<compile_context>
chip_gen: v7x
topology: tpu7x:2x2x1
jax: 0.10.0
libtpu: 0.0.40
codegen_flags: <defaults>
</compile_context>

<pallas_src>
import functools

import jax
import jax.numpy as jnp
from jax.experimental import pallas as pl
from jax.experimental.pallas import tpu as pltpu

D = 8
W = 256
INPUT_CH = 3
INPUT_CH_VIEWS = 3
OUTPUT_CH = 4
OUT_PAD = 128            # lane-dense padded width of the output matmul
SKIPS = (4,)
DEFAULT_TM = 1024        # max batch tile (rows per grid step); sweepable
MIN_TM = 256             # tile floor (keeps per-step MXU passes efficient)


def _round_up(x, m):
    return ((x + m - 1) // m) * m


def nerf_kernel(x_ref, w05_ref, wstk_ref, bstk_ref, wo_ref, bo_ref, out_ref):
    pts = x_ref[...]                                   # (TM, 3) f32

    # Layer 0 and the pts-part of the layer-5 skip share the three pts lane
    # broadcasts: one (3, 2W) f32 weight, three VPU broadcast-FMAs, then split.
    pre = (pts[:, 0:1] * w05_ref[0:1, :]
           + pts[:, 1:2] * w05_ref[1:2, :]
           + pts[:, 2:3] * w05_ref[2:3, :])            # (TM, 2W) f32
    pre0 = pre[:, :W]                                  # layer-0 pre-activation
    pts5 = pre[:, W:]                                  # pts contribution to layer 5

    def epilogue(acc_f32, layer):
        # bf16 bias-add + ReLU; bf16 result feeds the next MXU matmul directly.
        z = acc_f32.astype(jnp.bfloat16) + bstk_ref[layer:layer + 1, :]
        return jnp.maximum(z, 0.0)

    h = epilogue(pre0, 0)                              # (TM, W) bf16
    # layers 1..4: (256 -> 256) on the MXU (bf16 in, f32 accumulation)
    for layer in (1, 2, 3, 4):
        acc = jnp.dot(h, wstk_ref[layer - 1],
                      preferred_element_type=jnp.float32)
        h = epilogue(acc, layer)
    # layer 5 after skip: concat([pts, h4]) @ W5 == pts @ W5[:3] + h4 @ W5[3:]
    acc = pts5 + jnp.dot(h, wstk_ref[4], preferred_element_type=jnp.float32)
    h = epilogue(acc, 5)
    # layers 6, 7
    for layer in (6, 7):
        acc = jnp.dot(h, wstk_ref[layer - 1],
                      preferred_element_type=jnp.float32)
        h = epilogue(acc, layer)
    # output head: 128-wide padded MXU matmul; store only the 4 real channels.
    out = jnp.dot(h, wo_ref[...], preferred_element_type=jnp.float32) + bo_ref[...]
    out_ref[...] = out[:, :OUTPUT_CH].astype(out_ref.dtype)


def _full_spec(shape):
    # whole-array block, same block every grid step (parameter stays resident)
    zeros = (0,) * len(shape)
    return pl.BlockSpec(shape, lambda i: zeros)


@functools.partial(jax.jit, static_argnames=("tm",))
def nerf_forward(x, params, *, tm=DEFAULT_TM):
    """x: (N, input_ch + input_ch_views) f32.
    params: [w05, w_stack, b_stack, wo_pad, bo_pad] from prepare_kernel_params()."""
    N = x.shape[0]
    pts = x[:, :INPUT_CH].astype(jnp.float32)          # views unused (no viewdirs)

    # Shrink the tile so the grid has >= 2 steps whenever the batch allows it
    # (v7x: 2 TensorCores sharded over the "parallel" grid axis).
    tm_eff = min(tm, max(MIN_TM, _round_up((N + 1) // 2, MIN_TM)))
    n_pad = _round_up(N, tm_eff)
    if n_pad != N:
        pts = jnp.pad(pts, ((0, n_pad - N), (0, 0)))
    grid = (n_pad // tm_eff,)

    in_specs = [pl.BlockSpec((tm_eff, INPUT_CH), lambda i: (i, 0))]
    in_specs += [_full_spec(p.shape) for p in params]
    out_spec = pl.BlockSpec((tm_eff, OUTPUT_CH), lambda i: (i, 0))

    param_bytes = sum(int(p.size) * p.dtype.itemsize for p in params)
    # VMEM budget: double-buffered in/out blocks (lane-padded to 128), two
    # copies of the resident weights, generous room for live f32 activations.
    vmem_limit = min(60 * 1024 * 1024,
                     max(32 * 1024 * 1024,
                         4 * tm_eff * 128 * 4
                         + 2 * param_bytes
                         + 8 * tm_eff * W * 4
                         + (4 << 20)))

    flops = 2 * n_pad * W * (7 * W + OUT_PAD) + 2 * n_pad * INPUT_CH * 2 * W
    cost = pl.CostEstimate(
        flops=int(flops), transcendentals=0,
        bytes_accessed=int(n_pad * (INPUT_CH + OUTPUT_CH) * 4 + param_bytes))

    out = pl.pallas_call(
        nerf_kernel,
        out_shape=jax.ShapeDtypeStruct((n_pad, OUTPUT_CH), jnp.float32),
        grid_spec=pltpu.PrefetchScalarGridSpec(
            num_scalar_prefetch=0,
            grid=grid,
            in_specs=in_specs,
            out_specs=out_spec,
        ),
        compiler_params=pltpu.CompilerParams(
            dimension_semantics=("parallel",),
            vmem_limit_bytes=int(vmem_limit)),
        cost_estimate=cost,
    )(pts, *params)
    return out[:N]


def init_linear(key, fan_in, fan_out):
    # PyTorch nn.Linear default init: U(-1/sqrt(fan_in), 1/sqrt(fan_in))
    kw, kb = jax.random.split(key)
    bound = 1.0 / jnp.sqrt(jnp.float32(fan_in))
    w = jax.random.uniform(kw, (fan_in, fan_out), jnp.float32, -bound, bound)
    b = jax.random.uniform(kb, (1, fan_out), jnp.float32, -bound, bound)
    return w, b


def prepare_kernel_params(pts_ws, pts_bs, wo, bo):
    """Host-side prep: share the pts FMA weight between layer 0 and the skip
    layer, stack the 256x256 weights / biases, pad the output head."""
    skip_layer = SKIPS[0] + 1                          # layer that sees the concat
    w05 = jnp.concatenate(
        [pts_ws[0], pts_ws[skip_layer][:INPUT_CH, :]], axis=1
    ).astype(jnp.float32)                              # (3, 2W), VPU path, f32
    stack = []
    for i in range(1, D):
        wi = pts_ws[i]
        if (i - 1) in SKIPS:
            wi = wi[INPUT_CH:, :]                      # h-part of the skip layer
        stack.append(wi.astype(jnp.bfloat16))
    w_stack = jnp.stack(stack, axis=0)                 # (7, W, W) bf16, MXU path
    b_stack = jnp.stack([b.reshape(W) for b in pts_bs], axis=0
                        ).astype(jnp.bfloat16)         # (8, W) bf16 epilogue biases
    wo_pad = (jnp.zeros((W, OUT_PAD), jnp.float32)
              .at[:, :OUTPUT_CH].set(wo).astype(jnp.bfloat16))
    bo_pad = jnp.zeros((1, OUT_PAD), jnp.float32).at[:, :OUTPUT_CH].set(bo)
    return [w05, w_stack, b_stack, wo_pad, bo_pad]


def reference_forward(x, full_params):
    """Pure-JAX f32 reference matching the PyTorch forward exactly."""
    pts_ws, pts_bs, wo, bo = full_params
    input_pts = x[:, :INPUT_CH]
    h = input_pts
    for i in range(D):
        h = jnp.maximum(h @ pts_ws[i] + pts_bs[i], 0.0)
        if i in SKIPS:
            h = jnp.concatenate([input_pts, h], axis=-1)
    return h @ wo + bo


if __name__ == "__main__":
    key = jax.random.PRNGKey(0)
    keys = jax.random.split(key, D + 2)

    # Build parameters with PyTorch-equivalent shapes (f32 master copies).
    pts_ws, pts_bs = [], []
    for i in range(D):
        fan_in = INPUT_CH if i == 0 else (W + INPUT_CH if (i - 1) in SKIPS else W)
        w, b = init_linear(keys[i], fan_in, W)
        pts_ws.append(w)
        pts_bs.append(b)
    wo, bo = init_linear(keys[D], W, OUTPUT_CH)

    kparams = prepare_kernel_params(pts_ws, pts_bs, wo, bo)

    # Input: 1000 samples (not a multiple of the tile -> exercises padding and
    # the >=2-grid-step tile shrink), 6 features (3 pts + 3 views, views unused).
    N = 1000
    x = jax.random.normal(keys[D + 1], (N, INPUT_CH + INPUT_CH_VIEWS), jnp.float32)

    ref = reference_forward(x, (pts_ws, pts_bs, wo, bo))

    # Run at the default tile (grid auto-split into 2 steps) and a smaller tile.
    for tm in (DEFAULT_TM, 256):
        out = jax.block_until_ready(nerf_forward(x, kparams, tm=tm))
        assert out.shape == (N, OUTPUT_CH)
        err = float(jnp.max(jnp.abs(out - ref)))
        # bf16 matmuls + bf16 epilogues vs f32 reference -> loose tolerance
        assert jnp.allclose(out, ref, atol=5e-2, rtol=5e-2), (
            f"mismatch vs JAX reference at tm={tm}, max abs err {err}")

    print("KERNEL_OK")
</pallas_src>

<mosaic_0001>
module attributes {stable_mosaic.version = 11 : i64} {
  func.func @nerf_kernel(%arg0: i32, %arg1: memref<512x3xf32, #tpu.memory_space<vmem>>, %arg2: memref<3x512xf32, #tpu.memory_space<vmem>>, %arg3: memref<7x256x256xbf16, #tpu.memory_space<vmem>>, %arg4: memref<8x256xbf16, #tpu.memory_space<vmem>>, %arg5: memref<256x128xbf16, #tpu.memory_space<vmem>>, %arg6: memref<1x128xf32, #tpu.memory_space<vmem>>, %arg7: memref<512x4xf32, #tpu.memory_space<vmem>>) attributes {dimension_semantics = [#tpu.dimension_semantics<parallel>], iteration_bounds = array<i64: 2>, scalar_prefetch = 0 : i64, scratch_operands = 0 : i64, tpu.core_type = #tpu.core_type<tc>, window_params = [{transform_indices = @transform_0, window_bounds = array<i64: 512, 3>}, {pipeline_mode = #tpu.pipeline_mode<synchronous>, transform_indices = @transform_1, window_bounds = array<i64: 3, 512>}, {pipeline_mode = #tpu.pipeline_mode<synchronous>, transform_indices = @transform_2, window_bounds = array<i64: 7, 256, 256>}, {pipeline_mode = #tpu.pipeline_mode<synchronous>, transform_indices = @transform_3, window_bounds = array<i64: 8, 256>}, {pipeline_mode = #tpu.pipeline_mode<synchronous>, transform_indices = @transform_4, window_bounds = array<i64: 256, 128>}, {pipeline_mode = #tpu.pipeline_mode<synchronous>, transform_indices = @transform_5, window_bounds = array<i64: 1, 128>}, {transform_indices = @transform_6, window_bounds = array<i64: 512, 4>}]} {
    %c0 = arith.constant 0 : index
    %c0_0 = arith.constant 0 : index
    %0 = vector.load %arg1[%c0, %c0_0] : memref<512x3xf32, #tpu.memory_space<vmem>>, vector<512x3xf32>
    %1 = vector.extract_strided_slice %0 {offsets = [0, 0], sizes = [512, 1], strides = [1, 1]} : vector<512x3xf32> to vector<512x1xf32>
    %c0_1 = arith.constant 0 : index
    %c0_2 = arith.constant 0 : index
    %2 = vector.load %arg2[%c0_1, %c0_2] : memref<3x512xf32, #tpu.memory_space<vmem>>, vector<1x512xf32>
    %3 = vector.broadcast %1 : vector<512x1xf32> to vector<512x512xf32>
    %4 = vector.broadcast %2 : vector<1x512xf32> to vector<512x512xf32>
    %5 = arith.mulf %3, %4 : vector<512x512xf32>
    %6 = vector.extract_strided_slice %0 {offsets = [0, 1], sizes = [512, 1], strides = [1, 1]} : vector<512x3xf32> to vector<512x1xf32>
    %c1 = arith.constant 1 : index
    %c0_3 = arith.constant 0 : index
    %7 = vector.load %arg2[%c1, %c0_3] : memref<3x512xf32, #tpu.memory_space<vmem>>, vector<1x512xf32>
    %8 = vector.broadcast %6 : vector<512x1xf32> to vector<512x512xf32>
    %9 = vector.broadcast %7 : vector<1x512xf32> to vector<512x512xf32>
    %10 = arith.mulf %8, %9 : vector<512x512xf32>
    %11 = arith.addf %5, %10 : vector<512x512xf32>
    %12 = vector.extract_strided_slice %0 {offsets = [0, 2], sizes = [512, 1], strides = [1, 1]} : vector<512x3xf32> to vector<512x1xf32>
    %c2 = arith.constant 2 : index
    %c0_4 = arith.constant 0 : index
    %13 = vector.load %arg2[%c2, %c0_4] : memref<3x512xf32, #tpu.memory_space<vmem>>, vector<1x512xf32>
    %14 = vector.broadcast %12 : vector<512x1xf32> to vector<512x512xf32>
    %15 = vector.broadcast %13 : vector<1x512xf32> to vector<512x512xf32>
    %16 = arith.mulf %14, %15 : vector<512x512xf32>
    %17 = arith.addf %11, %16 : vector<512x512xf32>
    %18 = vector.extract_strided_slice %17 {offsets = [0, 0], sizes = [512, 256], strides = [1, 1]} : vector<512x512xf32> to vector<512x256xf32>
    %19 = vector.extract_strided_slice %17 {offsets = [0, 256], sizes = [512, 256], strides = [1, 1]} : vector<512x512xf32> to vector<512x256xf32>
    %20 = arith.truncf %18 : vector<512x256xf32> to vector<512x256xbf16>
    %c0_5 = arith.constant 0 : index
    %c0_6 = arith.constant 0 : index
    %21 = vector.load %arg4[%c0_5, %c0_6] : memref<8x256xbf16, #tpu.memory_space<vmem>>, vector<1x256xbf16>
    %22 = vector.broadcast %21 : vector<1x256xbf16> to vector<512x256xbf16>
    %23 = arith.addf %20, %22 : vector<512x256xbf16>
    %cst = arith.constant 0.000000e+00 : bf16
    %24 = vector.broadcast %cst : bf16 to vector<512x256xbf16>
    %25 = arith.maximumf %23, %24 : vector<512x256xbf16>
    %c0_7 = arith.constant 0 : index
    %c0_8 = arith.constant 0 : index
    %c0_9 = arith.constant 0 : index
    %26 = vector.load %arg3[%c0_7, %c0_8, %c0_9] : memref<7x256x256xbf16, #tpu.memory_space<vmem>>, vector<1x256x256xbf16>
    %27 = vector.shape_cast %26 : vector<1x256x256xbf16> to vector<256x256xbf16>
    %cst_10 = arith.constant dense<0.000000e+00> : vector<512x256xf32>
    %28 = tpu.matmul %25, %27, %cst_10 {dimension_numbers = #tpu.dot_dimension_numbers<[1], [0], [0], [1], [0, 0, 1, 1], [], []>} : vector<512x256xbf16>, vector<256x256xbf16>, vector<512x256xf32> -> vector<512x256xf32>
    %29 = arith.truncf %28 : vector<512x256xf32> to vector<512x256xbf16>
    %c1_11 = arith.constant 1 : index
    %c0_12 = arith.constant 0 : index
    %30 = vector.load %arg4[%c1_11, %c0_12] : memref<8x256xbf16, #tpu.memory_space<vmem>>, vector<1x256xbf16>
    %31 = vector.broadcast %30 : vector<1x256xbf16> to vector<512x256xbf16>
    %32 = arith.addf %29, %31 : vector<512x256xbf16>
    %cst_13 = arith.constant 0.000000e+00 : bf16
    %33 = vector.broadcast %cst_13 : bf16 to vector<512x256xbf16>
    %34 = arith.maximumf %32, %33 : vector<512x256xbf16>
    %c1_14 = arith.constant 1 : index
    %c0_15 = arith.constant 0 : index
    %c0_16 = arith.constant 0 : index
    %35 = vector.load %arg3[%c1_14, %c0_15, %c0_16] : memref<7x256x256xbf16, #tpu.memory_space<vmem>>, vector<1x256x256xbf16>
    %36 = vector.shape_cast %35 : vector<1x256x256xbf16> to vector<256x256xbf16>
    %cst_17 = arith.constant dense<0.000000e+00> : vector<512x256xf32>
    %37 = tpu.matmul %34, %36, %cst_17 {dimension_numbers = #tpu.dot_dimension_numbers<[1], [0], [0], [1], [0, 0, 1, 1], [], []>} : vector<512x256xbf16>, vector<256x256xbf16>, vector<512x256xf32> -> vector<512x256xf32>
    %38 = arith.truncf %37 : vector<512x256xf32> to vector<512x256xbf16>
    %c2_18 = arith.constant 2 : index
    %c0_19 = arith.constant 0 : index
    %39 = vector.load %arg4[%c2_18, %c0_19] : memref<8x256xbf16, #tpu.memory_space<vmem>>, vector<1x256xbf16>
    %40 = vector.broadcast %39 : vector<1x256xbf16> to vector<512x256xbf16>
    %41 = arith.addf %38, %40 : vector<512x256xbf16>
    %cst_20 = arith.constant 0.000000e+00 : bf16
    %42 = vector.broadcast %cst_20 : bf16 to vector<512x256xbf16>
    %43 = arith.maximumf %41, %42 : vector<512x256xbf16>
    %c2_21 = arith.constant 2 : index
    %c0_22 = arith.constant 0 : index
    %c0_23 = arith.constant 0 : index
    %44 = vector.load %arg3[%c2_21, %c0_22, %c0_23] : memref<7x256x256xbf16, #tpu.memory_space<vmem>>, vector<1x256x256xbf16>
    %45 = vector.shape_cast %44 : vector<1x256x256xbf16> to vector<256x256xbf16>
    %cst_24 = arith.constant dense<0.000000e+00> : vector<512x256xf32>
    %46 = tpu.matmul %43, %45, %cst_24 {dimension_numbers = #tpu.dot_dimension_numbers<[1], [0], [0], [1], [0, 0, 1, 1], [], []>} : vector<512x256xbf16>, vector<256x256xbf16>, vector<512x256xf32> -> vector<512x256xf32>
    %47 = arith.truncf %46 : vector<512x256xf32> to vector<512x256xbf16>
    %c3 = arith.constant 3 : index
    %c0_25 = arith.constant 0 : index
    %48 = vector.load %arg4[%c3, %c0_25] : memref<8x256xbf16, #tpu.memory_space<vmem>>, vector<1x256xbf16>
    %49 = vector.broadcast %48 : vector<1x256xbf16> to vector<512x256xbf16>
    %50 = arith.addf %47, %49 : vector<512x256xbf16>
    %cst_26 = arith.constant 0.000000e+00 : bf16
    %51 = vector.broadcast %cst_26 : bf16 to vector<512x256xbf16>
    %52 = arith.maximumf %50, %51 : vector<512x256xbf16>
    %c3_27 = arith.constant 3 : index
    %c0_28 = arith.constant 0 : index
    %c0_29 = arith.constant 0 : index
    %53 = vector.load %arg3[%c3_27, %c0_28, %c0_29] : memref<7x256x256xbf16, #tpu.memory_space<vmem>>, vector<1x256x256xbf16>
    %54 = vector.shape_cast %53 : vector<1x256x256xbf16> to vector<256x256xbf16>
    %cst_30 = arith.constant dense<0.000000e+00> : vector<512x256xf32>
    %55 = tpu.matmul %52, %54, %cst_30 {dimension_numbers = #tpu.dot_dimension_numbers<[1], [0], [0], [1], [0, 0, 1, 1], [], []>} : vector<512x256xbf16>, vector<256x256xbf16>, vector<512x256xf32> -> vector<512x256xf32>
    %56 = arith.truncf %55 : vector<512x256xf32> to vector<512x256xbf16>
    %c4 = arith.constant 4 : index
    %c0_31 = arith.constant 0 : index
    %57 = vector.load %arg4[%c4, %c0_31] : memref<8x256xbf16, #tpu.memory_space<vmem>>, vector<1x256xbf16>
    %58 = vector.broadcast %57 : vector<1x256xbf16> to vector<512x256xbf16>
    %59 = arith.addf %56, %58 : vector<512x256xbf16>
    %cst_32 = arith.constant 0.000000e+00 : bf16
    %60 = vector.broadcast %cst_32 : bf16 to vector<512x256xbf16>
    %61 = arith.maximumf %59, %60 : vector<512x256xbf16>
    %c4_33 = arith.constant 4 : index
    %c0_34 = arith.constant 0 : index
    %c0_35 = arith.constant 0 : index
    %62 = vector.load %arg3[%c4_33, %c0_34, %c0_35] : memref<7x256x256xbf16, #tpu.memory_space<vmem>>, vector<1x256x256xbf16>
    %63 = vector.shape_cast %62 : vector<1x256x256xbf16> to vector<256x256xbf16>
    %cst_36 = arith.constant dense<0.000000e+00> : vector<512x256xf32>
    %64 = tpu.matmul %61, %63, %cst_36 {dimension_numbers = #tpu.dot_dimension_numbers<[1], [0], [0], [1], [0, 0, 1, 1], [], []>} : vector<512x256xbf16>, vector<256x256xbf16>, vector<512x256xf32> -> vector<512x256xf32>
    %65 = arith.addf %19, %64 : vector<512x256xf32>
    %66 = arith.truncf %65 : vector<512x256xf32> to vector<512x256xbf16>
    %c5 = arith.constant 5 : index
    %c0_37 = arith.constant 0 : index
    %67 = vector.load %arg4[%c5, %c0_37] : memref<8x256xbf16, #tpu.memory_space<vmem>>, vector<1x256xbf16>
    %68 = vector.broadcast %67 : vector<1x256xbf16> to vector<512x256xbf16>
    %69 = arith.addf %66, %68 : vector<512x256xbf16>
    %cst_38 = arith.constant 0.000000e+00 : bf16
    %70 = vector.broadcast %cst_38 : bf16 to vector<512x256xbf16>
    %71 = arith.maximumf %69, %70 : vector<512x256xbf16>
    %c5_39 = arith.constant 5 : index
    %c0_40 = arith.constant 0 : index
    %c0_41 = arith.constant 0 : index
    %72 = vector.load %arg3[%c5_39, %c0_40, %c0_41] : memref<7x256x256xbf16, #tpu.memory_space<vmem>>, vector<1x256x256xbf16>
    %73 = vector.shape_cast %72 : vector<1x256x256xbf16> to vector<256x256xbf16>
    %cst_42 = arith.constant dense<0.000000e+00> : vector<512x256xf32>
    %74 = tpu.matmul %71, %73, %cst_42 {dimension_numbers = #tpu.dot_dimension_numbers<[1], [0], [0], [1], [0, 0, 1, 1], [], []>} : vector<512x256xbf16>, vector<256x256xbf16>, vector<512x256xf32> -> vector<512x256xf32>
    %75 = arith.truncf %74 : vector<512x256xf32> to vector<512x256xbf16>
    %c6 = arith.constant 6 : index
    %c0_43 = arith.constant 0 : index
    %76 = vector.load %arg4[%c6, %c0_43] : memref<8x256xbf16, #tpu.memory_space<vmem>>, vector<1x256xbf16>
    %77 = vector.broadcast %76 : vector<1x256xbf16> to vector<512x256xbf16>
    %78 = arith.addf %75, %77 : vector<512x256xbf16>
    %cst_44 = arith.constant 0.000000e+00 : bf16
    %79 = vector.broadcast %cst_44 : bf16 to vector<512x256xbf16>
    %80 = arith.maximumf %78, %79 : vector<512x256xbf16>
    %c6_45 = arith.constant 6 : index
    %c0_46 = arith.constant 0 : index
    %c0_47 = arith.constant 0 : index
    %81 = vector.load %arg3[%c6_45, %c0_46, %c0_47] : memref<7x256x256xbf16, #tpu.memory_space<vmem>>, vector<1x256x256xbf16>
    %82 = vector.shape_cast %81 : vector<1x256x256xbf16> to vector<256x256xbf16>
    %cst_48 = arith.constant dense<0.000000e+00> : vector<512x256xf32>
    %83 = tpu.matmul %80, %82, %cst_48 {dimension_numbers = #tpu.dot_dimension_numbers<[1], [0], [0], [1], [0, 0, 1, 1], [], []>} : vector<512x256xbf16>, vector<256x256xbf16>, vector<512x256xf32> -> vector<512x256xf32>
    %84 = arith.truncf %83 : vector<512x256xf32> to vector<512x256xbf16>
    %c7 = arith.constant 7 : index
    %c0_49 = arith.constant 0 : index
    %85 = vector.load %arg4[%c7, %c0_49] : memref<8x256xbf16, #tpu.memory_space<vmem>>, vector<1x256xbf16>
    %86 = vector.broadcast %85 : vector<1x256xbf16> to vector<512x256xbf16>
    %87 = arith.addf %84, %86 : vector<512x256xbf16>
    %cst_50 = arith.constant 0.000000e+00 : bf16
    %88 = vector.broadcast %cst_50 : bf16 to vector<512x256xbf16>
    %89 = arith.maximumf %87, %88 : vector<512x256xbf16>
    %c0_51 = arith.constant 0 : index
    %c0_52 = arith.constant 0 : index
    %90 = vector.load %arg5[%c0_51, %c0_52] : memref<256x128xbf16, #tpu.memory_space<vmem>>, vector<256x128xbf16>
    %cst_53 = arith.constant dense<0.000000e+00> : vector<512x128xf32>
    %91 = tpu.matmul %89, %90, %cst_53 {dimension_numbers = #tpu.dot_dimension_numbers<[1], [0], [0], [1], [0, 0, 1, 1], [], []>} : vector<512x256xbf16>, vector<256x128xbf16>, vector<512x128xf32> -> vector<512x128xf32>
    %c0_54 = arith.constant 0 : index
    %c0_55 = arith.constant 0 : index
    %92 = vector.load %arg6[%c0_54, %c0_55] : memref<1x128xf32, #tpu.memory_space<vmem>>, vector<1x128xf32>
    %93 = vector.broadcast %92 : vector<1x128xf32> to vector<512x128xf32>
    %94 = arith.addf %91, %93 : vector<512x128xf32>
    %95 = vector.extract_strided_slice %94 {offsets = [0, 0], sizes = [512, 4], strides = [1, 1]} : vector<512x128xf32> to vector<512x4xf32>
    %c0_56 = arith.constant 0 : index
    %c0_57 = arith.constant 0 : index
    %96 = vector.load %arg7[%c0_56, %c0_57] : memref<512x4xf32, #tpu.memory_space<vmem>>, vector<512x4xf32>
    tpu.vector_store %arg7[%c0_56, %c0_57], %95 {strides = array<i32>} : memref<512x4xf32, #tpu.memory_space<vmem>>, vector<512x4xf32>,
    return
  }
  func.func @transform_0(%arg0: i32) -> (i32, i32) {
    %c0_i32 = arith.constant 0 : i32
    %c0_i32_0 = arith.constant 0 : i32
    return %arg0, %c0_i32 : i32, i32
  }
  func.func @transform_1(%arg0: i32) -> (i32, i32) {
    %c0_i32 = arith.constant 0 : i32
    %c0_i32_0 = arith.constant 0 : i32
    %c0_i32_1 = arith.constant 0 : i32
    return %c0_i32, %c0_i32_0 : i32, i32
  }
  func.func @transform_2(%arg0: i32) -> (i32, i32, i32) {
    %c0_i32 = arith.constant 0 : i32
    %c0_i32_0 = arith.constant 0 : i32
    %c0_i32_1 = arith.constant 0 : i32
    %c0_i32_2 = arith.constant 0 : i32
    return %c0_i32, %c0_i32_0, %c0_i32_1 : i32, i32, i32
  }
  func.func @transform_3(%arg0: i32) -> (i32, i32) {
    %c0_i32 = arith.constant 0 : i32
    %c0_i32_0 = arith.constant 0 : i32
    %c0_i32_1 = arith.constant 0 : i32
    return %c0_i32, %c0_i32_0 : i32, i32
  }
  func.func @transform_4(%arg0: i32) -> (i32, i32) {
    %c0_i32 = arith.constant 0 : i32
    %c0_i32_0 = arith.constant 0 : i32
    %c0_i32_1 = arith.constant 0 : i32
    return %c0_i32, %c0_i32_0 : i32, i32
  }
  func.func @transform_5(%arg0: i32) -> (i32, i32) {
    %c0_i32 = arith.constant 0 : i32
    %c0_i32_0 = arith.constant 0 : i32
    %c0_i32_1 = arith.constant 0 : i32
    return %c0_i32, %c0_i32_0 : i32, i32
  }
  func.func @transform_6(%arg0: i32) -> (i32, i32) {
    %c0_i32 = arith.constant 0 : i32
    %c0_i32_0 = arith.constant 0 : i32
    return %arg0, %c0_i32 : i32, i32
  }
}

</mosaic_0001>

<llo_original>
// kernel: nerf_forward.1
$region0: #{nerf_forward.1}
  #allocation0 [shape = 'u32[]', space=smem, size = 0x4, offset = 0x4, fixed_abs, tag = 'smem constant byte address 0x4 - core index']
  #allocation1 [shape = 'u32[144,128]{1,0:T(1,128)}', space=vmem, size = 0x12000, scoped, tag = 'internal scratch']
  %s0 = inlined_call_operand.vmem [shape: f32[1024,3], index: 0, kind: input, shape index: {}]
  %s1 = inlined_call_operand.vmem [shape: f32[3,512], index: 1, kind: input, shape index: {}]
  %s2 = inlined_call_operand.vmem [shape: bf16[7,256,256], index: 2, kind: input, shape index: {}]
  %s3 = inlined_call_operand.vmem [shape: bf16[8,256], index: 3, kind: input, shape index: {}]
  %s4 = inlined_call_operand.vmem [shape: bf16[256,128], index: 4, kind: input, shape index: {}]
  %s5 = inlined_call_operand.vmem [shape: f32[1,128], index: 5, kind: input, shape index: {}]
  %s6 = inlined_call_operand.vmem [shape: f32[1024,4], index: 6, kind: output, shape index: {}]
  %s7 = sld [smem:[#allocation0]]
  $region57: #{nerf_forward.1} parent=0
    _
  %s9 = ssub.s32 1, %s7
  %s10 = scalar_select 0, %s9, %s7
  loop: start=0, step=1, limit=4
  $region2: #{nerf_forward.1} parent=0 // loop_pre_header
    _
  $region3: #{nerf_forward.1} parent=0 // loop_header
    %s12 = sphi 0, %s16
    %p13 = scmp.ge.s32.totalorder %s12, 4
    %s22 = sphi 0, %s24
    %s25 = sphi 0, %s22
    %s26 = sphi 0, %s25
    %s42 = sphi 0, %s26
    %s46 = sphi 0, %s46
    %s48 = sphi 0, %s46
    %s49 = sphi 0, %s48
    %s63 = sphi 0, %s49
    %s67 = sphi 0, %s67
    %s69 = sphi 0, %s67
    %s70 = sphi 0, %s69
    %s84 = sphi 0, %s70
    %s88 = sphi 0, %s88
    %s90 = sphi 0, %s88
    %s91 = sphi 0, %s90
    %s105 = sphi 0, %s91
    %s109 = sphi 0, %s109
    %s111 = sphi 0, %s109
    %s112 = sphi 0, %s111
    %s126 = sphi 0, %s112
    %s130 = sphi 0, %s130
    %s132 = sphi 0, %s130
    %s133 = sphi 0, %s132
    %s147 = sphi 0, %s133
    %s153 = sphi 0, %s155
    %s156 = sphi 0, %s153
    %s157 = sphi 0, %s156
    %s173 = sphi 0, %s157
  $region4: #{nerf_forward.1} parent=0 // loop_header_branch
    %15 = sbr.rel (%p13) target = $region8
  $region5: #{nerf_forward.1} parent=0 // loop_body
    %s17 = ssub.s32 %s12, 1
    %s18 = ssub.s32 %s12, 2
    %s19 = sadd.s32 %s12, 1
    %s20 = ssub.s32 %s12, %s19
    %p21 = scmp.eq.s32.totalorder %s20, 0
    %s23 = sadd.s32 %s22, 1
    %s24 = scalar_select %p21, %s22, %s23
    %p27 = pneg %p21
    %p28 = scmp.eq.s32.totalorder %s12, 1
    %p29 = por %p27, %p28
    %p30 = scmp.ne.s32.totalorder %s22, %s25
    %p31 = scmp.eq.s32.totalorder %s12, 0
    %p32 = por %p30, %p31
    %p33 = scmp.ne.s32.totalorder %s22, %s25
    %p34 = scmp.eq.s32.totalorder %s17, 1
    %p35 = por %p33, %p34
    %p36 = scmp.ne.s32.totalorder %s25, %s26
    %p37 = scmp.eq.s32.totalorder %s17, 0
    %p38 = por %p36, %p37
    %p39 = scmp.ne.s32.totalorder %s25, %s26
    %p40 = scmp.eq.s32.totalorder %s18, 1
    %p41 = por %p39, %p40
    %p43 = scmp.ne.s32.totalorder %s26, %s42
    %p44 = scmp.eq.s32.totalorder %s18, 0
    %p45 = por %p43, %p44
    %s47 = sadd.s32 %s46, 1
    %p50 = scmp.eq.s32.totalorder %s12, 1
    %p51 = scmp.ne.s32.totalorder %s46, %s48
    %p52 = scmp.eq.s32.totalorder %s12, 0
    %p53 = por %p51, %p52
    %p54 = scmp.ne.s32.totalorder %s46, %s48
    %p55 = scmp.eq.s32.totalorder %s17, 1
    %p56 = por %p54, %p55
    %p57 = scmp.ne.s32.totalorder %s48, %s49
    %p58 = scmp.eq.s32.totalorder %s17, 0
    %p59 = por %p57, %p58
    %p60 = scmp.ne.s32.totalorder %s48, %s49
    %p61 = scmp.eq.s32.totalorder %s18, 1
    %p62 = por %p60, %p61
    %p64 = scmp.ne.s32.totalorder %s49, %s63
    %p65 = scmp.eq.s32.totalorder %s18, 0
    %p66 = por %p64, %p65
    %s68 = sadd.s32 %s67, 1
    %p71 = scmp.eq.s32.totalorder %s12, 1
    %p72 = scmp.ne.s32.totalorder %s67, %s69
    %p73 = scmp.eq.s32.totalorder %s12, 0
    %p74 = por %p72, %p73
    %p75 = scmp.ne.s32.totalorder %s67, %s69
    %p76 = scmp.eq.s32.totalorder %s17, 1
    %p77 = por %p75, %p76
    %p78 = scmp.ne.s32.totalorder %s69, %s70
    %p79 = scmp.eq.s32.totalorder %s17, 0
    %p80 = por %p78, %p79
    %p81 = scmp.ne.s32.totalorder %s69, %s70
    %p82 = scmp.eq.s32.totalorder %s18, 1
    %p83 = por %p81, %p82
    %p85 = scmp.ne.s32.totalorder %s70, %s84
    %p86 = scmp.eq.s32.totalorder %s18, 0
    %p87 = por %p85, %p86
    %s89 = sadd.s32 %s88, 1
    %p92 = scmp.eq.s32.totalorder %s12, 1
    %p93 = scmp.ne.s32.totalorder %s88, %s90
    %p94 = scmp.eq.s32.totalorder %s12, 0
    %p95 = por %p93, %p94
    %p96 = scmp.ne.s32.totalorder %s88, %s90
    %p97 = scmp.eq.s32.totalorder %s17, 1
    %p98 = por %p96, %p97
    %p99 = scmp.ne.s32.totalorder %s90, %s91
    %p100 = scmp.eq.s32.totalorder %s17, 0
    %p101 = por %p99, %p100
    %p102 = scmp.ne.s32.totalorder %s90, %s91
    %p103 = scmp.eq.s32.totalorder %s18, 1
    %p104 = por %p102, %p103
    %p106 = scmp.ne.s32.totalorder %s91, %s105
    %p107 = scmp.eq.s32.totalorder %s18, 0
    %p108 = por %p106, %p107
    %s110 = sadd.s32 %s109, 1
    %p113 = scmp.eq.s32.totalorder %s12, 1
    %p114 = scmp.ne.s32.totalorder %s109, %s111
    %p115 = scmp.eq.s32.totalorder %s12, 0
    %p116 = por %p114, %p115
    %p117 = scmp.ne.s32.totalorder %s109, %s111
    %p118 = scmp.eq.s32.totalorder %s17, 1
    %p119 = por %p117, %p118
    %p120 = scmp.ne.s32.totalorder %s111, %s112
    %p121 = scmp.eq.s32.totalorder %s17, 0
    %p122 = por %p120, %p121
    %p123 = scmp.ne.s32.totalorder %s111, %s112
    %p124 = scmp.eq.s32.totalorder %s18, 1
    %p125 = por %p123, %p124
    %p127 = scmp.ne.s32.totalorder %s112, %s126
    %p128 = scmp.eq.s32.totalorder %s18, 0
    %p129 = por %p127, %p128
    %s131 = sadd.s32 %s130, 1
    %p134 = scmp.eq.s32.totalorder %s12, 1
    %p135 = scmp.ne.s32.totalorder %s130, %s132
    %p136 = scmp.eq.s32.totalorder %s12, 0
    %p137 = por %p135, %p136
    %p138 = scmp.ne.s32.totalorder %s130, %s132
    %p139 = scmp.eq.s32.totalorder %s17, 1
    %p140 = por %p138, %p139
    %p141 = scmp.ne.s32.totalorder %s132, %s133
    %p142 = scmp.eq.s32.totalorder %s17, 0
    %p143 = por %p141, %p142
    %p144 = scmp.ne.s32.totalorder %s132, %s133
    %p145 = scmp.eq.s32.totalorder %s18, 1
    %p146 = por %p144, %p145
    %p148 = scmp.ne.s32.totalorder %s133, %s147
    %p149 = scmp.eq.s32.totalorder %s18, 0
    %p150 = por %p148, %p149
    %s151 = ssub.s32 %s12, %s19
    %p152 = scmp.eq.s32.totalorder %s151, 0
    %s154 = sadd.s32 %s153, 1
    %s155 = scalar_select %p152, %s153, %s154
    %p158 = pneg %p152
    %p159 = scmp.eq.s32.totalorder %s12, 1
    %p160 = por %p158, %p159
    %p161 = scmp.ne.s32.totalorder %s153, %s156
    %p162 = scmp.eq.s32.totalorder %s12, 0
    %p163 = por %p161, %p162
    %p164 = scmp.ne.s32.totalorder %s153, %s156
    %p165 = scmp.eq.s32.totalorder %s17, 1
    %p166 = por %p164, %p165
    %p167 = scmp.ne.s32.totalorder %s156, %s157
    %p168 = scmp.eq.s32.totalorder %s17, 0
    %p169 = por %p167, %p168
    %p170 = scmp.ne.s32.totalorder %s156, %s157
    %p171 = scmp.eq.s32.totalorder %s18, 1
    %p172 = por %p170, %p171
    %p174 = scmp.ne.s32.totalorder %s157, %s173
    %p175 = scmp.eq.s32.totalorder %s18, 0
    %p176 = por %p174, %p175
    %p177 = scmp.le.s32.totalorder 1, %s12
    %p178 = scmp.lt.s32.totalorder %s12, 3
    %p179 = pnand %p177, %p178
    %p180 = pneg %p179
    // Predicated region
    $region9: #{nerf_forward.1} parent=5 // pred_check
      _
    $region10: #{nerf_forward.1} parent=5 // pred_check_branch
      %182 = sbr.rel (%p179) target = $region12
    $region11: #{nerf_forward.1} parent=5 // pred_region
      %s183 = ssub.s32 %s12, 1
      // Predicated region
      $region13: #{nerf_forward.1} parent=11 // pred_check
        %p184 = pneg %p59
      $region14: #{nerf_forward.1} parent=11 // pred_check_branch
        %186 = sbr.rel (%p184) target = $region16
      $region15: #{nerf_forward.1} parent=11 // pred_region
        _
      $region16: #{nerf_forward.1} parent=11 // pred_fallthru
        _
      // Predicated region
      $region17: #{nerf_forward.1} parent=11 // pred_check
        %p187 = pneg %p80
      $region18: #{nerf_forward.1} parent=11 // pred_check_branch
        %189 = sbr.rel (%p187) target = $region20
      $region19: #{nerf_forward.1} parent=11 // pred_region
        _
      $region20: #{nerf_forward.1} parent=11 // pred_fallthru
        _
      // Predicated region
      $region21: #{nerf_forward.1} parent=11 // pred_check
        %p190 = pneg %p101
      $region22: #{nerf_forward.1} parent=11 // pred_check_branch
        %192 = sbr.rel (%p190) target = $region24
      $region23: #{nerf_forward.1} parent=11 // pred_region
        _
      $region24: #{nerf_forward.1} parent=11 // pred_fallthru
        _
      // Predicated region
      $region25: #{nerf_forward.1} parent=11 // pred_check
        %p193 = pneg %p122
      $region26: #{nerf_forward.1} parent=11 // pred_check_branch
        %195 = sbr.rel (%p193) target = $region28
      $region27: #{nerf_forward.1} parent=11 // pred_region
        _
      $region28: #{nerf_forward.1} parent=11 // pred_fallthru
        _
      // Predicated region
      $region29: #{nerf_forward.1} parent=11 // pred_check
        %p196 = pneg %p143
      $region30: #{nerf_forward.1} parent=11 // pred_check_branch
        %198 = sbr.rel (%p196) target = $region32
      $region31: #{nerf_forward.1} parent=11 // pred_region
        _
      $region32: #{nerf_forward.1} parent=11 // pred_fallthru
        _
    $region12: #{nerf_forward.1} parent=5 // pred_fallthru
      _
    %p199 = scmp.lt.s32.totalorder %s12, 2
    // Predicated region
    $region33: #{nerf_forward.1} parent=5 // pred_check
      %p200 = pneg %p199
    $region34: #{nerf_forward.1} parent=5 // pred_check_branch
      %202 = sbr.rel (%p200) target = $region36
    $region35: #{nerf_forward.1} parent=5 // pred_region
      // Predicated region
      $region37: #{nerf_forward.1} parent=35 // pred_check
        %p203 = pneg %p32
      $region38: #{nerf_forward.1} parent=35 // pred_check_branch
        %205 = sbr.rel (%p203) target = $region40
      $region39: #{nerf_forward.1} parent=35 // pred_region
        %s206 = smul.u32 64, %s12
        %p207 = scmp.lt.s32.totalorder %s206, 127
        %s208 = scalar_select %p207, %s206, 127
        %s209 = smul.addr %s208, 8
        %s210 = scalar_lea.vmem %s0, %s209
        %s211 = smul.u32 64, %s12
      $region40: #{nerf_forward.1} parent=35 // pred_fallthru
        _
    $region36: #{nerf_forward.1} parent=5 // pred_fallthru
      _
    %p212 = scmp.le.s32.totalorder 1, %s12
    %p213 = scmp.lt.s32.totalorder %s12, 3
    %p214 = pnand %p212, %p213
    %p215 = pneg %p214
    // Predicated region
    $region41: #{nerf_forward.1} parent=5 // pred_check
      _
    $region42: #{nerf_forward.1} parent=5 // pred_check_branch
      %217 = sbr.rel (%p214) target = $region44
    $region43: #{nerf_forward.1} parent=5 // pred_region
      %s218 = ssub.s32 %s12, 1
      %s219 = smul.u32 64, %s17
      %p220 = scmp.lt.s32.totalorder %s219, 127
      %s221 = scalar_select %p220, %s219, 127
      %s222 = smul.addr %s221, 8
      %s223 = scalar_lea.vmem %s0, %s222
      %p224 = pneg %p38
      %p225 = pneg %p35
      %p226 = pneg %p59
      %p227 = pneg %p56
      %p228 = pneg %p80
      %p229 = pneg %p77
      %p230 = pneg %p101
      %p231 = pneg %p98
      %p232 = pneg %p122
      %p233 = pneg %p119
      %p234 = pneg %p143
      %p235 = pneg %p140
      %p236 = pneg %p169
      %p237 = pneg %p166
      %s238 = smul.u32 64, %s17
      %p239 = scmp.lt.s32.totalorder %s238, 127
      %s240 = scalar_select %p239, %s238, 127
      %s241 = smul.addr %s240, 8
      %s242 = scalar_lea.vmem %s6, %s241
      %s243 = smul.u32 64, %s17
      %p244 = scmp.lt.s32.totalorder %s243, 127
      %s245 = scalar_select %p244, %s243, 127
      %s246 = smul.addr %s245, 8
      %s247 = scalar_lea.vmem %s0, %s246
      %s248 = smul.u32 64, %s17
      %s249 = smul.u32 64, %s17
      %p250 = scmp.lt.s32.totalorder %s249, 127
      %s251 = scalar_select %p250, %s249, 127
      %s252 = smul.addr %s251, 8
      %s253 = scalar_lea.vmem %s6, %s252
      %s254 = smul.u32 64, %s17
      %v256 = vld [vmem:[%s247] sm:$0xff]
      %v257 = vld [vmem:[%s247 + $0x8] sm:$0xff]
      %v258 = vld [vmem:[%s247 + $0x10] sm:$0xff]
      %v259 = vld [vmem:[%s247 + $0x18] sm:$0xff]
      %v260 = vld [vmem:[%s247 + $0x20] sm:$0xff]
      %v261 = vld [vmem:[%s247 + $0x28] sm:$0xff]
      %v262 = vld [vmem:[%s247 + $0x30] sm:$0xff]
      %v263 = vld [vmem:[%s247 + $0x38] sm:$0xff]
      %v264 = vld [vmem:[%s247 + $0x40] sm:$0xff]
      %v265 = vld [vmem:[%s247 + $0x48] sm:$0xff]
      %v266 = vld [vmem:[%s247 + $0x50] sm:$0xff]
      %v267 = vld [vmem:[%s247 + $0x58] sm:$0xff]
      %v268 = vld [vmem:[%s247 + $0x60] sm:$0xff]
      %v269 = vld [vmem:[%s247 + $0x68] sm:$0xff]
      %v270 = vld [vmem:[%s247 + $0x70] sm:$0xff]
      %v271 = vld [vmem:[%s247 + $0x78] sm:$0xff]
      %v272 = vld [vmem:[%s247 + $0x80] sm:$0xff]
      %v273 = vld [vmem:[%s247 + $0x88] sm:$0xff]
      %v274 = vld [vmem:[%s247 + $0x90] sm:$0xff]
      %v275 = vld [vmem:[%s247 + $0x98] sm:$0xff]
      %v276 = vld [vmem:[%s247 + $0xa0] sm:$0xff]
      %v277 = vld [vmem:[%s247 + $0xa8] sm:$0xff]
      %v278 = vld [vmem:[%s247 + $0xb0] sm:$0xff]
      %v279 = vld [vmem:[%s247 + $0xb8] sm:$0xff]
      %v280 = vld [vmem:[%s247 + $0xc0] sm:$0xff]
      %v281 = vld [vmem:[%s247 + $0xc8] sm:$0xff]
      %v282 = vld [vmem:[%s247 + $0xd0] sm:$0xff]
      %v283 = vld [vmem:[%s247 + $0xd8] sm:$0xff]
      %v284 = vld [vmem:[%s247 + $0xe0] sm:$0xff]
      %v285 = vld [vmem:[%s247 + $0xe8] sm:$0xff]
      %v286 = vld [vmem:[%s247 + $0xf0] sm:$0xff]
      %v287 = vld [vmem:[%s247 + $0xf8] sm:$0xff]
      %v288 = vld [vmem:[%s247 + $0x100] sm:$0xff]
      %v289 = vld [vmem:[%s247 + $0x108] sm:$0xff]
      %v290 = vld [vmem:[%s247 + $0x110] sm:$0xff]
      %v291 = vld [vmem:[%s247 + $0x118] sm:$0xff]
      %v292 = vld [vmem:[%s247 + $0x120] sm:$0xff]
      %v293 = vld [vmem:[%s247 + $0x128] sm:$0xff]
      %v294 = vld [vmem:[%s247 + $0x130] sm:$0xff]
      %v295 = vld [vmem:[%s247 + $0x138] sm:$0xff]
      %v296 = vld [vmem:[%s247 + $0x140] sm:$0xff]
      %v297 = vld [vmem:[%s247 + $0x148] sm:$0xff]
      %v298 = vld [vmem:[%s247 + $0x150] sm:$0xff]
      %v299 = vld [vmem:[%s247 + $0x158] sm:$0xff]
      %v300 = vld [vmem:[%s247 + $0x160] sm:$0xff]
      %v301 = vld [vmem:[%s247 + $0x168] sm:$0xff]
      %v302 = vld [vmem:[%s247 + $0x170] sm:$0xff]
      %v303 = vld [vmem:[%s247 + $0x178] sm:$0xff]
      %v304 = vld [vmem:[%s247 + $0x180] sm:$0xff]
      %v305 = vld [vmem:[%s247 + $0x188] sm:$0xff]
      %v306 = vld [vmem:[%s247 + $0x190] sm:$0xff]
      %v307 = vld [vmem:[%s247 + $0x198] sm:$0xff]
      %v308 = vld [vmem:[%s247 + $0x1a0] sm:$0xff]
      %v309 = vld [vmem:[%s247 + $0x1a8] sm:$0xff]
      %v310 = vld [vmem:[%s247 + $0x1b0] sm:$0xff]
      %v311 = vld [vmem:[%s247 + $0x1b8] sm:$0xff]
      %v312 = vld [vmem:[%s247 + $0x1c0] sm:$0xff]
      %v313 = vld [vmem:[%s247 + $0x1c8] sm:$0xff]
      %v314 = vld [vmem:[%s247 + $0x1d0] sm:$0xff]
      %v315 = vld [vmem:[%s247 + $0x1d8] sm:$0xff]
      %v316 = vld [vmem:[%s247 + $0x1e0] sm:$0xff]
      %v317 = vld [vmem:[%s247 + $0x1e8] sm:$0xff]
      %v318 = vld [vmem:[%s247 + $0x1f0] sm:$0xff]
      %v319 = vld [vmem:[%s247 + $0x1f8] sm:$0xff]
      %v320 = vld [vmem:[%s1] ss:$4 sm:$0xf]
      %322 = vset.pattern.permute.xlu0 0
      %323 = vperm.xlu0 %322, %v256
      %v324 = vpop.permute.xlu0 %323
      %327 = vset.pattern.permute.xlu0 0
      %328 = vperm.xlu0 %327, %v257
      %v329 = vpop.permute.xlu0 %328
      %332 = vset.pattern.permute.xlu0 0
      %333 = vperm.xlu0 %332, %v258
      %v334 = vpop.permute.xlu0 %333
      %337 = vset.pattern.permute.xlu0 0
      %338 = vperm.xlu0 %337, %v259
      %v339 = vpop.permute.xlu0 %338
      %342 = vset.pattern.permute.xlu0 0
      %343 = vperm.xlu0 %342, %v260
      %v344 = vpop.permute.xlu0 %343
      %347 = vset.pattern.permute.xlu0 0
      %348 = vperm.xlu0 %347, %v261
      %v349 = vpop.permute.xlu0 %348
      %352 = vset.pattern.permute.xlu0 0
      %353 = vperm.xlu0 %352, %v262
      %v354 = vpop.permute.xlu0 %353
      %357 = vset.pattern.permute.xlu0 0
      %358 = vperm.xlu0 %357, %v263
      %v359 = vpop.permute.xlu0 %358
      %362 = vset.pattern.permute.xlu0 0
      %363 = vperm.xlu0 %362, %v264
      %v364 = vpop.permute.xlu0 %363
      %367 = vset.pattern.permute.xlu0 0
      %368 = vperm.xlu0 %367, %v265
      %v369 = vpop.permute.xlu0 %368
      %372 = vset.pattern.permute.xlu0 0
      %373 = vperm.xlu0 %372, %v266
      %v374 = vpop.permute.xlu0 %373
      %377 = vset.pattern.permute.xlu0 0
      %378 = vperm.xlu0 %377, %v267
      %v379 = vpop.permute.xlu0 %378
      %382 = vset.pattern.permute.xlu0 0
      %383 = vperm.xlu0 %382, %v268
      %v384 = vpop.permute.xlu0 %383
      %387 = vset.pattern.permute.xlu0 0
      %388 = vperm.xlu0 %387, %v269
      %v389 = vpop.permute.xlu0 %388
      %392 = vset.pattern.permute.xlu0 0
      %393 = vperm.xlu0 %392, %v270
      %v394 = vpop.permute.xlu0 %393
      %397 = vset.pattern.permute.xlu0 0
      %398 = vperm.xlu0 %397, %v271
      %v399 = vpop.permute.xlu0 %398
      %402 = vset.pattern.permute.xlu0 0
      %403 = vperm.xlu0 %402, %v272
      %v404 = vpop.permute.xlu0 %403
      %407 = vset.pattern.permute.xlu0 0
      %408 = vperm.xlu0 %407, %v273
      %v409 = vpop.permute.xlu0 %408
      %412 = vset.pattern.permute.xlu0 0
      %413 = vperm.xlu0 %412, %v274
      %v414 = vpop.permute.xlu0 %413
      %417 = vset.pattern.permute.xlu0 0
      %418 = vperm.xlu0 %417, %v275
      %v419 = vpop.permute.xlu0 %418
      %422 = vset.pattern.permute.xlu0 0
      %423 = vperm.xlu0 %422, %v276
      %v424 = vpop.permute.xlu0 %423
      %427 = vset.pattern.permute.xlu0 0
      %428 = vperm.xlu0 %427, %v277
      %v429 = vpop.permute.xlu0 %428
      %432 = vset.pattern.permute.xlu0 0
      %433 = vperm.xlu0 %432, %v278
      %v434 = vpop.permute.xlu0 %433
      %437 = vset.pattern.permute.xlu0 0
      %438 = vperm.xlu0 %437, %v279
      %v439 = vpop.permute.xlu0 %438
      %442 = vset.pattern.permute.xlu0 0
      %443 = vperm.xlu0 %442, %v280
      %v444 = vpop.permute.xlu0 %443
      %447 = vset.pattern.permute.xlu0 0
      %448 = vperm.xlu0 %447, %v281
      %v449 = vpop.permute.xlu0 %448
      %452 = vset.pattern.permute.xlu0 0
      %453 = vperm.xlu0 %452, %v282
      %v454 = vpop.permute.xlu0 %453
      %457 = vset.pattern.permute.xlu0 0
      %458 = vperm.xlu0 %457, %v283
      %v459 = vpop.permute.xlu0 %458
      %462 = vset.pattern.permute.xlu0 0
      %463 = vperm.xlu0 %462, %v284
      %v464 = vpop.permute.xlu0 %463
      %467 = vset.pattern.permute.xlu0 0
      %468 = vperm.xlu0 %467, %v285
      %v469 = vpop.permute.xlu0 %468
      %472 = vset.pattern.permute.xlu0 0
      %473 = vperm.xlu0 %472, %v286
      %v474 = vpop.permute.xlu0 %473
      %477 = vset.pattern.permute.xlu0 0
      %478 = vperm.xlu0 %477, %v287
      %v479 = vpop.permute.xlu0 %478
      %482 = vset.pattern.permute.xlu0 0
      %483 = vperm.xlu0 %482, %v288
      %v484 = vpop.permute.xlu0 %483
      %487 = vset.pattern.permute.xlu0 0
      %488 = vperm.xlu0 %487, %v289
      %v489 = vpop.permute.xlu0 %488
      %492 = vset.pattern.permute.xlu0 0
      %493 = vperm.xlu0 %492, %v290
      %v494 = vpop.permute.xlu0 %493
      %497 = vset.pattern.permute.xlu0 0
      %498 = vperm.xlu0 %497, %v291
      %v499 = vpop.permute.xlu0 %498
      %502 = vset.pattern.permute.xlu0 0
      %503 = vperm.xlu0 %502, %v292
      %v504 = vpop.permute.xlu0 %503
      %507 = vset.pattern.permute.xlu0 0
      %508 = vperm.xlu0 %507, %v293
      %v509 = vpop.permute.xlu0 %508
      %512 = vset.pattern.permute.xlu0 0
      %513 = vperm.xlu0 %512, %v294
      %v514 = vpop.permute.xlu0 %513
      %517 = vset.pattern.permute.xlu0 0
      %518 = vperm.xlu0 %517, %v295
      %v519 = vpop.permute.xlu0 %518
      %522 = vset.pattern.permute.xlu0 0
      %523 = vperm.xlu0 %522, %v296
      %v524 = vpop.permute.xlu0 %523
      %527 = vset.pattern.permute.xlu0 0
      %528 = vperm.xlu0 %527, %v297
      %v529 = vpop.permute.xlu0 %528
      %532 = vset.pattern.permute.xlu0 0
      %533 = vperm.xlu0 %532, %v298
      %v534 = vpop.permute.xlu0 %533
      %537 = vset.pattern.permute.xlu0 0
      %538 = vperm.xlu0 %537, %v299
      %v539 = vpop.permute.xlu0 %538
      %542 = vset.pattern.permute.xlu0 0
      %543 = vperm.xlu0 %542, %v300
      %v544 = vpop.permute.xlu0 %543
      %547 = vset.pattern.permute.xlu0 0
      %548 = vperm.xlu0 %547, %v301
      %v549 = vpop.permute.xlu0 %548
      %552 = vset.pattern.permute.xlu0 0
      %553 = vperm.xlu0 %552, %v302
      %v554 = vpop.permute.xlu0 %553
      %557 = vset.pattern.permute.xlu0 0
      %558 = vperm.xlu0 %557, %v303
      %v559 = vpop.permute.xlu0 %558
      %562 = vset.pattern.permute.xlu0 0
      %563 = vperm.xlu0 %562, %v304
      %v564 = vpop.permute.xlu0 %563
      %567 = vset.pattern.permute.xlu0 0
      %568 = vperm.xlu0 %567, %v305
      %v569 = vpop.permute.xlu0 %568
      %572 = vset.pattern.permute.xlu0 0
      %573 = vperm.xlu0 %572, %v306
      %v574 = vpop.permute.xlu0 %573
      %577 = vset.pattern.permute.xlu0 0
      %578 = vperm.xlu0 %577, %v307
      %v579 = vpop.permute.xlu0 %578
      %582 = vset.pattern.permute.xlu0 0
      %583 = vperm.xlu0 %582, %v308
      %v584 = vpop.permute.xlu0 %583
      %587 = vset.pattern.permute.xlu0 0
      %588 = vperm.xlu0 %587, %v309
      %v589 = vpop.permute.xlu0 %588
      %592 = vset.pattern.permute.xlu0 0
      %593 = vperm.xlu0 %592, %v310
      %v594 = vpop.permute.xlu0 %593
      %597 = vset.pattern.permute.xlu0 0
      %598 = vperm.xlu0 %597, %v311
      %v599 = vpop.permute.xlu0 %598
      %602 = vset.pattern.permute.xlu0 0
      %603 = vperm.xlu0 %602, %v312
      %v604 = vpop.permute.xlu0 %603
      %607 = vset.pattern.permute.xlu0 0
      %608 = vperm.xlu0 %607, %v313
      %v609 = vpop.permute.xlu0 %608
      %612 = vset.pattern.permute.xlu0 0
      %613 = vperm.xlu0 %612, %v314
      %v614 = vpop.permute.xlu0 %613
      %617 = vset.pattern.permute.xlu0 0
      %618 = vperm.xlu0 %617, %v315
      %v619 = vpop.permute.xlu0 %618
      %622 = vset.pattern.permute.xlu0 0
      %623 = vperm.xlu0 %622, %v316
      %v624 = vpop.permute.xlu0 %623
      %627 = vset.pattern.permute.xlu0 0
      %628 = vperm.xlu0 %627, %v317
      %v629 = vpop.permute.xlu0 %628
      %632 = vset.pattern.permute.xlu0 0
      %633 = vperm.xlu0 %632, %v318
      %v634 = vpop.permute.xlu0 %633
      %637 = vset.pattern.permute.xlu0 0
      %638 = vperm.xlu0 %637, %v319
      %v639 = vpop.permute.xlu0 %638
      %v642 = vlaneseq
      %v643 = vshrl.u32 %v642, 7
      %v644 = vsub.s32 0, %v643
      %v645 = vrot.slane %v320, %v644
      %v646 = vlaneseq
      %v647 = vshrl.u32 %v646, 7
      %v648 = vsub.s32 1, %v647
      %v649 = vrot.slane %v320, %v648
      %v650 = vlaneseq
      %v651 = vshrl.u32 %v650, 7
      %v652 = vsub.s32 2, %v651
      %v653 = vrot.slane %v320, %v652
      %v654 = vlaneseq
      %v655 = vshrl.u32 %v654, 7
      %v656 = vsub.s32 3, %v655
      %v657 = vrot.slane %v320, %v656
      %v662 = vmul.f32 %v324, %v645
      %v663 = vmul.f32 %v324, %v649
      %v664 = vmul.f32 %v324, %v653
      %v665 = vmul.f32 %v324, %v657
      %v666 = vmul.f32 %v329, %v645
      %v667 = vmul.f32 %v329, %v649
      %v668 = vmul.f32 %v329, %v653
      %v669 = vmul.f32 %v329, %v657
      %v670 = vmul.f32 %v334, %v645
      %v671 = vmul.f32 %v334, %v649
      %v672 = vmul.f32 %v334, %v653
      %v673 = vmul.f32 %v334, %v657
      %v674 = vmul.f32 %v339, %v645
      %v675 = vmul.f32 %v339, %v649
      %v676 = vmul.f32 %v339, %v653
      %v677 = vmul.f32 %v339, %v657
      %v678 = vmul.f32 %v344, %v645
      %v679 = vmul.f32 %v344, %v649
      %v680 = vmul.f32 %v344, %v653
      %v681 = vmul.f32 %v344, %v657
      %v682 = vmul.f32 %v349, %v645
      %v683 = vmul.f32 %v349, %v649
      %v684 = vmul.f32 %v349, %v653
      %v685 = vmul.f32 %v349, %v657
      %v686 = vmul.f32 %v354, %v645
      %v687 = vmul.f32 %v354, %v649
      %v688 = vmul.f32 %v354, %v653
      %v689 = vmul.f32 %v354, %v657
      %v690 = vmul.f32 %v359, %v645
      %v691 = vmul.f32 %v359, %v649
      %v692 = vmul.f32 %v359, %v653
      %v693 = vmul.f32 %v359, %v657
      %v694 = vmul.f32 %v364, %v645
      %v695 = vmul.f32 %v364, %v649
      %v696 = vmul.f32 %v364, %v653
      %v697 = vmul.f32 %v364, %v657
      %v698 = vmul.f32 %v369, %v645
      %v699 = vmul.f32 %v369, %v649
      %v700 = vmul.f32 %v369, %v653
      %v701 = vmul.f32 %v369, %v657
      %v702 = vmul.f32 %v374, %v645
      %v703 = vmul.f32 %v374, %v649
      %v704 = vmul.f32 %v374, %v653
      %v705 = vmul.f32 %v374, %v657
      %v706 = vmul.f32 %v379, %v645
      %v707 = vmul.f32 %v379, %v649
      %v708 = vmul.f32 %v379, %v653
      %v709 = vmul.f32 %v379, %v657
      %v710 = vmul.f32 %v384, %v645
      %v711 = vmul.f32 %v384, %v649
      %v712 = vmul.f32 %v384, %v653
      %v713 = vmul.f32 %v384, %v657
      %v714 = vmul.f32 %v389, %v645
      %v715 = vmul.f32 %v389, %v649
      %v716 = vmul.f32 %v389, %v653
      %v717 = vmul.f32 %v389, %v657
      %v718 = vmul.f32 %v394, %v645
      %v719 = vmul.f32 %v394, %v649
      %v720 = vmul.f32 %v394, %v653
      %v721 = vmul.f32 %v394, %v657
      %v722 = vmul.f32 %v399, %v645
      %v723 = vmul.f32 %v399, %v649
      %v724 = vmul.f32 %v399, %v653
      %v725 = vmul.f32 %v399, %v657
      %v726 = vmul.f32 %v404, %v645
      %v727 = vmul.f32 %v404, %v649
      %v728 = vmul.f32 %v404, %v653
      %v729 = vmul.f32 %v404, %v657
      %v730 = vmul.f32 %v409, %v645
      %v731 = vmul.f32 %v409, %v649
      %v732 = vmul.f32 %v409, %v653
      %v733 = vmul.f32 %v409, %v657
      %v734 = vmul.f32 %v414, %v645
      %v735 = vmul.f32 %v414, %v649
      %v736 = vmul.f32 %v414, %v653
      %v737 = vmul.f32 %v414, %v657
      %v738 = vmul.f32 %v419, %v645
      %v739 = vmul.f32 %v419, %v649
      %v740 = vmul.f32 %v419, %v653
      %v741 = vmul.f32 %v419, %v657
      %v742 = vmul.f32 %v424, %v645
      %v743 = vmul.f32 %v424, %v649
      %v744 = vmul.f32 %v424, %v653
      %v745 = vmul.f32 %v424, %v657
      %v746 = vmul.f32 %v429, %v645
      %v747 = vmul.f32 %v429, %v649
      %v748 = vmul.f32 %v429, %v653
      %v749 = vmul.f32 %v429, %v657
      %v750 = vmul.f32 %v434, %v645
      %v751 = vmul.f32 %v434, %v649
      %v752 = vmul.f32 %v434, %v653
      %v753 = vmul.f32 %v434, %v657
      %v754 = vmul.f32 %v439, %v645
      %v755 = vmul.f32 %v439, %v649
      %v756 = vmul.f32 %v439, %v653
      %v757 = vmul.f32 %v439, %v657
      %v758 = vmul.f32 %v444, %v645
      %v759 = vmul.f32 %v444, %v649
      %v760 = vmul.f32 %v444, %v653
      %v761 = vmul.f32 %v444, %v657
      %v762 = vmul.f32 %v449, %v645
      %v763 = vmul.f32 %v449, %v649
      %v764 = vmul.f32 %v449, %v653
      %v765 = vmul.f32 %v449, %v657
      %v766 = vmul.f32 %v454, %v645
      %v767 = vmul.f32 %v454, %v649
      %v768 = vmul.f32 %v454, %v653
      %v769 = vmul.f32 %v454, %v657
      %v770 = vmul.f32 %v459, %v645
      %v771 = vmul.f32 %v459, %v649
      %v772 = vmul.f32 %v459, %v653
      %v773 = vmul.f32 %v459, %v657
      %v774 = vmul.f32 %v464, %v645
      %v775 = vmul.f32 %v464, %v649
      %v776 = vmul.f32 %v464, %v653
      %v777 = vmul.f32 %v464, %v657
      %v778 = vmul.f32 %v469, %v645
      %v779 = vmul.f32 %v469, %v649
      %v780 = vmul.f32 %v469, %v653
      %v781 = vmul.f32 %v469, %v657
      %v782 = vmul.f32 %v474, %v645
      %v783 = vmul.f32 %v474, %v649
      %v784 = vmul.f32 %v474, %v653
      %v785 = vmul.f32 %v474, %v657
      %v786 = vmul.f32 %v479, %v645
      %v787 = vmul.f32 %v479, %v649
      %v788 = vmul.f32 %v479, %v653
      %v789 = vmul.f32 %v479, %v657
      %v790 = vmul.f32 %v484, %v645
      %v791 = vmul.f32 %v484, %v649
      %v792 = vmul.f32 %v484, %v653
      %v793 = vmul.f32 %v484, %v657
      %v794 = vmul.f32 %v489, %v645
      %v795 = vmul.f32 %v489, %v649
      %v796 = vmul.f32 %v489, %v653
      %v797 = vmul.f32 %v489, %v657
      %v798 = vmul.f32 %v494, %v645
      %v799 = vmul.f32 %v494, %v649
      %v800 = vmul.f32 %v494, %v653
      %v801 = vmul.f32 %v494, %v657
      %v802 = vmul.f32 %v499, %v645
      %v803 = vmul.f32 %v499, %v649
      %v804 = vmul.f32 %v499, %v653
      %v805 = vmul.f32 %v499, %v657
      %v806 = vmul.f32 %v504, %v645
      %v807 = vmul.f32 %v504, %v649
      %v808 = vmul.f32 %v504, %v653
      %v809 = vmul.f32 %v504, %v657
      %v810 = vmul.f32 %v509, %v645
      %v811 = vmul.f32 %v509, %v649
      %v812 = vmul.f32 %v509, %v653
      %v813 = vmul.f32 %v509, %v657
      %v814 = vmul.f32 %v514, %v645
      %v815 = vmul.f32 %v514, %v649
      %v816 = vmul.f32 %v514, %v653
      %v817 = vmul.f32 %v514, %v657
      %v818 = vmul.f32 %v519, %v645
      %v819 = vmul.f32 %v519, %v649
      %v820 = vmul.f32 %v519, %v653
      %v821 = vmul.f32 %v519, %v657
      %v822 = vmul.f32 %v524, %v645
      %v823 = vmul.f32 %v524, %v649
      %v824 = vmul.f32 %v524, %v653
      %v825 = vmul.f32 %v524, %v657
      %v826 = vmul.f32 %v529, %v645
      %v827 = vmul.f32 %v529, %v649
      %v828 = vmul.f32 %v529, %v653
      %v829 = vmul.f32 %v529, %v657
      %v830 = vmul.f32 %v534, %v645
      %v831 = vmul.f32 %v534, %v649
      %v832 = vmul.f32 %v534, %v653
      %v833 = vmul.f32 %v534, %v657
      %v834 = vmul.f32 %v539, %v645
      %v835 = vmul.f32 %v539, %v649
      %v836 = vmul.f32 %v539, %v653
      %v837 = vmul.f32 %v539, %v657
      %v838 = vmul.f32 %v544, %v645
      %v839 = vmul.f32 %v544, %v649
      %v840 = vmul.f32 %v544, %v653
      %v841 = vmul.f32 %v544, %v657
      %v842 = vmul.f32 %v549, %v645
      %v843 = vmul.f32 %v549, %v649
      %v844 = vmul.f32 %v549, %v653
      %v845 = vmul.f32 %v549, %v657
      %v846 = vmul.f32 %v554, %v645
      %v847 = vmul.f32 %v554, %v649
      %v848 = vmul.f32 %v554, %v653
      %v849 = vmul.f32 %v554, %v657
      %v850 = vmul.f32 %v559, %v645
      %v851 = vmul.f32 %v559, %v649
      %v852 = vmul.f32 %v559, %v653
      %v853 = vmul.f32 %v559, %v657
      %v854 = vmul.f32 %v564, %v645
      %v855 = vmul.f32 %v564, %v649
      %v856 = vmul.f32 %v564, %v653
      %v857 = vmul.f32 %v564, %v657
      %v858 = vmul.f32 %v569, %v645
      %v859 = vmul.f32 %v569, %v649
      %v860 = vmul.f32 %v569, %v653
      %v861 = vmul.f32 %v569, %v657
      %v862 = vmul.f32 %v574, %v645
      %v863 = vmul.f32 %v574, %v649
      %v864 = vmul.f32 %v574, %v653
      %v865 = vmul.f32 %v574, %v657
      %v866 = vmul.f32 %v579, %v645
      %v867 = vmul.f32 %v579, %v649
      %v868 = vmul.f32 %v579, %v653
      %v869 = vmul.f32 %v579, %v657
      %v870 = vmul.f32 %v584, %v645
      %v871 = vmul.f32 %v584, %v649
      %v872 = vmul.f32 %v584, %v653
      %v873 = vmul.f32 %v584, %v657
      %v874 = vmul.f32 %v589, %v645
      %v875 = vmul.f32 %v589, %v649
      %v876 = vmul.f32 %v589, %v653
      %v877 = vmul.f32 %v589, %v657
      %v878 = vmul.f32 %v594, %v645
      %v879 = vmul.f32 %v594, %v649
      %v880 = vmul.f32 %v594, %v653
      %v881 = vmul.f32 %v594, %v657
      %v882 = vmul.f32 %v599, %v645
      %v883 = vmul.f32 %v599, %v649
      %v884 = vmul.f32 %v599, %v653
      %v885 = vmul.f32 %v599, %v657
      %v886 = vmul.f32 %v604, %v645
      %v887 = vmul.f32 %v604, %v649
      %v888 = vmul.f32 %v604, %v653
      %v889 = vmul.f32 %v604, %v657
      %v890 = vmul.f32 %v609, %v645
      %v891 = vmul.f32 %v609, %v649
      %v892 = vmul.f32 %v609, %v653
      %v893 = vmul.f32 %v609, %v657
      %v894 = vmul.f32 %v614, %v645
      %v895 = vmul.f32 %v614, %v649
      %v896 = vmul.f32 %v614, %v653
      %v897 = vmul.f32 %v614, %v657
      %v898 = vmul.f32 %v619, %v645
      %v899 = vmul.f32 %v619, %v649
      %v900 = vmul.f32 %v619, %v653
      %v901 = vmul.f32 %v619, %v657
      %v902 = vmul.f32 %v624, %v645
      %v903 = vmul.f32 %v624, %v649
      %v904 = vmul.f32 %v624, %v653
      %v905 = vmul.f32 %v624, %v657
      %v906 = vmul.f32 %v629, %v645
      %v907 = vmul.f32 %v629, %v649
      %v908 = vmul.f32 %v629, %v653
      %v909 = vmul.f32 %v629, %v657
      %v910 = vmul.f32 %v634, %v645
      %v911 = vmul.f32 %v634, %v649
      %v912 = vmul.f32 %v634, %v653
      %v913 = vmul.f32 %v634, %v657
      %v914 = vmul.f32 %v639, %v645
      %v915 = vmul.f32 %v639, %v649
      %v916 = vmul.f32 %v639, %v653
      %v917 = vmul.f32 %v639, %v657
      %s918 = scalar_lea.vmem %s1, 1
      %v919 = vld [vmem:[%s918] ss:$4 sm:$0xf]
      %920 = vset.pattern.permute.xlu0 1
      %921 = vperm.xlu0 %920, %v256
      %v922 = vpop.permute.xlu0 %921
      %924 = vset.pattern.permute.xlu0 1
      %925 = vperm.xlu0 %924, %v257
      %v926 = vpop.permute.xlu0 %925
      %928 = vset.pattern.permute.xlu0 1
      %929 = vperm.xlu0 %928, %v258
      %v930 = vpop.permute.xlu0 %929
      %932 = vset.pattern.permute.xlu0 1
      %933 = vperm.xlu0 %932, %v259
      %v934 = vpop.permute.xlu0 %933
      %936 = vset.pattern.permute.xlu0 1
      %937 = vperm.xlu0 %936, %v260
      %v938 = vpop.permute.xlu0 %937
      %940 = vset.pattern.permute.xlu0 1
      %941 = vperm.xlu0 %940, %v261
      %v942 = vpop.permute.xlu0 %941
      %944 = vset.pattern.permute.xlu0 1
      %945 = vperm.xlu0 %944, %v262
      %v946 = vpop.permute.xlu0 %945
      %948 = vset.pattern.permute.xlu0 1
      %949 = vperm.xlu0 %948, %v263
      %v950 = vpop.permute.xlu0 %949
      %952 = vset.pattern.permute.xlu0 1
      %953 = vperm.xlu0 %952, %v264
      %v954 = vpop.permute.xlu0 %953
      %956 = vset.pattern.permute.xlu0 1
      %957 = vperm.xlu0 %956, %v265
      %v958 = vpop.permute.xlu0 %957
      %960 = vset.pattern.permute.xlu0 1
      %961 = vperm.xlu0 %960, %v266
      %v962 = vpop.permute.xlu0 %961
      %964 = vset.pattern.permute.xlu0 1
      %965 = vperm.xlu0 %964, %v267
      %v966 = vpop.permute.xlu0 %965
      %968 = vset.pattern.permute.xlu0 1
      %969 = vperm.xlu0 %968, %v268
      %v970 = vpop.permute.xlu0 %969
      %972 = vset.pattern.permute.xlu0 1
      %973 = vperm.xlu0 %972, %v269
      %v974 = vpop.permute.xlu0 %973
      %976 = vset.pattern.permute.xlu0 1
      %977 = vperm.xlu0 %976, %v270
      %v978 = vpop.permute.xlu0 %977
      %980 = vset.pattern.permute.xlu0 1
      %981 = vperm.xlu0 %980, %v271
      %v982 = vpop.permute.xlu0 %981
      %984 = vset.pattern.permute.xlu0 1
      %985 = vperm.xlu0 %984, %v272
      %v986 = vpop.permute.xlu0 %985
      %988 = vset.pattern.permute.xlu0 1
      %989 = vperm.xlu0 %988, %v273
      %v990 = vpop.permute.xlu0 %989
      %992 = vset.pattern.permute.xlu0 1
      %993 = vperm.xlu0 %992, %v274
      %v994 = vpop.permute.xlu0 %993
      %996 = vset.pattern.permute.xlu0 1
      %997 = vperm.xlu0 %996, %v275
      %v998 = vpop.permute.xlu0 %997
      %1000 = vset.pattern.permute.xlu0 1
      %1001 = vperm.xlu0 %1000, %v276
      %v1002 = vpop.permute.xlu0 %1001
      %1004 = vset.pattern.permute.xlu0 1
      %1005 = vperm.xlu0 %1004, %v277
      %v1006 = vpop.permute.xlu0 %1005
      %1008 = vset.pattern.permute.xlu0 1
      %1009 = vperm.xlu0 %1008, %v278
      %v1010 = vpop.permute.xlu0 %1009
      %1012 = vset.pattern.permute.xlu0 1
      %1013 = vperm.xlu0 %1012, %v279
      %v1014 = vpop.permute.xlu0 %1013
      %1016 = vset.pattern.permute.xlu0 1
      %1017 = vperm.xlu0 %1016, %v280
      %v1018 = vpop.permute.xlu0 %1017
      %1020 = vset.pattern.permute.xlu0 1
      %1021 = vperm.xlu0 %1020, %v281
      %v1022 = vpop.permute.xlu0 %1021
      %1024 = vset.pattern.permute.xlu0 1
      %1025 = vperm.xlu0 %1024, %v282
      %v1026 = vpop.permute.xlu0 %1025
      %1028 = vset.pattern.permute.xlu0 1
      %1029 = vperm.xlu0 %1028, %v283
      %v1030 = vpop.permute.xlu0 %1029
      %1032 = vset.pattern.permute.xlu0 1
      %1033 = vperm.xlu0 %1032, %v284
      %v1034 = vpop.permute.xlu0 %1033
      %1036 = vset.pattern.permute.xlu0 1
      %1037 = vperm.xlu0 %1036, %v285
      %v1038 = vpop.permute.xlu0 %1037
      %1040 = vset.pattern.permute.xlu0 1
      %1041 = vperm.xlu0 %1040, %v286
      %v1042 = vpop.permute.xlu0 %1041
      %1044 = vset.pattern.permute.xlu0 1
      %1045 = vperm.xlu0 %1044, %v287
      %v1046 = vpop.permute.xlu0 %1045
      %1048 = vset.pattern.permute.xlu0 1
      %1049 = vperm.xlu0 %1048, %v288
      %v1050 = vpop.permute.xlu0 %1049
      %1052 = vset.pattern.permute.xlu0 1
      %1053 = vperm.xlu0 %1052, %v289
      %v1054 = vpop.permute.xlu0 %1053
      %1056 = vset.pattern.permute.xlu0 1
      %1057 = vperm.xlu0 %1056, %v290
      %v1058 = vpop.permute.xlu0 %1057
      %1060 = vset.pattern.permute.xlu0 1
      %1061 = vperm.xlu0 %1060, %v291
      %v1062 = vpop.permute.xlu0 %1061
      %1064 = vset.pattern.permute.xlu0 1
      %1065 = vperm.xlu0 %1064, %v292
      %v1066 = vpop.permute.xlu0 %1065
      %1068 = vset.pattern.permute.xlu0 1
      %1069 = vperm.xlu0 %1068, %v293
      %v1070 = vpop.permute.xlu0 %1069
      %1072 = vset.pattern.permute.xlu0 1
      %1073 = vperm.xlu0 %1072, %v294
      %v1074 = vpop.permute.xlu0 %1073
      %1076 = vset.pattern.permute.xlu0 1
      %1077 = vperm.xlu0 %1076, %v295
      %v1078 = vpop.permute.xlu0 %1077
      %1080 = vset.pattern.permute.xlu0 1
      %1081 = vperm.xlu0 %1080, %v296
      %v1082 = vpop.permute.xlu0 %1081
      %1084 = vset.pattern.permute.xlu0 1
      %1085 = vperm.xlu0 %1084, %v297
      %v1086 = vpop.permute.xlu0 %1085
      %1088 = vset.pattern.permute.xlu0 1
      %1089 = vperm.xlu0 %1088, %v298
      %v1090 = vpop.permute.xlu0 %1089
      %1092 = vset.pattern.permute.xlu0 1
      %1093 = vperm.xlu0 %1092, %v299
      %v1094 = vpop.permute.xlu0 %1093
      %1096 = vset.pattern.permute.xlu0 1
      %1097 = vperm.xlu0 %1096, %v300
      %v1098 = vpop.permute.xlu0 %1097
      %1100 = vset.pattern.permute.xlu0 1
      %1101 = vperm.xlu0 %1100, %v301
      %v1102 = vpop.permute.xlu0 %1101
      %1104 = vset.pattern.permute.xlu0 1
      %1105 = vperm.xlu0 %1104, %v302
      %v1106 = vpop.permute.xlu0 %1105
      %1108 = vset.pattern.permute.xlu0 1
      %1109 = vperm.xlu0 %1108, %v303
      %v1110 = vpop.permute.xlu0 %1109
      %1112 = vset.pattern.permute.xlu0 1
      %1113 = vperm.xlu0 %1112, %v304
      %v1114 = vpop.permute.xlu0 %1113
      %1116 = vset.pattern.permute.xlu0 1
      %1117 = vperm.xlu0 %1116, %v305
      %v1118 = vpop.permute.xlu0 %1117
      %1120 = vset.pattern.permute.xlu0 1
      %1121 = vperm.xlu0 %1120, %v306
      %v1122 = vpop.permute.xlu0 %1121
      %1124 = vset.pattern.permute.xlu0 1
      %1125 = vperm.xlu0 %1124, %v307
      %v1126 = vpop.permute.xlu0 %1125
      %1128 = vset.pattern.permute.xlu0 1
      %1129 = vperm.xlu0 %1128, %v308
      %v1130 = vpop.permute.xlu0 %1129
      %1132 = vset.pattern.permute.xlu0 1
      %1133 = vperm.xlu0 %1132, %v309
      %v1134 = vpop.permute.xlu0 %1133
      %1136 = vset.pattern.permute.xlu0 1
      %1137 = vperm.xlu0 %1136, %v310
      %v1138 = vpop.permute.xlu0 %1137
      %1140 = vset.pattern.permute.xlu0 1
      %1141 = vperm.xlu0 %1140, %v311
      %v1142 = vpop.permute.xlu0 %1141
      %1144 = vset.pattern.permute.xlu0 1
      %1145 = vperm.xlu0 %1144, %v312
      %v1146 = vpop.permute.xlu0 %1145
      %1148 = vset.pattern.permute.xlu0 1
      %1149 = vperm.xlu0 %1148, %v313
      %v1150 = vpop.permute.xlu0 %1149
      %1152 = vset.pattern.permute.xlu0 1
      %1153 = vperm.xlu0 %1152, %v314
      %v1154 = vpop.permute.xlu0 %1153
      %1156 = vset.pattern.permute.xlu0 1
      %1157 = vperm.xlu0 %1156, %v315
      %v1158 = vpop.permute.xlu0 %1157
      %1160 = vset.pattern.permute.xlu0 1
      %1161 = vperm.xlu0 %1160, %v316
      %v1162 = vpop.permute.xlu0 %1161
      %1164 = vset.pattern.permute.xlu0 1
      %1165 = vperm.xlu0 %1164, %v317
      %v1166 = vpop.permute.xlu0 %1165
      %1168 = vset.pattern.permute.xlu0 1
      %1169 = vperm.xlu0 %1168, %v318
      %v1170 = vpop.permute.xlu0 %1169
      %1172 = vset.pattern.permute.xlu0 1
      %1173 = vperm.xlu0 %1172, %v319
      %v1174 = vpop.permute.xlu0 %1173
      %v1177 = vlaneseq
      %v1178 = vshrl.u32 %v1177, 7
      %v1179 = vsub.s32 0, %v1178
      %v1180 = vrot.slane %v919, %v1179
      %v1181 = vlaneseq
      %v1182 = vshrl.u32 %v1181, 7
      %v1183 = vsub.s32 1, %v1182
      %v1184 = vrot.slane %v919, %v1183
      %v1185 = vlaneseq
      %v1186 = vshrl.u32 %v1185, 7
      %v1187 = vsub.s32 2, %v1186
      %v1188 = vrot.slane %v919, %v1187
      %v1189 = vlaneseq
      %v1190 = vshrl.u32 %v1189, 7
      %v1191 = vsub.s32 3, %v1190
      %v1192 = vrot.slane %v919, %v1191
      %v1197 = vmul.f32 %v922, %v1180
      %v1198 = vmul.f32 %v922, %v1184
      %v1199 = vmul.f32 %v922, %v1188
      %v1200 = vmul.f32 %v922, %v1192
      %v1201 = vmul.f32 %v926, %v1180
      %v1202 = vmul.f32 %v926, %v1184
      %v1203 = vmul.f32 %v926, %v1188
      %v1204 = vmul.f32 %v926, %v1192
      %v1205 = vmul.f32 %v930, %v1180
      %v1206 = vmul.f32 %v930, %v1184
      %v1207 = vmul.f32 %v930, %v1188
      %v1208 = vmul.f32 %v930, %v1192
      %v1209 = vmul.f32 %v934, %v1180
      %v1210 = vmul.f32 %v934, %v1184
      %v1211 = vmul.f32 %v934, %v1188
      %v1212 = vmul.f32 %v934, %v1192
      %v1213 = vmul.f32 %v938, %v1180
      %v1214 = vmul.f32 %v938, %v1184
      %v1215 = vmul.f32 %v938, %v1188
      %v1216 = vmul.f32 %v938, %v1192
      %v1217 = vmul.f32 %v942, %v1180
      %v1218 = vmul.f32 %v942, %v1184
      %v1219 = vmul.f32 %v942, %v1188
      %v1220 = vmul.f32 %v942, %v1192
      %v1221 = vmul.f32 %v946, %v1180
      %v1222 = vmul.f32 %v946, %v1184
      %v1223 = vmul.f32 %v946, %v1188
      %v1224 = vmul.f32 %v946, %v1192
      %v1225 = vmul.f32 %v950, %v1180
      %v1226 = vmul.f32 %v950, %v1184
      %v1227 = vmul.f32 %v950, %v1188
      %v1228 = vmul.f32 %v950, %v1192
      %v1229 = vmul.f32 %v954, %v1180
      %v1230 = vmul.f32 %v954, %v1184
      %v1231 = vmul.f32 %v954, %v1188
      %v1232 = vmul.f32 %v954, %v1192
      %v1233 = vmul.f32 %v958, %v1180
      %v1234 = vmul.f32 %v958, %v1184
      %v1235 = vmul.f32 %v958, %v1188
      %v1236 = vmul.f32 %v958, %v1192
      %v1237 = vmul.f32 %v962, %v1180
      %v1238 = vmul.f32 %v962, %v1184
      %v1239 = vmul.f32 %v962, %v1188
      %v1240 = vmul.f32 %v962, %v1192
      %v1241 = vmul.f32 %v966, %v1180
      %v1242 = vmul.f32 %v966, %v1184
      %v1243 = vmul.f32 %v966, %v1188
      %v1244 = vmul.f32 %v966, %v1192
      %v1245 = vmul.f32 %v970, %v1180
      %v1246 = vmul.f32 %v970, %v1184
      %v1247 = vmul.f32 %v970, %v1188
      %v1248 = vmul.f32 %v970, %v1192
      %v1249 = vmul.f32 %v974, %v1180
      %v1250 = vmul.f32 %v974, %v1184
      %v1251 = vmul.f32 %v974, %v1188
      %v1252 = vmul.f32 %v974, %v1192
      %v1253 = vmul.f32 %v978, %v1180
      %v1254 = vmul.f32 %v978, %v1184
      %v1255 = vmul.f32 %v978, %v1188
      %v1256 = vmul.f32 %v978, %v1192
      %v1257 = vmul.f32 %v982, %v1180
      %v1258 = vmul.f32 %v982, %v1184
      %v1259 = vmul.f32 %v982, %v1188
      %v1260 = vmul.f32 %v982, %v1192
      %v1261 = vmul.f32 %v986, %v1180
      %v1262 = vmul.f32 %v986, %v1184
      %v1263 = vmul.f32 %v986, %v1188
      %v1264 = vmul.f32 %v986, %v1192
      %v1265 = vmul.f32 %v990, %v1180
      %v1266 = vmul.f32 %v990, %v1184
      %v1267 = vmul.f32 %v990, %v1188
      %v1268 = vmul.f32 %v990, %v1192
      %v1269 = vmul.f32 %v994, %v1180
      %v1270 = vmul.f32 %v994, %v1184
      %v1271 = vmul.f32 %v994, %v1188
      %v1272 = vmul.f32 %v994, %v1192
      %v1273 = vmul.f32 %v998, %v1180
      %v1274 = vmul.f32 %v998, %v1184
      %v1275 = vmul.f32 %v998, %v1188
      %v1276 = vmul.f32 %v998, %v1192
      %v1277 = vmul.f32 %v1002, %v1180
      %v1278 = vmul.f32 %v1002, %v1184
      %v1279 = vmul.f32 %v1002, %v1188
      %v1280 = vmul.f32 %v1002, %v1192
      %v1281 = vmul.f32 %v1006, %v1180
      %v1282 = vmul.f32 %v1006, %v1184
      %v1283 = vmul.f32 %v1006, %v1188
      %v1284 = vmul.f32 %v1006, %v1192
      %v1285 = vmul.f32 %v1010, %v1180
      %v1286 = vmul.f32 %v1010, %v1184
      %v1287 = vmul.f32 %v1010, %v1188
      %v1288 = vmul.f32 %v1010, %v1192
      %v1289 = vmul.f32 %v1014, %v1180
      %v1290 = vmul.f32 %v1014, %v1184
      %v1291 = vmul.f32 %v1014, %v1188
      %v1292 = vmul.f32 %v1014, %v1192
      %v1293 = vmul.f32 %v1018, %v1180
      %v1294 = vmul.f32 %v1018, %v1184
      %v1295 = vmul.f32 %v1018, %v1188
      %v1296 = vmul.f32 %v1018, %v1192
      %v1297 = vmul.f32 %v1022, %v1180
      %v1298 = vmul.f32 %v1022, %v1184
      %v1299 = vmul.f32 %v1022, %v1188
      %v1300 = vmul.f32 %v1022, %v1192
      %v1301 = vmul.f32 %v1026, %v1180
      %v1302 = vmul.f32 %v1026, %v1184
      %v1303 = vmul.f32 %v1026, %v1188
      %v1304 = vmul.f32 %v1026, %v1192
      %v1305 = vmul.f32 %v1030, %v1180
      %v1306 = vmul.f32 %v1030, %v1184
      %v1307 = vmul.f32 %v1030, %v1188
      %v1308 = vmul.f32 %v1030, %v1192
      %v1309 = vmul.f32 %v1034, %v1180
      %v1310 = vmul.f32 %v1034, %v1184
      %v1311 = vmul.f32 %v1034, %v1188
      %v1312 = vmul.f32 %v1034, %v1192
      %v1313 = vmul.f32 %v1038, %v1180
      %v1314 = vmul.f32 %v1038, %v1184
      %v1315 = vmul.f32 %v1038, %v1188
      %v1316 = vmul.f32 %v1038, %v1192
      %v1317 = vmul.f32 %v1042, %v1180
      %v1318 = vmul.f32 %v1042, %v1184
      %v1319 = vmul.f32 %v1042, %v1188
      %v1320 = vmul.f32 %v1042, %v1192
      %v1321 = vmul.f32 %v1046, %v1180
      %v1322 = vmul.f32 %v1046, %v1184
      %v1323 = vmul.f32 %v1046, %v1188
      %v1324 = vmul.f32 %v1046, %v1192
      %v1325 = vmul.f32 %v1050, %v1180
      %v1326 = vmul.f32 %v1050, %v1184
      %v1327 = vmul.f32 %v1050, %v1188
      %v1328 = vmul.f32 %v1050, %v1192
      %v1329 = vmul.f32 %v1054, %v1180
      %v1330 = vmul.f32 %v1054, %v1184
      %v1331 = vmul.f32 %v1054, %v1188
      %v1332 = vmul.f32 %v1054, %v1192
      %v1333 = vmul.f32 %v1058, %v1180
      %v1334 = vmul.f32 %v1058, %v1184
      %v1335 = vmul.f32 %v1058, %v1188
      %v1336 = vmul.f32 %v1058, %v1192
      %v1337 = vmul.f32 %v1062, %v1180
      %v1338 = vmul.f32 %v1062, %v1184
      %v1339 = vmul.f32 %v1062, %v1188
      %v1340 = vmul.f32 %v1062, %v1192
      %v1341 = vmul.f32 %v1066, %v1180
      %v1342 = vmul.f32 %v1066, %v1184
      %v1343 = vmul.f32 %v1066, %v1188
      %v1344 = vmul.f32 %v1066, %v1192
      %v1345 = vmul.f32 %v1070, %v1180
      %v1346 = vmul.f32 %v1070, %v1184
      %v1347 = vmul.f32 %v1070, %v1188
      %v1348 = vmul.f32 %v1070, %v1192
      %v1349 = vmul.f32 %v1074, %v1180
      %v1350 = vmul.f32 %v1074, %v1184
      %v1351 = vmul.f32 %v1074, %v1188
      %v1352 = vmul.f32 %v1074, %v1192
      %v1353 = vmul.f32 %v1078, %v1180
      %v1354 = vmul.f32 %v1078, %v1184
      %v1355 = vmul.f32 %v1078, %v1188
      %v1356 = vmul.f32 %v1078, %v1192
      %v1357 = vmul.f32 %v1082, %v1180
      %v1358 = vmul.f32 %v1082, %v1184
      %v1359 = vmul.f32 %v1082, %v1188
      %v1360 = vmul.f32 %v1082, %v1192
      %v1361 = vmul.f32 %v1086, %v1180
      %v1362 = vmul.f32 %v1086, %v1184
      %v1363 = vmul.f32 %v1086, %v1188
      %v1364 = vmul.f32 %v1086, %v1192
      %v1365 = vmul.f32 %v1090, %v1180
      %v1366 = vmul.f32 %v1090, %v1184
      %v1367 = vmul.f32 %v1090, %v1188
      %v1368 = vmul.f32 %v1090, %v1192
      %v1369 = vmul.f32 %v1094, %v1180
      %v1370 = vmul.f32 %v1094, %v1184
      %v1371 = vmul.f32 %v1094, %v1188
      %v1372 = vmul.f32 %v1094, %v1192
      %v1373 = vmul.f32 %v1098, %v1180
      %v1374 = vmul.f32 %v1098, %v1184
      %v1375 = vmul.f32 %v1098, %v1188
      %v1376 = vmul.f32 %v1098, %v1192
      %v1377 = vmul.f32 %v1102, %v1180
      %v1378 = vmul.f32 %v1102, %v1184
      %v1379 = vmul.f32 %v1102, %v1188
      %v1380 = vmul.f32 %v1102, %v1192
      %v1381 = vmul.f32 %v1106, %v1180
      %v1382 = vmul.f32 %v1106, %v1184
      %v1383 = vmul.f32 %v1106, %v1188
      %v1384 = vmul.f32 %v1106, %v1192
      %v1385 = vmul.f32 %v1110, %v1180
      %v1386 = vmul.f32 %v1110, %v1184
      %v1387 = vmul.f32 %v1110, %v1188
      %v1388 = vmul.f32 %v1110, %v1192
      %v1389 = vmul.f32 %v1114, %v1180
      %v1390 = vmul.f32 %v1114, %v1184
      %v1391 = vmul.f32 %v1114, %v1188
      %v1392 = vmul.f32 %v1114, %v1192
      %v1393 = vmul.f32 %v1118, %v1180
      %v1394 = vmul.f32 %v1118, %v1184
      %v1395 = vmul.f32 %v1118, %v1188
      %v1396 = vmul.f32 %v1118, %v1192
      %v1397 = vmul.f32 %v1122, %v1180
      %v1398 = vmul.f32 %v1122, %v1184
      %v1399 = vmul.f32 %v1122, %v1188
      %v1400 = vmul.f32 %v1122, %v1192
      %v1401 = vmul.f32 %v1126, %v1180
      %v1402 = vmul.f32 %v1126, %v1184
      %v1403 = vmul.f32 %v1126, %v1188
      %v1404 = vmul.f32 %v1126, %v1192
      %v1405 = vmul.f32 %v1130, %v1180
      %v1406 = vmul.f32 %v1130, %v1184
      %v1407 = vmul.f32 %v1130, %v1188
      %v1408 = vmul.f32 %v1130, %v1192
      %v1409 = vmul.f32 %v1134, %v1180
      %v1410 = vmul.f32 %v1134, %v1184
      %v1411 = vmul.f32 %v1134, %v1188
      %v1412 = vmul.f32 %v1134, %v1192
      %v1413 = vmul.f32 %v1138, %v1180
      %v1414 = vmul.f32 %v1138, %v1184
      %v1415 = vmul.f32 %v1138, %v1188
      %v1416 = vmul.f32 %v1138, %v1192
      %v1417 = vmul.f32 %v1142, %v1180
      %v1418 = vmul.f32 %v1142, %v1184
      %v1419 = vmul.f32 %v1142, %v1188
      %v1420 = vmul.f32 %v1142, %v1192
      %v1421 = vmul.f32 %v1146, %v1180
      %v1422 = vmul.f32 %v1146, %v1184
      %v1423 = vmul.f32 %v1146, %v1188
      %v1424 = vmul.f32 %v1146, %v1192
      %v1425 = vmul.f32 %v1150, %v1180
      %v1426 = vmul.f32 %v1150, %v1184
      %v1427 = vmul.f32 %v1150, %v1188
      %v1428 = vmul.f32 %v1150, %v1192
      %v1429 = vmul.f32 %v1154, %v1180
      %v1430 = vmul.f32 %v1154, %v1184
      %v1431 = vmul.f32 %v1154, %v1188
      %v1432 = vmul.f32 %v1154, %v1192
      %v1433 = vmul.f32 %v1158, %v1180
      %v1434 = vmul.f32 %v1158, %v1184
      %v1435 = vmul.f32 %v1158, %v1188
      %v1436 = vmul.f32 %v1158, %v1192
      %v1437 = vmul.f32 %v1162, %v1180
      %v1438 = vmul.f32 %v1162, %v1184
      %v1439 = vmul.f32 %v1162, %v1188
      %v1440 = vmul.f32 %v1162, %v1192
      %v1441 = vmul.f32 %v1166, %v1180
      %v1442 = vmul.f32 %v1166, %v1184
      %v1443 = vmul.f32 %v1166, %v1188
      %v1444 = vmul.f32 %v1166, %v1192
      %v1445 = vmul.f32 %v1170, %v1180
      %v1446 = vmul.f32 %v1170, %v1184
      %v1447 = vmul.f32 %v1170, %v1188
      %v1448 = vmul.f32 %v1170, %v1192
      %v1449 = vmul.f32 %v1174, %v1180
      %v1450 = vmul.f32 %v1174, %v1184
      %v1451 = vmul.f32 %v1174, %v1188
      %v1452 = vmul.f32 %v1174, %v1192
      %v1453 = vadd.f32 %v662, %v1197
      %v1454 = vadd.f32 %v663, %v1198
      %v1455 = vadd.f32 %v664, %v1199
      %v1456 = vadd.f32 %v665, %v1200
      %v1457 = vadd.f32 %v666, %v1201
      %v1458 = vadd.f32 %v667, %v1202
      %v1459 = vadd.f32 %v668, %v1203
      %v1460 = vadd.f32 %v669, %v1204
      %v1461 = vadd.f32 %v670, %v1205
      %v1462 = vadd.f32 %v671, %v1206
      %v1463 = vadd.f32 %v672, %v1207
      %v1464 = vadd.f32 %v673, %v1208
      %v1465 = vadd.f32 %v674, %v1209
      %v1466 = vadd.f32 %v675, %v1210
      %v1467 = vadd.f32 %v676, %v1211
      %v1468 = vadd.f32 %v677, %v1212
      %v1469 = vadd.f32 %v678, %v1213
      %v1470 = vadd.f32 %v679, %v1214
      %v1471 = vadd.f32 %v680, %v1215
      %v1472 = vadd.f32 %v681, %v1216
      %v1473 = vadd.f32 %v682, %v1217
      %v1474 = vadd.f32 %v683, %v1218
      %v1475 = vadd.f32 %v684, %v1219
      %v1476 = vadd.f32 %v685, %v1220
      %v1477 = vadd.f32 %v686, %v1221
      %v1478 = vadd.f32 %v687, %v1222
      %v1479 = vadd.f32 %v688, %v1223
      %v1480 = vadd.f32 %v689, %v1224
      %v1481 = vadd.f32 %v690, %v1225
      %v1482 = vadd.f32 %v691, %v1226
      %v1483 = vadd.f32 %v692, %v1227
      %v1484 = vadd.f32 %v693, %v1228
      %v1485 = vadd.f32 %v694, %v1229
      %v1486 = vadd.f32 %v695, %v1230
      %v1487 = vadd.f32 %v696, %v1231
      %v1488 = vadd.f32 %v697, %v1232
      %v1489 = vadd.f32 %v698, %v1233
      %v1490 = vadd.f32 %v699, %v1234
      %v1491 = vadd.f32 %v700, %v1235
      %v1492 = vadd.f32 %v701, %v1236
      %v1493 = vadd.f32 %v702, %v1237
      %v1494 = vadd.f32 %v703, %v1238
      %v1495 = vadd.f32 %v704, %v1239
      %v1496 = vadd.f32 %v705, %v1240
      %v1497 = vadd.f32 %v706, %v1241
      %v1498 = vadd.f32 %v707, %v1242
      %v1499 = vadd.f32 %v708, %v1243
      %v1500 = vadd.f32 %v709, %v1244
      %v1501 = vadd.f32 %v710, %v1245
      %v1502 = vadd.f32 %v711, %v1246
      %v1503 = vadd.f32 %v712, %v1247
      %v1504 = vadd.f32 %v713, %v1248
      %v1505 = vadd.f32 %v714, %v1249
      %v1506 = vadd.f32 %v715, %v1250
      %v1507 = vadd.f32 %v716, %v1251
      %v1508 = vadd.f32 %v717, %v1252
      %v1509 = vadd.f32 %v718, %v1253
      %v1510 = vadd.f32 %v719, %v1254
      %v1511 = vadd.f32 %v720, %v1255
      %v1512 = vadd.f32 %v721, %v1256
      %v1513 = vadd.f32 %v722, %v1257
      %v1514 = vadd.f32 %v723, %v1258
      %v1515 = vadd.f32 %v724, %v1259
      %v1516 = vadd.f32 %v725, %v1260
      %v1517 = vadd.f32 %v726, %v1261
      %v1518 = vadd.f32 %v727, %v1262
      %v1519 = vadd.f32 %v728, %v1263
      %v1520 = vadd.f32 %v729, %v1264
      %v1521 = vadd.f32 %v730, %v1265
      %v1522 = vadd.f32 %v731, %v1266
      %v1523 = vadd.f32 %v732, %v1267
      %v1524 = vadd.f32 %v733, %v1268
      %v1525 = vadd.f32 %v734, %v1269
      %v1526 = vadd.f32 %v735, %v1270
      %v1527 = vadd.f32 %v736, %v1271
      %v1528 = vadd.f32 %v737, %v1272
      %v1529 = vadd.f32 %v738, %v1273
      %v1530 = vadd.f32 %v739, %v1274
      %v1531 = vadd.f32 %v740, %v1275
      %v1532 = vadd.f32 %v741, %v1276
      %v1533 = vadd.f32 %v742, %v1277
      %v1534 = vadd.f32 %v743, %v1278
      %v1535 = vadd.f32 %v744, %v1279
      %v1536 = vadd.f32 %v745, %v1280
      %v1537 = vadd.f32 %v746, %v1281
      %v1538 = vadd.f32 %v747, %v1282
      %v1539 = vadd.f32 %v748, %v1283
      %v1540 = vadd.f32 %v749, %v1284
      %v1541 = vadd.f32 %v750, %v1285
      %v1542 = vadd.f32 %v751, %v1286
      %v1543 = vadd.f32 %v752, %v1287
      %v1544 = vadd.f32 %v753, %v1288
      %v1545 = vadd.f32 %v754, %v1289
      %v1546 = vadd.f32 %v755, %v1290
      %v1547 = vadd.f32 %v756, %v1291
      %v1548 = vadd.f32 %v757, %v1292
      %v1549 = vadd.f32 %v758, %v1293
      %v1550 = vadd.f32 %v759, %v1294
      %v1551 = vadd.f32 %v760, %v1295
      %v1552 = vadd.f32 %v761, %v1296
      %v1553 = vadd.f32 %v762, %v1297
      %v1554 = vadd.f32 %v763, %v1298
      %v1555 = vadd.f32 %v764, %v1299
      %v1556 = vadd.f32 %v765, %v1300
      %v1557 = vadd.f32 %v766, %v1301
      %v1558 = vadd.f32 %v767, %v1302
      %v1559 = vadd.f32 %v768, %v1303
      %v1560 = vadd.f32 %v769, %v1304
      %v1561 = vadd.f32 %v770, %v1305
      %v1562 = vadd.f32 %v771, %v1306
      %v1563 = vadd.f32 %v772, %v1307
      %v1564 = vadd.f32 %v773, %v1308
      %v1565 = vadd.f32 %v774, %v1309
      %v1566 = vadd.f32 %v775, %v1310
      %v1567 = vadd.f32 %v776, %v1311
      %v1568 = vadd.f32 %v777, %v1312
      %v1569 = vadd.f32 %v778, %v1313
      %v1570 = vadd.f32 %v779, %v1314
      %v1571 = vadd.f32 %v780, %v1315
      %v1572 = vadd.f32 %v781, %v1316
      %v1573 = vadd.f32 %v782, %v1317
      %v1574 = vadd.f32 %v783, %v1318
      %v1575 = vadd.f32 %v784, %v1319
      %v1576 = vadd.f32 %v785, %v1320
      %v1577 = vadd.f32 %v786, %v1321
      %v1578 = vadd.f32 %v787, %v1322
      %v1579 = vadd.f32 %v788, %v1323
      %v1580 = vadd.f32 %v789, %v1324
      %v1581 = vadd.f32 %v790, %v1325
      %v1582 = vadd.f32 %v791, %v1326
      %v1583 = vadd.f32 %v792, %v1327
      %v1584 = vadd.f32 %v793, %v1328
      %v1585 = vadd.f32 %v794, %v1329
      %v1586 = vadd.f32 %v795, %v1330
      %v1587 = vadd.f32 %v796, %v1331
      %v1588 = vadd.f32 %v797, %v1332
      %v1589 = vadd.f32 %v798, %v1333
      %v1590 = vadd.f32 %v799, %v1334
      %v1591 = vadd.f32 %v800, %v1335
      %v1592 = vadd.f32 %v801, %v1336
      %v1593 = vadd.f32 %v802, %v1337
      %v1594 = vadd.f32 %v803, %v1338
      %v1595 = vadd.f32 %v804, %v1339
      %v1596 = vadd.f32 %v805, %v1340
      %v1597 = vadd.f32 %v806, %v1341
      %v1598 = vadd.f32 %v807, %v1342
      %v1599 = vadd.f32 %v808, %v1343
      %v1600 = vadd.f32 %v809, %v1344
      %v1601 = vadd.f32 %v810, %v1345
      %v1602 = vadd.f32 %v811, %v1346
      %v1603 = vadd.f32 %v812, %v1347
      %v1604 = vadd.f32 %v813, %v1348
      %v1605 = vadd.f32 %v814, %v1349
      %v1606 = vadd.f32 %v815, %v1350
      %v1607 = vadd.f32 %v816, %v1351
      %v1608 = vadd.f32 %v817, %v1352
      %v1609 = vadd.f32 %v818, %v1353
      %v1610 = vadd.f32 %v819, %v1354
      %v1611 = vadd.f32 %v820, %v1355
      %v1612 = vadd.f32 %v821, %v1356
      %v1613 = vadd.f32 %v822, %v1357
      %v1614 = vadd.f32 %v823, %v1358
      %v1615 = vadd.f32 %v824, %v1359
      %v1616 = vadd.f32 %v825, %v1360
      %v1617 = vadd.f32 %v826, %v1361
      %v1618 = vadd.f32 %v827, %v1362
      %v1619 = vadd.f32 %v828, %v1363
      %v1620 = vadd.f32 %v829, %v1364
      %v1621 = vadd.f32 %v830, %v1365
      %v1622 = vadd.f32 %v831, %v1366
      %v1623 = vadd.f32 %v832, %v1367
      %v1624 = vadd.f32 %v833, %v1368
      %v1625 = vadd.f32 %v834, %v1369
      %v1626 = vadd.f32 %v835, %v1370
      %v1627 = vadd.f32 %v836, %v1371
      %v1628 = vadd.f32 %v837, %v1372
      %v1629 = vadd.f32 %v838, %v1373
      %v1630 = vadd.f32 %v839, %v1374
      %v1631 = vadd.f32 %v840, %v1375
      %v1632 = vadd.f32 %v841, %v1376
      %v1633 = vadd.f32 %v842, %v1377
      %v1634 = vadd.f32 %v843, %v1378
      %v1635 = vadd.f32 %v844, %v1379
      %v1636 = vadd.f32 %v845, %v1380
      %v1637 = vadd.f32 %v846, %v1381
      %v1638 = vadd.f32 %v847, %v1382
      %v1639 = vadd.f32 %v848, %v1383
      %v1640 = vadd.f32 %v849, %v1384
      %v1641 = vadd.f32 %v850, %v1385
      %v1642 = vadd.f32 %v851, %v1386
      %v1643 = vadd.f32 %v852, %v1387
      %v1644 = vadd.f32 %v853, %v1388
      %v1645 = vadd.f32 %v854, %v1389
      %v1646 = vadd.f32 %v855, %v1390
      %v1647 = vadd.f32 %v856, %v1391
      %v1648 = vadd.f32 %v857, %v1392
      %v1649 = vadd.f32 %v858, %v1393
      %v1650 = vadd.f32 %v859, %v1394
      %v1651 = vadd.f32 %v860, %v1395
      %v1652 = vadd.f32 %v861, %v1396
      %v1653 = vadd.f32 %v862, %v1397
      %v1654 = vadd.f32 %v863, %v1398
      %v1655 = vadd.f32 %v864, %v1399
      %v1656 = vadd.f32 %v865, %v1400
      %v1657 = vadd.f32 %v866, %v1401
      %v1658 = vadd.f32 %v867, %v1402
      %v1659 = vadd.f32 %v868, %v1403
      %v1660 = vadd.f32 %v869, %v1404
      %v1661 = vadd.f32 %v870, %v1405
      %v1662 = vadd.f32 %v871, %v1406
      %v1663 = vadd.f32 %v872, %v1407
      %v1664 = vadd.f32 %v873, %v1408
      %v1665 = vadd.f32 %v874, %v1409
      %v1666 = vadd.f32 %v875, %v1410
      %v1667 = vadd.f32 %v876, %v1411
      %v1668 = vadd.f32 %v877, %v1412
      %v1669 = vadd.f32 %v878, %v1413
      %v1670 = vadd.f32 %v879, %v1414
      %v1671 = vadd.f32 %v880, %v1415
      %v1672 = vadd.f32 %v881, %v1416
      %v1673 = vadd.f32 %v882, %v1417
      %v1674 = vadd.f32 %v883, %v1418
      %v1675 = vadd.f32 %v884, %v1419
      %v1676 = vadd.f32 %v885, %v1420
      %v1677 = vadd.f32 %v886, %v1421
      %v1678 = vadd.f32 %v887, %v1422
      %v1679 = vadd.f32 %v888, %v1423
      %v1680 = vadd.f32 %v889, %v1424
      %v1681 = vadd.f32 %v890, %v1425
      %v1682 = vadd.f32 %v891, %v1426
      %v1683 = vadd.f32 %v892, %v1427
      %v1684 = vadd.f32 %v893, %v1428
      %v1685 = vadd.f32 %v894, %v1429
      %v1686 = vadd.f32 %v895, %v1430
      %v1687 = vadd.f32 %v896, %v1431
      %v1688 = vadd.f32 %v897, %v1432
      %v1689 = vadd.f32 %v898, %v1433
      %v1690 = vadd.f32 %v899, %v1434
      %v1691 = vadd.f32 %v900, %v1435
      %v1692 = vadd.f32 %v901, %v1436
      %v1693 = vadd.f32 %v902, %v1437
      %v1694 = vadd.f32 %v903, %v1438
      %v1695 = vadd.f32 %v904, %v1439
      %v1696 = vadd.f32 %v905, %v1440
      %v1697 = vadd.f32 %v906, %v1441
      %v1698 = vadd.f32 %v907, %v1442
      %v1699 = vadd.f32 %v908, %v1443
      %v1700 = vadd.f32 %v909, %v1444
      %v1701 = vadd.f32 %v910, %v1445
      %v1702 = vadd.f32 %v911, %v1446
      %v1703 = vadd.f32 %v912, %v1447
      %v1704 = vadd.f32 %v913, %v1448
      %v1705 = vadd.f32 %v914, %v1449
      %v1706 = vadd.f32 %v915, %v1450
      %v1707 = vadd.f32 %v916, %v1451
      %v1708 = vadd.f32 %v917, %v1452
      %s1709 = scalar_lea.vmem %s1, 2
      %v1710 = vld [vmem:[%s1709] ss:$4 sm:$0xf]
      %1711 = vset.pattern.permute.xlu0 2
      %1712 = vperm.xlu0 %1711, %v256
      %v1713 = vpop.permute.xlu0 %1712
      %1715 = vset.pattern.permute.xlu0 2
      %1716 = vperm.xlu0 %1715, %v257
      %v1717 = vpop.permute.xlu0 %1716
      %1719 = vset.pattern.permute.xlu0 2
      %1720 = vperm.xlu0 %1719, %v258
      %v1721 = vpop.permute.xlu0 %1720
      %1723 = vset.pattern.permute.xlu0 2
      %1724 = vperm.xlu0 %1723, %v259
      %v1725 = vpop.permute.xlu0 %1724
      %1727 = vset.pattern.permute.xlu0 2
      %1728 = vperm.xlu0 %1727, %v260
      %v1729 = vpop.permute.xlu0 %1728
      %1731 = vset.pattern.permute.xlu0 2
      %1732 = vperm.xlu0 %1731, %v261
      %v1733 = vpop.permute.xlu0 %1732
      %1735 = vset.pattern.permute.xlu0 2
      %1736 = vperm.xlu0 %1735, %v262
      %v1737 = vpop.permute.xlu0 %1736
      %1739 = vset.pattern.permute.xlu0 2
      %1740 = vperm.xlu0 %1739, %v263
      %v1741 = vpop.permute.xlu0 %1740
      %1743 = vset.pattern.permute.xlu0 2
      %1744 = vperm.xlu0 %1743, %v264
      %v1745 = vpop.permute.xlu0 %1744
      %1747 = vset.pattern.permute.xlu0 2
      %1748 = vperm.xlu0 %1747, %v265
      %v1749 = vpop.permute.xlu0 %1748
      %1751 = vset.pattern.permute.xlu0 2
      %1752 = vperm.xlu0 %1751, %v266
      %v1753 = vpop.permute.xlu0 %1752
      %1755 = vset.pattern.permute.xlu0 2
      %1756 = vperm.xlu0 %1755, %v267
      %v1757 = vpop.permute.xlu0 %1756
      %1759 = vset.pattern.permute.xlu0 2
      %1760 = vperm.xlu0 %1759, %v268
      %v1761 = vpop.permute.xlu0 %1760
      %1763 = vset.pattern.permute.xlu0 2
      %1764 = vperm.xlu0 %1763, %v269
      %v1765 = vpop.permute.xlu0 %1764
      %1767 = vset.pattern.permute.xlu0 2
      %1768 = vperm.xlu0 %1767, %v270
      %v1769 = vpop.permute.xlu0 %1768
      %1771 = vset.pattern.permute.xlu0 2
      %1772 = vperm.xlu0 %1771, %v271
      %v1773 = vpop.permute.xlu0 %1772
      %1775 = vset.pattern.permute.xlu0 2
      %1776 = vperm.xlu0 %1775, %v272
      %v1777 = vpop.permute.xlu0 %1776
      %1779 = vset.pattern.permute.xlu0 2
      %1780 = vperm.xlu0 %1779, %v273
      %v1781 = vpop.permute.xlu0 %1780
      %1783 = vset.pattern.permute.xlu0 2
      %1784 = vperm.xlu0 %1783, %v274
      %v1785 = vpop.permute.xlu0 %1784
      %1787 = vset.pattern.permute.xlu0 2
      %1788 = vperm.xlu0 %1787, %v275
      %v1789 = vpop.permute.xlu0 %1788
      %1791 = vset.pattern.permute.xlu0 2
      %1792 = vperm.xlu0 %1791, %v276
      %v1793 = vpop.permute.xlu0 %1792
      %1795 = vset.pattern.permute.xlu0 2
      %1796 = vperm.xlu0 %1795, %v277
      %v1797 = vpop.permute.xlu0 %1796
      %1799 = vset.pattern.permute.xlu0 2
      %1800 = vperm.xlu0 %1799, %v278
      %v1801 = vpop.permute.xlu0 %1800
      %1803 = vset.pattern.permute.xlu0 2
      %1804 = vperm.xlu0 %1803, %v279
      %v1805 = vpop.permute.xlu0 %1804
      %1807 = vset.pattern.permute.xlu0 2
      %1808 = vperm.xlu0 %1807, %v280
      %v1809 = vpop.permute.xlu0 %1808
      %1811 = vset.pattern.permute.xlu0 2
      %1812 = vperm.xlu0 %1811, %v281
      %v1813 = vpop.permute.xlu0 %1812
      %1815 = vset.pattern.permute.xlu0 2
      %1816 = vperm.xlu0 %1815, %v282
      %v1817 = vpop.permute.xlu0 %1816
      %1819 = vset.pattern.permute.xlu0 2
      %1820 = vperm.xlu0 %1819, %v283
      %v1821 = vpop.permute.xlu0 %1820
      %1823 = vset.pattern.permute.xlu0 2
      %1824 = vperm.xlu0 %1823, %v284
      %v1825 = vpop.permute.xlu0 %1824
      %1827 = vset.pattern.permute.xlu0 2
      %1828 = vperm.xlu0 %1827, %v285
      %v1829 = vpop.permute.xlu0 %1828
      %1831 = vset.pattern.permute.xlu0 2
      %1832 = vperm.xlu0 %1831, %v286
      %v1833 = vpop.permute.xlu0 %1832
      %1835 = vset.pattern.permute.xlu0 2
      %1836 = vperm.xlu0 %1835, %v287
      %v1837 = vpop.permute.xlu0 %1836
      %1839 = vset.pattern.permute.xlu0 2
      %1840 = vperm.xlu0 %1839, %v288
      %v1841 = vpop.permute.xlu0 %1840
      %1843 = vset.pattern.permute.xlu0 2
      %1844 = vperm.xlu0 %1843, %v289
      %v1845 = vpop.permute.xlu0 %1844
      %1847 = vset.pattern.permute.xlu0 2
      %1848 = vperm.xlu0 %1847, %v290
      %v1849 = vpop.permute.xlu0 %1848
      %1851 = vset.pattern.permute.xlu0 2
      %1852 = vperm.xlu0 %1851, %v291
      %v1853 = vpop.permute.xlu0 %1852
      %1855 = vset.pattern.permute.xlu0 2
      %1856 = vperm.xlu0 %1855, %v292
      %v1857 = vpop.permute.xlu0 %1856
      %1859 = vset.pattern.permute.xlu0 2
      %1860 = vperm.xlu0 %1859, %v293
      %v1861 = vpop.permute.xlu0 %1860
      %1863 = vset.pattern.permute.xlu0 2
      %1864 = vperm.xlu0 %1863, %v294
      %v1865 = vpop.permute.xlu0 %1864
      %1867 = vset.pattern.permute.xlu0 2
      %1868 = vperm.xlu0 %1867, %v295
      %v1869 = vpop.permute.xlu0 %1868
      %1871 = vset.pattern.permute.xlu0 2
      %1872 = vperm.xlu0 %1871, %v296
      %v1873 = vpop.permute.xlu0 %1872
      %1875 = vset.pattern.permute.xlu0 2
      %1876 = vperm.xlu0 %1875, %v297
      %v1877 = vpop.permute.xlu0 %1876
      %1879 = vset.pattern.permute.xlu0 2
      %1880 = vperm.xlu0 %1879, %v298
      %v1881 = vpop.permute.xlu0 %1880
      %1883 = vset.pattern.permute.xlu0 2
      %1884 = vperm.xlu0 %1883, %v299
      %v1885 = vpop.permute.xlu0 %1884
      %1887 = vset.pattern.permute.xlu0 2
      %1888 = vperm.xlu0 %1887, %v300
      %v1889 = vpop.permute.xlu0 %1888
      %1891 = vset.pattern.permute.xlu0 2
      %1892 = vperm.xlu0 %1891, %v301
      %v1893 = vpop.permute.xlu0 %1892
      %1895 = vset.pattern.permute.xlu0 2
      %1896 = vperm.xlu0 %1895, %v302
      %v1897 = vpop.permute.xlu0 %1896
      %1899 = vset.pattern.permute.xlu0 2
      %1900 = vperm.xlu0 %1899, %v303
      %v1901 = vpop.permute.xlu0 %1900
      %1903 = vset.pattern.permute.xlu0 2
      %1904 = vperm.xlu0 %1903, %v304
      %v1905 = vpop.permute.xlu0 %1904
      %1907 = vset.pattern.permute.xlu0 2
      %1908 = vperm.xlu0 %1907, %v305
      %v1909 = vpop.permute.xlu0 %1908
      %1911 = vset.pattern.permute.xlu0 2
      %1912 = vperm.xlu0 %1911, %v306
      %v1913 = vpop.permute.xlu0 %1912
      %1915 = vset.pattern.permute.xlu0 2
      %1916 = vperm.xlu0 %1915, %v307
      %v1917 = vpop.permute.xlu0 %1916
      %1919 = vset.pattern.permute.xlu0 2
      %1920 = vperm.xlu0 %1919, %v308
      %v1921 = vpop.permute.xlu0 %1920
      %1923 = vset.pattern.permute.xlu0 2
      %1924 = vperm.xlu0 %1923, %v309
      %v1925 = vpop.permute.xlu0 %1924
      %1927 = vset.pattern.permute.xlu0 2
      %1928 = vperm.xlu0 %1927, %v310
      %v1929 = vpop.permute.xlu0 %1928
      %1931 = vset.pattern.permute.xlu0 2
      %1932 = vperm.xlu0 %1931, %v311
      %v1933 = vpop.permute.xlu0 %1932
      %1935 = vset.pattern.permute.xlu0 2
      %1936 = vperm.xlu0 %1935, %v312
      %v1937 = vpop.permute.xlu0 %1936
      %1939 = vset.pattern.permute.xlu0 2
      %1940 = vperm.xlu0 %1939, %v313
      %v1941 = vpop.permute.xlu0 %1940
      %1943 = vset.pattern.permute.xlu0 2
      %1944 = vperm.xlu0 %1943, %v314
      %v1945 = vpop.permute.xlu0 %1944
      %1947 = vset.pattern.permute.xlu0 2
      %1948 = vperm.xlu0 %1947, %v315
      %v1949 = vpop.permute.xlu0 %1948
      %1951 = vset.pattern.permute.xlu0 2
      %1952 = vperm.xlu0 %1951, %v316
      %v1953 = vpop.permute.xlu0 %1952
      %1955 = vset.pattern.permute.xlu0 2
      %1956 = vperm.xlu0 %1955, %v317
      %v1957 = vpop.permute.xlu0 %1956
      %1959 = vset.pattern.permute.xlu0 2
      %1960 = vperm.xlu0 %1959, %v318
      %v1961 = vpop.permute.xlu0 %1960
      %1963 = vset.pattern.permute.xlu0 2
      %1964 = vperm.xlu0 %1963, %v319
      %v1965 = vpop.permute.xlu0 %1964
      %v1968 = vlaneseq
      %v1969 = vshrl.u32 %v1968, 7
      %v1970 = vsub.s32 0, %v1969
      %v1971 = vrot.slane %v1710, %v1970
      %v1972 = vlaneseq
      %v1973 = vshrl.u32 %v1972, 7
      %v1974 = vsub.s32 1, %v1973
      %v1975 = vrot.slane %v1710, %v1974
      %v1976 = vlaneseq
      %v1977 = vshrl.u32 %v1976, 7
      %v1978 = vsub.s32 2, %v1977
      %v1979 = vrot.slane %v1710, %v1978
      %v1980 = vlaneseq
      %v1981 = vshrl.u32 %v1980, 7
      %v1982 = vsub.s32 3, %v1981
      %v1983 = vrot.slane %v1710, %v1982
      %v1988 = vmul.f32 %v1713, %v1971
      %v1989 = vmul.f32 %v1713, %v1975
      %v1990 = vmul.f32 %v1713, %v1979
      %v1991 = vmul.f32 %v1713, %v1983
      %v1992 = vmul.f32 %v1717, %v1971
      %v1993 = vmul.f32 %v1717, %v1975
      %v1994 = vmul.f32 %v1717, %v1979
      %v1995 = vmul.f32 %v1717, %v1983
      %v1996 = vmul.f32 %v1721, %v1971
      %v1997 = vmul.f32 %v1721, %v1975
      %v1998 = vmul.f32 %v1721, %v1979
      %v1999 = vmul.f32 %v1721, %v1983
      %v2000 = vmul.f32 %v1725, %v1971
      %v2001 = vmul.f32 %v1725, %v1975
      %v2002 = vmul.f32 %v1725, %v1979
      %v2003 = vmul.f32 %v1725, %v1983
      %v2004 = vmul.f32 %v1729, %v1971
      %v2005 = vmul.f32 %v1729, %v1975
      %v2006 = vmul.f32 %v1729, %v1979
      %v2007 = vmul.f32 %v1729, %v1983
      %v2008 = vmul.f32 %v1733, %v1971
      %v2009 = vmul.f32 %v1733, %v1975
      %v2010 = vmul.f32 %v1733, %v1979
      %v2011 = vmul.f32 %v1733, %v1983
      %v2012 = vmul.f32 %v1737, %v1971
      %v2013 = vmul.f32 %v1737, %v1975
      %v2014 = vmul.f32 %v1737, %v1979
      %v2015 = vmul.f32 %v1737, %v1983
      %v2016 = vmul.f32 %v1741, %v1971
      %v2017 = vmul.f32 %v1741, %v1975
      %v2018 = vmul.f32 %v1741, %v1979
      %v2019 = vmul.f32 %v1741, %v1983
      %v2020 = vmul.f32 %v1745, %v1971
      %v2021 = vmul.f32 %v1745, %v1975
      %v2022 = vmul.f32 %v1745, %v1979
      %v2023 = vmul.f32 %v1745, %v1983
      %v2024 = vmul.f32 %v1749, %v1971
      %v2025 = vmul.f32 %v1749, %v1975
      %v2026 = vmul.f32 %v1749, %v1979
      %v2027 = vmul.f32 %v1749, %v1983
      %v2028 = vmul.f32 %v1753, %v1971
      %v2029 = vmul.f32 %v1753, %v1975
      %v2030 = vmul.f32 %v1753, %v1979
      %v2031 = vmul.f32 %v1753, %v1983
      %v2032 = vmul.f32 %v1757, %v1971
      %v2033 = vmul.f32 %v1757, %v1975
      %v2034 = vmul.f32 %v1757, %v1979
      %v2035 = vmul.f32 %v1757, %v1983
      %v2036 = vmul.f32 %v1761, %v1971
      %v2037 = vmul.f32 %v1761, %v1975
      %v2038 = vmul.f32 %v1761, %v1979
      %v2039 = vmul.f32 %v1761, %v1983
      %v2040 = vmul.f32 %v1765, %v1971
      %v2041 = vmul.f32 %v1765, %v1975
      %v2042 = vmul.f32 %v1765, %v1979
      %v2043 = vmul.f32 %v1765, %v1983
      %v2044 = vmul.f32 %v1769, %v1971
      %v2045 = vmul.f32 %v1769, %v1975
      %v2046 = vmul.f32 %v1769, %v1979
      %v2047 = vmul.f32 %v1769, %v1983
      %v2048 = vmul.f32 %v1773, %v1971
      %v2049 = vmul.f32 %v1773, %v1975
      %v2050 = vmul.f32 %v1773, %v1979
      %v2051 = vmul.f32 %v1773, %v1983
      %v2052 = vmul.f32 %v1777, %v1971
      %v2053 = vmul.f32 %v1777, %v1975
      %v2054 = vmul.f32 %v1777, %v1979
      %v2055 = vmul.f32 %v1777, %v1983
      %v2056 = vmul.f32 %v1781, %v1971
      %v2057 = vmul.f32 %v1781, %v1975
      %v2058 = vmul.f32 %v1781, %v1979
      %v2059 = vmul.f32 %v1781, %v1983
      %v2060 = vmul.f32 %v1785, %v1971
      %v2061 = vmul.f32 %v1785, %v1975
      %v2062 = vmul.f32 %v1785, %v1979
      %v2063 = vmul.f32 %v1785, %v1983
      %v2064 = vmul.f32 %v1789, %v1971
      %v2065 = vmul.f32 %v1789, %v1975
      %v2066 = vmul.f32 %v1789, %v1979
      %v2067 = vmul.f32 %v1789, %v1983
      %v2068 = vmul.f32 %v1793, %v1971
      %v2069 = vmul.f32 %v1793, %v1975
      %v2070 = vmul.f32 %v1793, %v1979
      %v2071 = vmul.f32 %v1793, %v1983
      %v2072 = vmul.f32 %v1797, %v1971
      %v2073 = vmul.f32 %v1797, %v1975
      %v2074 = vmul.f32 %v1797, %v1979
      %v2075 = vmul.f32 %v1797, %v1983
      %v2076 = vmul.f32 %v1801, %v1971
      %v2077 = vmul.f32 %v1801, %v1975
      %v2078 = vmul.f32 %v1801, %v1979
      %v2079 = vmul.f32 %v1801, %v1983
      %v2080 = vmul.f32 %v1805, %v1971
      %v2081 = vmul.f32 %v1805, %v1975
      %v2082 = vmul.f32 %v1805, %v1979
      %v2083 = vmul.f32 %v1805, %v1983
      %v2084 = vmul.f32 %v1809, %v1971
      %v2085 = vmul.f32 %v1809, %v1975
      %v2086 = vmul.f32 %v1809, %v1979
      %v2087 = vmul.f32 %v1809, %v1983
      %v2088 = vmul.f32 %v1813, %v1971
      %v2089 = vmul.f32 %v1813, %v1975
      %v2090 = vmul.f32 %v1813, %v1979
      %v2091 = vmul.f32 %v1813, %v1983
      %v2092 = vmul.f32 %v1817, %v1971
      %v2093 = vmul.f32 %v1817, %v1975
      %v2094 = vmul.f32 %v1817, %v1979
      %v2095 = vmul.f32 %v1817, %v1983
      %v2096 = vmul.f32 %v1821, %v1971
      %v2097 = vmul.f32 %v1821, %v1975
      %v2098 = vmul.f32 %v1821, %v1979
      %v2099 = vmul.f32 %v1821, %v1983
      %v2100 = vmul.f32 %v1825, %v1971
      %v2101 = vmul.f32 %v1825, %v1975
      %v2102 = vmul.f32 %v1825, %v1979
      %v2103 = vmul.f32 %v1825, %v1983
      %v2104 = vmul.f32 %v1829, %v1971
      %v2105 = vmul.f32 %v1829, %v1975
      %v2106 = vmul.f32 %v1829, %v1979
      %v2107 = vmul.f32 %v1829, %v1983
      %v2108 = vmul.f32 %v1833, %v1971
      %v2109 = vmul.f32 %v1833, %v1975
      %v2110 = vmul.f32 %v1833, %v1979
      %v2111 = vmul.f32 %v1833, %v1983
      %v2112 = vmul.f32 %v1837, %v1971
      %v2113 = vmul.f32 %v1837, %v1975
      %v2114 = vmul.f32 %v1837, %v1979
      %v2115 = vmul.f32 %v1837, %v1983
      %v2116 = vmul.f32 %v1841, %v1971
      %v2117 = vmul.f32 %v1841, %v1975
      %v2118 = vmul.f32 %v1841, %v1979
      %v2119 = vmul.f32 %v1841, %v1983
      %v2120 = vmul.f32 %v1845, %v1971
      %v2121 = vmul.f32 %v1845, %v1975
      %v2122 = vmul.f32 %v1845, %v1979
      %v2123 = vmul.f32 %v1845, %v1983
      %v2124 = vmul.f32 %v1849, %v1971
      %v2125 = vmul.f32 %v1849, %v1975
      %v2126 = vmul.f32 %v1849, %v1979
      %v2127 = vmul.f32 %v1849, %v1983
      %v2128 = vmul.f32 %v1853, %v1971
      %v2129 = vmul.f32 %v1853, %v1975
      %v2130 = vmul.f32 %v1853, %v1979
      %v2131 = vmul.f32 %v1853, %v1983
      %v2132 = vmul.f32 %v1857, %v1971
      %v2133 = vmul.f32 %v1857, %v1975
      %v2134 = vmul.f32 %v1857, %v1979
      %v2135 = vmul.f32 %v1857, %v1983
      %v2136 = vmul.f32 %v1861, %v1971
      %v2137 = vmul.f32 %v1861, %v1975
      %v2138 = vmul.f32 %v1861, %v1979
      %v2139 = vmul.f32 %v1861, %v1983
      %v2140 = vmul.f32 %v1865, %v1971
      %v2141 = vmul.f32 %v1865, %v1975
      %v2142 = vmul.f32 %v1865, %v1979
      %v2143 = vmul.f32 %v1865, %v1983
      %v2144 = vmul.f32 %v1869, %v1971
      %v2145 = vmul.f32 %v1869, %v1975
      %v2146 = vmul.f32 %v1869, %v1979
      %v2147 = vmul.f32 %v1869, %v1983
      %v2148 = vmul.f32 %v1873, %v1971
      %v2149 = vmul.f32 %v1873, %v1975
      %v2150 = vmul.f32 %v1873, %v1979
      %v2151 = vmul.f32 %v1873, %v1983
      %v2152 = vmul.f32 %v1877, %v1971
      %v2153 = vmul.f32 %v1877, %v1975
      %v2154 = vmul.f32 %v1877, %v1979
      %v2155 = vmul.f32 %v1877, %v1983
      %v2156 = vmul.f32 %v1881, %v1971
      %v2157 = vmul.f32 %v1881, %v1975
      %v2158 = vmul.f32 %v1881, %v1979
      %v2159 = vmul.f32 %v1881, %v1983
      %v2160 = vmul.f32 %v1885, %v1971
      %v2161 = vmul.f32 %v1885, %v1975
      %v2162 = vmul.f32 %v1885, %v1979
      %v2163 = vmul.f32 %v1885, %v1983
      %v2164 = vmul.f32 %v1889, %v1971
      %v2165 = vmul.f32 %v1889, %v1975
      %v2166 = vmul.f32 %v1889, %v1979
      %v2167 = vmul.f32 %v1889, %v1983
      %v2168 = vmul.f32 %v1893, %v1971
      %v2169 = vmul.f32 %v1893, %v1975
      %v2170 = vmul.f32 %v1893, %v1979
      %v2171 = vmul.f32 %v1893, %v1983
      %v2172 = vmul.f32 %v1897, %v1971
      %v2173 = vmul.f32 %v1897, %v1975
      %v2174 = vmul.f32 %v1897, %v1979
      %v2175 = vmul.f32 %v1897, %v1983
      %v2176 = vmul.f32 %v1901, %v1971
      %v2177 = vmul.f32 %v1901, %v1975
      %v2178 = vmul.f32 %v1901, %v1979
      %v2179 = vmul.f32 %v1901, %v1983
      %v2180 = vmul.f32 %v1905, %v1971
      %v2181 = vmul.f32 %v1905, %v1975
      %v2182 = vmul.f32 %v1905, %v1979
      %v2183 = vmul.f32 %v1905, %v1983
      %v2184 = vmul.f32 %v1909, %v1971
      %v2185 = vmul.f32 %v1909, %v1975
      %v2186 = vmul.f32 %v1909, %v1979
      %v2187 = vmul.f32 %v1909, %v1983
      %v2188 = vmul.f32 %v1913, %v1971
      %v2189 = vmul.f32 %v1913, %v1975
      %v2190 = vmul.f32 %v1913, %v1979
      %v2191 = vmul.f32 %v1913, %v1983
      %v2192 = vmul.f32 %v1917, %v1971
      %v2193 = vmul.f32 %v1917, %v1975
      %v2194 = vmul.f32 %v1917, %v1979
      %v2195 = vmul.f32 %v1917, %v1983
      %v2196 = vmul.f32 %v1921, %v1971
      %v2197 = vmul.f32 %v1921, %v1975
      %v2198 = vmul.f32 %v1921, %v1979
      %v2199 = vmul.f32 %v1921, %v1983
      %v2200 = vmul.f32 %v1925, %v1971
      %v2201 = vmul.f32 %v1925, %v1975
      %v2202 = vmul.f32 %v1925, %v1979
      %v2203 = vmul.f32 %v1925, %v1983
      %v2204 = vmul.f32 %v1929, %v1971
      %v2205 = vmul.f32 %v1929, %v1975
      %v2206 = vmul.f32 %v1929, %v1979
      %v2207 = vmul.f32 %v1929, %v1983
      %v2208 = vmul.f32 %v1933, %v1971
      %v2209 = vmul.f32 %v1933, %v1975
      %v2210 = vmul.f32 %v1933, %v1979
      %v2211 = vmul.f32 %v1933, %v1983
      %v2212 = vmul.f32 %v1937, %v1971
      %v2213 = vmul.f32 %v1937, %v1975
      %v2214 = vmul.f32 %v1937, %v1979
      %v2215 = vmul.f32 %v1937, %v1983
      %v2216 = vmul.f32 %v1941, %v1971
      %v2217 = vmul.f32 %v1941, %v1975
      %v2218 = vmul.f32 %v1941, %v1979
      %v2219 = vmul.f32 %v1941, %v1983
      %v2220 = vmul.f32 %v1945, %v1971
      %v2221 = vmul.f32 %v1945, %v1975
      %v2222 = vmul.f32 %v1945, %v1979
      %v2223 = vmul.f32 %v1945, %v1983
      %v2224 = vmul.f32 %v1949, %v1971
      %v2225 = vmul.f32 %v1949, %v1975
      %v2226 = vmul.f32 %v1949, %v1979
      %v2227 = vmul.f32 %v1949, %v1983
      %v2228 = vmul.f32 %v1953, %v1971
      %v2229 = vmul.f32 %v1953, %v1975
      %v2230 = vmul.f32 %v1953, %v1979
      %v2231 = vmul.f32 %v1953, %v1983
      %v2232 = vmul.f32 %v1957, %v1971
      %v2233 = vmul.f32 %v1957, %v1975
      %v2234 = vmul.f32 %v1957, %v1979
      %v2235 = vmul.f32 %v1957, %v1983
      %v2236 = vmul.f32 %v1961, %v1971
      %v2237 = vmul.f32 %v1961, %v1975
      %v2238 = vmul.f32 %v1961, %v1979
      %v2239 = vmul.f32 %v1961, %v1983
      %v2240 = vmul.f32 %v1965, %v1971
      %v2241 = vmul.f32 %v1965, %v1975
      %v2242 = vmul.f32 %v1965, %v1979
      %v2243 = vmul.f32 %v1965, %v1983
      %v2244 = vadd.f32 %v1453, %v1988
      %v2245 = vadd.f32 %v1454, %v1989
      %v2246 = vadd.f32 %v1455, %v1990
      %v2247 = vadd.f32 %v1456, %v1991
      %v2248 = vadd.f32 %v1457, %v1992
      %v2249 = vadd.f32 %v1458, %v1993
      %v2250 = vadd.f32 %v1459, %v1994
      %v2251 = vadd.f32 %v1460, %v1995
      %v2252 = vadd.f32 %v1461, %v1996
      %v2253 = vadd.f32 %v1462, %v1997
      %v2254 = vadd.f32 %v1463, %v1998
      %v2255 = vadd.f32 %v1464, %v1999
      %v2256 = vadd.f32 %v1465, %v2000
      %v2257 = vadd.f32 %v1466, %v2001
      %v2258 = vadd.f32 %v1467, %v2002
      %v2259 = vadd.f32 %v1468, %v2003
      %v2260 = vadd.f32 %v1469, %v2004
      %v2261 = vadd.f32 %v1470, %v2005
      %v2262 = vadd.f32 %v1471, %v2006
      %v2263 = vadd.f32 %v1472, %v2007
      %v2264 = vadd.f32 %v1473, %v2008
      %v2265 = vadd.f32 %v1474, %v2009
      %v2266 = vadd.f32 %v1475, %v2010
      %v2267 = vadd.f32 %v1476, %v2011
      %v2268 = vadd.f32 %v1477, %v2012
      %v2269 = vadd.f32 %v1478, %v2013
      %v2270 = vadd.f32 %v1479, %v2014
      %v2271 = vadd.f32 %v1480, %v2015
      %v2272 = vadd.f32 %v1481, %v2016
      %v2273 = vadd.f32 %v1482, %v2017
      %v2274 = vadd.f32 %v1483, %v2018
      %v2275 = vadd.f32 %v1484, %v2019
      %v2276 = vadd.f32 %v1485, %v2020
      %v2277 = vadd.f32 %v1486, %v2021
      %v2278 = vadd.f32 %v1487, %v2022
      %v2279 = vadd.f32 %v1488, %v2023
      %v2280 = vadd.f32 %v1489, %v2024
      %v2281 = vadd.f32 %v1490, %v2025
      %v2282 = vadd.f32 %v1491, %v2026
      %v2283 = vadd.f32 %v1492, %v2027
      %v2284 = vadd.f32 %v1493, %v2028
      %v2285 = vadd.f32 %v1494, %v2029
      %v2286 = vadd.f32 %v1495, %v2030
      %v2287 = vadd.f32 %v1496, %v2031
      %v2288 = vadd.f32 %v1497, %v2032
      %v2289 = vadd.f32 %v1498, %v2033
      %v2290 = vadd.f32 %v1499, %v2034
      %v2291 = vadd.f32 %v1500, %v2035
      %v2292 = vadd.f32 %v1501, %v2036
      %v2293 = vadd.f32 %v1502, %v2037
      %v2294 = vadd.f32 %v1503, %v2038
      %v2295 = vadd.f32 %v1504, %v2039
      %v2296 = vadd.f32 %v1505, %v2040
      %v2297 = vadd.f32 %v1506, %v2041
      %v2298 = vadd.f32 %v1507, %v2042
      %v2299 = vadd.f32 %v1508, %v2043
      %v2300 = vadd.f32 %v1509, %v2044
      %v2301 = vadd.f32 %v1510, %v2045
      %v2302 = vadd.f32 %v1511, %v2046
      %v2303 = vadd.f32 %v1512, %v2047
      %v2304 = vadd.f32 %v1513, %v2048
      %v2305 = vadd.f32 %v1514, %v2049
      %v2306 = vadd.f32 %v1515, %v2050
      %v2307 = vadd.f32 %v1516, %v2051
      %v2308 = vadd.f32 %v1517, %v2052
      %v2309 = vadd.f32 %v1518, %v2053
      %v2310 = vadd.f32 %v1519, %v2054
      %v2311 = vadd.f32 %v1520, %v2055
      %v2312 = vadd.f32 %v1521, %v2056
      %v2313 = vadd.f32 %v1522, %v2057
      %v2314 = vadd.f32 %v1523, %v2058
      %v2315 = vadd.f32 %v1524, %v2059
      %v2316 = vadd.f32 %v1525, %v2060
      %v2317 = vadd.f32 %v1526, %v2061
      %v2318 = vadd.f32 %v1527, %v2062
      %v2319 = vadd.f32 %v1528, %v2063
      %v2320 = vadd.f32 %v1529, %v2064
      %v2321 = vadd.f32 %v1530, %v2065
      %v2322 = vadd.f32 %v1531, %v2066
      %v2323 = vadd.f32 %v1532, %v2067
      %v2324 = vadd.f32 %v1533, %v2068
      %v2325 = vadd.f32 %v1534, %v2069
      %v2326 = vadd.f32 %v1535, %v2070
      %v2327 = vadd.f32 %v1536, %v2071
      %v2328 = vadd.f32 %v1537, %v2072
      %v2329 = vadd.f32 %v1538, %v2073
      %v2330 = vadd.f32 %v1539, %v2074
      %v2331 = vadd.f32 %v1540, %v2075
      %v2332 = vadd.f32 %v1541, %v2076
      %v2333 = vadd.f32 %v1542, %v2077
      %v2334 = vadd.f32 %v1543, %v2078
      %v2335 = vadd.f32 %v1544, %v2079
      %v2336 = vadd.f32 %v1545, %v2080
      %v2337 = vadd.f32 %v1546, %v2081
      %v2338 = vadd.f32 %v1547, %v2082
      %v2339 = vadd.f32 %v1548, %v2083
      %v2340 = vadd.f32 %v1549, %v2084
      %v2341 = vadd.f32 %v1550, %v2085
      %v2342 = vadd.f32 %v1551, %v2086
      %v2343 = vadd.f32 %v1552, %v2087
      %v2344 = vadd.f32 %v1553, %v2088
      %v2345 = vadd.f32 %v1554, %v2089
      %v2346 = vadd.f32 %v1555, %v2090
      %v2347 = vadd.f32 %v1556, %v2091
      %v2348 = vadd.f32 %v1557, %v2092
      %v2349 = vadd.f32 %v1558, %v2093
      %v2350 = vadd.f32 %v1559, %v2094
      %v2351 = vadd.f32 %v1560, %v2095
      %v2352 = vadd.f32 %v1561, %v2096
      %v2353 = vadd.f32 %v1562, %v2097
      %v2354 = vadd.f32 %v1563, %v2098
      %v2355 = vadd.f32 %v1564, %v2099
      %v2356 = vadd.f32 %v1565, %v2100
      %v2357 = vadd.f32 %v1566, %v2101
      %v2358 = vadd.f32 %v1567, %v2102
      %v2359 = vadd.f32 %v1568, %v2103
      %v2360 = vadd.f32 %v1569, %v2104
      %v2361 = vadd.f32 %v1570, %v2105
      %v2362 = vadd.f32 %v1571, %v2106
      %v2363 = vadd.f32 %v1572, %v2107
      %v2364 = vadd.f32 %v1573, %v2108
      %v2365 = vadd.f32 %v1574, %v2109
      %v2366 = vadd.f32 %v1575, %v2110
      %v2367 = vadd.f32 %v1576, %v2111
      %v2368 = vadd.f32 %v1577, %v2112
      %v2369 = vadd.f32 %v1578, %v2113
      %v2370 = vadd.f32 %v1579, %v2114
      %v2371 = vadd.f32 %v1580, %v2115
      %v2372 = vadd.f32 %v1581, %v2116
      %v2373 = vadd.f32 %v1582, %v2117
      %v2374 = vadd.f32 %v1583, %v2118
      %v2375 = vadd.f32 %v1584, %v2119
      %v2376 = vadd.f32 %v1585, %v2120
      %v2377 = vadd.f32 %v1586, %v2121
      %v2378 = vadd.f32 %v1587, %v2122
      %v2379 = vadd.f32 %v1588, %v2123
      %v2380 = vadd.f32 %v1589, %v2124
      %v2381 = vadd.f32 %v1590, %v2125
      %v2382 = vadd.f32 %v1591, %v2126
      %v2383 = vadd.f32 %v1592, %v2127
      %v2384 = vadd.f32 %v1593, %v2128
      %v2385 = vadd.f32 %v1594, %v2129
      %v2386 = vadd.f32 %v1595, %v2130
      %v2387 = vadd.f32 %v1596, %v2131
      %v2388 = vadd.f32 %v1597, %v2132
      %v2389 = vadd.f32 %v1598, %v2133
      %v2390 = vadd.f32 %v1599, %v2134
      %v2391 = vadd.f32 %v1600, %v2135
      %v2392 = vadd.f32 %v1601, %v2136
      %v2393 = vadd.f32 %v1602, %v2137
      %v2394 = vadd.f32 %v1603, %v2138
      %v2395 = vadd.f32 %v1604, %v2139
      %v2396 = vadd.f32 %v1605, %v2140
      %v2397 = vadd.f32 %v1606, %v2141
      %v2398 = vadd.f32 %v1607, %v2142
      %v2399 = vadd.f32 %v1608, %v2143
      %v2400 = vadd.f32 %v1609, %v2144
      %v2401 = vadd.f32 %v1610, %v2145
      %v2402 = vadd.f32 %v1611, %v2146
      %v2403 = vadd.f32 %v1612, %v2147
      %v2404 = vadd.f32 %v1613, %v2148
      %v2405 = vadd.f32 %v1614, %v2149
      %v2406 = vadd.f32 %v1615, %v2150
      %v2407 = vadd.f32 %v1616, %v2151
      %v2408 = vadd.f32 %v1617, %v2152
      %v2409 = vadd.f32 %v1618, %v2153
      %v2410 = vadd.f32 %v1619, %v2154
      %v2411 = vadd.f32 %v1620, %v2155
      %v2412 = vadd.f32 %v1621, %v2156
      %v2413 = vadd.f32 %v1622, %v2157
      %v2414 = vadd.f32 %v1623, %v2158
      %v2415 = vadd.f32 %v1624, %v2159
      %v2416 = vadd.f32 %v1625, %v2160
      %v2417 = vadd.f32 %v1626, %v2161
      %v2418 = vadd.f32 %v1627, %v2162
      %v2419 = vadd.f32 %v1628, %v2163
      %v2420 = vadd.f32 %v1629, %v2164
      %v2421 = vadd.f32 %v1630, %v2165
      %v2422 = vadd.f32 %v1631, %v2166
      %v2423 = vadd.f32 %v1632, %v2167
      %v2424 = vadd.f32 %v1633, %v2168
      %v2425 = vadd.f32 %v1634, %v2169
      %v2426 = vadd.f32 %v1635, %v2170
      %v2427 = vadd.f32 %v1636, %v2171
      %v2428 = vadd.f32 %v1637, %v2172
      %v2429 = vadd.f32 %v1638, %v2173
      %v2430 = vadd.f32 %v1639, %v2174
      %v2431 = vadd.f32 %v1640, %v2175
      %v2432 = vadd.f32 %v1641, %v2176
      %v2433 = vadd.f32 %v1642, %v2177
      %v2434 = vadd.f32 %v1643, %v2178
      %v2435 = vadd.f32 %v1644, %v2179
      %v2436 = vadd.f32 %v1645, %v2180
      %v2437 = vadd.f32 %v1646, %v2181
      %v2438 = vadd.f32 %v1647, %v2182
      %v2439 = vadd.f32 %v1648, %v2183
      %v2440 = vadd.f32 %v1649, %v2184
      %v2441 = vadd.f32 %v1650, %v2185
      %v2442 = vadd.f32 %v1651, %v2186
      %v2443 = vadd.f32 %v1652, %v2187
      %v2444 = vadd.f32 %v1653, %v2188
      %v2445 = vadd.f32 %v1654, %v2189
      %v2446 = vadd.f32 %v1655, %v2190
      %v2447 = vadd.f32 %v1656, %v2191
      %v2448 = vadd.f32 %v1657, %v2192
      %v2449 = vadd.f32 %v1658, %v2193
      %v2450 = vadd.f32 %v1659, %v2194
      %v2451 = vadd.f32 %v1660, %v2195
      %v2452 = vadd.f32 %v1661, %v2196
      %v2453 = vadd.f32 %v1662, %v2197
      %v2454 = vadd.f32 %v1663, %v2198
      %v2455 = vadd.f32 %v1664, %v2199
      %v2456 = vadd.f32 %v1665, %v2200
      %v2457 = vadd.f32 %v1666, %v2201
      %v2458 = vadd.f32 %v1667, %v2202
      %v2459 = vadd.f32 %v1668, %v2203
      %v2460 = vadd.f32 %v1669, %v2204
      %v2461 = vadd.f32 %v1670, %v2205
      %v2462 = vadd.f32 %v1671, %v2206
      %v2463 = vadd.f32 %v1672, %v2207
      %v2464 = vadd.f32 %v1673, %v2208
      %v2465 = vadd.f32 %v1674, %v2209
      %v2466 = vadd.f32 %v1675, %v2210
      %v2467 = vadd.f32 %v1676, %v2211
      %v2468 = vadd.f32 %v1677, %v2212
      %v2469 = vadd.f32 %v1678, %v2213
      %v2470 = vadd.f32 %v1679, %v2214
      %v2471 = vadd.f32 %v1680, %v2215
      %v2472 = vadd.f32 %v1681, %v2216
      %v2473 = vadd.f32 %v1682, %v2217
      %v2474 = vadd.f32 %v1683, %v2218
      %v2475 = vadd.f32 %v1684, %v2219
      %v2476 = vadd.f32 %v1685, %v2220
      %v2477 = vadd.f32 %v1686, %v2221
      %v2478 = vadd.f32 %v1687, %v2222
      %v2479 = vadd.f32 %v1688, %v2223
      %v2480 = vadd.f32 %v1689, %v2224
      %v2481 = vadd.f32 %v1690, %v2225
      %v2482 = vadd.f32 %v1691, %v2226
      %v2483 = vadd.f32 %v1692, %v2227
      %v2484 = vadd.f32 %v1693, %v2228
      %v2485 = vadd.f32 %v1694, %v2229
      %v2486 = vadd.f32 %v1695, %v2230
      %v2487 = vadd.f32 %v1696, %v2231
      %v2488 = vadd.f32 %v1697, %v2232
      %v2489 = vadd.f32 %v1698, %v2233
      %v2490 = vadd.f32 %v1699, %v2234
      %v2491 = vadd.f32 %v1700, %v2235
      %v2492 = vadd.f32 %v1701, %v2236
      %v2493 = vadd.f32 %v1702, %v2237
      %v2494 = vadd.f32 %v1703, %v2238
      %v2495 = vadd.f32 %v1704, %v2239
      %v2496 = vadd.f32 %v1705, %v2240
      %v2497 = vadd.f32 %v1706, %v2241
      %v2498 = vadd.f32 %v1707, %v2242
      %v2499 = vadd.f32 %v1708, %v2243
      %v2500 = vpack.c.bf16 %v2248, %v2244
      %v2501 = vpack.c.bf16 %v2249, %v2245
      %v2502 = vpack.c.bf16 %v2256, %v2252
      %v2503 = vpack.c.bf16 %v2257, %v2253
      %v2504 = vpack.c.bf16 %v2264, %v2260
      %v2505 = vpack.c.bf16 %v2265, %v2261
      %v2506 = vpack.c.bf16 %v2272, %v2268
      %v2507 = vpack.c.bf16 %v2273, %v2269
      %v2508 = vpack.c.bf16 %v2280, %v2276
      %v2509 = vpack.c.bf16 %v2281, %v2277
      %v2510 = vpack.c.bf16 %v2288, %v2284
      %v2511 = vpack.c.bf16 %v2289, %v2285
      %v2512 = vpack.c.bf16 %v2296, %v2292
      %v2513 = vpack.c.bf16 %v2297, %v2293
      %v2514 = vpack.c.bf16 %v2304, %v2300
      %v2515 = vpack.c.bf16 %v2305, %v2301
      %v2516 = vpack.c.bf16 %v2312, %v2308
      %v2517 = vpack.c.bf16 %v2313, %v2309
      %v2518 = vpack.c.bf16 %v2320, %v2316
      %v2519 = vpack.c.bf16 %v2321, %v2317
      %v2520 = vpack.c.bf16 %v2328, %v2324
      %v2521 = vpack.c.bf16 %v2329, %v2325
      %v2522 = vpack.c.bf16 %v2336, %v2332
      %v2523 = vpack.c.bf16 %v2337, %v2333
      %v2524 = vpack.c.bf16 %v2344, %v2340
      %v2525 = vpack.c.bf16 %v2345, %v2341
      %v2526 = vpack.c.bf16 %v2352, %v2348
      %v2527 = vpack.c.bf16 %v2353, %v2349
      %v2528 = vpack.c.bf16 %v2360, %v2356
      %v2529 = vpack.c.bf16 %v2361, %v2357
      %v2530 = vpack.c.bf16 %v2368, %v2364
      %v2531 = vpack.c.bf16 %v2369, %v2365
      %v2532 = vpack.c.bf16 %v2376, %v2372
      %v2533 = vpack.c.bf16 %v2377, %v2373
      %v2534 = vpack.c.bf16 %v2384, %v2380
      %v2535 = vpack.c.bf16 %v2385, %v2381
      %v2536 = vpack.c.bf16 %v2392, %v2388
      %v2537 = vpack.c.bf16 %v2393, %v2389
      %v2538 = vpack.c.bf16 %v2400, %v2396
      %v2539 = vpack.c.bf16 %v2401, %v2397
      %v2540 = vpack.c.bf16 %v2408, %v2404
      %v2541 = vpack.c.bf16 %v2409, %v2405
      %v2542 = vpack.c.bf16 %v2416, %v2412
      %v2543 = vpack.c.bf16 %v2417, %v2413
      %v2544 = vpack.c.bf16 %v2424, %v2420
      %v2545 = vpack.c.bf16 %v2425, %v2421
      %v2546 = vpack.c.bf16 %v2432, %v2428
      %v2547 = vpack.c.bf16 %v2433, %v2429
      %v2548 = vpack.c.bf16 %v2440, %v2436
      %v2549 = vpack.c.bf16 %v2441, %v2437
      %v2550 = vpack.c.bf16 %v2448, %v2444
      %v2551 = vpack.c.bf16 %v2449, %v2445
      %v2552 = vpack.c.bf16 %v2456, %v2452
      %v2553 = vpack.c.bf16 %v2457, %v2453
      %v2554 = vpack.c.bf16 %v2464, %v2460
      %v2555 = vpack.c.bf16 %v2465, %v2461
      %v2556 = vpack.c.bf16 %v2472, %v2468
      %v2557 = vpack.c.bf16 %v2473, %v2469
      %v2558 = vpack.c.bf16 %v2480, %v2476
      %v2559 = vpack.c.bf16 %v2481, %v2477
      %v2560 = vpack.c.bf16 %v2488, %v2484
      %v2561 = vpack.c.bf16 %v2489, %v2485
      %v2562 = vpack.c.bf16 %v2496, %v2492
      %v2563 = vpack.c.bf16 %v2497, %v2493
      %v2564 = vld [vmem:[%s3] sm:$0x11]
      %v2566 = vunpack.c.l.b16 %v2564
      %v2567 = vunpack.c.h.b16 %v2564
      %v2568 = vpack.c.b16 %v2566, %v2566
      %v2569 = vpack.c.b16 %v2567, %v2567
      %v2571 = vpack.i.b16 %v2568, %v2568
      %v2573 = vlaneseq
      %v2574 = vshrl.u32 %v2573, 7
      %v2575 = vsub.s32 0, %v2574
      %v2576 = vrot.slane %v2571, %v2575
      %v2578 = vpack.i.b16 %v2569, %v2569
      %v2580 = vlaneseq
      %v2581 = vshrl.u32 %v2580, 7
      %v2582 = vsub.s32 0, %v2581
      %v2583 = vrot.slane %v2578, %v2582
      %v2584 = vadd.bf16 %v2500, %v2576
      %v2585 = vadd.bf16 %v2501, %v2583
      %v2586 = vadd.bf16 %v2502, %v2576
      %v2587 = vadd.bf16 %v2503, %v2583
      %v2588 = vadd.bf16 %v2504, %v2576
      %v2589 = vadd.bf16 %v2505, %v2583
      %v2590 = vadd.bf16 %v2506, %v2576
      %v2591 = vadd.bf16 %v2507, %v2583
      %v2592 = vadd.bf16 %v2508, %v2576
      %v2593 = vadd.bf16 %v2509, %v2583
      %v2594 = vadd.bf16 %v2510, %v2576
      %v2595 = vadd.bf16 %v2511, %v2583
      %v2596 = vadd.bf16 %v2512, %v2576
      %v2597 = vadd.bf16 %v2513, %v2583
      %v2598 = vadd.bf16 %v2514, %v2576
      %v2599 = vadd.bf16 %v2515, %v2583
      %v2600 = vadd.bf16 %v2516, %v2576
      %v2601 = vadd.bf16 %v2517, %v2583
      %v2602 = vadd.bf16 %v2518, %v2576
      %v2603 = vadd.bf16 %v2519, %v2583
      %v2604 = vadd.bf16 %v2520, %v2576
      %v2605 = vadd.bf16 %v2521, %v2583
      %v2606 = vadd.bf16 %v2522, %v2576
      %v2607 = vadd.bf16 %v2523, %v2583
      %v2608 = vadd.bf16 %v2524, %v2576
      %v2609 = vadd.bf16 %v2525, %v2583
      %v2610 = vadd.bf16 %v2526, %v2576
      %v2611 = vadd.bf16 %v2527, %v2583
      %v2612 = vadd.bf16 %v2528, %v2576
      %v2613 = vadd.bf16 %v2529, %v2583
      %v2614 = vadd.bf16 %v2530, %v2576
      %v2615 = vadd.bf16 %v2531, %v2583
      %v2616 = vadd.bf16 %v2532, %v2576
      %v2617 = vadd.bf16 %v2533, %v2583
      %v2618 = vadd.bf16 %v2534, %v2576
      %v2619 = vadd.bf16 %v2535, %v2583
      %v2620 = vadd.bf16 %v2536, %v2576
      %v2621 = vadd.bf16 %v2537, %v2583
      %v2622 = vadd.bf16 %v2538, %v2576
      %v2623 = vadd.bf16 %v2539, %v2583
      %v2624 = vadd.bf16 %v2540, %v2576
      %v2625 = vadd.bf16 %v2541, %v2583
      %v2626 = vadd.bf16 %v2542, %v2576
      %v2627 = vadd.bf16 %v2543, %v2583
      %v2628 = vadd.bf16 %v2544, %v2576
      %v2629 = vadd.bf16 %v2545, %v2583
      %v2630 = vadd.bf16 %v2546, %v2576
      %v2631 = vadd.bf16 %v2547, %v2583
      %v2632 = vadd.bf16 %v2548, %v2576
      %v2633 = vadd.bf16 %v2549, %v2583
      %v2634 = vadd.bf16 %v2550, %v2576
      %v2635 = vadd.bf16 %v2551, %v2583
      %v2636 = vadd.bf16 %v2552, %v2576
      %v2637 = vadd.bf16 %v2553, %v2583
      %v2638 = vadd.bf16 %v2554, %v2576
      %v2639 = vadd.bf16 %v2555, %v2583
      %v2640 = vadd.bf16 %v2556, %v2576
      %v2641 = vadd.bf16 %v2557, %v2583
      %v2642 = vadd.bf16 %v2558, %v2576
      %v2643 = vadd.bf16 %v2559, %v2583
      %v2644 = vadd.bf16 %v2560, %v2576
      %v2645 = vadd.bf16 %v2561, %v2583
      %v2646 = vadd.bf16 %v2562, %v2576
      %v2647 = vadd.bf16 %v2563, %v2583
      %v2648 = vmax.bf16 %v2584, 0
      %v2649 = vmax.bf16 %v2585, 0
      %v2650 = vmax.bf16 %v2586, 0
      %v2651 = vmax.bf16 %v2587, 0
      %v2652 = vmax.bf16 %v2588, 0
      %v2653 = vmax.bf16 %v2589, 0
      %v2654 = vmax.bf16 %v2590, 0
      %v2655 = vmax.bf16 %v2591, 0
      %v2656 = vmax.bf16 %v2592, 0
      %v2657 = vmax.bf16 %v2593, 0
      %v2658 = vmax.bf16 %v2594, 0
      %v2659 = vmax.bf16 %v2595, 0
      %v2660 = vmax.bf16 %v2596, 0
      %v2661 = vmax.bf16 %v2597, 0
      %v2662 = vmax.bf16 %v2598, 0
      %v2663 = vmax.bf16 %v2599, 0
      %v2664 = vmax.bf16 %v2600, 0
      %v2665 = vmax.bf16 %v2601, 0
      %v2666 = vmax.bf16 %v2602, 0
      %v2667 = vmax.bf16 %v2603, 0
      %v2668 = vmax.bf16 %v2604, 0
      %v2669 = vmax.bf16 %v2605, 0
      %v2670 = vmax.bf16 %v2606, 0
      %v2671 = vmax.bf16 %v2607, 0
      %v2672 = vmax.bf16 %v2608, 0
      %v2673 = vmax.bf16 %v2609, 0
      %v2674 = vmax.bf16 %v2610, 0
      %v2675 = vmax.bf16 %v2611, 0
      %v2676 = vmax.bf16 %v2612, 0
      %v2677 = vmax.bf16 %v2613, 0
      %v2678 = vmax.bf16 %v2614, 0
      %v2679 = vmax.bf16 %v2615, 0
      %v2680 = vmax.bf16 %v2616, 0
      %v2681 = vmax.bf16 %v2617, 0
      %v2682 = vmax.bf16 %v2618, 0
      %v2683 = vmax.bf16 %v2619, 0
      %v2684 = vmax.bf16 %v2620, 0
      %v2685 = vmax.bf16 %v2621, 0
      %v2686 = vmax.bf16 %v2622, 0
      %v2687 = vmax.bf16 %v2623, 0
      %v2688 = vmax.bf16 %v2624, 0
      %v2689 = vmax.bf16 %v2625, 0
      %v2690 = vmax.bf16 %v2626, 0
      %v2691 = vmax.bf16 %v2627, 0
      %v2692 = vmax.bf16 %v2628, 0
      %v2693 = vmax.bf16 %v2629, 0
      %v2694 = vmax.bf16 %v2630, 0
      %v2695 = vmax.bf16 %v2631, 0
      %v2696 = vmax.bf16 %v2632, 0
      %v2697 = vmax.bf16 %v2633, 0
      %v2698 = vmax.bf16 %v2634, 0
      %v2699 = vmax.bf16 %v2635, 0
      %v2700 = vmax.bf16 %v2636, 0
      %v2701 = vmax.bf16 %v2637, 0
      %v2702 = vmax.bf16 %v2638, 0
      %v2703 = vmax.bf16 %v2639, 0
      %v2704 = vmax.bf16 %v2640, 0
      %v2705 = vmax.bf16 %v2641, 0
      %v2706 = vmax.bf16 %v2642, 0
      %v2707 = vmax.bf16 %v2643, 0
      %v2708 = vmax.bf16 %v2644, 0
      %v2709 = vmax.bf16 %v2645, 0
      %v2710 = vmax.bf16 %v2646, 0
      %v2711 = vmax.bf16 %v2647, 0
      %v2712 = vld [vmem:[%s2] sm:$0xff]
      %v2713 = vld [vmem:[%s2 + $0x8] sm:$0xff]
      %v2714 = vld [vmem:[%s2 + $0x10] sm:$0xff]
      %v2715 = vld [vmem:[%s2 + $0x18] sm:$0xff]
      %v2716 = vld [vmem:[%s2 + $0x20] sm:$0xff]
      %v2717 = vld [vmem:[%s2 + $0x28] sm:$0xff]
      %v2718 = vld [vmem:[%s2 + $0x30] sm:$0xff]
      %v2719 = vld [vmem:[%s2 + $0x38] sm:$0xff]
      %v2720 = vld [vmem:[%s2 + $0x40] sm:$0xff]
      %v2721 = vld [vmem:[%s2 + $0x48] sm:$0xff]
      %v2722 = vld [vmem:[%s2 + $0x50] sm:$0xff]
      %v2723 = vld [vmem:[%s2 + $0x58] sm:$0xff]
      %v2724 = vld [vmem:[%s2 + $0x60] sm:$0xff]
      %v2725 = vld [vmem:[%s2 + $0x68] sm:$0xff]
      %v2726 = vld [vmem:[%s2 + $0x70] sm:$0xff]
      %v2727 = vld [vmem:[%s2 + $0x78] sm:$0xff]
      %v2728 = vld [vmem:[%s2 + $0x80] sm:$0xff]
      %v2729 = vld [vmem:[%s2 + $0x88] sm:$0xff]
      %v2730 = vld [vmem:[%s2 + $0x90] sm:$0xff]
      %v2731 = vld [vmem:[%s2 + $0x98] sm:$0xff]
      %v2732 = vld [vmem:[%s2 + $0xa0] sm:$0xff]
      %v2733 = vld [vmem:[%s2 + $0xa8] sm:$0xff]
      %v2734 = vld [vmem:[%s2 + $0xb0] sm:$0xff]
      %v2735 = vld [vmem:[%s2 + $0xb8] sm:$0xff]
      %v2736 = vld [vmem:[%s2 + $0xc0] sm:$0xff]
      %v2737 = vld [vmem:[%s2 + $0xc8] sm:$0xff]
      %v2738 = vld [vmem:[%s2 + $0xd0] sm:$0xff]
      %v2739 = vld [vmem:[%s2 + $0xd8] sm:$0xff]
      %v2740 = vld [vmem:[%s2 + $0xe0] sm:$0xff]
      %v2741 = vld [vmem:[%s2 + $0xe8] sm:$0xff]
      %v2742 = vld [vmem:[%s2 + $0xf0] sm:$0xff]
      %v2743 = vld [vmem:[%s2 + $0xf8] sm:$0xff]
      %v2776 = vunpack.c.l.b16 %v2712
      %v2777 = vunpack.c.h.b16 %v2712
      %v2778 = vunpack.c.l.b16 %v2713
      %v2779 = vunpack.c.h.b16 %v2713
      %v2780 = vunpack.c.l.b16 %v2714
      %v2781 = vunpack.c.h.b16 %v2714
      %v2782 = vunpack.c.l.b16 %v2715
      %v2783 = vunpack.c.h.b16 %v2715
      %v2784 = vunpack.c.l.b16 %v2716
      %v2785 = vunpack.c.h.b16 %v2716
      %v2786 = vunpack.c.l.b16 %v2717
      %v2787 = vunpack.c.h.b16 %v2717
      %v2788 = vunpack.c.l.b16 %v2718
      %v2789 = vunpack.c.h.b16 %v2718
      %v2790 = vunpack.c.l.b16 %v2719
      %v2791 = vunpack.c.h.b16 %v2719
      %v2792 = vunpack.c.l.b16 %v2720
      %v2793 = vunpack.c.h.b16 %v2720
      %v2794 = vunpack.c.l.b16 %v2721
      %v2795 = vunpack.c.h.b16 %v2721
      %v2796 = vunpack.c.l.b16 %v2722
      %v2797 = vunpack.c.h.b16 %v2722
      %v2798 = vunpack.c.l.b16 %v2723
      %v2799 = vunpack.c.h.b16 %v2723
      %v2800 = vunpack.c.l.b16 %v2724
      %v2801 = vunpack.c.h.b16 %v2724
      %v2802 = vunpack.c.l.b16 %v2725
      %v2803 = vunpack.c.h.b16 %v2725
      %v2804 = vunpack.c.l.b16 %v2726
      %v2805 = vunpack.c.h.b16 %v2726
      %v2806 = vunpack.c.l.b16 %v2727
      %v2807 = vunpack.c.h.b16 %v2727
      %v2808 = vunpack.c.l.b16 %v2728
      %v2809 = vunpack.c.h.b16 %v2728
      %v2810 = vunpack.c.l.b16 %v2729
      %v2811 = vunpack.c.h.b16 %v2729
      %v2812 = vunpack.c.l.b16 %v2730
      %v2813 = vunpack.c.h.b16 %v2730
      %v2814 = vunpack.c.l.b16 %v2731
      %v2815 = vunpack.c.h.b16 %v2731
      %v2816 = vunpack.c.l.b16 %v2732
      %v2817 = vunpack.c.h.b16 %v2732
      %v2818 = vunpack.c.l.b16 %v2733
      %v2819 = vunpack.c.h.b16 %v2733
      %v2820 = vunpack.c.l.b16 %v2734
      %v2821 = vunpack.c.h.b16 %v2734
      %v2822 = vunpack.c.l.b16 %v2735
      %v2823 = vunpack.c.h.b16 %v2735
      %v2824 = vunpack.c.l.b16 %v2736
      %v2825 = vunpack.c.h.b16 %v2736
      %v2826 = vunpack.c.l.b16 %v2737
      %v2827 = vunpack.c.h.b16 %v2737
      %v2828 = vunpack.c.l.b16 %v2738
      %v2829 = vunpack.c.h.b16 %v2738
      %v2830 = vunpack.c.l.b16 %v2739
      %v2831 = vunpack.c.h.b16 %v2739
      %v2832 = vunpack.c.l.b16 %v2740
      %v2833 = vunpack.c.h.b16 %v2740
      %v2834 = vunpack.c.l.b16 %v2741
      %v2835 = vunpack.c.h.b16 %v2741
      %v2836 = vunpack.c.l.b16 %v2742
      %v2837 = vunpack.c.h.b16 %v2742
      %v2838 = vunpack.c.l.b16 %v2743
      %v2839 = vunpack.c.h.b16 %v2743
      %v2840 = vpack.c.b16 %v2778, %v2776
      %v2841 = vpack.c.b16 %v2779, %v2777
      %v2842 = vpack.c.b16 %v2782, %v2780
      %v2843 = vpack.c.b16 %v2783, %v2781
      %v2844 = vpack.c.b16 %v2786, %v2784
      %v2845 = vpack.c.b16 %v2787, %v2785
      %v2846 = vpack.c.b16 %v2790, %v2788
      %v2847 = vpack.c.b16 %v2791, %v2789
      %v2848 = vpack.c.b16 %v2794, %v2792
      %v2849 = vpack.c.b16 %v2795, %v2793
      %v2850 = vpack.c.b16 %v2798, %v2796
      %v2851 = vpack.c.b16 %v2799, %v2797
      %v2852 = vpack.c.b16 %v2802, %v2800
      %v2853 = vpack.c.b16 %v2803, %v2801
      %v2854 = vpack.c.b16 %v2806, %v2804
      %v2855 = vpack.c.b16 %v2807, %v2805
      %v2856 = vpack.c.b16 %v2810, %v2808
      %v2857 = vpack.c.b16 %v2811, %v2809
      %v2858 = vpack.c.b16 %v2814, %v2812
      %v2859 = vpack.c.b16 %v2815, %v2813
      %v2860 = vpack.c.b16 %v2818, %v2816
      %v2861 = vpack.c.b16 %v2819, %v2817
      %v2862 = vpack.c.b16 %v2822, %v2820
      %v2863 = vpack.c.b16 %v2823, %v2821
      %v2864 = vpack.c.b16 %v2826, %v2824
      %v2865 = vpack.c.b16 %v2827, %v2825
      %v2866 = vpack.c.b16 %v2830, %v2828
      %v2867 = vpack.c.b16 %v2831, %v2829
      %v2868 = vpack.c.b16 %v2834, %v2832
      %v2869 = vpack.c.b16 %v2835, %v2833
      %v2870 = vpack.c.b16 %v2838, %v2836
      %v2871 = vpack.c.b16 %v2839, %v2837
      %2904 = vmatprep.subr.bf16.mxu0 %v2841
      %2905 = vmatpush1.bf16.msra.mxu0 %v2840
      %2906 = vmatprep.subr.bf16.mxu0 %v2843
      %2907 = vmatpush1.bf16.msra.mxu0 %v2842
      %2908 = vmatprep.subr.bf16.mxu0 %v2845
      %2909 = vmatpush1.bf16.msra.mxu0 %v2844
      %2910 = vmatprep.subr.bf16.mxu0 %v2847
      %2911 = vmatpush1.bf16.msra.mxu0 %v2846
      %2912 = vmatprep.subr.bf16.mxu0 %v2849
      %2913 = vmatpush1.bf16.msra.mxu0 %v2848
      %2914 = vmatprep.subr.bf16.mxu0 %v2851
      %2915 = vmatpush1.bf16.msra.mxu0 %v2850
      %2916 = vmatprep.subr.bf16.mxu0 %v2853
      %2917 = vmatpush1.bf16.msra.mxu0 %v2852
      %2918 = vmatprep.subr.bf16.mxu0 %v2855
      %2919 = vmatpush1.bf16.msra.mxu0 %v2854
      %2920 = vmatprep.subr.bf16.mxu0 %v2857
      %2921 = vmatpush1.bf16.msra.mxu0 %v2856
      %2922 = vmatprep.subr.bf16.mxu0 %v2859
      %2923 = vmatpush1.bf16.msra.mxu0 %v2858
      %2924 = vmatprep.subr.bf16.mxu0 %v2861
      %2925 = vmatpush1.bf16.msra.mxu0 %v2860
      %2926 = vmatprep.subr.bf16.mxu0 %v2863
      %2927 = vmatpush1.bf16.msra.mxu0 %v2862
      %2928 = vmatprep.subr.bf16.mxu0 %v2865
      %2929 = vmatpush1.bf16.msra.mxu0 %v2864
      %2930 = vmatprep.subr.bf16.mxu0 %v2867
      %2931 = vmatpush1.bf16.msra.mxu0 %v2866
      %2932 = vmatprep.subr.bf16.mxu0 %v2869
      %2933 = vmatpush1.bf16.msra.mxu0 %v2868
      %2934 = vmatprep.subr.bf16.mxu0 %v2871
      %2935 = vmatpush1.bf16.msra.mxu0 %v2870
      %2936 = vmatprep.mubr.bf16.mxu0 %v2649
      %2937 = vmatmul.mubr.bf16.gmra.mrb[0].mxu0 %v2648
      %v2938 = vpop.f32.mrb[0].mxu0
      %v2939 = vadd.f32 0.0, %v2938
      %v2940 = vpop.f32.mrb[0].mxu0
      %v2941 = vadd.f32 0.0, %v2940
      %v2942 = vpop.f32.mrb[0].mxu0
      %v2943 = vadd.f32 0.0, %v2942
      %v2944 = vpop.f32.mrb[0].mxu0
      %v2945 = vadd.f32 0.0, %v2944
      %2946 = vmatprep.mubr.bf16.mxu0 %v2651
      %2947 = vmatmul.mubr.bf16.gmra.mrb[0].mxu0 %v2650
      %v2948 = vpop.f32.mrb[0].mxu0
      %v2949 = vadd.f32 0.0, %v2948
      %v2950 = vpop.f32.mrb[0].mxu0
      %v2951 = vadd.f32 0.0, %v2950
      %v2952 = vpop.f32.mrb[0].mxu0
      %v2953 = vadd.f32 0.0, %v2952
      %v2954 = vpop.f32.mrb[0].mxu0
      %v2955 = vadd.f32 0.0, %v2954
      %2956 = vmatprep.mubr.bf16.mxu0 %v2653
      %2957 = vmatmul.mubr.bf16.gmra.mrb[0].mxu0 %v2652
      %v2958 = vpop.f32.mrb[0].mxu0
      %v2959 = vadd.f32 0.0, %v2958
      %v2960 = vpop.f32.mrb[0].mxu0
      %v2961 = vadd.f32 0.0, %v2960
      %v2962 = vpop.f32.mrb[0].mxu0
      %v2963 = vadd.f32 0.0, %v2962
      %v2964 = vpop.f32.mrb[0].mxu0
      %v2965 = vadd.f32 0.0, %v2964
      %2966 = vmatprep.mubr.bf16.mxu0 %v2655
      %2967 = vmatmul.mubr.bf16.gmra.mrb[0].mxu0 %v2654
      %v2968 = vpop.f32.mrb[0].mxu0
      %v2969 = vadd.f32 0.0, %v2968
      %v2970 = vpop.f32.mrb[0].mxu0
      %v2971 = vadd.f32 0.0, %v2970
      %v2972 = vpop.f32.mrb[0].mxu0
      %v2973 = vadd.f32 0.0, %v2972
      %v2974 = vpop.f32.mrb[0].mxu0
      %v2975 = vadd.f32 0.0, %v2974
      %2976 = vmatprep.mubr.bf16.mxu0 %v2657
      %2977 = vmatmul.mubr.bf16.gmra.mrb[0].mxu0 %v2656
      %v2978 = vpop.f32.mrb[0].mxu0
      %v2979 = vadd.f32 0.0, %v2978
      %v2980 = vpop.f32.mrb[0].mxu0
      %v2981 = vadd.f32 0.0, %v2980
      %v2982 = vpop.f32.mrb[0].mxu0
      %v2983 = vadd.f32 0.0, %v2982
      %v2984 = vpop.f32.mrb[0].mxu0
      %v2985 = vadd.f32 0.0, %v2984
      %2986 = vmatprep.mubr.bf16.mxu0 %v2659
      %2987 = vmatmul.mubr.bf16.gmra.mrb[0].mxu0 %v2658
      %v2988 = vpop.f32.mrb[0].mxu0
      %v2989 = vadd.f32 0.0, %v2988
      %v2990 = vpop.f32.mrb[0].mxu0
      %v2991 = vadd.f32 0.0, %v2990
      %v2992 = vpop.f32.mrb[0].mxu0
      %v2993 = vadd.f32 0.0, %v2992
      %v2994 = vpop.f32.mrb[0].mxu0
      %v2995 = vadd.f32 0.0, %v2994
      %2996 = vmatprep.mubr.bf16.mxu0 %v2661
      %2997 = vmatmul.mubr.bf16.gmra.mrb[0].mxu0 %v2660
      %v2998 = vpop.f32.mrb[0].mxu0
      %v2999 = vadd.f32 0.0, %v2998
      %v3000 = vpop.f32.mrb[0].mxu0
      %v3001 = vadd.f32 0.0, %v3000
      %v3002 = vpop.f32.mrb[0].mxu0
      %v3003 = vadd.f32 0.0, %v3002
      %v3004 = vpop.f32.mrb[0].mxu0
      %v3005 = vadd.f32 0.0, %v3004
      %3006 = vmatprep.mubr.bf16.mxu0 %v2663
      %3007 = vmatmul.mubr.bf16.gmra.mrb[0].mxu0 %v2662
      %v3008 = vpop.f32.mrb[0].mxu0
      %v3009 = vadd.f32 0.0, %v3008
      %v3010 = vpop.f32.mrb[0].mxu0
      %v3011 = vadd.f32 0.0, %v3010
      %v3012 = vpop.f32.mrb[0].mxu0
      %v3013 = vadd.f32 0.0, %v3012
      %v3014 = vpop.f32.mrb[0].mxu0
      %v3015 = vadd.f32 0.0, %v3014
      %3016 = vmatprep.mubr.bf16.mxu0 %v2665
      %3017 = vmatmul.mubr.bf16.gmra.mrb[0].mxu0 %v2664
      %v3018 = vpop.f32.mrb[0].mxu0
      %v3019 = vadd.f32 0.0, %v3018
      %v3020 = vpop.f32.mrb[0].mxu0
      %v3021 = vadd.f32 0.0, %v3020
      %v3022 = vpop.f32.mrb[0].mxu0
      %v3023 = vadd.f32 0.0, %v3022
      %v3024 = vpop.f32.mrb[0].mxu0
      %v3025 = vadd.f32 0.0, %v3024
      %3026 = vmatprep.mubr.bf16.mxu0 %v2667
      %3027 = vmatmul.mubr.bf16.gmra.mrb[0].mxu0 %v2666
      %v3028 = vpop.f32.mrb[0].mxu0
      %v3029 = vadd.f32 0.0, %v3028
      %v3030 = vpop.f32.mrb[0].mxu0
      %v3031 = vadd.f32 0.0, %v3030
      %v3032 = vpop.f32.mrb[0].mxu0
      %v3033 = vadd.f32 0.0, %v3032
      %v3034 = vpop.f32.mrb[0].mxu0
      %v3035 = vadd.f32 0.0, %v3034
      %3036 = vmatprep.mubr.bf16.mxu0 %v2669
      %3037 = vmatmul.mubr.bf16.gmra.mrb[0].mxu0 %v2668
      %v3038 = vpop.f32.mrb[0].mxu0
      %v3039 = vadd.f32 0.0, %v3038
      %v3040 = vpop.f32.mrb[0].mxu0
      %v3041 = vadd.f32 0.0, %v3040
      %v3042 = vpop.f32.mrb[0].mxu0
      %v3043 = vadd.f32 0.0, %v3042
      %v3044 = vpop.f32.mrb[0].mxu0
      %v3045 = vadd.f32 0.0, %v3044
      %3046 = vmatprep.mubr.bf16.mxu0 %v2671
      %3047 = vmatmul.mubr.bf16.gmra.mrb[0].mxu0 %v2670
      %v3048 = vpop.f32.mrb[0].mxu0
      %v3049 = vadd.f32 0.0, %v3048
      %v3050 = vpop.f32.mrb[0].mxu0
      %v3051 = vadd.f32 0.0, %v3050
      %v3052 = vpop.f32.mrb[0].mxu0
      %v3053 = vadd.f32 0.0, %v3052
      %v3054 = vpop.f32.mrb[0].mxu0
      %v3055 = vadd.f32 0.0, %v3054
      %3056 = vmatprep.mubr.bf16.mxu0 %v2673
      %3057 = vmatmul.mubr.bf16.gmra.mrb[0].mxu0 %v2672
      %v3058 = vpop.f32.mrb[0].mxu0
      %v3059 = vadd.f32 0.0, %v3058
      %v3060 = vpop.f32.mrb[0].mxu0
      %v3061 = vadd.f32 0.0, %v3060
      %v3062 = vpop.f32.mrb[0].mxu0
      %v3063 = vadd.f32 0.0, %v3062
      %v3064 = vpop.f32.mrb[0].mxu0
      %v3065 = vadd.f32 0.0, %v3064
      %3066 = vmatprep.mubr.bf16.mxu0 %v2675
      %3067 = vmatmul.mubr.bf16.gmra.mrb[0].mxu0 %v2674
      %v3068 = vpop.f32.mrb[0].mxu0
      %v3069 = vadd.f32 0.0, %v3068
      %v3070 = vpop.f32.mrb[0].mxu0
      %v3071 = vadd.f32 0.0, %v3070
      %v3072 = vpop.f32.mrb[0].mxu0
      %v3073 = vadd.f32 0.0, %v3072
      %v3074 = vpop.f32.mrb[0].mxu0
      %v3075 = vadd.f32 0.0, %v3074
      %3076 = vmatprep.mubr.bf16.mxu0 %v2677
      %3077 = vmatmul.mubr.bf16.gmra.mrb[0].mxu0 %v2676
      %v3078 = vpop.f32.mrb[0].mxu0
      %v3079 = vadd.f32 0.0, %v3078
      %v3080 = vpop.f32.mrb[0].mxu0
      %v3081 = vadd.f32 0.0, %v3080
      %v3082 = vpop.f32.mrb[0].mxu0
      %v3083 = vadd.f32 0.0, %v3082
      %v3084 = vpop.f32.mrb[0].mxu0
      %v3085 = vadd.f32 0.0, %v3084
      %3086 = vmatprep.mubr.bf16.mxu0 %v2679
      %3087 = vmatmul.mubr.bf16.gmra.mrb[0].mxu0 %v2678
      %v3088 = vpop.f32.mrb[0].mxu0
      %v3089 = vadd.f32 0.0, %v3088
      %v3090 = vpop.f32.mrb[0].mxu0
      %v3091 = vadd.f32 0.0, %v3090
      %v3092 = vpop.f32.mrb[0].mxu0
      %v3093 = vadd.f32 0.0, %v3092
      %v3094 = vpop.f32.mrb[0].mxu0
      %v3095 = vadd.f32 0.0, %v3094
      %3096 = vmatprep.mubr.bf16.mxu0 %v2681
      %3097 = vmatmul.mubr.bf16.gmra.mrb[0].mxu0 %v2680
      %v3098 = vpop.f32.mrb[0].mxu0
      %v3099 = vadd.f32 0.0, %v3098
      %v3100 = vpop.f32.mrb[0].mxu0
      %v3101 = vadd.f32 0.0, %v3100
      %v3102 = vpop.f32.mrb[0].mxu0
      %v3103 = vadd.f32 0.0, %v3102
      %v3104 = vpop.f32.mrb[0].mxu0
      %v3105 = vadd.f32 0.0, %v3104
      %3106 = vmatprep.mubr.bf16.mxu0 %v2683
      %3107 = vmatmul.mubr.bf16.gmra.mrb[0].mxu0 %v2682
      %v3108 = vpop.f32.mrb[0].mxu0
      %v3109 = vadd.f32 0.0, %v3108
      %v3110 = vpop.f32.mrb[0].mxu0
      %v3111 = vadd.f32 0.0, %v3110
      %v3112 = vpop.f32.mrb[0].mxu0
      %v3113 = vadd.f32 0.0, %v3112
      %v3114 = vpop.f32.mrb[0].mxu0
      %v3115 = vadd.f32 0.0, %v3114
      %3116 = vmatprep.mubr.bf16.mxu0 %v2685
      %3117 = vmatmul.mubr.bf16.gmra.mrb[0].mxu0 %v2684
      %v3118 = vpop.f32.mrb[0].mxu0
      %v3119 = vadd.f32 0.0, %v3118
      %v3120 = vpop.f32.mrb[0].mxu0
      %v3121 = vadd.f32 0.0, %v3120
      %v3122 = vpop.f32.mrb[0].mxu0
      %v3123 = vadd.f32 0.0, %v3122
      %v3124 = vpop.f32.mrb[0].mxu0
      %v3125 = vadd.f32 0.0, %v3124
      %3126 = vmatprep.mubr.bf16.mxu0 %v2687
      %3127 = vmatmul.mubr.bf16.gmra.mrb[0].mxu0 %v2686
      %v3128 = vpop.f32.mrb[0].mxu0
      %v3129 = vadd.f32 0.0, %v3128
      %v3130 = vpop.f32.mrb[0].mxu0
      %v3131 = vadd.f32 0.0, %v3130
      %v3132 = vpop.f32.mrb[0].mxu0
      %v3133 = vadd.f32 0.0, %v3132
      %v3134 = vpop.f32.mrb[0].mxu0
      %v3135 = vadd.f32 0.0, %v3134
      %3136 = vmatprep.mubr.bf16.mxu0 %v2689
      %3137 = vmatmul.mubr.bf16.gmra.mrb[0].mxu0 %v2688
      %v3138 = vpop.f32.mrb[0].mxu0
      %v3139 = vadd.f32 0.0, %v3138
      %v3140 = vpop.f32.mrb[0].mxu0
      %v3141 = vadd.f32 0.0, %v3140
      %v3142 = vpop.f32.mrb[0].mxu0
      %v3143 = vadd.f32 0.0, %v3142
      %v3144 = vpop.f32.mrb[0].mxu0
      %v3145 = vadd.f32 0.0, %v3144
      %3146 = vmatprep.mubr.bf16.mxu0 %v2691
      %3147 = vmatmul.mubr.bf16.gmra.mrb[0].mxu0 %v2690
      %v3148 = vpop.f32.mrb[0].mxu0
      %v3149 = vadd.f32 0.0, %v3148
      %v3150 = vpop.f32.mrb[0].mxu0
      %v3151 = vadd.f32 0.0, %v3150
      %v3152 = vpop.f32.mrb[0].mxu0
      %v3153 = vadd.f32 0.0, %v3152
      %v3154 = vpop.f32.mrb[0].mxu0
      %v3155 = vadd.f32 0.0, %v3154
      %3156 = vmatprep.mubr.bf16.mxu0 %v2693
      %3157 = vmatmul.mubr.bf16.gmra.mrb[0].mxu0 %v2692
      %v3158 = vpop.f32.mrb[0].mxu0
      %v3159 = vadd.f32 0.0, %v3158
      %v3160 = vpop.f32.mrb[0].mxu0
      %v3161 = vadd.f32 0.0, %v3160
      %v3162 = vpop.f32.mrb[0].mxu0
      %v3163 = vadd.f32 0.0, %v3162
      %v3164 = vpop.f32.mrb[0].mxu0
      %v3165 = vadd.f32 0.0, %v3164
      %3166 = vmatprep.mubr.bf16.mxu0 %v2695
      %3167 = vmatmul.mubr.bf16.gmra.mrb[0].mxu0 %v2694
      %v3168 = vpop.f32.mrb[0].mxu0
      %v3169 = vadd.f32 0.0, %v3168
      %v3170 = vpop.f32.mrb[0].mxu0
      %v3171 = vadd.f32 0.0, %v3170
      %v3172 = vpop.f32.mrb[0].mxu0
      %v3173 = vadd.f32 0.0, %v3172
      %v3174 = vpop.f32.mrb[0].mxu0
      %v3175 = vadd.f32 0.0, %v3174
      %3176 = vmatprep.mubr.bf16.mxu0 %v2697
      %3177 = vmatmul.mubr.bf16.gmra.mrb[0].mxu0 %v2696
      %v3178 = vpop.f32.mrb[0].mxu0
      %v3179 = vadd.f32 0.0, %v3178
      %v3180 = vpop.f32.mrb[0].mxu0
      %v3181 = vadd.f32 0.0, %v3180
      %v3182 = vpop.f32.mrb[0].mxu0
      %v3183 = vadd.f32 0.0, %v3182
      %v3184 = vpop.f32.mrb[0].mxu0
      %v3185 = vadd.f32 0.0, %v3184
      %3186 = vmatprep.mubr.bf16.mxu0 %v2699
      %3187 = vmatmul.mubr.bf16.gmra.mrb[0].mxu0 %v2698
      %v3188 = vpop.f32.mrb[0].mxu0
      %v3189 = vadd.f32 0.0, %v3188
      %v3190 = vpop.f32.mrb[0].mxu0
      %v3191 = vadd.f32 0.0, %v3190
      %v3192 = vpop.f32.mrb[0].mxu0
      %v3193 = vadd.f32 0.0, %v3192
      %v3194 = vpop.f32.mrb[0].mxu0
      %v3195 = vadd.f32 0.0, %v3194
      %3196 = vmatprep.mubr.bf16.mxu0 %v2701
      %3197 = vmatmul.mubr.bf16.gmra.mrb[0].mxu0 %v2700
      %v3198 = vpop.f32.mrb[0].mxu0
      %v3199 = vadd.f32 0.0, %v3198
      %v3200 = vpop.f32.mrb[0].mxu0
      %v3201 = vadd.f32 0.0, %v3200
      %v3202 = vpop.f32.mrb[0].mxu0
      %v3203 = vadd.f32 0.0, %v3202
      %v3204 = vpop.f32.mrb[0].mxu0
      %v3205 = vadd.f32 0.0, %v3204
      %3206 = vmatprep.mubr.bf16.mxu0 %v2703
      %3207 = vmatmul.mubr.bf16.gmra.mrb[0].mxu0 %v2702
      %v3208 = vpop.f32.mrb[0].mxu0
      %v3209 = vadd.f32 0.0, %v3208
      %v3210 = vpop.f32.mrb[0].mxu0
      %v3211 = vadd.f32 0.0, %v3210
      %v3212 = vpop.f32.mrb[0].mxu0
      %v3213 = vadd.f32 0.0, %v3212
      %v3214 = vpop.f32.mrb[0].mxu0
      %v3215 = vadd.f32 0.0, %v3214
      %3216 = vmatprep.mubr.bf16.mxu0 %v2705
      %3217 = vmatmul.mubr.bf16.gmra.mrb[0].mxu0 %v2704
      %v3218 = vpop.f32.mrb[0].mxu0
      %v3219 = vadd.f32 0.0, %v3218
      %v3220 = vpop.f32.mrb[0].mxu0
      %v3221 = vadd.f32 0.0, %v3220
      %v3222 = vpop.f32.mrb[0].mxu0
      %v3223 = vadd.f32 0.0, %v3222
      %v3224 = vpop.f32.mrb[0].mxu0
      %v3225 = vadd.f32 0.0, %v3224
      %3226 = vmatprep.mubr.bf16.mxu0 %v2707
      %3227 = vmatmul.mubr.bf16.gmra.mrb[0].mxu0 %v2706
      %v3228 = vpop.f32.mrb[0].mxu0
      %v3229 = vadd.f32 0.0, %v3228
      %v3230 = vpop.f32.mrb[0].mxu0
      %v3231 = vadd.f32 0.0, %v3230
      %v3232 = vpop.f32.mrb[0].mxu0
      %v3233 = vadd.f32 0.0, %v3232
      %v3234 = vpop.f32.mrb[0].mxu0
      %v3235 = vadd.f32 0.0, %v3234
      %3236 = vmatprep.mubr.bf16.mxu0 %v2709
      %3237 = vmatmul.mubr.bf16.gmra.mrb[0].mxu0 %v2708
      %v3238 = vpop.f32.mrb[0].mxu0
      %v3239 = vadd.f32 0.0, %v3238
      %v3240 = vpop.f32.mrb[0].mxu0
      %v3241 = vadd.f32 0.0, %v3240
      %v3242 = vpop.f32.mrb[0].mxu0
      %v3243 = vadd.f32 0.0, %v3242
      %v3244 = vpop.f32.mrb[0].mxu0
      %v3245 = vadd.f32 0.0, %v3244
      %3246 = vmatprep.mubr.bf16.mxu0 %v2711
      %3247 = vmatmul.mubr.bf16.gmra.mrb[0].mxu0 %v2710
      %v3248 = vpop.f32.mrb[0].mxu0
      %v3249 = vadd.f32 0.0, %v3248
      %v3250 = vpop.f32.mrb[0].mxu0
      %v3251 = vadd.f32 0.0, %v3250
      %v3252 = vpop.f32.mrb[0].mxu0
      %v3253 = vadd.f32 0.0, %v3252
      %v3254 = vpop.f32.mrb[0].mxu0
      %v3255 = vadd.f32 0.0, %v3254
      %3256 = vdwg.mxu0
      %v3257 = vpack.c.bf16 %v2943, %v2939
      %v3258 = vpack.c.bf16 %v2945, %v2941
      %v3259 = vpack.c.bf16 %v2953, %v2949
      %v3260 = vpack.c.bf16 %v2955, %v2951
      %v3261 = vpack.c.bf16 %v2963, %v2959
      %v3262 = vpack.c.bf16 %v2965, %v2961
      %v3263 = vpack.c.bf16 %v2973, %v2969
      %v3264 = vpack.c.bf16 %v2975, %v2971
      %v3265 = vpack.c.bf16 %v2983, %v2979
      %v3266 = vpack.c.bf16 %v2985, %v2981
      %v3267 = vpack.c.bf16 %v2993, %v2989
      %v3268 = vpack.c.bf16 %v2995, %v2991
      %v3269 = vpack.c.bf16 %v3003, %v2999
      %v3270 = vpack.c.bf16 %v3005, %v3001
      %v3271 = vpack.c.bf16 %v3013, %v3009
      %v3272 = vpack.c.bf16 %v3015, %v3011
      %v3273 = vpack.c.bf16 %v3023, %v3019
      %v3274 = vpack.c.bf16 %v3025, %v3021
      %v3275 = vpack.c.bf16 %v3033, %v3029
      %v3276 = vpack.c.bf16 %v3035, %v3031
      %v3277 = vpack.c.bf16 %v3043, %v3039
      %v3278 = vpack.c.bf16 %v3045, %v3041
      %v3279 = vpack.c.bf16 %v3053, %v3049
      %v3280 = vpack.c.bf16 %v3055, %v3051
      %v3281 = vpack.c.bf16 %v3063, %v3059
      %v3282 = vpack.c.bf16 %v3065, %v3061
      %v3283 = vpack.c.bf16 %v3073, %v3069
      %v3284 = vpack.c.bf16 %v3075, %v3071
      %v3285 = vpack.c.bf16 %v3083, %v3079
      %v3286 = vpack.c.bf16 %v3085, %v3081
      %v3287 = vpack.c.bf16 %v3093, %v3089
      %v3288 = vpack.c.bf16 %v3095, %v3091
      %v3289 = vpack.c.bf16 %v3103, %v3099
      %v3290 = vpack.c.bf16 %v3105, %v3101
      %v3291 = vpack.c.bf16 %v3113, %v3109
      %v3292 = vpack.c.bf16 %v3115, %v3111
      %v3293 = vpack.c.bf16 %v3123, %v3119
      %v3294 = vpack.c.bf16 %v3125, %v3121
      %v3295 = vpack.c.bf16 %v3133, %v3129
      %v3296 = vpack.c.bf16 %v3135, %v3131
      %v3297 = vpack.c.bf16 %v3143, %v3139
      %v3298 = vpack.c.bf16 %v3145, %v3141
      %v3299 = vpack.c.bf16 %v3153, %v3149
      %v3300 = vpack.c.bf16 %v3155, %v3151
      %v3301 = vpack.c.bf16 %v3163, %v3159
      %v3302 = vpack.c.bf16 %v3165, %v3161
      %v3303 = vpack.c.bf16 %v3173, %v3169
      %v3304 = vpack.c.bf16 %v3175, %v3171
      %v3305 = vpack.c.bf16 %v3183, %v3179
      %v3306 = vpack.c.bf16 %v3185, %v3181
      %v3307 = vpack.c.bf16 %v3193, %v3189
      %v3308 = vpack.c.bf16 %v3195, %v3191
      %v3309 = vpack.c.bf16 %v3203, %v3199
      %v3310 = vpack.c.bf16 %v3205, %v3201
      %v3311 = vpack.c.bf16 %v3213, %v3209
      %v3312 = vpack.c.bf16 %v3215, %v3211
      %v3313 = vpack.c.bf16 %v3223, %v3219
      %v3314 = vpack.c.bf16 %v3225, %v3221
      %v3315 = vpack.c.bf16 %v3233, %v3229
      %v3316 = vpack.c.bf16 %v3235, %v3231
      %v3317 = vpack.c.bf16 %v3243, %v3239
      %v3318 = vpack.c.bf16 %v3245, %v3241
      %v3319 = vpack.c.bf16 %v3253, %v3249
      %v3320 = vpack.c.bf16 %v3255, %v3251
      %v3321 = vshrl.u32 %v2568, 16
      %v3322 = vpack.i.b16 %v3321, %v3321
      %v3324 = vlaneseq
      %v3325 = vshrl.u32 %v3324, 7
      %v3326 = vsub.s32 0, %v3325
      %v3327 = vrot.slane %v3322, %v3326
      %v3328 = vshrl.u32 %v2569, 16
      %v3329 = vpack.i.b16 %v3328, %v3328
      %v3331 = vlaneseq
      %v3332 = vshrl.u32 %v3331, 7
      %v3333 = vsub.s32 0, %v3332
      %v3334 = vrot.slane %v3329, %v3333
      %v3335 = vadd.bf16 %v3257, %v3327
      %v3336 = vadd.bf16 %v3258, %v3334
      %v3337 = vadd.bf16 %v3259, %v3327
      %v3338 = vadd.bf16 %v3260, %v3334
      %v3339 = vadd.bf16 %v3261, %v3327
      %v3340 = vadd.bf16 %v3262, %v3334
      %v3341 = vadd.bf16 %v3263, %v3327
      %v3342 = vadd.bf16 %v3264, %v3334
      %v3343 = vadd.bf16 %v3265, %v3327
      %v3344 = vadd.bf16 %v3266, %v3334
      %v3345 = vadd.bf16 %v3267, %v3327
      %v3346 = vadd.bf16 %v3268, %v3334
      %v3347 = vadd.bf16 %v3269, %v3327
      %v3348 = vadd.bf16 %v3270, %v3334
      %v3349 = vadd.bf16 %v3271, %v3327
      %v3350 = vadd.bf16 %v3272, %v3334
      %v3351 = vadd.bf16 %v3273, %v3327
      %v3352 = vadd.bf16 %v3274, %v3334
      %v3353 = vadd.bf16 %v3275, %v3327
      %v3354 = vadd.bf16 %v3276, %v3334
      %v3355 = vadd.bf16 %v3277, %v3327
      %v3356 = vadd.bf16 %v3278, %v3334
      %v3357 = vadd.bf16 %v3279, %v3327
      %v3358 = vadd.bf16 %v3280, %v3334
      %v3359 = vadd.bf16 %v3281, %v3327
      %v3360 = vadd.bf16 %v3282, %v3334
      %v3361 = vadd.bf16 %v3283, %v3327
      %v3362 = vadd.bf16 %v3284, %v3334
      %v3363 = vadd.bf16 %v3285, %v3327
      %v3364 = vadd.bf16 %v3286, %v3334
      %v3365 = vadd.bf16 %v3287, %v3327
      %v3366 = vadd.bf16 %v3288, %v3334
      %v3367 = vadd.bf16 %v3289, %v3327
      %v3368 = vadd.bf16 %v3290, %v3334
      %v3369 = vadd.bf16 %v3291, %v3327
      %v3370 = vadd.bf16 %v3292, %v3334
      %v3371 = vadd.bf16 %v3293, %v3327
      %v3372 = vadd.bf16 %v3294, %v3334
      %v3373 = vadd.bf16 %v3295, %v3327
      %v3374 = vadd.bf16 %v3296, %v3334
      %v3375 = vadd.bf16 %v3297, %v3327
      %v3376 = vadd.bf16 %v3298, %v3334
      %v3377 = vadd.bf16 %v3299, %v3327
      %v3378 = vadd.bf16 %v3300, %v3334
      %v3379 = vadd.bf16 %v3301, %v3327
      %v3380 = vadd.bf16 %v3302, %v3334
      %v3381 = vadd.bf16 %v3303, %v3327
      %v3382 = vadd.bf16 %v3304, %v3334
      %v3383 = vadd.bf16 %v3305, %v3327
      %v3384 = vadd.bf16 %v3306, %v3334
      %v3385 = vadd.bf16 %v3307, %v3327
      %v3386 = vadd.bf16 %v3308, %v3334
      %v3387 = vadd.bf16 %v3309, %v3327
      %v3388 = vadd.bf16 %v3310, %v3334
      %v3389 = vadd.bf16 %v3311, %v3327
      %v3390 = vadd.bf16 %v3312, %v3334
      %v3391 = vadd.bf16 %v3313, %v3327
      %v3392 = vadd.bf16 %v3314, %v3334
      %v3393 = vadd.bf16 %v3315, %v3327
      %v3394 = vadd.bf16 %v3316, %v3334
      %v3395 = vadd.bf16 %v3317, %v3327
      %v3396 = vadd.bf16 %v3318, %v3334
      %v3397 = vadd.bf16 %v3319, %v3327
      %v3398 = vadd.bf16 %v3320, %v3334
      %v3399 = vmax.bf16 %v3335, 0
      %v3400 = vmax.bf16 %v3336, 0
      %v3401 = vmax.bf16 %v3337, 0
      %v3402 = vmax.bf16 %v3338, 0
      %v3403 = vmax.bf16 %v3339, 0
      %v3404 = vmax.bf16 %v3340, 0
      %v3405 = vmax.bf16 %v3341, 0
      %v3406 = vmax.bf16 %v3342, 0
      %v3407 = vmax.bf16 %v3343, 0
      %v3408 = vmax.bf16 %v3344, 0
      %v3409 = vmax.bf16 %v3345, 0
      %v3410 = vmax.bf16 %v3346, 0
      %v3411 = vmax.bf16 %v3347, 0
      %v3412 = vmax.bf16 %v3348, 0
      %v3413 = vmax.bf16 %v3349, 0
      %v3414 = vmax.bf16 %v3350, 0
      %v3415 = vmax.bf16 %v3351, 0
      %v3416 = vmax.bf16 %v3352, 0
      %v3417 = vmax.bf16 %v3353, 0
      %v3418 = vmax.bf16 %v3354, 0
      %v3419 = vmax.bf16 %v3355, 0
      %v3420 = vmax.bf16 %v3356, 0
      %v3421 = vmax.bf16 %v3357, 0
      %v3422 = vmax.bf16 %v3358, 0
      %v3423 = vmax.bf16 %v3359, 0
      %v3424 = vmax.bf16 %v3360, 0
      %v3425 = vmax.bf16 %v3361, 0
      %v3426 = vmax.bf16 %v3362, 0
      %v3427 = vmax.bf16 %v3363, 0
      %v3428 = vmax.bf16 %v3364, 0
      %v3429 = vmax.bf16 %v3365, 0
      %v3430 = vmax.bf16 %v3366, 0
      %v3431 = vmax.bf16 %v3367, 0
      %v3432 = vmax.bf16 %v3368, 0
      %v3433 = vmax.bf16 %v3369, 0
      %v3434 = vmax.bf16 %v3370, 0
      %v3435 = vmax.bf16 %v3371, 0
      %v3436 = vmax.bf16 %v3372, 0
      %v3437 = vmax.bf16 %v3373, 0
      %v3438 = vmax.bf16 %v3374, 0
      %v3439 = vmax.bf16 %v3375, 0
      %v3440 = vmax.bf16 %v3376, 0
      %v3441 = vmax.bf16 %v3377, 0
      %v3442 = vmax.bf16 %v3378, 0
      %v3443 = vmax.bf16 %v3379, 0
      %v3444 = vmax.bf16 %v3380, 0
      %v3445 = vmax.bf16 %v3381, 0
      %v3446 = vmax.bf16 %v3382, 0
      %v3447 = vmax.bf16 %v3383, 0
      %v3448 = vmax.bf16 %v3384, 0
      %v3449 = vmax.bf16 %v3385, 0
      %v3450 = vmax.bf16 %v3386, 0
      %v3451 = vmax.bf16 %v3387, 0
      %v3452 = vmax.bf16 %v3388, 0
      %v3453 = vmax.bf16 %v3389, 0
      %v3454 = vmax.bf16 %v3390, 0
      %v3455 = vmax.bf16 %v3391, 0
      %v3456 = vmax.bf16 %v3392, 0
      %v3457 = vmax.bf16 %v3393, 0
      %v3458 = vmax.bf16 %v3394, 0
      %v3459 = vmax.bf16 %v3395, 0
      %v3460 = vmax.bf16 %v3396, 0
      %v3461 = vmax.bf16 %v3397, 0
      %v3462 = vmax.bf16 %v3398, 0
      %s3463 = scalar_lea.vmem %s2, 256
      %v3464 = vld [vmem:[%s3463] sm:$0xff]
      %v3465 = vld [vmem:[%s3463 + $0x8] sm:$0xff]
      %v3466 = vld [vmem:[%s3463 + $0x10] sm:$0xff]
      %v3467 = vld [vmem:[%s3463 + $0x18] sm:$0xff]
      %v3468 = vld [vmem:[%s3463 + $0x20] sm:$0xff]
      %v3469 = vld [vmem:[%s3463 + $0x28] sm:$0xff]
      %v3470 = vld [vmem:[%s3463 + $0x30] sm:$0xff]
      %v3471 = vld [vmem:[%s3463 + $0x38] sm:$0xff]
      %v3472 = vld [vmem:[%s3463 + $0x40] sm:$0xff]
      %v3473 = vld [vmem:[%s3463 + $0x48] sm:$0xff]
      %v3474 = vld [vmem:[%s3463 + $0x50] sm:$0xff]
      %v3475 = vld [vmem:[%s3463 + $0x58] sm:$0xff]
      %v3476 = vld [vmem:[%s3463 + $0x60] sm:$0xff]
      %v3477 = vld [vmem:[%s3463 + $0x68] sm:$0xff]
      %v3478 = vld [vmem:[%s3463 + $0x70] sm:$0xff]
      %v3479 = vld [vmem:[%s3463 + $0x78] sm:$0xff]
      %v3480 = vld [vmem:[%s3463 + $0x80] sm:$0xff]
      %v3481 = vld [vmem:[%s3463 + $0x88] sm:$0xff]
      %v3482 = vld [vmem:[%s3463 + $0x90] sm:$0xff]
      %v3483 = vld [vmem:[%s3463 + $0x98] sm:$0xff]
      %v3484 = vld [vmem:[%s3463 + $0xa0] sm:$0xff]
      %v3485 = vld [vmem:[%s3463 + $0xa8] sm:$0xff]
      %v3486 = vld [vmem:[%s3463 + $0xb0] sm:$0xff]
      %v3487 = vld [vmem:[%s3463 + $0xb8] sm:$0xff]
      %v3488 = vld [vmem:[%s3463 + $0xc0] sm:$0xff]
      %v3489 = vld [vmem:[%s3463 + $0xc8] sm:$0xff]
      %v3490 = vld [vmem:[%s3463 + $0xd0] sm:$0xff]
      %v3491 = vld [vmem:[%s3463 + $0xd8] sm:$0xff]
      %v3492 = vld [vmem:[%s3463 + $0xe0] sm:$0xff]
      %v3493 = vld [vmem:[%s3463 + $0xe8] sm:$0xff]
      %v3494 = vld [vmem:[%s3463 + $0xf0] sm:$0xff]
      %v3495 = vld [vmem:[%s3463 + $0xf8] sm:$0xff]
      %v3528 = vunpack.c.l.b16 %v3464
      %v3529 = vunpack.c.h.b16 %v3464
      %v3530 = vunpack.c.l.b16 %v3465
      %v3531 = vunpack.c.h.b16 %v3465
      %v3532 = vunpack.c.l.b16 %v3466
      %v3533 = vunpack.c.h.b16 %v3466
      %v3534 = vunpack.c.l.b16 %v3467
      %v3535 = vunpack.c.h.b16 %v3467
      %v3536 = vunpack.c.l.b16 %v3468
      %v3537 = vunpack.c.h.b16 %v3468
      %v3538 = vunpack.c.l.b16 %v3469
      %v3539 = vunpack.c.h.b16 %v3469
      %v3540 = vunpack.c.l.b16 %v3470
      %v3541 = vunpack.c.h.b16 %v3470
      %v3542 = vunpack.c.l.b16 %v3471
      %v3543 = vunpack.c.h.b16 %v3471
      %v3544 = vunpack.c.l.b16 %v3472
      %v3545 = vunpack.c.h.b16 %v3472
      %v3546 = vunpack.c.l.b16 %v3473
      %v3547 = vunpack.c.h.b16 %v3473
      %v3548 = vunpack.c.l.b16 %v3474
      %v3549 = vunpack.c.h.b16 %v3474
      %v3550 = vunpack.c.l.b16 %v3475
      %v3551 = vunpack.c.h.b16 %v3475
      %v3552 = vunpack.c.l.b16 %v3476
      %v3553 = vunpack.c.h.b16 %v3476
      %v3554 = vunpack.c.l.b16 %v3477
      %v3555 = vunpack.c.h.b16 %v3477
      %v3556 = vunpack.c.l.b16 %v3478
      %v3557 = vunpack.c.h.b16 %v3478
      %v3558 = vunpack.c.l.b16 %v3479
      %v3559 = vunpack.c.h.b16 %v3479
      %v3560 = vunpack.c.l.b16 %v3480
      %v3561 = vunpack.c.h.b16 %v3480
      %v3562 = vunpack.c.l.b16 %v3481
      %v3563 = vunpack.c.h.b16 %v3481
      %v3564 = vunpack.c.l.b16 %v3482
      %v3565 = vunpack.c.h.b16 %v3482
      %v3566 = vunpack.c.l.b16 %v3483
      %v3567 = vunpack.c.h.b16 %v3483
      %v3568 = vunpack.c.l.b16 %v3484
      %v3569 = vunpack.c.h.b16 %v3484
      %v3570 = vunpack.c.l.b16 %v3485
      %v3571 = vunpack.c.h.b16 %v3485
      %v3572 = vunpack.c.l.b16 %v3486
      %v3573 = vunpack.c.h.b16 %v3486
      %v3574 = vunpack.c.l.b16 %v3487
      %v3575 = vunpack.c.h.b16 %v3487
      %v3576 = vunpack.c.l.b16 %v3488
      %v3577 = vunpack.c.h.b16 %v3488
      %v3578 = vunpack.c.l.b16 %v3489
      %v3579 = vunpack.c.h.b16 %v3489
      %v3580 = vunpack.c.l.b16 %v3490
      %v3581 = vunpack.c.h.b16 %v3490
      %v3582 = vunpack.c.l.b16 %v3491
      %v3583 = vunpack.c.h.b16 %v3491
      %v3584 = vunpack.c.l.b16 %v3492
      %v3585 = vunpack.c.h.b16 %v3492
      %v3586 = vunpack.c.l.b16 %v3493
      %v3587 = vunpack.c.h.b16 %v3493
      %v3588 = vunpack.c.l.b16 %v3494
      %v3589 = vunpack.c.h.b16 %v3494
      %v3590 = vunpack.c.l.b16 %v3495
      %v3591 = vunpack.c.h.b16 %v3495
      %v3592 = vpack.c.b16 %v3530, %v3528
      %v3593 = vpack.c.b16 %v3531, %v3529
      %v3594 = vpack.c.b16 %v3534, %v3532
      %v3595 = vpack.c.b16 %v3535, %v3533
      %v3596 = vpack.c.b16 %v3538, %v3536
      %v3597 = vpack.c.b16 %v3539, %v3537
      %v3598 = vpack.c.b16 %v3542, %v3540
      %v3599 = vpack.c.b16 %v3543, %v3541
      %v3600 = vpack.c.b16 %v3546, %v3544
      %v3601 = vpack.c.b16 %v3547, %v3545
      %v3602 = vpack.c.b16 %v3550, %v3548
      %v3603 = vpack.c.b16 %v3551, %v3549
      %v3604 = vpack.c.b16 %v3554, %v3552
      %v3605 = vpack.c.b16 %v3555, %v3553
      %v3606 = vpack.c.b16 %v3558, %v3556
      %v3607 = vpack.c.b16 %v3559, %v3557
      %v3608 = vpack.c.b16 %v3562, %v3560
      %v3609 = vpack.c.b16 %v3563, %v3561
      %v3610 = vpack.c.b16 %v3566, %v3564
      %v3611 = vpack.c.b16 %v3567, %v3565
      %v3612 = vpack.c.b16 %v3570, %v3568
      %v3613 = vpack.c.b16 %v3571, %v3569
      %v3614 = vpack.c.b16 %v3574, %v3572
      %v3615 = vpack.c.b16 %v3575, %v3573
      %v3616 = vpack.c.b16 %v3578, %v3576
      %v3617 = vpack.c.b16 %v3579, %v3577
      %v3618 = vpack.c.b16 %v3582, %v3580
      %v3619 = vpack.c.b16 %v3583, %v3581
      %v3620 = vpack.c.b16 %v3586, %v3584
      %v3621 = vpack.c.b16 %v3587, %v3585
      %v3622 = vpack.c.b16 %v3590, %v3588
      %v3623 = vpack.c.b16 %v3591, %v3589
      %3656 = vmatprep.subr.bf16.mxu0 %v3593
      %3657 = vmatpush1.bf16.msra.mxu0 %v3592
      %3658 = vmatprep.subr.bf16.mxu0 %v3595
      %3659 = vmatpush1.bf16.msra.mxu0 %v3594
      %3660 = vmatprep.subr.bf16.mxu0 %v3597
      %3661 = vmatpush1.bf16.msra.mxu0 %v3596
      %3662 = vmatprep.subr.bf16.mxu0 %v3599
      %3663 = vmatpush1.bf16.msra.mxu0 %v3598
      %3664 = vmatprep.subr.bf16.mxu0 %v3601
      %3665 = vmatpush1.bf16.msra.mxu0 %v3600
      %3666 = vmatprep.subr.bf16.mxu0 %v3603
      %3667 = vmatpush1.bf16.msra.mxu0 %v3602
      %3668 = vmatprep.subr.bf16.mxu0 %v3605
      %3669 = vmatpush1.bf16.msra.mxu0 %v3604
      %3670 = vmatprep.subr.bf16.mxu0 %v3607
      %3671 = vmatpush1.bf16.msra.mxu0 %v3606
      %3672 = vmatprep.subr.bf16.mxu0 %v3609
      %3673 = vmatpush1.bf16.msra.mxu0 %v3608
      %3674 = vmatprep.subr.bf16.mxu0 %v3611
      %3675 = vmatpush1.bf16.msra.mxu0 %v3610
      %3676 = vmatprep.subr.bf16.mxu0 %v3613
      %3677 = vmatpush1.bf16.msra.mxu0 %v3612
      %3678 = vmatprep.subr.bf16.mxu0 %v3615
      %3679 = vmatpush1.bf16.msra.mxu0 %v3614
      %3680 = vmatprep.subr.bf16.mxu0 %v3617
      %3681 = vmatpush1.bf16.msra.mxu0 %v3616
      %3682 = vmatprep.subr.bf16.mxu0 %v3619
      %3683 = vmatpush1.bf16.msra.mxu0 %v3618
      %3684 = vmatprep.subr.bf16.mxu0 %v3621
      %3685 = vmatpush1.bf16.msra.mxu0 %v3620
      %3686 = vmatprep.subr.bf16.mxu0 %v3623
      %3687 = vmatpush1.bf16.msra.mxu0 %v3622
      %3688 = vmatprep.mubr.bf16.mxu0 %v3400
      %3689 = vmatmul.mubr.bf16.gmra.mrb[0].mxu0 %v3399
      %v3690 = vpop.f32.mrb[0].mxu0
      %v3691 = vadd.f32 0.0, %v3690
      %v3692 = vpop.f32.mrb[0].mxu0
      %v3693 = vadd.f32 0.0, %v3692
      %v3694 = vpop.f32.mrb[0].mxu0
      %v3695 = vadd.f32 0.0, %v3694
      %v3696 = vpop.f32.mrb[0].mxu0
      %v3697 = vadd.f32 0.0, %v3696
      %3698 = vmatprep.mubr.bf16.mxu0 %v3402
      %3699 = vmatmul.mubr.bf16.gmra.mrb[0].mxu0 %v3401
      %v3700 = vpop.f32.mrb[0].mxu0
      %v3701 = vadd.f32 0.0, %v3700
      %v3702 = vpop.f32.mrb[0].mxu0
      %v3703 = vadd.f32 0.0, %v3702
      %v3704 = vpop.f32.mrb[0].mxu0
      %v3705 = vadd.f32 0.0, %v3704
      %v3706 = vpop.f32.mrb[0].mxu0
      %v3707 = vadd.f32 0.0, %v3706
      %3708 = vmatprep.mubr.bf16.mxu0 %v3404
      %3709 = vmatmul.mubr.bf16.gmra.mrb[0].mxu0 %v3403
      %v3710 = vpop.f32.mrb[0].mxu0
      %v3711 = vadd.f32 0.0, %v3710
      %v3712 = vpop.f32.mrb[0].mxu0
      %v3713 = vadd.f32 0.0, %v3712
      %v3714 = vpop.f32.mrb[0].mxu0
      %v3715 = vadd.f32 0.0, %v3714
      %v3716 = vpop.f32.mrb[0].mxu0
      %v3717 = vadd.f32 0.0, %v3716
      %3718 = vmatprep.mubr.bf16.mxu0 %v3406
      %3719 = vmatmul.mubr.bf16.gmra.mrb[0].mxu0 %v3405
      %v3720 = vpop.f32.mrb[0].mxu0
      %v3721 = vadd.f32 0.0, %v3720
      %v3722 = vpop.f32.mrb[0].mxu0
      %v3723 = vadd.f32 0.0, %v3722
      %v3724 = vpop.f32.mrb[0].mxu0
      %v3725 = vadd.f32 0.0, %v3724
      %v3726 = vpop.f32.mrb[0].mxu0
      %v3727 = vadd.f32 0.0, %v3726
      %3728 = vmatprep.mubr.bf16.mxu0 %v3408
      %3729 = vmatmul.mubr.bf16.gmra.mrb[0].mxu0 %v3407
      %v3730 = vpop.f32.mrb[0].mxu0
      %v3731 = vadd.f32 0.0, %v3730
      %v3732 = vpop.f32.mrb[0].mxu0
      %v3733 = vadd.f32 0.0, %v3732
      %v3734 = vpop.f32.mrb[0].mxu0
      %v3735 = vadd.f32 0.0, %v3734
      %v3736 = vpop.f32.mrb[0].mxu0
      %v3737 = vadd.f32 0.0, %v3736
      %3738 = vmatprep.mubr.bf16.mxu0 %v3410
      %3739 = vmatmul.mubr.bf16.gmra.mrb[0].mxu0 %v3409
      %v3740 = vpop.f32.mrb[0].mxu0
      %v3741 = vadd.f32 0.0, %v3740
      %v3742 = vpop.f32.mrb[0].mxu0
      %v3743 = vadd.f32 0.0, %v3742
      %v3744 = vpop.f32.mrb[0].mxu0
      %v3745 = vadd.f32 0.0, %v3744
      %v3746 = vpop.f32.mrb[0].mxu0
      %v3747 = vadd.f32 0.0, %v3746
      %3748 = vmatprep.mubr.bf16.mxu0 %v3412
      %3749 = vmatmul.mubr.bf16.gmra.mrb[0].mxu0 %v3411
      %v3750 = vpop.f32.mrb[0].mxu0
      %v3751 = vadd.f32 0.0, %v3750
      %v3752 = vpop.f32.mrb[0].mxu0
      %v3753 = vadd.f32 0.0, %v3752
      %v3754 = vpop.f32.mrb[0].mxu0
      %v3755 = vadd.f32 0.0, %v3754
      %v3756 = vpop.f32.mrb[0].mxu0
      %v3757 = vadd.f32 0.0, %v3756
      %3758 = vmatprep.mubr.bf16.mxu0 %v3414
      %3759 = vmatmul.mubr.bf16.gmra.mrb[0].mxu0 %v3413
      %v3760 = vpop.f32.mrb[0].mxu0
      %v3761 = vadd.f32 0.0, %v3760
      %v3762 = vpop.f32.mrb[0].mxu0
      %v3763 = vadd.f32 0.0, %v3762
      %v3764 = vpop.f32.mrb[0].mxu0
      %v3765 = vadd.f32 0.0, %v3764
      %v3766 = vpop.f32.mrb[0].mxu0
      %v3767 = vadd.f32 0.0, %v3766
      %3768 = vmatprep.mubr.bf16.mxu0 %v3416
      %3769 = vmatmul.mubr.bf16.gmra.mrb[0].mxu0 %v3415
      %v3770 = vpop.f32.mrb[0].mxu0
      %v3771 = vadd.f32 0.0, %v3770
      %v3772 = vpop.f32.mrb[0].mxu0
      %v3773 = vadd.f32 0.0, %v3772
      %v3774 = vpop.f32.mrb[0].mxu0
      %v3775 = vadd.f32 0.0, %v3774
      %v3776 = vpop.f32.mrb[0].mxu0
      %v3777 = vadd.f32 0.0, %v3776
      %3778 = vmatprep.mubr.bf16.mxu0 %v3418
      %3779 = vmatmul.mubr.bf16.gmra.mrb[0].mxu0 %v3417
      %v3780 = vpop.f32.mrb[0].mxu0
      %v3781 = vadd.f32 0.0, %v3780
      %v3782 = vpop.f32.mrb[0].mxu0
      %v3783 = vadd.f32 0.0, %v3782
      %v3784 = vpop.f32.mrb[0].mxu0
      %v3785 = vadd.f32 0.0, %v3784
      %v3786 = vpop.f32.mrb[0].mxu0
      %v3787 = vadd.f32 0.0, %v3786
      %3788 = vmatprep.mubr.bf16.mxu0 %v3420
      %3789 = vmatmul.mubr.bf16.gmra.mrb[0].mxu0 %v3419
      %v3790 = vpop.f32.mrb[0].mxu0
      %v3791 = vadd.f32 0.0, %v3790
      %v3792 = vpop.f32.mrb[0].mxu0
      %v3793 = vadd.f32 0.0, %v3792
      %v3794 = vpop.f32.mrb[0].mxu0
      %v3795 = vadd.f32 0.0, %v3794
      %v3796 = vpop.f32.mrb[0].mxu0
      %v3797 = vadd.f32 0.0, %v3796
      %3798 = vmatprep.mubr.bf16.mxu0 %v3422
      %3799 = vmatmul.mubr.bf16.gmra.mrb[0].mxu0 %v3421
      %v3800 = vpop.f32.mrb[0].mxu0
      %v3801 = vadd.f32 0.0, %v3800
      %v3802 = vpop.f32.mrb[0].mxu0
      %v3803 = vadd.f32 0.0, %v3802
      %v3804 = vpop.f32.mrb[0].mxu0
      %v3805 = vadd.f32 0.0, %v3804
      %v3806 = vpop.f32.mrb[0].mxu0
      %v3807 = vadd.f32 0.0, %v3806
      %3808 = vmatprep.mubr.bf16.mxu0 %v3424
      %3809 = vmatmul.mubr.bf16.gmra.mrb[0].mxu0 %v3423
      %v3810 = vpop.f32.mrb[0].mxu0
      %v3811 = vadd.f32 0.0, %v3810
      %v3812 = vpop.f32.mrb[0].mxu0
      %v3813 = vadd.f32 0.0, %v3812
      %v3814 = vpop.f32.mrb[0].mxu0
      %v3815 = vadd.f32 0.0, %v3814
      %v3816 = vpop.f32.mrb[0].mxu0
      %v3817 = vadd.f32 0.0, %v3816
      %3818 = vmatprep.mubr.bf16.mxu0 %v3426
      %3819 = vmatmul.mubr.bf16.gmra.mrb[0].mxu0 %v3425
      %v3820 = vpop.f32.mrb[0].mxu0
      %v3821 = vadd.f32 0.0, %v3820
      %v3822 = vpop.f32.mrb[0].mxu0
      %v3823 = vadd.f32 0.0, %v3822
      %v3824 = vpop.f32.mrb[0].mxu0
      %v3825 = vadd.f32 0.0, %v3824
      %v3826 = vpop.f32.mrb[0].mxu0
      %v3827 = vadd.f32 0.0, %v3826
      %3828 = vmatprep.mubr.bf16.mxu0 %v3428
      %3829 = vmatmul.mubr.bf16.gmra.mrb[0].mxu0 %v3427
      %v3830 = vpop.f32.mrb[0].mxu0
      %v3831 = vadd.f32 0.0, %v3830
      %v3832 = vpop.f32.mrb[0].mxu0
      %v3833 = vadd.f32 0.0, %v3832
      %v3834 = vpop.f32.mrb[0].mxu0
      %v3835 = vadd.f32 0.0, %v3834
      %v3836 = vpop.f32.mrb[0].mxu0
      %v3837 = vadd.f32 0.0, %v3836
      %3838 = vmatprep.mubr.bf16.mxu0 %v3430
      %3839 = vmatmul.mubr.bf16.gmra.mrb[0].mxu0 %v3429
      %v3840 = vpop.f32.mrb[0].mxu0
      %v3841 = vadd.f32 0.0, %v3840
      %v3842 = vpop.f32.mrb[0].mxu0
      %v3843 = vadd.f32 0.0, %v3842
      %v3844 = vpop.f32.mrb[0].mxu0
      %v3845 = vadd.f32 0.0, %v3844
      %v3846 = vpop.f32.mrb[0].mxu0
      %v3847 = vadd.f32 0.0, %v3846
      %3848 = vmatprep.mubr.bf16.mxu0 %v3432
      %3849 = vmatmul.mubr.bf16.gmra.mrb[0].mxu0 %v3431
      %v3850 = vpop.f32.mrb[0].mxu0
      %v3851 = vadd.f32 0.0, %v3850
      %v3852 = vpop.f32.mrb[0].mxu0
      %v3853 = vadd.f32 0.0, %v3852
      %v3854 = vpop.f32.mrb[0].mxu0
      %v3855 = vadd.f32 0.0, %v3854
      %v3856 = vpop.f32.mrb[0].mxu0
      %v3857 = vadd.f32 0.0, %v3856
      %3858 = vmatprep.mubr.bf16.mxu0 %v3434
      %3859 = vmatmul.mubr.bf16.gmra.mrb[0].mxu0 %v3433
      %v3860 = vpop.f32.mrb[0].mxu0
      %v3861 = vadd.f32 0.0, %v3860
      %v3862 = vpop.f32.mrb[0].mxu0
      %v3863 = vadd.f32 0.0, %v3862
      %v3864 = vpop.f32.mrb[0].mxu0
      %v3865 = vadd.f32 0.0, %v3864
      %v3866 = vpop.f32.mrb[0].mxu0
      %v3867 = vadd.f32 0.0, %v3866
      %3868 = vmatprep.mubr.bf16.mxu0 %v3436
      %3869 = vmatmul.mubr.bf16.gmra.mrb[0].mxu0 %v3435
      %v3870 = vpop.f32.mrb[0].mxu0
      %v3871 = vadd.f32 0.0, %v3870
      %v3872 = vpop.f32.mrb[0].mxu0
      %v3873 = vadd.f32 0.0, %v3872
      %v3874 = vpop.f32.mrb[0].mxu0
      %v3875 = vadd.f32 0.0, %v3874
      %v3876 = vpop.f32.mrb[0].mxu0
      %v3877 = vadd.f32 0.0, %v3876
      %3878 = vmatprep.mubr.bf16.mxu0 %v3438
      %3879 = vmatmul.mubr.bf16.gmra.mrb[0].mxu0 %v3437
      %v3880 = vpop.f32.mrb[0].mxu0
      %v3881 = vadd.f32 0.0, %v3880
      %v3882 = vpop.f32.mrb[0].mxu0
      %v3883 = vadd.f32 0.0, %v3882
      %v3884 = vpop.f32.mrb[0].mxu0
      %v3885 = vadd.f32 0.0, %v3884
      %v3886 = vpop.f32.mrb[0].mxu0
      %v3887 = vadd.f32 0.0, %v3886
      %3888 = vmatprep.mubr.bf16.mxu0 %v3440
      %3889 = vmatmul.mubr.bf16.gmra.mrb[0].mxu0 %v3439
      %v3890 = vpop.f32.mrb[0].mxu0
      %v3891 = vadd.f32 0.0, %v3890
      %v3892 = vpop.f32.mrb[0].mxu0
      %v3893 = vadd.f32 0.0, %v3892
      %v3894 = vpop.f32.mrb[0].mxu0
      %v3895 = vadd.f32 0.0, %v3894
      %v3896 = vpop.f32.mrb[0].mxu0
      %v3897 = vadd.f32 0.0, %v3896
      %3898 = vmatprep.mubr.bf16.mxu0 %v3442
      %3899 = vmatmul.mubr.bf16.gmra.mrb[0].mxu0 %v3441
      %v3900 = vpop.f32.mrb[0].mxu0
      %v3901 = vadd.f32 0.0, %v3900
      %v3902 = vpop.f32.mrb[0].mxu0
      %v3903 = vadd.f32 0.0, %v3902
      %v3904 = vpop.f32.mrb[0].mxu0
      %v3905 = vadd.f32 0.0, %v3904
      %v3906 = vpop.f32.mrb[0].mxu0
      %v3907 = vadd.f32 0.0, %v3906
      %3908 = vmatprep.mubr.bf16.mxu0 %v3444
      %3909 = vmatmul.mubr.bf16.gmra.mrb[0].mxu0 %v3443
      %v3910 = vpop.f32.mrb[0].mxu0
      %v3911 = vadd.f32 0.0, %v3910
      %v3912 = vpop.f32.mrb[0].mxu0
      %v3913 = vadd.f32 0.0, %v3912
      %v3914 = vpop.f32.mrb[0].mxu0
      %v3915 = vadd.f32 0.0, %v3914
      %v3916 = vpop.f32.mrb[0].mxu0
      %v3917 = vadd.f32 0.0, %v3916
      %3918 = vmatprep.mubr.bf16.mxu0 %v3446
      %3919 = vmatmul.mubr.bf16.gmra.mrb[0].mxu0 %v3445
      %v3920 = vpop.f32.mrb[0].mxu0
      %v3921 = vadd.f32 0.0, %v3920
      %v3922 = vpop.f32.mrb[0].mxu0
      %v3923 = vadd.f32 0.0, %v3922
      %v3924 = vpop.f32.mrb[0].mxu0
      %v3925 = vadd.f32 0.0, %v3924
      %v3926 = vpop.f32.mrb[0].mxu0
      %v3927 = vadd.f32 0.0, %v3926
      %3928 = vmatprep.mubr.bf16.mxu0 %v3448
      %3929 = vmatmul.mubr.bf16.gmra.mrb[0].mxu0 %v3447
      %v3930 = vpop.f32.mrb[0].mxu0
      %v3931 = vadd.f32 0.0, %v3930
      %v3932 = vpop.f32.mrb[0].mxu0
      %v3933 = vadd.f32 0.0, %v3932
      %v3934 = vpop.f32.mrb[0].mxu0
      %v3935 = vadd.f32 0.0, %v3934
      %v3936 = vpop.f32.mrb[0].mxu0
      %v3937 = vadd.f32 0.0, %v3936
      %3938 = vmatprep.mubr.bf16.mxu0 %v3450
      %3939 = vmatmul.mubr.bf16.gmra.mrb[0].mxu0 %v3449
      %v3940 = vpop.f32.mrb[0].mxu0
      %v3941 = vadd.f32 0.0, %v3940
      %v3942 = vpop.f32.mrb[0].mxu0
      %v3943 = vadd.f32 0.0, %v3942
      %v3944 = vpop.f32.mrb[0].mxu0
      %v3945 = vadd.f32 0.0, %v3944
      %v3946 = vpop.f32.mrb[0].mxu0
      %v3947 = vadd.f32 0.0, %v3946
      %3948 = vmatprep.mubr.bf16.mxu0 %v3452
      %3949 = vmatmul.mubr.bf16.gmra.mrb[0].mxu0 %v3451
      %v3950 = vpop.f32.mrb[0].mxu0
      %v3951 = vadd.f32 0.0, %v3950
      %v3952 = vpop.f32.mrb[0].mxu0
      %v3953 = vadd.f32 0.0, %v3952
      %v3954 = vpop.f32.mrb[0].mxu0
      %v3955 = vadd.f32 0.0, %v3954
      %v3956 = vpop.f32.mrb[0].mxu0
      %v3957 = vadd.f32 0.0, %v3956
      %3958 = vmatprep.mubr.bf16.mxu0 %v3454
      %3959 = vmatmul.mubr.bf16.gmra.mrb[0].mxu0 %v3453
      %v3960 = vpop.f32.mrb[0].mxu0
      %v3961 = vadd.f32 0.0, %v3960
      %v3962 = vpop.f32.mrb[0].mxu0
      %v3963 = vadd.f32 0.0, %v3962
      %v3964 = vpop.f32.mrb[0].mxu0
      %v3965 = vadd.f32 0.0, %v3964
      %v3966 = vpop.f32.mrb[0].mxu0
      %v3967 = vadd.f32 0.0, %v3966
      %3968 = vmatprep.mubr.bf16.mxu0 %v3456
      %3969 = vmatmul.mubr.bf16.gmra.mrb[0].mxu0 %v3455
      %v3970 = vpop.f32.mrb[0].mxu0
      %v3971 = vadd.f32 0.0, %v3970
      %v3972 = vpop.f32.mrb[0].mxu0
      %v3973 = vadd.f32 0.0, %v3972
      %v3974 = vpop.f32.mrb[0].mxu0
      %v3975 = vadd.f32 0.0, %v3974
      %v3976 = vpop.f32.mrb[0].mxu0
      %v3977 = vadd.f32 0.0, %v3976
      %3978 = vmatprep.mubr.bf16.mxu0 %v3458
      %3979 = vmatmul.mubr.bf16.gmra.mrb[0].mxu0 %v3457
      %v3980 = vpop.f32.mrb[0].mxu0
      %v3981 = vadd.f32 0.0, %v3980
      %v3982 = vpop.f32.mrb[0].mxu0
      %v3983 = vadd.f32 0.0, %v3982
      %v3984 = vpop.f32.mrb[0].mxu0
      %v3985 = vadd.f32 0.0, %v3984
      %v3986 = vpop.f32.mrb[0].mxu0
      %v3987 = vadd.f32 0.0, %v3986
      %3988 = vmatprep.mubr.bf16.mxu0 %v3460
      %3989 = vmatmul.mubr.bf16.gmra.mrb[0].mxu0 %v3459
      %v3990 = vpop.f32.mrb[0].mxu0
      %v3991 = vadd.f32 0.0, %v3990
      %v3992 = vpop.f32.mrb[0].mxu0
      %v3993 = vadd.f32 0.0, %v3992
      %v3994 = vpop.f32.mrb[0].mxu0
      %v3995 = vadd.f32 0.0, %v3994
      %v3996 = vpop.f32.mrb[0].mxu0
      %v3997 = vadd.f32 0.0, %v3996
      %3998 = vmatprep.mubr.bf16.mxu0 %v3462
      %3999 = vmatmul.mubr.bf16.gmra.mrb[0].mxu0 %v3461
      %v4000 = vpop.f32.mrb[0].mxu0
      %v4001 = vadd.f32 0.0, %v4000
      %v4002 = vpop.f32.mrb[0].mxu0
      %v4003 = vadd.f32 0.0, %v4002
      %v4004 = vpop.f32.mrb[0].mxu0
      %v4005 = vadd.f32 0.0, %v4004
      %v4006 = vpop.f32.mrb[0].mxu0
      %v4007 = vadd.f32 0.0, %v4006
      %4008 = vdwg.mxu0
      %v4009 = vpack.c.bf16 %v3695, %v3691
      %v4010 = vpack.c.bf16 %v3697, %v3693
      %v4011 = vpack.c.bf16 %v3705, %v3701
      %v4012 = vpack.c.bf16 %v3707, %v3703
      %v4013 = vpack.c.bf16 %v3715, %v3711
      %v4014 = vpack.c.bf16 %v3717, %v3713
      %v4015 = vpack.c.bf16 %v3725, %v3721
      %v4016 = vpack.c.bf16 %v3727, %v3723
      %v4017 = vpack.c.bf16 %v3735, %v3731
      %v4018 = vpack.c.bf16 %v3737, %v3733
      %v4019 = vpack.c.bf16 %v3745, %v3741
      %v4020 = vpack.c.bf16 %v3747, %v3743
      %v4021 = vpack.c.bf16 %v3755, %v3751
      %v4022 = vpack.c.bf16 %v3757, %v3753
      %v4023 = vpack.c.bf16 %v3765, %v3761
      %v4024 = vpack.c.bf16 %v3767, %v3763
      %v4025 = vpack.c.bf16 %v3775, %v3771
      %v4026 = vpack.c.bf16 %v3777, %v3773
      %v4027 = vpack.c.bf16 %v3785, %v3781
      %v4028 = vpack.c.bf16 %v3787, %v3783
      %v4029 = vpack.c.bf16 %v3795, %v3791
      %v4030 = vpack.c.bf16 %v3797, %v3793
      %v4031 = vpack.c.bf16 %v3805, %v3801
      %v4032 = vpack.c.bf16 %v3807, %v3803
      %v4033 = vpack.c.bf16 %v3815, %v3811
      %v4034 = vpack.c.bf16 %v3817, %v3813
      %v4035 = vpack.c.bf16 %v3825, %v3821
      %v4036 = vpack.c.bf16 %v3827, %v3823
      %v4037 = vpack.c.bf16 %v3835, %v3831
      %v4038 = vpack.c.bf16 %v3837, %v3833
      %v4039 = vpack.c.bf16 %v3845, %v3841
      %v4040 = vpack.c.bf16 %v3847, %v3843
      %v4041 = vpack.c.bf16 %v3855, %v3851
      %v4042 = vpack.c.bf16 %v3857, %v3853
      %v4043 = vpack.c.bf16 %v3865, %v3861
      %v4044 = vpack.c.bf16 %v3867, %v3863
      %v4045 = vpack.c.bf16 %v3875, %v3871
      %v4046 = vpack.c.bf16 %v3877, %v3873
      %v4047 = vpack.c.bf16 %v3885, %v3881
      %v4048 = vpack.c.bf16 %v3887, %v3883
      %v4049 = vpack.c.bf16 %v3895, %v3891
      %v4050 = vpack.c.bf16 %v3897, %v3893
      %v4051 = vpack.c.bf16 %v3905, %v3901
      %v4052 = vpack.c.bf16 %v3907, %v3903
      %v4053 = vpack.c.bf16 %v3915, %v3911
      %v4054 = vpack.c.bf16 %v3917, %v3913
      %v4055 = vpack.c.bf16 %v3925, %v3921
      %v4056 = vpack.c.bf16 %v3927, %v3923
      %v4057 = vpack.c.bf16 %v3935, %v3931
      %v4058 = vpack.c.bf16 %v3937, %v3933
      %v4059 = vpack.c.bf16 %v3945, %v3941
      %v4060 = vpack.c.bf16 %v3947, %v3943
      %v4061 = vpack.c.bf16 %v3955, %v3951
      %v4062 = vpack.c.bf16 %v3957, %v3953
      %v4063 = vpack.c.bf16 %v3965, %v3961
      %v4064 = vpack.c.bf16 %v3967, %v3963
      %v4065 = vpack.c.bf16 %v3975, %v3971
      %v4066 = vpack.c.bf16 %v3977, %v3973
      %v4067 = vpack.c.bf16 %v3985, %v3981
      %v4068 = vpack.c.bf16 %v3987, %v3983
      %v4069 = vpack.c.bf16 %v3995, %v3991
      %v4070 = vpack.c.bf16 %v3997, %v3993
      %v4071 = vpack.c.bf16 %v4005, %v4001
      %v4072 = vpack.c.bf16 %v4007, %v4003
      %v4073 = vld [vmem:[%s3] sm:$0x22]
      %v4075 = vunpack.c.l.b16 %v4073
      %v4076 = vunpack.c.h.b16 %v4073
      %v4077 = vpack.c.b16 %v4075, %v4075
      %v4078 = vpack.c.b16 %v4076, %v4076
      %v4080 = vpack.i.b16 %v4077, %v4077
      %v4082 = vlaneseq
      %v4083 = vshrl.u32 %v4082, 7
      %v4084 = vsub.s32 1, %v4083
      %v4085 = vrot.slane %v4080, %v4084
      %v4087 = vpack.i.b16 %v4078, %v4078
      %v4089 = vlaneseq
      %v4090 = vshrl.u32 %v4089, 7
      %v4091 = vsub.s32 1, %v4090
      %v4092 = vrot.slane %v4087, %v4091
      %v4093 = vadd.bf16 %v4009, %v4085
      %v4094 = vadd.bf16 %v4010, %v4092
      %v4095 = vadd.bf16 %v4011, %v4085
      %v4096 = vadd.bf16 %v4012, %v4092
      %v4097 = vadd.bf16 %v4013, %v4085
      %v4098 = vadd.bf16 %v4014, %v4092
      %v4099 = vadd.bf16 %v4015, %v4085
      %v4100 = vadd.bf16 %v4016, %v4092
      %v4101 = vadd.bf16 %v4017, %v4085
      %v4102 = vadd.bf16 %v4018, %v4092
      %v4103 = vadd.bf16 %v4019, %v4085
      %v4104 = vadd.bf16 %v4020, %v4092
      %v4105 = vadd.bf16 %v4021, %v4085
      %v4106 = vadd.bf16 %v4022, %v4092
      %v4107 = vadd.bf16 %v4023, %v4085
      %v4108 = vadd.bf16 %v4024, %v4092
      %v4109 = vadd.bf16 %v4025, %v4085
      %v4110 = vadd.bf16 %v4026, %v4092
      %v4111 = vadd.bf16 %v4027, %v4085
      %v4112 = vadd.bf16 %v4028, %v4092
      %v4113 = vadd.bf16 %v4029, %v4085
      %v4114 = vadd.bf16 %v4030, %v4092
      %v4115 = vadd.bf16 %v4031, %v4085
      %v4116 = vadd.bf16 %v4032, %v4092
      %v4117 = vadd.bf16 %v4033, %v4085
      %v4118 = vadd.bf16 %v4034, %v4092
      %v4119 = vadd.bf16 %v4035, %v4085
      %v4120 = vadd.bf16 %v4036, %v4092
      %v4121 = vadd.bf16 %v4037, %v4085
      %v4122 = vadd.bf16 %v4038, %v4092
      %v4123 = vadd.bf16 %v4039, %v4085
      %v4124 = vadd.bf16 %v4040, %v4092
      %v4125 = vadd.bf16 %v4041, %v4085
      %v4126 = vadd.bf16 %v4042, %v4092
      %v4127 = vadd.bf16 %v4043, %v4085
      %v4128 = vadd.bf16 %v4044, %v4092
      %v4129 = vadd.bf16 %v4045, %v4085
      %v4130 = vadd.bf16 %v4046, %v4092
      %v4131 = vadd.bf16 %v4047, %v4085
      %v4132 = vadd.bf16 %v4048, %v4092
      %v4133 = vadd.bf16 %v4049, %v4085
      %v4134 = vadd.bf16 %v4050, %v4092
      %v4135 = vadd.bf16 %v4051, %v4085
      %v4136 = vadd.bf16 %v4052, %v4092
      %v4137 = vadd.bf16 %v4053, %v4085
      %v4138 = vadd.bf16 %v4054, %v4092
      %v4139 = vadd.bf16 %v4055, %v4085
      %v4140 = vadd.bf16 %v4056, %v4092
      %v4141 = vadd.bf16 %v4057, %v4085
      %v4142 = vadd.bf16 %v4058, %v4092
      %v4143 = vadd.bf16 %v4059, %v4085
      %v4144 = vadd.bf16 %v4060, %v4092
      %v4145 = vadd.bf16 %v4061, %v4085
      %v4146 = vadd.bf16 %v4062, %v4092
      %v4147 = vadd.bf16 %v4063, %v4085
      %v4148 = vadd.bf16 %v4064, %v4092
      %v4149 = vadd.bf16 %v4065, %v4085
      %v4150 = vadd.bf16 %v4066, %v4092
      %v4151 = vadd.bf16 %v4067, %v4085
      %v4152 = vadd.bf16 %v4068, %v4092
      %v4153 = vadd.bf16 %v4069, %v4085
      %v4154 = vadd.bf16 %v4070, %v4092
      %v4155 = vadd.bf16 %v4071, %v4085
      %v4156 = vadd.bf16 %v4072, %v4092
      %v4157 = vmax.bf16 %v4093, 0
      %v4158 = vmax.bf16 %v4094, 0
      %v4159 = vmax.bf16 %v4095, 0
      %v4160 = vmax.bf16 %v4096, 0
      %v4161 = vmax.bf16 %v4097, 0
      %v4162 = vmax.bf16 %v4098, 0
      %v4163 = vmax.bf16 %v4099, 0
      %v4164 = vmax.bf16 %v4100, 0
      %v4165 = vmax.bf16 %v4101, 0
      %v4166 = vmax.bf16 %v4102, 0
      %v4167 = vmax.bf16 %v4103, 0
      %v4168 = vmax.bf16 %v4104, 0
      %v4169 = vmax.bf16 %v4105, 0
      %v4170 = vmax.bf16 %v4106, 0
      %v4171 = vmax.bf16 %v4107, 0
      %v4172 = vmax.bf16 %v4108, 0
      %v4173 = vmax.bf16 %v4109, 0
      %v4174 = vmax.bf16 %v4110, 0
      %v4175 = vmax.bf16 %v4111, 0
      %v4176 = vmax.bf16 %v4112, 0
      %v4177 = vmax.bf16 %v4113, 0
      %v4178 = vmax.bf16 %v4114, 0
      %v4179 = vmax.bf16 %v4115, 0
      %v4180 = vmax.bf16 %v4116, 0
      %v4181 = vmax.bf16 %v4117, 0
      %v4182 = vmax.bf16 %v4118, 0
      %v4183 = vmax.bf16 %v4119, 0
      %v4184 = vmax.bf16 %v4120, 0
      %v4185 = vmax.bf16 %v4121, 0
      %v4186 = vmax.bf16 %v4122, 0
      %v4187 = vmax.bf16 %v4123, 0
      %v4188 = vmax.bf16 %v4124, 0
      %v4189 = vmax.bf16 %v4125, 0
      %v4190 = vmax.bf16 %v4126, 0
      %v4191 = vmax.bf16 %v4127, 0
      %v4192 = vmax.bf16 %v4128, 0
      %v4193 = vmax.bf16 %v4129, 0
      %v4194 = vmax.bf16 %v4130, 0
      %v4195 = vmax.bf16 %v4131, 0
      %v4196 = vmax.bf16 %v4132, 0
      %v4197 = vmax.bf16 %v4133, 0
      %v4198 = vmax.bf16 %v4134, 0
      %v4199 = vmax.bf16 %v4135, 0
      %v4200 = vmax.bf16 %v4136, 0
      %v4201 = vmax.bf16 %v4137, 0
      %v4202 = vmax.bf16 %v4138, 0
      %v4203 = vmax.bf16 %v4139, 0
      %v4204 = vmax.bf16 %v4140, 0
      %v4205 = vmax.bf16 %v4141, 0
      %v4206 = vmax.bf16 %v4142, 0
      %v4207 = vmax.bf16 %v4143, 0
      %v4208 = vmax.bf16 %v4144, 0
      %v4209 = vmax.bf16 %v4145, 0
      %v4210 = vmax.bf16 %v4146, 0
      %v4211 = vmax.bf16 %v4147, 0
      %v4212 = vmax.bf16 %v4148, 0
      %v4213 = vmax.bf16 %v4149, 0
      %v4214 = vmax.bf16 %v4150, 0
      %v4215 = vmax.bf16 %v4151, 0
      %v4216 = vmax.bf16 %v4152, 0
      %v4217 = vmax.bf16 %v4153, 0
      %v4218 = vmax.bf16 %v4154, 0
      %v4219 = vmax.bf16 %v4155, 0
      %v4220 = vmax.bf16 %v4156, 0
      %s4221 = scalar_lea.vmem %s2, 512
      %v4222 = vld [vmem:[%s4221] sm:$0xff]
      %v4223 = vld [vmem:[%s4221 + $0x8] sm:$0xff]
      %v4224 = vld [vmem:[%s4221 + $0x10] sm:$0xff]
      %v4225 = vld [vmem:[%s4221 + $0x18] sm:$0xff]
      %v4226 = vld [vmem:[%s4221 + $0x20] sm:$0xff]
      %v4227 = vld [vmem:[%s4221 + $0x28] sm:$0xff]
      %v4228 = vld [vmem:[%s4221 + $0x30] sm:$0xff]
      %v4229 = vld [vmem:[%s4221 + $0x38] sm:$0xff]
      %v4230 = vld [vmem:[%s4221 + $0x40] sm:$0xff]
      %v4231 = vld [vmem:[%s4221 + $0x48] sm:$0xff]
      %v4232 = vld [vmem:[%s4221 + $0x50] sm:$0xff]
      %v4233 = vld [vmem:[%s4221 + $0x58] sm:$0xff]
      %v4234 = vld [vmem:[%s4221 + $0x60] sm:$0xff]
      %v4235 = vld [vmem:[%s4221 + $0x68] sm:$0xff]
      %v4236 = vld [vmem:[%s4221 + $0x70] sm:$0xff]
      %v4237 = vld [vmem:[%s4221 + $0x78] sm:$0xff]
      %v4238 = vld [vmem:[%s4221 + $0x80] sm:$0xff]
      %v4239 = vld [vmem:[%s4221 + $0x88] sm:$0xff]
      %v4240 = vld [vmem:[%s4221 + $0x90] sm:$0xff]
      %v4241 = vld [vmem:[%s4221 + $0x98] sm:$0xff]
      %v4242 = vld [vmem:[%s4221 + $0xa0] sm:$0xff]
      %v4243 = vld [vmem:[%s4221 + $0xa8] sm:$0xff]
      %v4244 = vld [vmem:[%s4221 + $0xb0] sm:$0xff]
      %v4245 = vld [vmem:[%s4221 + $0xb8] sm:$0xff]
      %v4246 = vld [vmem:[%s4221 + $0xc0] sm:$0xff]
      %v4247 = vld [vmem:[%s4221 + $0xc8] sm:$0xff]
      %v4248 = vld [vmem:[%s4221 + $0xd0] sm:$0xff]
      %v4249 = vld [vmem:[%s4221 + $0xd8] sm:$0xff]
      %v4250 = vld [vmem:[%s4221 + $0xe0] sm:$0xff]
      %v4251 = vld [vmem:[%s4221 + $0xe8] sm:$0xff]
      %v4252 = vld [vmem:[%s4221 + $0xf0] sm:$0xff]
      %v4253 = vld [vmem:[%s4221 + $0xf8] sm:$0xff]
      %v4286 = vunpack.c.l.b16 %v4222
      %v4287 = vunpack.c.h.b16 %v4222
      %v4288 = vunpack.c.l.b16 %v4223
      %v4289 = vunpack.c.h.b16 %v4223
      %v4290 = vunpack.c.l.b16 %v4224
      %v4291 = vunpack.c.h.b16 %v4224
      %v4292 = vunpack.c.l.b16 %v4225
      %v4293 = vunpack.c.h.b16 %v4225
      %v4294 = vunpack.c.l.b16 %v4226
      %v4295 = vunpack.c.h.b16 %v4226
      %v4296 = vunpack.c.l.b16 %v4227
      %v4297 = vunpack.c.h.b16 %v4227
      %v4298 = vunpack.c.l.b16 %v4228
      %v4299 = vunpack.c.h.b16 %v4228
      %v4300 = vunpack.c.l.b16 %v4229
      %v4301 = vunpack.c.h.b16 %v4229
      %v4302 = vunpack.c.l.b16 %v4230
      %v4303 = vunpack.c.h.b16 %v4230
      %v4304 = vunpack.c.l.b16 %v4231
      %v4305 = vunpack.c.h.b16 %v4231
      %v4306 = vunpack.c.l.b16 %v4232
      %v4307 = vunpack.c.h.b16 %v4232
      %v4308 = vunpack.c.l.b16 %v4233
      %v4309 = vunpack.c.h.b16 %v4233
      %v4310 = vunpack.c.l.b16 %v4234
      %v4311 = vunpack.c.h.b16 %v4234
      %v4312 = vunpack.c.l.b16 %v4235
      %v4313 = vunpack.c.h.b16 %v4235
      %v4314 = vunpack.c.l.b16 %v4236
      %v4315 = vunpack.c.h.b16 %v4236
      %v4316 = vunpack.c.l.b16 %v4237
      %v4317 = vunpack.c.h.b16 %v4237
      %v4318 = vunpack.c.l.b16 %v4238
      %v4319 = vunpack.c.h.b16 %v4238
      %v4320 = vunpack.c.l.b16 %v4239
      %v4321 = vunpack.c.h.b16 %v4239
      %v4322 = vunpack.c.l.b16 %v4240
      %v4323 = vunpack.c.h.b16 %v4240
      %v4324 = vunpack.c.l.b16 %v4241
      %v4325 = vunpack.c.h.b16 %v4241
      %v4326 = vunpack.c.l.b16 %v4242
      %v4327 = vunpack.c.h.b16 %v4242
      %v4328 = vunpack.c.l.b16 %v4243
      %v4329 = vunpack.c.h.b16 %v4243
      %v4330 = vunpack.c.l.b16 %v4244
      %v4331 = vunpack.c.h.b16 %v4244
      %v4332 = vunpack.c.l.b16 %v4245
      %v4333 = vunpack.c.h.b16 %v4245
      %v4334 = vunpack.c.l.b16 %v4246
      %v4335 = vunpack.c.h.b16 %v4246
      %v4336 = vunpack.c.l.b16 %v4247
      %v4337 = vunpack.c.h.b16 %v4247
      %v4338 = vunpack.c.l.b16 %v4248
      %v4339 = vunpack.c.h.b16 %v4248
      %v4340 = vunpack.c.l.b16 %v4249
      %v4341 = vunpack.c.h.b16 %v4249
      %v4342 = vunpack.c.l.b16 %v4250
      %v4343 = vunpack.c.h.b16 %v4250
      %v4344 = vunpack.c.l.b16 %v4251
      %v4345 = vunpack.c.h.b16 %v4251
      %v4346 = vunpack.c.l.b16 %v4252
      %v4347 = vunpack.c.h.b16 %v4252
      %v4348 = vunpack.c.l.b16 %v4253
      %v4349 = vunpack.c.h.b16 %v4253
      %v4350 = vpack.c.b16 %v4288, %v4286
      %v4351 = vpack.c.b16 %v4289, %v4287
      %v4352 = vpack.c.b16 %v4292, %v4290
      %v4353 = vpack.c.b16 %v4293, %v4291
      %v4354 = vpack.c.b16 %v4296, %v4294
      %v4355 = vpack.c.b16 %v4297, %v4295
      %v4356 = vpack.c.b16 %v4300, %v4298
      %v4357 = vpack.c.b16 %v4301, %v4299
      %v4358 = vpack.c.b16 %v4304, %v4302
      %v4359 = vpack.c.b16 %v4305, %v4303
      %v4360 = vpack.c.b16 %v4308, %v4306
      %v4361 = vpack.c.b16 %v4309, %v4307
      %v4362 = vpack.c.b16 %v4312, %v4310
      %v4363 = vpack.c.b16 %v4313, %v4311
      %v4364 = vpack.c.b16 %v4316, %v4314
      %v4365 = vpack.c.b16 %v4317, %v4315
      %v4366 = vpack.c.b16 %v4320, %v4318
      %v4367 = vpack.c.b16 %v4321, %v4319
      %v4368 = vpack.c.b16 %v4324, %v4322
      %v4369 = vpack.c.b16 %v4325, %v4323
      %v4370 = vpack.c.b16 %v4328, %v4326
      %v4371 = vpack.c.b16 %v4329, %v4327
      %v4372 = vpack.c.b16 %v4332, %v4330
      %v4373 = vpack.c.b16 %v4333, %v4331
      %v4374 = vpack.c.b16 %v4336, %v4334
      %v4375 = vpack.c.b16 %v4337, %v4335
      %v4376 = vpack.c.b16 %v4340, %v4338
      %v4377 = vpack.c.b16 %v4341, %v4339
      %v4378 = vpack.c.b16 %v4344, %v4342
      %v4379 = vpack.c.b16 %v4345, %v4343
      %v4380 = vpack.c.b16 %v4348, %v4346
      %v4381 = vpack.c.b16 %v4349, %v4347
      %4414 = vmatprep.subr.bf16.mxu0 %v4351
      %4415 = vmatpush1.bf16.msra.mxu0 %v4350
      %4416 = vmatprep.subr.bf16.mxu0 %v4353
      %4417 = vmatpush1.bf16.msra.mxu0 %v4352
      %4418 = vmatprep.subr.bf16.mxu0 %v4355
      %4419 = vmatpush1.bf16.msra.mxu0 %v4354
      %4420 = vmatprep.subr.bf16.mxu0 %v4357
      %4421 = vmatpush1.bf16.msra.mxu0 %v4356
      %4422 = vmatprep.subr.bf16.mxu0 %v4359
      %4423 = vmatpush1.bf16.msra.mxu0 %v4358
      %4424 = vmatprep.subr.bf16.mxu0 %v4361
      %4425 = vmatpush1.bf16.msra.mxu0 %v4360
      %4426 = vmatprep.subr.bf16.mxu0 %v4363
      %4427 = vmatpush1.bf16.msra.mxu0 %v4362
      %4428 = vmatprep.subr.bf16.mxu0 %v4365
      %4429 = vmatpush1.bf16.msra.mxu0 %v4364
      %4430 = vmatprep.subr.bf16.mxu0 %v4367
      %4431 = vmatpush1.bf16.msra.mxu0 %v4366
      %4432 = vmatprep.subr.bf16.mxu0 %v4369
      %4433 = vmatpush1.bf16.msra.mxu0 %v4368
      %4434 = vmatprep.subr.bf16.mxu0 %v4371
      %4435 = vmatpush1.bf16.msra.mxu0 %v4370
      %4436 = vmatprep.subr.bf16.mxu0 %v4373
      %4437 = vmatpush1.bf16.msra.mxu0 %v4372
      %4438 = vmatprep.subr.bf16.mxu0 %v4375
      %4439 = vmatpush1.bf16.msra.mxu0 %v4374
      %4440 = vmatprep.subr.bf16.mxu0 %v4377
      %4441 = vmatpush1.bf16.msra.mxu0 %v4376
      %4442 = vmatprep.subr.bf16.mxu0 %v4379
      %4443 = vmatpush1.bf16.msra.mxu0 %v4378
      %4444 = vmatprep.subr.bf16.mxu0 %v4381
      %4445 = vmatpush1.bf16.msra.mxu0 %v4380
      %4446 = vmatprep.mubr.bf16.mxu0 %v4158
      %4447 = vmatmul.mubr.bf16.gmra.mrb[0].mxu0 %v4157
      %v4448 = vpop.f32.mrb[0].mxu0
      %v4449 = vadd.f32 0.0, %v4448
      %v4450 = vpop.f32.mrb[0].mxu0
      %v4451 = vadd.f32 0.0, %v4450
      %v4452 = vpop.f32.mrb[0].mxu0
      %v4453 = vadd.f32 0.0, %v4452
      %v4454 = vpop.f32.mrb[0].mxu0
      %v4455 = vadd.f32 0.0, %v4454
      %4456 = vmatprep.mubr.bf16.mxu0 %v4160
      %4457 = vmatmul.mubr.bf16.gmra.mrb[0].mxu0 %v4159
      %v4458 = vpop.f32.mrb[0].mxu0
      %v4459 = vadd.f32 0.0, %v4458
      %v4460 = vpop.f32.mrb[0].mxu0
      %v4461 = vadd.f32 0.0, %v4460
      %v4462 = vpop.f32.mrb[0].mxu0
      %v4463 = vadd.f32 0.0, %v4462
      %v4464 = vpop.f32.mrb[0].mxu0
      %v4465 = vadd.f32 0.0, %v4464
      %4466 = vmatprep.mubr.bf16.mxu0 %v4162
      %4467 = vmatmul.mubr.bf16.gmra.mrb[0].mxu0 %v4161
      %v4468 = vpop.f32.mrb[0].mxu0
      %v4469 = vadd.f32 0.0, %v4468
      %v4470 = vpop.f32.mrb[0].mxu0
      %v4471 = vadd.f32 0.0, %v4470
      %v4472 = vpop.f32.mrb[0].mxu0
      %v4473 = vadd.f32 0.0, %v4472
      %v4474 = vpop.f32.mrb[0].mxu0
      %v4475 = vadd.f32 0.0, %v4474
      %4476 = vmatprep.mubr.bf16.mxu0 %v4164
      %4477 = vmatmul.mubr.bf16.gmra.mrb[0].mxu0 %v4163
      %v4478 = vpop.f32.mrb[0].mxu0
      %v4479 = vadd.f32 0.0, %v4478
      %v4480 = vpop.f32.mrb[0].mxu0
      %v4481 = vadd.f32 0.0, %v4480
      %v4482 = vpop.f32.mrb[0].mxu0
      %v4483 = vadd.f32 0.0, %v4482
      %v4484 = vpop.f32.mrb[0].mxu0
      %v4485 = vadd.f32 0.0, %v4484
      %4486 = vmatprep.mubr.bf16.mxu0 %v4166
      %4487 = vmatmul.mubr.bf16.gmra.mrb[0].mxu0 %v4165
      %v4488 = vpop.f32.mrb[0].mxu0
      %v4489 = vadd.f32 0.0, %v4488
      %v4490 = vpop.f32.mrb[0].mxu0
      %v4491 = vadd.f32 0.0, %v4490
      %v4492 = vpop.f32.mrb[0].mxu0
      %v4493 = vadd.f32 0.0, %v4492
      %v4494 = vpop.f32.mrb[0].mxu0
      %v4495 = vadd.f32 0.0, %v4494
      %4496 = vmatprep.mubr.bf16.mxu0 %v4168
      %4497 = vmatmul.mubr.bf16.gmra.mrb[0].mxu0 %v4167
      %v4498 = vpop.f32.mrb[0].mxu0
      %v4499 = vadd.f32 0.0, %v4498
      %v4500 = vpop.f32.mrb[0].mxu0
      %v4501 = vadd.f32 0.0, %v4500
      %v4502 = vpop.f32.mrb[0].mxu0
      %v4503 = vadd.f32 0.0, %v4502
      %v4504 = vpop.f32.mrb[0].mxu0
      %v4505 = vadd.f32 0.0, %v4504
      %4506 = vmatprep.mubr.bf16.mxu0 %v4170
      %4507 = vmatmul.mubr.bf16.gmra.mrb[0].mxu0 %v4169
      %v4508 = vpop.f32.mrb[0].mxu0
      %v4509 = vadd.f32 0.0, %v4508
      %v4510 = vpop.f32.mrb[0].mxu0
      %v4511 = vadd.f32 0.0, %v4510
      %v4512 = vpop.f32.mrb[0].mxu0
      %v4513 = vadd.f32 0.0, %v4512
      %v4514 = vpop.f32.mrb[0].mxu0
      %v4515 = vadd.f32 0.0, %v4514
      %4516 = vmatprep.mubr.bf16.mxu0 %v4172
      %4517 = vmatmul.mubr.bf16.gmra.mrb[0].mxu0 %v4171
      %v4518 = vpop.f32.mrb[0].mxu0
      %v4519 = vadd.f32 0.0, %v4518
      %v4520 = vpop.f32.mrb[0].mxu0
      %v4521 = vadd.f32 0.0, %v4520
      %v4522 = vpop.f32.mrb[0].mxu0
      %v4523 = vadd.f32 0.0, %v4522
      %v4524 = vpop.f32.mrb[0].mxu0
      %v4525 = vadd.f32 0.0, %v4524
      %4526 = vmatprep.mubr.bf16.mxu0 %v4174
      %4527 = vmatmul.mubr.bf16.gmra.mrb[0].mxu0 %v4173
      %v4528 = vpop.f32.mrb[0].mxu0
      %v4529 = vadd.f32 0.0, %v4528
      %v4530 = vpop.f32.mrb[0].mxu0
      %v4531 = vadd.f32 0.0, %v4530
      %v4532 = vpop.f32.mrb[0].mxu0
      %v4533 = vadd.f32 0.0, %v4532
      %v4534 = vpop.f32.mrb[0].mxu0
      %v4535 = vadd.f32 0.0, %v4534
      %4536 = vmatprep.mubr.bf16.mxu0 %v4176
      %4537 = vmatmul.mubr.bf16.gmra.mrb[0].mxu0 %v4175
      %v4538 = vpop.f32.mrb[0].mxu0
      %v4539 = vadd.f32 0.0, %v4538
      %v4540 = vpop.f32.mrb[0].mxu0
      %v4541 = vadd.f32 0.0, %v4540
      %v4542 = vpop.f32.mrb[0].mxu0
      %v4543 = vadd.f32 0.0, %v4542
      %v4544 = vpop.f32.mrb[0].mxu0
      %v4545 = vadd.f32 0.0, %v4544
      %4546 = vmatprep.mubr.bf16.mxu0 %v4178
      %4547 = vmatmul.mubr.bf16.gmra.mrb[0].mxu0 %v4177
      %v4548 = vpop.f32.mrb[0].mxu0
      %v4549 = vadd.f32 0.0, %v4548
      %v4550 = vpop.f32.mrb[0].mxu0
      %v4551 = vadd.f32 0.0, %v4550
      %v4552 = vpop.f32.mrb[0].mxu0
      %v4553 = vadd.f32 0.0, %v4552
      %v4554 = vpop.f32.mrb[0].mxu0
      %v4555 = vadd.f32 0.0, %v4554
      %4556 = vmatprep.mubr.bf16.mxu0 %v4180
      %4557 = vmatmul.mubr.bf16.gmra.mrb[0].mxu0 %v4179
      %v4558 = vpop.f32.mrb[0].mxu0
      %v4559 = vadd.f32 0.0, %v4558
      %v4560 = vpop.f32.mrb[0].mxu0
      %v4561 = vadd.f32 0.0, %v4560
      %v4562 = vpop.f32.mrb[0].mxu0
      %v4563 = vadd.f32 0.0, %v4562
      %v4564 = vpop.f32.mrb[0].mxu0
      %v4565 = vadd.f32 0.0, %v4564
      %4566 = vmatprep.mubr.bf16.mxu0 %v4182
      %4567 = vmatmul.mubr.bf16.gmra.mrb[0].mxu0 %v4181
      %v4568 = vpop.f32.mrb[0].mxu0
      %v4569 = vadd.f32 0.0, %v4568
      %v4570 = vpop.f32.mrb[0].mxu0
      %v4571 = vadd.f32 0.0, %v4570
      %v4572 = vpop.f32.mrb[0].mxu0
      %v4573 = vadd.f32 0.0, %v4572
      %v4574 = vpop.f32.mrb[0].mxu0
      %v4575 = vadd.f32 0.0, %v4574
      %4576 = vmatprep.mubr.bf16.mxu0 %v4184
      %4577 = vmatmul.mubr.bf16.gmra.mrb[0].mxu0 %v4183
      %v4578 = vpop.f32.mrb[0].mxu0
      %v4579 = vadd.f32 0.0, %v4578
      %v4580 = vpop.f32.mrb[0].mxu0
      %v4581 = vadd.f32 0.0, %v4580
      %v4582 = vpop.f32.mrb[0].mxu0
      %v4583 = vadd.f32 0.0, %v4582
      %v4584 = vpop.f32.mrb[0].mxu0
      %v4585 = vadd.f32 0.0, %v4584
      %4586 = vmatprep.mubr.bf16.mxu0 %v4186
      %4587 = vmatmul.mubr.bf16.gmra.mrb[0].mxu0 %v4185
      %v4588 = vpop.f32.mrb[0].mxu0
      %v4589 = vadd.f32 0.0, %v4588
      %v4590 = vpop.f32.mrb[0].mxu0
      %v4591 = vadd.f32 0.0, %v4590
      %v4592 = vpop.f32.mrb[0].mxu0
      %v4593 = vadd.f32 0.0, %v4592
      %v4594 = vpop.f32.mrb[0].mxu0
      %v4595 = vadd.f32 0.0, %v4594
      %4596 = vmatprep.mubr.bf16.mxu0 %v4188
      %4597 = vmatmul.mubr.bf16.gmra.mrb[0].mxu0 %v4187
      %v4598 = vpop.f32.mrb[0].mxu0
      %v4599 = vadd.f32 0.0, %v4598
      %v4600 = vpop.f32.mrb[0].mxu0
      %v4601 = vadd.f32 0.0, %v4600
      %v4602 = vpop.f32.mrb[0].mxu0
      %v4603 = vadd.f32 0.0, %v4602
      %v4604 = vpop.f32.mrb[0].mxu0
      %v4605 = vadd.f32 0.0, %v4604
      %4606 = vmatprep.mubr.bf16.mxu0 %v4190
      %4607 = vmatmul.mubr.bf16.gmra.mrb[0].mxu0 %v4189
      %v4608 = vpop.f32.mrb[0].mxu0
      %v4609 = vadd.f32 0.0, %v4608
      %v4610 = vpop.f32.mrb[0].mxu0
      %v4611 = vadd.f32 0.0, %v4610
      %v4612 = vpop.f32.mrb[0].mxu0
      %v4613 = vadd.f32 0.0, %v4612
      %v4614 = vpop.f32.mrb[0].mxu0
      %v4615 = vadd.f32 0.0, %v4614
      %4616 = vmatprep.mubr.bf16.mxu0 %v4192
      %4617 = vmatmul.mubr.bf16.gmra.mrb[0].mxu0 %v4191
      %v4618 = vpop.f32.mrb[0].mxu0
      %v4619 = vadd.f32 0.0, %v4618
      %v4620 = vpop.f32.mrb[0].mxu0
      %v4621 = vadd.f32 0.0, %v4620
      %v4622 = vpop.f32.mrb[0].mxu0
      %v4623 = vadd.f32 0.0, %v4622
      %v4624 = vpop.f32.mrb[0].mxu0
      %v4625 = vadd.f32 0.0, %v4624
      %4626 = vmatprep.mubr.bf16.mxu0 %v4194
      %4627 = vmatmul.mubr.bf16.gmra.mrb[0].mxu0 %v4193
      %v4628 = vpop.f32.mrb[0].mxu0
      %v4629 = vadd.f32 0.0, %v4628
      %v4630 = vpop.f32.mrb[0].mxu0
      %v4631 = vadd.f32 0.0, %v4630
      %v4632 = vpop.f32.mrb[0].mxu0
      %v4633 = vadd.f32 0.0, %v4632
      %v4634 = vpop.f32.mrb[0].mxu0
      %v4635 = vadd.f32 0.0, %v4634
      %4636 = vmatprep.mubr.bf16.mxu0 %v4196
      %4637 = vmatmul.mubr.bf16.gmra.mrb[0].mxu0 %v4195
      %v4638 = vpop.f32.mrb[0].mxu0
      %v4639 = vadd.f32 0.0, %v4638
      %v4640 = vpop.f32.mrb[0].mxu0
      %v4641 = vadd.f32 0.0, %v4640
      %v4642 = vpop.f32.mrb[0].mxu0
      %v4643 = vadd.f32 0.0, %v4642
      %v4644 = vpop.f32.mrb[0].mxu0
      %v4645 = vadd.f32 0.0, %v4644
      %4646 = vmatprep.mubr.bf16.mxu0 %v4198
      %4647 = vmatmul.mubr.bf16.gmra.mrb[0].mxu0 %v4197
      %v4648 = vpop.f32.mrb[0].mxu0
      %v4649 = vadd.f32 0.0, %v4648
      %v4650 = vpop.f32.mrb[0].mxu0
      %v4651 = vadd.f32 0.0, %v4650
      %v4652 = vpop.f32.mrb[0].mxu0
      %v4653 = vadd.f32 0.0, %v4652
      %v4654 = vpop.f32.mrb[0].mxu0
      %v4655 = vadd.f32 0.0, %v4654
      %4656 = vmatprep.mubr.bf16.mxu0 %v4200
      %4657 = vmatmul.mubr.bf16.gmra.mrb[0].mxu0 %v4199
      %v4658 = vpop.f32.mrb[0].mxu0
      %v4659 = vadd.f32 0.0, %v4658
      %v4660 = vpop.f32.mrb[0].mxu0
      %v4661 = vadd.f32 0.0, %v4660
      %v4662 = vpop.f32.mrb[0].mxu0
      %v4663 = vadd.f32 0.0, %v4662
      %v4664 = vpop.f32.mrb[0].mxu0
      %v4665 = vadd.f32 0.0, %v4664
      %4666 = vmatprep.mubr.bf16.mxu0 %v4202
      %4667 = vmatmul.mubr.bf16.gmra.mrb[0].mxu0 %v4201
      %v4668 = vpop.f32.mrb[0].mxu0
      %v4669 = vadd.f32 0.0, %v4668
      %v4670 = vpop.f32.mrb[0].mxu0
      %v4671 = vadd.f32 0.0, %v4670
      %v4672 = vpop.f32.mrb[0].mxu0
      %v4673 = vadd.f32 0.0, %v4672
      %v4674 = vpop.f32.mrb[0].mxu0
      %v4675 = vadd.f32 0.0, %v4674
      %4676 = vmatprep.mubr.bf16.mxu0 %v4204
      %4677 = vmatmul.mubr.bf16.gmra.mrb[0].mxu0 %v4203
      %v4678 = vpop.f32.mrb[0].mxu0
      %v4679 = vadd.f32 0.0, %v4678
      %v4680 = vpop.f32.mrb[0].mxu0
      %v4681 = vadd.f32 0.0, %v4680
      %v4682 = vpop.f32.mrb[0].mxu0
      %v4683 = vadd.f32 0.0, %v4682
      %v4684 = vpop.f32.mrb[0].mxu0
      %v4685 = vadd.f32 0.0, %v4684
      %4686 = vmatprep.mubr.bf16.mxu0 %v4206
      %4687 = vmatmul.mubr.bf16.gmra.mrb[0].mxu0 %v4205
      %v4688 = vpop.f32.mrb[0].mxu0
      %v4689 = vadd.f32 0.0, %v4688
      %v4690 = vpop.f32.mrb[0].mxu0
      %v4691 = vadd.f32 0.0, %v4690
      %v4692 = vpop.f32.mrb[0].mxu0
      %v4693 = vadd.f32 0.0, %v4692
      %v4694 = vpop.f32.mrb[0].mxu0
      %v4695 = vadd.f32 0.0, %v4694
      %4696 = vmatprep.mubr.bf16.mxu0 %v4208
      %4697 = vmatmul.mubr.bf16.gmra.mrb[0].mxu0 %v4207
      %v4698 = vpop.f32.mrb[0].mxu0
      %v4699 = vadd.f32 0.0, %v4698
      %v4700 = vpop.f32.mrb[0].mxu0
      %v4701 = vadd.f32 0.0, %v4700
      %v4702 = vpop.f32.mrb[0].mxu0
      %v4703 = vadd.f32 0.0, %v4702
      %v4704 = vpop.f32.mrb[0].mxu0
      %v4705 = vadd.f32 0.0, %v4704
      %4706 = vmatprep.mubr.bf16.mxu0 %v4210
      %4707 = vmatmul.mubr.bf16.gmra.mrb[0].mxu0 %v4209
      %v4708 = vpop.f32.mrb[0].mxu0
      %v4709 = vadd.f32 0.0, %v4708
      %v4710 = vpop.f32.mrb[0].mxu0
      %v4711 = vadd.f32 0.0, %v4710
      %v4712 = vpop.f32.mrb[0].mxu0
      %v4713 = vadd.f32 0.0, %v4712
      %v4714 = vpop.f32.mrb[0].mxu0
      %v4715 = vadd.f32 0.0, %v4714
      %4716 = vmatprep.mubr.bf16.mxu0 %v4212
      %4717 = vmatmul.mubr.bf16.gmra.mrb[0].mxu0 %v4211
      %v4718 = vpop.f32.mrb[0].mxu0
      %v4719 = vadd.f32 0.0, %v4718
      %v4720 = vpop.f32.mrb[0].mxu0
      %v4721 = vadd.f32 0.0, %v4720
      %v4722 = vpop.f32.mrb[0].mxu0
      %v4723 = vadd.f32 0.0, %v4722
      %v4724 = vpop.f32.mrb[0].mxu0
      %v4725 = vadd.f32 0.0, %v4724
      %4726 = vmatprep.mubr.bf16.mxu0 %v4214
      %4727 = vmatmul.mubr.bf16.gmra.mrb[0].mxu0 %v4213
      %v4728 = vpop.f32.mrb[0].mxu0
      %v4729 = vadd.f32 0.0, %v4728
      %v4730 = vpop.f32.mrb[0].mxu0
      %v4731 = vadd.f32 0.0, %v4730
      %v4732 = vpop.f32.mrb[0].mxu0
      %v4733 = vadd.f32 0.0, %v4732
      %v4734 = vpop.f32.mrb[0].mxu0
      %v4735 = vadd.f32 0.0, %v4734
      %4736 = vmatprep.mubr.bf16.mxu0 %v4216
      %4737 = vmatmul.mubr.bf16.gmra.mrb[0].mxu0 %v4215
      %v4738 = vpop.f32.mrb[0].mxu0
      %v4739 = vadd.f32 0.0, %v4738
      %v4740 = vpop.f32.mrb[0].mxu0
      %v4741 = vadd.f32 0.0, %v4740
      %v4742 = vpop.f32.mrb[0].mxu0
      %v4743 = vadd.f32 0.0, %v4742
      %v4744 = vpop.f32.mrb[0].mxu0
      %v4745 = vadd.f32 0.0, %v4744
      %4746 = vmatprep.mubr.bf16.mxu0 %v4218
      %4747 = vmatmul.mubr.bf16.gmra.mrb[0].mxu0 %v4217
      %v4748 = vpop.f32.mrb[0].mxu0
      %v4749 = vadd.f32 0.0, %v4748
      %v4750 = vpop.f32.mrb[0].mxu0
      %v4751 = vadd.f32 0.0, %v4750
      %v4752 = vpop.f32.mrb[0].mxu0
      %v4753 = vadd.f32 0.0, %v4752
      %v4754 = vpop.f32.mrb[0].mxu0
      %v4755 = vadd.f32 0.0, %v4754
      %4756 = vmatprep.mubr.bf16.mxu0 %v4220
      %4757 = vmatmul.mubr.bf16.gmra.mrb[0].mxu0 %v4219
      %v4758 = vpop.f32.mrb[0].mxu0
      %v4759 = vadd.f32 0.0, %v4758
      %v4760 = vpop.f32.mrb[0].mxu0
      %v4761 = vadd.f32 0.0, %v4760
      %v4762 = vpop.f32.mrb[0].mxu0
      %v4763 = vadd.f32 0.0, %v4762
      %v4764 = vpop.f32.mrb[0].mxu0
      %v4765 = vadd.f32 0.0, %v4764
      %4766 = vdwg.mxu0
      %v4767 = vpack.c.bf16 %v4453, %v4449
      %v4768 = vpack.c.bf16 %v4455, %v4451
      %v4769 = vpack.c.bf16 %v4463, %v4459
      %v4770 = vpack.c.bf16 %v4465, %v4461
      %v4771 = vpack.c.bf16 %v4473, %v4469
      %v4772 = vpack.c.bf16 %v4475, %v4471
      %v4773 = vpack.c.bf16 %v4483, %v4479
      %v4774 = vpack.c.bf16 %v4485, %v4481
      %v4775 = vpack.c.bf16 %v4493, %v4489
      %v4776 = vpack.c.bf16 %v4495, %v4491
      %v4777 = vpack.c.bf16 %v4503, %v4499
      %v4778 = vpack.c.bf16 %v4505, %v4501
      %v4779 = vpack.c.bf16 %v4513, %v4509
      %v4780 = vpack.c.bf16 %v4515, %v4511
      %v4781 = vpack.c.bf16 %v4523, %v4519
      %v4782 = vpack.c.bf16 %v4525, %v4521
      %v4783 = vpack.c.bf16 %v4533, %v4529
      %v4784 = vpack.c.bf16 %v4535, %v4531
      %v4785 = vpack.c.bf16 %v4543, %v4539
      %v4786 = vpack.c.bf16 %v4545, %v4541
      %v4787 = vpack.c.bf16 %v4553, %v4549
      %v4788 = vpack.c.bf16 %v4555, %v4551
      %v4789 = vpack.c.bf16 %v4563, %v4559
      %v4790 = vpack.c.bf16 %v4565, %v4561
      %v4791 = vpack.c.bf16 %v4573, %v4569
      %v4792 = vpack.c.bf16 %v4575, %v4571
      %v4793 = vpack.c.bf16 %v4583, %v4579
      %v4794 = vpack.c.bf16 %v4585, %v4581
      %v4795 = vpack.c.bf16 %v4593, %v4589
      %v4796 = vpack.c.bf16 %v4595, %v4591
      %v4797 = vpack.c.bf16 %v4603, %v4599
      %v4798 = vpack.c.bf16 %v4605, %v4601
      %v4799 = vpack.c.bf16 %v4613, %v4609
      %v4800 = vpack.c.bf16 %v4615, %v4611
      %v4801 = vpack.c.bf16 %v4623, %v4619
      %v4802 = vpack.c.bf16 %v4625, %v4621
      %v4803 = vpack.c.bf16 %v4633, %v4629
      %v4804 = vpack.c.bf16 %v4635, %v4631
      %v4805 = vpack.c.bf16 %v4643, %v4639
      %v4806 = vpack.c.bf16 %v4645, %v4641
      %v4807 = vpack.c.bf16 %v4653, %v4649
      %v4808 = vpack.c.bf16 %v4655, %v4651
      %v4809 = vpack.c.bf16 %v4663, %v4659
      %v4810 = vpack.c.bf16 %v4665, %v4661
      %v4811 = vpack.c.bf16 %v4673, %v4669
      %v4812 = vpack.c.bf16 %v4675, %v4671
      %v4813 = vpack.c.bf16 %v4683, %v4679
      %v4814 = vpack.c.bf16 %v4685, %v4681
      %v4815 = vpack.c.bf16 %v4693, %v4689
      %v4816 = vpack.c.bf16 %v4695, %v4691
      %v4817 = vpack.c.bf16 %v4703, %v4699
      %v4818 = vpack.c.bf16 %v4705, %v4701
      %v4819 = vpack.c.bf16 %v4713, %v4709
      %v4820 = vpack.c.bf16 %v4715, %v4711
      %v4821 = vpack.c.bf16 %v4723, %v4719
      %v4822 = vpack.c.bf16 %v4725, %v4721
      %v4823 = vpack.c.bf16 %v4733, %v4729
      %v4824 = vpack.c.bf16 %v4735, %v4731
      %v4825 = vpack.c.bf16 %v4743, %v4739
      %v4826 = vpack.c.bf16 %v4745, %v4741
      %v4827 = vpack.c.bf16 %v4753, %v4749
      %v4828 = vpack.c.bf16 %v4755, %v4751
      %v4829 = vpack.c.bf16 %v4763, %v4759
      %v4830 = vpack.c.bf16 %v4765, %v4761
      %v4831 = vshrl.u32 %v4077, 16
      %v4832 = vpack.i.b16 %v4831, %v4831
      %v4834 = vlaneseq
      %v4835 = vshrl.u32 %v4834, 7
      %v4836 = vsub.s32 1, %v4835
      %v4837 = vrot.slane %v4832, %v4836
      %v4838 = vshrl.u32 %v4078, 16
      %v4839 = vpack.i.b16 %v4838, %v4838
      %v4841 = vlaneseq
      %v4842 = vshrl.u32 %v4841, 7
      %v4843 = vsub.s32 1, %v4842
      %v4844 = vrot.slane %v4839, %v4843
      %v4845 = vadd.bf16 %v4767, %v4837
      %v4846 = vadd.bf16 %v4768, %v4844
      %v4847 = vadd.bf16 %v4769, %v4837
      %v4848 = vadd.bf16 %v4770, %v4844
      %v4849 = vadd.bf16 %v4771, %v4837
      %v4850 = vadd.bf16 %v4772, %v4844
      %v4851 = vadd.bf16 %v4773, %v4837
      %v4852 = vadd.bf16 %v4774, %v4844
      %v4853 = vadd.bf16 %v4775, %v4837
      %v4854 = vadd.bf16 %v4776, %v4844
      %v4855 = vadd.bf16 %v4777, %v4837
      %v4856 = vadd.bf16 %v4778, %v4844
      %v4857 = vadd.bf16 %v4779, %v4837
      %v4858 = vadd.bf16 %v4780, %v4844
      %v4859 = vadd.bf16 %v4781, %v4837
      %v4860 = vadd.bf16 %v4782, %v4844
      %v4861 = vadd.bf16 %v4783, %v4837
      %v4862 = vadd.bf16 %v4784, %v4844
      %v4863 = vadd.bf16 %v4785, %v4837
      %v4864 = vadd.bf16 %v4786, %v4844
      %v4865 = vadd.bf16 %v4787, %v4837
      %v4866 = vadd.bf16 %v4788, %v4844
      %v4867 = vadd.bf16 %v4789, %v4837
      %v4868 = vadd.bf16 %v4790, %v4844
      %v4869 = vadd.bf16 %v4791, %v4837
      %v4870 = vadd.bf16 %v4792, %v4844
      %v4871 = vadd.bf16 %v4793, %v4837
      %v4872 = vadd.bf16 %v4794, %v4844
      %v4873 = vadd.bf16 %v4795, %v4837
      %v4874 = vadd.bf16 %v4796, %v4844
      %v4875 = vadd.bf16 %v4797, %v4837
      %v4876 = vadd.bf16 %v4798, %v4844
      %v4877 = vadd.bf16 %v4799, %v4837
      %v4878 = vadd.bf16 %v4800, %v4844
      %v4879 = vadd.bf16 %v4801, %v4837
      %v4880 = vadd.bf16 %v4802, %v4844
      %v4881 = vadd.bf16 %v4803, %v4837
      %v4882 = vadd.bf16 %v4804, %v4844
      %v4883 = vadd.bf16 %v4805, %v4837
      %v4884 = vadd.bf16 %v4806, %v4844
      %v4885 = vadd.bf16 %v4807, %v4837
      %v4886 = vadd.bf16 %v4808, %v4844
      %v4887 = vadd.bf16 %v4809, %v4837
      %v4888 = vadd.bf16 %v4810, %v4844
      %v4889 = vadd.bf16 %v4811, %v4837
      %v4890 = vadd.bf16 %v4812, %v4844
      %v4891 = vadd.bf16 %v4813, %v4837
      %v4892 = vadd.bf16 %v4814, %v4844
      %v4893 = vadd.bf16 %v4815, %v4837
      %v4894 = vadd.bf16 %v4816, %v4844
      %v4895 = vadd.bf16 %v4817, %v4837
      %v4896 = vadd.bf16 %v4818, %v4844
      %v4897 = vadd.bf16 %v4819, %v4837
      %v4898 = vadd.bf16 %v4820, %v4844
      %v4899 = vadd.bf16 %v4821, %v4837
      %v4900 = vadd.bf16 %v4822, %v4844
      %v4901 = vadd.bf16 %v4823, %v4837
      %v4902 = vadd.bf16 %v4824, %v4844
      %v4903 = vadd.bf16 %v4825, %v4837
      %v4904 = vadd.bf16 %v4826, %v4844
      %v4905 = vadd.bf16 %v4827, %v4837
      %v4906 = vadd.bf16 %v4828, %v4844
      %v4907 = vadd.bf16 %v4829, %v4837
      %v4908 = vadd.bf16 %v4830, %v4844
      %v4909 = vmax.bf16 %v4845, 0
      %v4910 = vmax.bf16 %v4846, 0
      %v4911 = vmax.bf16 %v4847, 0
      %v4912 = vmax.bf16 %v4848, 0
      %v4913 = vmax.bf16 %v4849, 0
      %v4914 = vmax.bf16 %v4850, 0
      %v4915 = vmax.bf16 %v4851, 0
      %v4916 = vmax.bf16 %v4852, 0
      %v4917 = vmax.bf16 %v4853, 0
      %v4918 = vmax.bf16 %v4854, 0
      %v4919 = vmax.bf16 %v4855, 0
      %v4920 = vmax.bf16 %v4856, 0
      %v4921 = vmax.bf16 %v4857, 0
      %v4922 = vmax.bf16 %v4858, 0
      %v4923 = vmax.bf16 %v4859, 0
      %v4924 = vmax.bf16 %v4860, 0
      %v4925 = vmax.bf16 %v4861, 0
      %v4926 = vmax.bf16 %v4862, 0
      %v4927 = vmax.bf16 %v4863, 0
      %v4928 = vmax.bf16 %v4864, 0
      %v4929 = vmax.bf16 %v4865, 0
      %v4930 = vmax.bf16 %v4866, 0
      %v4931 = vmax.bf16 %v4867, 0
      %v4932 = vmax.bf16 %v4868, 0
      %v4933 = vmax.bf16 %v4869, 0
      %v4934 = vmax.bf16 %v4870, 0
      %v4935 = vmax.bf16 %v4871, 0
      %v4936 = vmax.bf16 %v4872, 0
      %v4937 = vmax.bf16 %v4873, 0
      %v4938 = vmax.bf16 %v4874, 0
      %v4939 = vmax.bf16 %v4875, 0
      %v4940 = vmax.bf16 %v4876, 0
      %v4941 = vmax.bf16 %v4877, 0
      %v4942 = vmax.bf16 %v4878, 0
      %v4943 = vmax.bf16 %v4879, 0
      %v4944 = vmax.bf16 %v4880, 0
      %v4945 = vmax.bf16 %v4881, 0
      %v4946 = vmax.bf16 %v4882, 0
      %v4947 = vmax.bf16 %v4883, 0
      %v4948 = vmax.bf16 %v4884, 0
      %v4949 = vmax.bf16 %v4885, 0
      %v4950 = vmax.bf16 %v4886, 0
      %v4951 = vmax.bf16 %v4887, 0
      %v4952 = vmax.bf16 %v4888, 0
      %v4953 = vmax.bf16 %v4889, 0
      %v4954 = vmax.bf16 %v4890, 0
      %v4955 = vmax.bf16 %v4891, 0
      %v4956 = vmax.bf16 %v4892, 0
      %v4957 = vmax.bf16 %v4893, 0
      %v4958 = vmax.bf16 %v4894, 0
      %v4959 = vmax.bf16 %v4895, 0
      %v4960 = vmax.bf16 %v4896, 0
      %v4961 = vmax.bf16 %v4897, 0
      %v4962 = vmax.bf16 %v4898, 0
      %v4963 = vmax.bf16 %v4899, 0
      %v4964 = vmax.bf16 %v4900, 0
      %v4965 = vmax.bf16 %v4901, 0
      %v4966 = vmax.bf16 %v4902, 0
      %v4967 = vmax.bf16 %v4903, 0
      %v4968 = vmax.bf16 %v4904, 0
      %v4969 = vmax.bf16 %v4905, 0
      %v4970 = vmax.bf16 %v4906, 0
      %v4971 = vmax.bf16 %v4907, 0
      %v4972 = vmax.bf16 %v4908, 0
      %s4973 = scalar_lea.vmem %s2, 768
      %v4974 = vld [vmem:[%s4973] sm:$0xff]
      %v4975 = vld [vmem:[%s4973 + $0x8] sm:$0xff]
      %v4976 = vld [vmem:[%s4973 + $0x10] sm:$0xff]
      %v4977 = vld [vmem:[%s4973 + $0x18] sm:$0xff]
      %v4978 = vld [vmem:[%s4973 + $0x20] sm:$0xff]
      %v4979 = vld [vmem:[%s4973 + $0x28] sm:$0xff]
      %v4980 = vld [vmem:[%s4973 + $0x30] sm:$0xff]
      %v4981 = vld [vmem:[%s4973 + $0x38] sm:$0xff]
      %v4982 = vld [vmem:[%s4973 + $0x40] sm:$0xff]
      %v4983 = vld [vmem:[%s4973 + $0x48] sm:$0xff]
      %v4984 = vld [vmem:[%s4973 + $0x50] sm:$0xff]
      %v4985 = vld [vmem:[%s4973 + $0x58] sm:$0xff]
      %v4986 = vld [vmem:[%s4973 + $0x60] sm:$0xff]
      %v4987 = vld [vmem:[%s4973 + $0x68] sm:$0xff]
      %v4988 = vld [vmem:[%s4973 + $0x70] sm:$0xff]
      %v4989 = vld [vmem:[%s4973 + $0x78] sm:$0xff]
      %v4990 = vld [vmem:[%s4973 + $0x80] sm:$0xff]
      %v4991 = vld [vmem:[%s4973 + $0x88] sm:$0xff]
      %v4992 = vld [vmem:[%s4973 + $0x90] sm:$0xff]
      %v4993 = vld [vmem:[%s4973 + $0x98] sm:$0xff]
      %v4994 = vld [vmem:[%s4973 + $0xa0] sm:$0xff]
      %v4995 = vld [vmem:[%s4973 + $0xa8] sm:$0xff]
      %v4996 = vld [vmem:[%s4973 + $0xb0] sm:$0xff]
      %v4997 = vld [vmem:[%s4973 + $0xb8] sm:$0xff]
      %v4998 = vld [vmem:[%s4973 + $0xc0] sm:$0xff]
      %v4999 = vld [vmem:[%s4973 + $0xc8] sm:$0xff]
      %v5000 = vld [vmem:[%s4973 + $0xd0] sm:$0xff]
      %v5001 = vld [vmem:[%s4973 + $0xd8] sm:$0xff]
      %v5002 = vld [vmem:[%s4973 + $0xe0] sm:$0xff]
      %v5003 = vld [vmem:[%s4973 + $0xe8] sm:$0xff]
      %v5004 = vld [vmem:[%s4973 + $0xf0] sm:$0xff]
      %v5005 = vld [vmem:[%s4973 + $0xf8] sm:$0xff]
      %v5038 = vunpack.c.l.b16 %v4974
      %v5039 = vunpack.c.h.b16 %v4974
      %v5040 = vunpack.c.l.b16 %v4975
      %v5041 = vunpack.c.h.b16 %v4975
      %v5042 = vunpack.c.l.b16 %v4976
      %v5043 = vunpack.c.h.b16 %v4976
      %v5044 = vunpack.c.l.b16 %v4977
      %v5045 = vunpack.c.h.b16 %v4977
      %v5046 = vunpack.c.l.b16 %v4978
      %v5047 = vunpack.c.h.b16 %v4978
      %v5048 = vunpack.c.l.b16 %v4979
      %v5049 = vunpack.c.h.b16 %v4979
      %v5050 = vunpack.c.l.b16 %v4980
      %v5051 = vunpack.c.h.b16 %v4980
      %v5052 = vunpack.c.l.b16 %v4981
      %v5053 = vunpack.c.h.b16 %v4981
      %v5054 = vunpack.c.l.b16 %v4982
      %v5055 = vunpack.c.h.b16 %v4982
      %v5056 = vunpack.c.l.b16 %v4983
      %v5057 = vunpack.c.h.b16 %v4983
      %v5058 = vunpack.c.l.b16 %v4984
      %v5059 = vunpack.c.h.b16 %v4984
      %v5060 = vunpack.c.l.b16 %v4985
      %v5061 = vunpack.c.h.b16 %v4985
      %v5062 = vunpack.c.l.b16 %v4986
      %v5063 = vunpack.c.h.b16 %v4986
      %v5064 = vunpack.c.l.b16 %v4987
      %v5065 = vunpack.c.h.b16 %v4987
      %v5066 = vunpack.c.l.b16 %v4988
      %v5067 = vunpack.c.h.b16 %v4988
      %v5068 = vunpack.c.l.b16 %v4989
      %v5069 = vunpack.c.h.b16 %v4989
      %v5070 = vunpack.c.l.b16 %v4990
      %v5071 = vunpack.c.h.b16 %v4990
      %v5072 = vunpack.c.l.b16 %v4991
      %v5073 = vunpack.c.h.b16 %v4991
      %v5074 = vunpack.c.l.b16 %v4992
      %v5075 = vunpack.c.h.b16 %v4992
      %v5076 = vunpack.c.l.b16 %v4993
      %v5077 = vunpack.c.h.b16 %v4993
      %v5078 = vunpack.c.l.b16 %v4994
      %v5079 = vunpack.c.h.b16 %v4994
      %v5080 = vunpack.c.l.b16 %v4995
      %v5081 = vunpack.c.h.b16 %v4995
      %v5082 = vunpack.c.l.b16 %v4996
      %v5083 = vunpack.c.h.b16 %v4996
      %v5084 = vunpack.c.l.b16 %v4997
      %v5085 = vunpack.c.h.b16 %v4997
      %v5086 = vunpack.c.l.b16 %v4998
      %v5087 = vunpack.c.h.b16 %v4998
      %v5088 = vunpack.c.l.b16 %v4999
      %v5089 = vunpack.c.h.b16 %v4999
      %v5090 = vunpack.c.l.b16 %v5000
      %v5091 = vunpack.c.h.b16 %v5000
      %v5092 = vunpack.c.l.b16 %v5001
      %v5093 = vunpack.c.h.b16 %v5001
      %v5094 = vunpack.c.l.b16 %v5002
      %v5095 = vunpack.c.h.b16 %v5002
      %v5096 = vunpack.c.l.b16 %v5003
      %v5097 = vunpack.c.h.b16 %v5003
      %v5098 = vunpack.c.l.b16 %v5004
      %v5099 = vunpack.c.h.b16 %v5004
      %v5100 = vunpack.c.l.b16 %v5005
      %v5101 = vunpack.c.h.b16 %v5005
      %v5102 = vpack.c.b16 %v5040, %v5038
      %v5103 = vpack.c.b16 %v5041, %v5039
      %v5104 = vpack.c.b16 %v5044, %v5042
      %v5105 = vpack.c.b16 %v5045, %v5043
      %v5106 = vpack.c.b16 %v5048, %v5046
      %v5107 = vpack.c.b16 %v5049, %v5047
      %v5108 = vpack.c.b16 %v5052, %v5050
      %v5109 = vpack.c.b16 %v5053, %v5051
      %v5110 = vpack.c.b16 %v5056, %v5054
      %v5111 = vpack.c.b16 %v5057, %v5055
      %v5112 = vpack.c.b16 %v5060, %v5058
      %v5113 = vpack.c.b16 %v5061, %v5059
      %v5114 = vpack.c.b16 %v5064, %v5062
      %v5115 = vpack.c.b16 %v5065, %v5063
      %v5116 = vpack.c.b16 %v5068, %v5066
      %v5117 = vpack.c.b16 %v5069, %v5067
      %v5118 = vpack.c.b16 %v5072, %v5070
      %v5119 = vpack.c.b16 %v5073, %v5071
      %v5120 = vpack.c.b16 %v5076, %v5074
      %v5121 = vpack.c.b16 %v5077, %v5075
      %v5122 = vpack.c.b16 %v5080, %v5078
      %v5123 = vpack.c.b16 %v5081, %v5079
      %v5124 = vpack.c.b16 %v5084, %v5082
      %v5125 = vpack.c.b16 %v5085, %v5083
      %v5126 = vpack.c.b16 %v5088, %v5086
      %v5127 = vpack.c.b16 %v5089, %v5087
      %v5128 = vpack.c.b16 %v5092, %v5090
      %v5129 = vpack.c.b16 %v5093, %v5091
      %v5130 = vpack.c.b16 %v5096, %v5094
      %v5131 = vpack.c.b16 %v5097, %v5095
      %v5132 = vpack.c.b16 %v5100, %v5098
      %v5133 = vpack.c.b16 %v5101, %v5099
      %5166 = vmatprep.subr.bf16.mxu0 %v5103
      %5167 = vmatpush1.bf16.msra.mxu0 %v5102
      %5168 = vmatprep.subr.bf16.mxu0 %v5105
      %5169 = vmatpush1.bf16.msra.mxu0 %v5104
      %5170 = vmatprep.subr.bf16.mxu0 %v5107
      %5171 = vmatpush1.bf16.msra.mxu0 %v5106
      %5172 = vmatprep.subr.bf16.mxu0 %v5109
      %5173 = vmatpush1.bf16.msra.mxu0 %v5108
      %5174 = vmatprep.subr.bf16.mxu0 %v5111
      %5175 = vmatpush1.bf16.msra.mxu0 %v5110
      %5176 = vmatprep.subr.bf16.mxu0 %v5113
      %5177 = vmatpush1.bf16.msra.mxu0 %v5112
      %5178 = vmatprep.subr.bf16.mxu0 %v5115
      %5179 = vmatpush1.bf16.msra.mxu0 %v5114
      %5180 = vmatprep.subr.bf16.mxu0 %v5117
      %5181 = vmatpush1.bf16.msra.mxu0 %v5116
      %5182 = vmatprep.subr.bf16.mxu0 %v5119
      %5183 = vmatpush1.bf16.msra.mxu0 %v5118
      %5184 = vmatprep.subr.bf16.mxu0 %v5121
      %5185 = vmatpush1.bf16.msra.mxu0 %v5120
      %5186 = vmatprep.subr.bf16.mxu0 %v5123
      %5187 = vmatpush1.bf16.msra.mxu0 %v5122
      %5188 = vmatprep.subr.bf16.mxu0 %v5125
      %5189 = vmatpush1.bf16.msra.mxu0 %v5124
      %5190 = vmatprep.subr.bf16.mxu0 %v5127
      %5191 = vmatpush1.bf16.msra.mxu0 %v5126
      %5192 = vmatprep.subr.bf16.mxu0 %v5129
      %5193 = vmatpush1.bf16.msra.mxu0 %v5128
      %5194 = vmatprep.subr.bf16.mxu0 %v5131
      %5195 = vmatpush1.bf16.msra.mxu0 %v5130
      %5196 = vmatprep.subr.bf16.mxu0 %v5133
      %5197 = vmatpush1.bf16.msra.mxu0 %v5132
      %5198 = vmatprep.mubr.bf16.mxu0 %v4910
      %5199 = vmatmul.mubr.bf16.gmra.mrb[0].mxu0 %v4909
      %v5200 = vpop.f32.mrb[0].mxu0
      %v5201 = vadd.f32 0.0, %v5200
      %v5202 = vpop.f32.mrb[0].mxu0
      %v5203 = vadd.f32 0.0, %v5202
      %v5204 = vpop.f32.mrb[0].mxu0
      %v5205 = vadd.f32 0.0, %v5204
      %v5206 = vpop.f32.mrb[0].mxu0
      %v5207 = vadd.f32 0.0, %v5206
      %5208 = vmatprep.mubr.bf16.mxu0 %v4912
      %5209 = vmatmul.mubr.bf16.gmra.mrb[0].mxu0 %v4911
      %v5210 = vpop.f32.mrb[0].mxu0
      %v5211 = vadd.f32 0.0, %v5210
      %v5212 = vpop.f32.mrb[0].mxu0
      %v5213 = vadd.f32 0.0, %v5212
      %v5214 = vpop.f32.mrb[0].mxu0
      %v5215 = vadd.f32 0.0, %v5214
      %v5216 = vpop.f32.mrb[0].mxu0
      %v5217 = vadd.f32 0.0, %v5216
      %5218 = vmatprep.mubr.bf16.mxu0 %v4914
      %5219 = vmatmul.mubr.bf16.gmra.mrb[0].mxu0 %v4913
      %v5220 = vpop.f32.mrb[0].mxu0
      %v5221 = vadd.f32 0.0, %v5220
      %v5222 = vpop.f32.mrb[0].mxu0
      %v5223 = vadd.f32 0.0, %v5222
      %v5224 = vpop.f32.mrb[0].mxu0
      %v5225 = vadd.f32 0.0, %v5224
      %v5226 = vpop.f32.mrb[0].mxu0
      %v5227 = vadd.f32 0.0, %v5226
      %5228 = vmatprep.mubr.bf16.mxu0 %v4916
      %5229 = vmatmul.mubr.bf16.gmra.mrb[0].mxu0 %v4915
      %v5230 = vpop.f32.mrb[0].mxu0
      %v5231 = vadd.f32 0.0, %v5230
      %v5232 = vpop.f32.mrb[0].mxu0
      %v5233 = vadd.f32 0.0, %v5232
      %v5234 = vpop.f32.mrb[0].mxu0
      %v5235 = vadd.f32 0.0, %v5234
      %v5236 = vpop.f32.mrb[0].mxu0
      %v5237 = vadd.f32 0.0, %v5236
      %5238 = vmatprep.mubr.bf16.mxu0 %v4918
      %5239 = vmatmul.mubr.bf16.gmra.mrb[0].mxu0 %v4917
      %v5240 = vpop.f32.mrb[0].mxu0
      %v5241 = vadd.f32 0.0, %v5240
      %v5242 = vpop.f32.mrb[0].mxu0
      %v5243 = vadd.f32 0.0, %v5242
      %v5244 = vpop.f32.mrb[0].mxu0
      %v5245 = vadd.f32 0.0, %v5244
      %v5246 = vpop.f32.mrb[0].mxu0
      %v5247 = vadd.f32 0.0, %v5246
      %5248 = vmatprep.mubr.bf16.mxu0 %v4920
      %5249 = vmatmul.mubr.bf16.gmra.mrb[0].mxu0 %v4919
      %v5250 = vpop.f32.mrb[0].mxu0
      %v5251 = vadd.f32 0.0, %v5250
      %v5252 = vpop.f32.mrb[0].mxu0
      %v5253 = vadd.f32 0.0, %v5252
      %v5254 = vpop.f32.mrb[0].mxu0
      %v5255 = vadd.f32 0.0, %v5254
      %v5256 = vpop.f32.mrb[0].mxu0
      %v5257 = vadd.f32 0.0, %v5256
      %5258 = vmatprep.mubr.bf16.mxu0 %v4922
      %5259 = vmatmul.mubr.bf16.gmra.mrb[0].mxu0 %v4921
      %v5260 = vpop.f32.mrb[0].mxu0
      %v5261 = vadd.f32 0.0, %v5260
      %v5262 = vpop.f32.mrb[0].mxu0
      %v5263 = vadd.f32 0.0, %v5262
      %v5264 = vpop.f32.mrb[0].mxu0
      %v5265 = vadd.f32 0.0, %v5264
      %v5266 = vpop.f32.mrb[0].mxu0
      %v5267 = vadd.f32 0.0, %v5266
      %5268 = vmatprep.mubr.bf16.mxu0 %v4924
      %5269 = vmatmul.mubr.bf16.gmra.mrb[0].mxu0 %v4923
      %v5270 = vpop.f32.mrb[0].mxu0
      %v5271 = vadd.f32 0.0, %v5270
      %v5272 = vpop.f32.mrb[0].mxu0
      %v5273 = vadd.f32 0.0, %v5272
      %v5274 = vpop.f32.mrb[0].mxu0
      %v5275 = vadd.f32 0.0, %v5274
      %v5276 = vpop.f32.mrb[0].mxu0
      %v5277 = vadd.f32 0.0, %v5276
      %5278 = vmatprep.mubr.bf16.mxu0 %v4926
      %5279 = vmatmul.mubr.bf16.gmra.mrb[0].mxu0 %v4925
      %v5280 = vpop.f32.mrb[0].mxu0
      %v5281 = vadd.f32 0.0, %v5280
      %v5282 = vpop.f32.mrb[0].mxu0
      %v5283 = vadd.f32 0.0, %v5282
      %v5284 = vpop.f32.mrb[0].mxu0
      %v5285 = vadd.f32 0.0, %v5284
      %v5286 = vpop.f32.mrb[0].mxu0
      %v5287 = vadd.f32 0.0, %v5286
      %5288 = vmatprep.mubr.bf16.mxu0 %v4928
      %5289 = vmatmul.mubr.bf16.gmra.mrb[0].mxu0 %v4927
      %v5290 = vpop.f32.mrb[0].mxu0
      %v5291 = vadd.f32 0.0, %v5290
      %v5292 = vpop.f32.mrb[0].mxu0
      %v5293 = vadd.f32 0.0, %v5292
      %v5294 = vpop.f32.mrb[0].mxu0
      %v5295 = vadd.f32 0.0, %v5294
      %v5296 = vpop.f32.mrb[0].mxu0
      %v5297 = vadd.f32 0.0, %v5296
      %5298 = vmatprep.mubr.bf16.mxu0 %v4930
      %5299 = vmatmul.mubr.bf16.gmra.mrb[0].mxu0 %v4929
      %v5300 = vpop.f32.mrb[0].mxu0
      %v5301 = vadd.f32 0.0, %v5300
      %v5302 = vpop.f32.mrb[0].mxu0
      %v5303 = vadd.f32 0.0, %v5302
      %v5304 = vpop.f32.mrb[0].mxu0
      %v5305 = vadd.f32 0.0, %v5304
      %v5306 = vpop.f32.mrb[0].mxu0
      %v5307 = vadd.f32 0.0, %v5306
      %5308 = vmatprep.mubr.bf16.mxu0 %v4932
      %5309 = vmatmul.mubr.bf16.gmra.mrb[0].mxu0 %v4931
      %v5310 = vpop.f32.mrb[0].mxu0
      %v5311 = vadd.f32 0.0, %v5310
      %v5312 = vpop.f32.mrb[0].mxu0
      %v5313 = vadd.f32 0.0, %v5312
      %v5314 = vpop.f32.mrb[0].mxu0
      %v5315 = vadd.f32 0.0, %v5314
      %v5316 = vpop.f32.mrb[0].mxu0
      %v5317 = vadd.f32 0.0, %v5316
      %5318 = vmatprep.mubr.bf16.mxu0 %v4934
      %5319 = vmatmul.mubr.bf16.gmra.mrb[0].mxu0 %v4933
      %v5320 = vpop.f32.mrb[0].mxu0
      %v5321 = vadd.f32 0.0, %v5320
      %v5322 = vpop.f32.mrb[0].mxu0
      %v5323 = vadd.f32 0.0, %v5322
      %v5324 = vpop.f32.mrb[0].mxu0
      %v5325 = vadd.f32 0.0, %v5324
      %v5326 = vpop.f32.mrb[0].mxu0
      %v5327 = vadd.f32 0.0, %v5326
      %5328 = vmatprep.mubr.bf16.mxu0 %v4936
      %5329 = vmatmul.mubr.bf16.gmra.mrb[0].mxu0 %v4935
      %v5330 = vpop.f32.mrb[0].mxu0
      %v5331 = vadd.f32 0.0, %v5330
      %v5332 = vpop.f32.mrb[0].mxu0
      %v5333 = vadd.f32 0.0, %v5332
      %v5334 = vpop.f32.mrb[0].mxu0
      %v5335 = vadd.f32 0.0, %v5334
      %v5336 = vpop.f32.mrb[0].mxu0
      %v5337 = vadd.f32 0.0, %v5336
      %5338 = vmatprep.mubr.bf16.mxu0 %v4938
      %5339 = vmatmul.mubr.bf16.gmra.mrb[0].mxu0 %v4937
      %v5340 = vpop.f32.mrb[0].mxu0
      %v5341 = vadd.f32 0.0, %v5340
      %v5342 = vpop.f32.mrb[0].mxu0
      %v5343 = vadd.f32 0.0, %v5342
      %v5344 = vpop.f32.mrb[0].mxu0
      %v5345 = vadd.f32 0.0, %v5344
      %v5346 = vpop.f32.mrb[0].mxu0
      %v5347 = vadd.f32 0.0, %v5346
      %5348 = vmatprep.mubr.bf16.mxu0 %v4940
      %5349 = vmatmul.mubr.bf16.gmra.mrb[0].mxu0 %v4939
      %v5350 = vpop.f32.mrb[0].mxu0
      %v5351 = vadd.f32 0.0, %v5350
      %v5352 = vpop.f32.mrb[0].mxu0
      %v5353 = vadd.f32 0.0, %v5352
      %v5354 = vpop.f32.mrb[0].mxu0
      %v5355 = vadd.f32 0.0, %v5354
      %v5356 = vpop.f32.mrb[0].mxu0
      %v5357 = vadd.f32 0.0, %v5356
      %5358 = vmatprep.mubr.bf16.mxu0 %v4942
      %5359 = vmatmul.mubr.bf16.gmra.mrb[0].mxu0 %v4941
      %v5360 = vpop.f32.mrb[0].mxu0
      %v5361 = vadd.f32 0.0, %v5360
      %v5362 = vpop.f32.mrb[0].mxu0
      %v5363 = vadd.f32 0.0, %v5362
      %v5364 = vpop.f32.mrb[0].mxu0
      %v5365 = vadd.f32 0.0, %v5364
      %v5366 = vpop.f32.mrb[0].mxu0
      %v5367 = vadd.f32 0.0, %v5366
      %5368 = vmatprep.mubr.bf16.mxu0 %v4944
      %5369 = vmatmul.mubr.bf16.gmra.mrb[0].mxu0 %v4943
      %v5370 = vpop.f32.mrb[0].mxu0
      %v5371 = vadd.f32 0.0, %v5370
      %v5372 = vpop.f32.mrb[0].mxu0
      %v5373 = vadd.f32 0.0, %v5372
      %v5374 = vpop.f32.mrb[0].mxu0
      %v5375 = vadd.f32 0.0, %v5374
      %v5376 = vpop.f32.mrb[0].mxu0
      %v5377 = vadd.f32 0.0, %v5376
      %5378 = vmatprep.mubr.bf16.mxu0 %v4946
      %5379 = vmatmul.mubr.bf16.gmra.mrb[0].mxu0 %v4945
      %v5380 = vpop.f32.mrb[0].mxu0
      %v5381 = vadd.f32 0.0, %v5380
      %v5382 = vpop.f32.mrb[0].mxu0
      %v5383 = vadd.f32 0.0, %v5382
      %v5384 = vpop.f32.mrb[0].mxu0
      %v5385 = vadd.f32 0.0, %v5384
      %v5386 = vpop.f32.mrb[0].mxu0
      %v5387 = vadd.f32 0.0, %v5386
      %5388 = vmatprep.mubr.bf16.mxu0 %v4948
      %5389 = vmatmul.mubr.bf16.gmra.mrb[0].mxu0 %v4947
      %v5390 = vpop.f32.mrb[0].mxu0
      %v5391 = vadd.f32 0.0, %v5390
      %v5392 = vpop.f32.mrb[0].mxu0
      %v5393 = vadd.f32 0.0, %v5392
      %v5394 = vpop.f32.mrb[0].mxu0
      %v5395 = vadd.f32 0.0, %v5394
      %v5396 = vpop.f32.mrb[0].mxu0
      %v5397 = vadd.f32 0.0, %v5396
      %5398 = vmatprep.mubr.bf16.mxu0 %v4950
      %5399 = vmatmul.mubr.bf16.gmra.mrb[0].mxu0 %v4949
      %v5400 = vpop.f32.mrb[0].mxu0
      %v5401 = vadd.f32 0.0, %v5400
      %v5402 = vpop.f32.mrb[0].mxu0
      %v5403 = vadd.f32 0.0, %v5402
      %v5404 = vpop.f32.mrb[0].mxu0
      %v5405 = vadd.f32 0.0, %v5404
      %v5406 = vpop.f32.mrb[0].mxu0
      %v5407 = vadd.f32 0.0, %v5406
      %5408 = vmatprep.mubr.bf16.mxu0 %v4952
      %5409 = vmatmul.mubr.bf16.gmra.mrb[0].mxu0 %v4951
      %v5410 = vpop.f32.mrb[0].mxu0
      %v5411 = vadd.f32 0.0, %v5410
      %v5412 = vpop.f32.mrb[0].mxu0
      %v5413 = vadd.f32 0.0, %v5412
      %v5414 = vpop.f32.mrb[0].mxu0
      %v5415 = vadd.f32 0.0, %v5414
      %v5416 = vpop.f32.mrb[0].mxu0
      %v5417 = vadd.f32 0.0, %v5416
      %5418 = vmatprep.mubr.bf16.mxu0 %v4954
      %5419 = vmatmul.mubr.bf16.gmra.mrb[0].mxu0 %v4953
      %v5420 = vpop.f32.mrb[0].mxu0
      %v5421 = vadd.f32 0.0, %v5420
      %v5422 = vpop.f32.mrb[0].mxu0
      %v5423 = vadd.f32 0.0, %v5422
      %v5424 = vpop.f32.mrb[0].mxu0
      %v5425 = vadd.f32 0.0, %v5424
      %v5426 = vpop.f32.mrb[0].mxu0
      %v5427 = vadd.f32 0.0, %v5426
      %5428 = vmatprep.mubr.bf16.mxu0 %v4956
      %5429 = vmatmul.mubr.bf16.gmra.mrb[0].mxu0 %v4955
      %v5430 = vpop.f32.mrb[0].mxu0
      %v5431 = vadd.f32 0.0, %v5430
      %v5432 = vpop.f32.mrb[0].mxu0
      %v5433 = vadd.f32 0.0, %v5432
      %v5434 = vpop.f32.mrb[0].mxu0
      %v5435 = vadd.f32 0.0, %v5434
      %v5436 = vpop.f32.mrb[0].mxu0
      %v5437 = vadd.f32 0.0, %v5436
      %5438 = vmatprep.mubr.bf16.mxu0 %v4958
      %5439 = vmatmul.mubr.bf16.gmra.mrb[0].mxu0 %v4957
      %v5440 = vpop.f32.mrb[0].mxu0
      %v5441 = vadd.f32 0.0, %v5440
      %v5442 = vpop.f32.mrb[0].mxu0
      %v5443 = vadd.f32 0.0, %v5442
      %v5444 = vpop.f32.mrb[0].mxu0
      %v5445 = vadd.f32 0.0, %v5444
      %v5446 = vpop.f32.mrb[0].mxu0
      %v5447 = vadd.f32 0.0, %v5446
      %5448 = vmatprep.mubr.bf16.mxu0 %v4960
      %5449 = vmatmul.mubr.bf16.gmra.mrb[0].mxu0 %v4959
      %v5450 = vpop.f32.mrb[0].mxu0
      %v5451 = vadd.f32 0.0, %v5450
      %v5452 = vpop.f32.mrb[0].mxu0
      %v5453 = vadd.f32 0.0, %v5452
      %v5454 = vpop.f32.mrb[0].mxu0
      %v5455 = vadd.f32 0.0, %v5454
      %v5456 = vpop.f32.mrb[0].mxu0
      %v5457 = vadd.f32 0.0, %v5456
      %5458 = vmatprep.mubr.bf16.mxu0 %v4962
      %5459 = vmatmul.mubr.bf16.gmra.mrb[0].mxu0 %v4961
      %v5460 = vpop.f32.mrb[0].mxu0
      %v5461 = vadd.f32 0.0, %v5460
      %v5462 = vpop.f32.mrb[0].mxu0
      %v5463 = vadd.f32 0.0, %v5462
      %v5464 = vpop.f32.mrb[0].mxu0
      %v5465 = vadd.f32 0.0, %v5464
      %v5466 = vpop.f32.mrb[0].mxu0
      %v5467 = vadd.f32 0.0, %v5466
      %5468 = vmatprep.mubr.bf16.mxu0 %v4964
      %5469 = vmatmul.mubr.bf16.gmra.mrb[0].mxu0 %v4963
      %v5470 = vpop.f32.mrb[0].mxu0
      %v5471 = vadd.f32 0.0, %v5470
      %v5472 = vpop.f32.mrb[0].mxu0
      %v5473 = vadd.f32 0.0, %v5472
      %v5474 = vpop.f32.mrb[0].mxu0
      %v5475 = vadd.f32 0.0, %v5474
      %v5476 = vpop.f32.mrb[0].mxu0
      %v5477 = vadd.f32 0.0, %v5476
      %5478 = vmatprep.mubr.bf16.mxu0 %v4966
      %5479 = vmatmul.mubr.bf16.gmra.mrb[0].mxu0 %v4965
      %v5480 = vpop.f32.mrb[0].mxu0
      %v5481 = vadd.f32 0.0, %v5480
      %v5482 = vpop.f32.mrb[0].mxu0
      %v5483 = vadd.f32 0.0, %v5482
      %v5484 = vpop.f32.mrb[0].mxu0
      %v5485 = vadd.f32 0.0, %v5484
      %v5486 = vpop.f32.mrb[0].mxu0
      %v5487 = vadd.f32 0.0, %v5486
      %5488 = vmatprep.mubr.bf16.mxu0 %v4968
      %5489 = vmatmul.mubr.bf16.gmra.mrb[0].mxu0 %v4967
      %v5490 = vpop.f32.mrb[0].mxu0
      %v5491 = vadd.f32 0.0, %v5490
      %v5492 = vpop.f32.mrb[0].mxu0
      %v5493 = vadd.f32 0.0, %v5492
      %v5494 = vpop.f32.mrb[0].mxu0
      %v5495 = vadd.f32 0.0, %v5494
      %v5496 = vpop.f32.mrb[0].mxu0
      %v5497 = vadd.f32 0.0, %v5496
      %5498 = vmatprep.mubr.bf16.mxu0 %v4970
      %5499 = vmatmul.mubr.bf16.gmra.mrb[0].mxu0 %v4969
      %v5500 = vpop.f32.mrb[0].mxu0
      %v5501 = vadd.f32 0.0, %v5500
      %v5502 = vpop.f32.mrb[0].mxu0
      %v5503 = vadd.f32 0.0, %v5502
      %v5504 = vpop.f32.mrb[0].mxu0
      %v5505 = vadd.f32 0.0, %v5504
      %v5506 = vpop.f32.mrb[0].mxu0
      %v5507 = vadd.f32 0.0, %v5506
      %5508 = vmatprep.mubr.bf16.mxu0 %v4972
      %5509 = vmatmul.mubr.bf16.gmra.mrb[0].mxu0 %v4971
      %v5510 = vpop.f32.mrb[0].mxu0
      %v5511 = vadd.f32 0.0, %v5510
      %v5512 = vpop.f32.mrb[0].mxu0
      %v5513 = vadd.f32 0.0, %v5512
      %v5514 = vpop.f32.mrb[0].mxu0
      %v5515 = vadd.f32 0.0, %v5514
      %v5516 = vpop.f32.mrb[0].mxu0
      %v5517 = vadd.f32 0.0, %v5516
      %5518 = vdwg.mxu0
      %v5519 = vpack.c.bf16 %v5205, %v5201
      %v5520 = vpack.c.bf16 %v5207, %v5203
      %v5521 = vpack.c.bf16 %v5215, %v5211
      %v5522 = vpack.c.bf16 %v5217, %v5213
      %v5523 = vpack.c.bf16 %v5225, %v5221
      %v5524 = vpack.c.bf16 %v5227, %v5223
      %v5525 = vpack.c.bf16 %v5235, %v5231
      %v5526 = vpack.c.bf16 %v5237, %v5233
      %v5527 = vpack.c.bf16 %v5245, %v5241
      %v5528 = vpack.c.bf16 %v5247, %v5243
      %v5529 = vpack.c.bf16 %v5255, %v5251
      %v5530 = vpack.c.bf16 %v5257, %v5253
      %v5531 = vpack.c.bf16 %v5265, %v5261
      %v5532 = vpack.c.bf16 %v5267, %v5263
      %v5533 = vpack.c.bf16 %v5275, %v5271
      %v5534 = vpack.c.bf16 %v5277, %v5273
      %v5535 = vpack.c.bf16 %v5285, %v5281
      %v5536 = vpack.c.bf16 %v5287, %v5283
      %v5537 = vpack.c.bf16 %v5295, %v5291
      %v5538 = vpack.c.bf16 %v5297, %v5293
      %v5539 = vpack.c.bf16 %v5305, %v5301
      %v5540 = vpack.c.bf16 %v5307, %v5303
      %v5541 = vpack.c.bf16 %v5315, %v5311
      %v5542 = vpack.c.bf16 %v5317, %v5313
      %v5543 = vpack.c.bf16 %v5325, %v5321
      %v5544 = vpack.c.bf16 %v5327, %v5323
      %v5545 = vpack.c.bf16 %v5335, %v5331
      %v5546 = vpack.c.bf16 %v5337, %v5333
      %v5547 = vpack.c.bf16 %v5345, %v5341
      %v5548 = vpack.c.bf16 %v5347, %v5343
      %v5549 = vpack.c.bf16 %v5355, %v5351
      %v5550 = vpack.c.bf16 %v5357, %v5353
      %v5551 = vpack.c.bf16 %v5365, %v5361
      %v5552 = vpack.c.bf16 %v5367, %v5363
      %v5553 = vpack.c.bf16 %v5375, %v5371
      %v5554 = vpack.c.bf16 %v5377, %v5373
      %v5555 = vpack.c.bf16 %v5385, %v5381
      %v5556 = vpack.c.bf16 %v5387, %v5383
      %v5557 = vpack.c.bf16 %v5395, %v5391
      %v5558 = vpack.c.bf16 %v5397, %v5393
      %v5559 = vpack.c.bf16 %v5405, %v5401
      %v5560 = vpack.c.bf16 %v5407, %v5403
      %v5561 = vpack.c.bf16 %v5415, %v5411
      %v5562 = vpack.c.bf16 %v5417, %v5413
      %v5563 = vpack.c.bf16 %v5425, %v5421
      %v5564 = vpack.c.bf16 %v5427, %v5423
      %v5565 = vpack.c.bf16 %v5435, %v5431
      %v5566 = vpack.c.bf16 %v5437, %v5433
      %v5567 = vpack.c.bf16 %v5445, %v5441
      %v5568 = vpack.c.bf16 %v5447, %v5443
      %v5569 = vpack.c.bf16 %v5455, %v5451
      %v5570 = vpack.c.bf16 %v5457, %v5453
      %v5571 = vpack.c.bf16 %v5465, %v5461
      %v5572 = vpack.c.bf16 %v5467, %v5463
      %v5573 = vpack.c.bf16 %v5475, %v5471
      %v5574 = vpack.c.bf16 %v5477, %v5473
      %v5575 = vpack.c.bf16 %v5485, %v5481
      %v5576 = vpack.c.bf16 %v5487, %v5483
      %v5577 = vpack.c.bf16 %v5495, %v5491
      %v5578 = vpack.c.bf16 %v5497, %v5493
      %v5579 = vpack.c.bf16 %v5505, %v5501
      %v5580 = vpack.c.bf16 %v5507, %v5503
      %v5581 = vpack.c.bf16 %v5515, %v5511
      %v5582 = vpack.c.bf16 %v5517, %v5513
      %v5583 = vld [vmem:[%s3] sm:$0x44]
      %v5585 = vunpack.c.l.b16 %v5583
      %v5586 = vunpack.c.h.b16 %v5583
      %v5587 = vpack.c.b16 %v5585, %v5585
      %v5588 = vpack.c.b16 %v5586, %v5586
      %v5590 = vpack.i.b16 %v5587, %v5587
      %v5592 = vlaneseq
      %v5593 = vshrl.u32 %v5592, 7
      %v5594 = vsub.s32 2, %v5593
      %v5595 = vrot.slane %v5590, %v5594
      %v5597 = vpack.i.b16 %v5588, %v5588
      %v5599 = vlaneseq
      %v5600 = vshrl.u32 %v5599, 7
      %v5601 = vsub.s32 2, %v5600
      %v5602 = vrot.slane %v5597, %v5601
      %v5603 = vadd.bf16 %v5519, %v5595
      %v5604 = vadd.bf16 %v5520, %v5602
      %v5605 = vadd.bf16 %v5521, %v5595
      %v5606 = vadd.bf16 %v5522, %v5602
      %v5607 = vadd.bf16 %v5523, %v5595
      %v5608 = vadd.bf16 %v5524, %v5602
      %v5609 = vadd.bf16 %v5525, %v5595
      %v5610 = vadd.bf16 %v5526, %v5602
      %v5611 = vadd.bf16 %v5527, %v5595
      %v5612 = vadd.bf16 %v5528, %v5602
      %v5613 = vadd.bf16 %v5529, %v5595
      %v5614 = vadd.bf16 %v5530, %v5602
      %v5615 = vadd.bf16 %v5531, %v5595
      %v5616 = vadd.bf16 %v5532, %v5602
      %v5617 = vadd.bf16 %v5533, %v5595
      %v5618 = vadd.bf16 %v5534, %v5602
      %v5619 = vadd.bf16 %v5535, %v5595
      %v5620 = vadd.bf16 %v5536, %v5602
      %v5621 = vadd.bf16 %v5537, %v5595
      %v5622 = vadd.bf16 %v5538, %v5602
      %v5623 = vadd.bf16 %v5539, %v5595
      %v5624 = vadd.bf16 %v5540, %v5602
      %v5625 = vadd.bf16 %v5541, %v5595
      %v5626 = vadd.bf16 %v5542, %v5602
      %v5627 = vadd.bf16 %v5543, %v5595
      %v5628 = vadd.bf16 %v5544, %v5602
      %v5629 = vadd.bf16 %v5545, %v5595
      %v5630 = vadd.bf16 %v5546, %v5602
      %v5631 = vadd.bf16 %v5547, %v5595
      %v5632 = vadd.bf16 %v5548, %v5602
      %v5633 = vadd.bf16 %v5549, %v5595
      %v5634 = vadd.bf16 %v5550, %v5602
      %v5635 = vadd.bf16 %v5551, %v5595
      %v5636 = vadd.bf16 %v5552, %v5602
      %v5637 = vadd.bf16 %v5553, %v5595
      %v5638 = vadd.bf16 %v5554, %v5602
      %v5639 = vadd.bf16 %v5555, %v5595
      %v5640 = vadd.bf16 %v5556, %v5602
      %v5641 = vadd.bf16 %v5557, %v5595
      %v5642 = vadd.bf16 %v5558, %v5602
      %v5643 = vadd.bf16 %v5559, %v5595
      %v5644 = vadd.bf16 %v5560, %v5602
      %v5645 = vadd.bf16 %v5561, %v5595
      %v5646 = vadd.bf16 %v5562, %v5602
      %v5647 = vadd.bf16 %v5563, %v5595
      %v5648 = vadd.bf16 %v5564, %v5602
      %v5649 = vadd.bf16 %v5565, %v5595
      %v5650 = vadd.bf16 %v5566, %v5602
      %v5651 = vadd.bf16 %v5567, %v5595
      %v5652 = vadd.bf16 %v5568, %v5602
      %v5653 = vadd.bf16 %v5569, %v5595
      %v5654 = vadd.bf16 %v5570, %v5602
      %v5655 = vadd.bf16 %v5571, %v5595
      %v5656 = vadd.bf16 %v5572, %v5602
      %v5657 = vadd.bf16 %v5573, %v5595
      %v5658 = vadd.bf16 %v5574, %v5602
      %v5659 = vadd.bf16 %v5575, %v5595
      %v5660 = vadd.bf16 %v5576, %v5602
      %v5661 = vadd.bf16 %v5577, %v5595
      %v5662 = vadd.bf16 %v5578, %v5602
      %v5663 = vadd.bf16 %v5579, %v5595
      %v5664 = vadd.bf16 %v5580, %v5602
      %v5665 = vadd.bf16 %v5581, %v5595
      %v5666 = vadd.bf16 %v5582, %v5602
      %v5667 = vmax.bf16 %v5603, 0
      %v5668 = vmax.bf16 %v5604, 0
      %v5669 = vmax.bf16 %v5605, 0
      %v5670 = vmax.bf16 %v5606, 0
      %v5671 = vmax.bf16 %v5607, 0
      %v5672 = vmax.bf16 %v5608, 0
      %v5673 = vmax.bf16 %v5609, 0
      %v5674 = vmax.bf16 %v5610, 0
      %v5675 = vmax.bf16 %v5611, 0
      %v5676 = vmax.bf16 %v5612, 0
      %v5677 = vmax.bf16 %v5613, 0
      %v5678 = vmax.bf16 %v5614, 0
      %v5679 = vmax.bf16 %v5615, 0
      %v5680 = vmax.bf16 %v5616, 0
      %v5681 = vmax.bf16 %v5617, 0
      %v5682 = vmax.bf16 %v5618, 0
      %v5683 = vmax.bf16 %v5619, 0
      %v5684 = vmax.bf16 %v5620, 0
      %v5685 = vmax.bf16 %v5621, 0
      %v5686 = vmax.bf16 %v5622, 0
      %v5687 = vmax.bf16 %v5623, 0
      %v5688 = vmax.bf16 %v5624, 0
      %v5689 = vmax.bf16 %v5625, 0
      %v5690 = vmax.bf16 %v5626, 0
      %v5691 = vmax.bf16 %v5627, 0
      %v5692 = vmax.bf16 %v5628, 0
      %v5693 = vmax.bf16 %v5629, 0
      %v5694 = vmax.bf16 %v5630, 0
      %v5695 = vmax.bf16 %v5631, 0
      %v5696 = vmax.bf16 %v5632, 0
      %v5697 = vmax.bf16 %v5633, 0
      %v5698 = vmax.bf16 %v5634, 0
      %v5699 = vmax.bf16 %v5635, 0
      %v5700 = vmax.bf16 %v5636, 0
      %v5701 = vmax.bf16 %v5637, 0
      %v5702 = vmax.bf16 %v5638, 0
      %v5703 = vmax.bf16 %v5639, 0
      %v5704 = vmax.bf16 %v5640, 0
      %v5705 = vmax.bf16 %v5641, 0
      %v5706 = vmax.bf16 %v5642, 0
      %v5707 = vmax.bf16 %v5643, 0
      %v5708 = vmax.bf16 %v5644, 0
      %v5709 = vmax.bf16 %v5645, 0
      %v5710 = vmax.bf16 %v5646, 0
      %v5711 = vmax.bf16 %v5647, 0
      %v5712 = vmax.bf16 %v5648, 0
      %v5713 = vmax.bf16 %v5649, 0
      %v5714 = vmax.bf16 %v5650, 0
      %v5715 = vmax.bf16 %v5651, 0
      %v5716 = vmax.bf16 %v5652, 0
      %v5717 = vmax.bf16 %v5653, 0
      %v5718 = vmax.bf16 %v5654, 0
      %v5719 = vmax.bf16 %v5655, 0
      %v5720 = vmax.bf16 %v5656, 0
      %v5721 = vmax.bf16 %v5657, 0
      %v5722 = vmax.bf16 %v5658, 0
      %v5723 = vmax.bf16 %v5659, 0
      %v5724 = vmax.bf16 %v5660, 0
      %v5725 = vmax.bf16 %v5661, 0
      %v5726 = vmax.bf16 %v5662, 0
      %v5727 = vmax.bf16 %v5663, 0
      %v5728 = vmax.bf16 %v5664, 0
      %v5729 = vmax.bf16 %v5665, 0
      %v5730 = vmax.bf16 %v5666, 0
      %s5731 = scalar_lea.vmem %s2, 1024
      %v5732 = vld [vmem:[%s5731] sm:$0xff]
      %v5733 = vld [vmem:[%s5731 + $0x8] sm:$0xff]
      %v5734 = vld [vmem:[%s5731 + $0x10] sm:$0xff]
      %v5735 = vld [vmem:[%s5731 + $0x18] sm:$0xff]
      %v5736 = vld [vmem:[%s5731 + $0x20] sm:$0xff]
      %v5737 = vld [vmem:[%s5731 + $0x28] sm:$0xff]
      %v5738 = vld [vmem:[%s5731 + $0x30] sm:$0xff]
      %v5739 = vld [vmem:[%s5731 + $0x38] sm:$0xff]
      %v5740 = vld [vmem:[%s5731 + $0x40] sm:$0xff]
      %v5741 = vld [vmem:[%s5731 + $0x48] sm:$0xff]
      %v5742 = vld [vmem:[%s5731 + $0x50] sm:$0xff]
      %v5743 = vld [vmem:[%s5731 + $0x58] sm:$0xff]
      %v5744 = vld [vmem:[%s5731 + $0x60] sm:$0xff]
      %v5745 = vld [vmem:[%s5731 + $0x68] sm:$0xff]
      %v5746 = vld [vmem:[%s5731 + $0x70] sm:$0xff]
      %v5747 = vld [vmem:[%s5731 + $0x78] sm:$0xff]
      %v5748 = vld [vmem:[%s5731 + $0x80] sm:$0xff]
      %v5749 = vld [vmem:[%s5731 + $0x88] sm:$0xff]
      %v5750 = vld [vmem:[%s5731 + $0x90] sm:$0xff]
      %v5751 = vld [vmem:[%s5731 + $0x98] sm:$0xff]
      %v5752 = vld [vmem:[%s5731 + $0xa0] sm:$0xff]
      %v5753 = vld [vmem:[%s5731 + $0xa8] sm:$0xff]
      %v5754 = vld [vmem:[%s5731 + $0xb0] sm:$0xff]
      %v5755 = vld [vmem:[%s5731 + $0xb8] sm:$0xff]
      %v5756 = vld [vmem:[%s5731 + $0xc0] sm:$0xff]
      %v5757 = vld [vmem:[%s5731 + $0xc8] sm:$0xff]
      %v5758 = vld [vmem:[%s5731 + $0xd0] sm:$0xff]
      %v5759 = vld [vmem:[%s5731 + $0xd8] sm:$0xff]
      %v5760 = vld [vmem:[%s5731 + $0xe0] sm:$0xff]
      %v5761 = vld [vmem:[%s5731 + $0xe8] sm:$0xff]
      %v5762 = vld [vmem:[%s5731 + $0xf0] sm:$0xff]
      %v5763 = vld [vmem:[%s5731 + $0xf8] sm:$0xff]
      %v5796 = vunpack.c.l.b16 %v5732
      %v5797 = vunpack.c.h.b16 %v5732
      %v5798 = vunpack.c.l.b16 %v5733
      %v5799 = vunpack.c.h.b16 %v5733
      %v5800 = vunpack.c.l.b16 %v5734
      %v5801 = vunpack.c.h.b16 %v5734
      %v5802 = vunpack.c.l.b16 %v5735
      %v5803 = vunpack.c.h.b16 %v5735
      %v5804 = vunpack.c.l.b16 %v5736
      %v5805 = vunpack.c.h.b16 %v5736
      %v5806 = vunpack.c.l.b16 %v5737
      %v5807 = vunpack.c.h.b16 %v5737
      %v5808 = vunpack.c.l.b16 %v5738
      %v5809 = vunpack.c.h.b16 %v5738
      %v5810 = vunpack.c.l.b16 %v5739
      %v5811 = vunpack.c.h.b16 %v5739
      %v5812 = vunpack.c.l.b16 %v5740
      %v5813 = vunpack.c.h.b16 %v5740
      %v5814 = vunpack.c.l.b16 %v5741
      %v5815 = vunpack.c.h.b16 %v5741
      %v5816 = vunpack.c.l.b16 %v5742
      %v5817 = vunpack.c.h.b16 %v5742
      %v5818 = vunpack.c.l.b16 %v5743
      %v5819 = vunpack.c.h.b16 %v5743
      %v5820 = vunpack.c.l.b16 %v5744
      %v5821 = vunpack.c.h.b16 %v5744
      %v5822 = vunpack.c.l.b16 %v5745
      %v5823 = vunpack.c.h.b16 %v5745
      %v5824 = vunpack.c.l.b16 %v5746
      %v5825 = vunpack.c.h.b16 %v5746
      %v5826 = vunpack.c.l.b16 %v5747
      %v5827 = vunpack.c.h.b16 %v5747
      %v5828 = vunpack.c.l.b16 %v5748
      %v5829 = vunpack.c.h.b16 %v5748
      %v5830 = vunpack.c.l.b16 %v5749
      %v5831 = vunpack.c.h.b16 %v5749
      %v5832 = vunpack.c.l.b16 %v5750
      %v5833 = vunpack.c.h.b16 %v5750
      %v5834 = vunpack.c.l.b16 %v5751
      %v5835 = vunpack.c.h.b16 %v5751
      %v5836 = vunpack.c.l.b16 %v5752
      %v5837 = vunpack.c.h.b16 %v5752
      %v5838 = vunpack.c.l.b16 %v5753
      %v5839 = vunpack.c.h.b16 %v5753
      %v5840 = vunpack.c.l.b16 %v5754
      %v5841 = vunpack.c.h.b16 %v5754
      %v5842 = vunpack.c.l.b16 %v5755
      %v5843 = vunpack.c.h.b16 %v5755
      %v5844 = vunpack.c.l.b16 %v5756
      %v5845 = vunpack.c.h.b16 %v5756
      %v5846 = vunpack.c.l.b16 %v5757
      %v5847 = vunpack.c.h.b16 %v5757
      %v5848 = vunpack.c.l.b16 %v5758
      %v5849 = vunpack.c.h.b16 %v5758
      %v5850 = vunpack.c.l.b16 %v5759
      %v5851 = vunpack.c.h.b16 %v5759
      %v5852 = vunpack.c.l.b16 %v5760
      %v5853 = vunpack.c.h.b16 %v5760
      %v5854 = vunpack.c.l.b16 %v5761
      %v5855 = vunpack.c.h.b16 %v5761
      %v5856 = vunpack.c.l.b16 %v5762
      %v5857 = vunpack.c.h.b16 %v5762
      %v5858 = vunpack.c.l.b16 %v5763
      %v5859 = vunpack.c.h.b16 %v5763
      %v5860 = vpack.c.b16 %v5798, %v5796
      %v5861 = vpack.c.b16 %v5799, %v5797
      %v5862 = vpack.c.b16 %v5802, %v5800
      %v5863 = vpack.c.b16 %v5803, %v5801
      %v5864 = vpack.c.b16 %v5806, %v5804
      %v5865 = vpack.c.b16 %v5807, %v5805
      %v5866 = vpack.c.b16 %v5810, %v5808
      %v5867 = vpack.c.b16 %v5811, %v5809
      %v5868 = vpack.c.b16 %v5814, %v5812
      %v5869 = vpack.c.b16 %v5815, %v5813
      %v5870 = vpack.c.b16 %v5818, %v5816
      %v5871 = vpack.c.b16 %v5819, %v5817
      %v5872 = vpack.c.b16 %v5822, %v5820
      %v5873 = vpack.c.b16 %v5823, %v5821
      %v5874 = vpack.c.b16 %v5826, %v5824
      %v5875 = vpack.c.b16 %v5827, %v5825
      %v5876 = vpack.c.b16 %v5830, %v5828
      %v5877 = vpack.c.b16 %v5831, %v5829
      %v5878 = vpack.c.b16 %v5834, %v5832
      %v5879 = vpack.c.b16 %v5835, %v5833
      %v5880 = vpack.c.b16 %v5838, %v5836
      %v5881 = vpack.c.b16 %v5839, %v5837
      %v5882 = vpack.c.b16 %v5842, %v5840
      %v5883 = vpack.c.b16 %v5843, %v5841
      %v5884 = vpack.c.b16 %v5846, %v5844
      %v5885 = vpack.c.b16 %v5847, %v5845
      %v5886 = vpack.c.b16 %v5850, %v5848
      %v5887 = vpack.c.b16 %v5851, %v5849
      %v5888 = vpack.c.b16 %v5854, %v5852
      %v5889 = vpack.c.b16 %v5855, %v5853
      %v5890 = vpack.c.b16 %v5858, %v5856
      %v5891 = vpack.c.b16 %v5859, %v5857
      %5924 = vmatprep.subr.bf16.mxu0 %v5861
      %5925 = vmatpush1.bf16.msra.mxu0 %v5860
      %5926 = vmatprep.subr.bf16.mxu0 %v5863
      %5927 = vmatpush1.bf16.msra.mxu0 %v5862
      %5928 = vmatprep.subr.bf16.mxu0 %v5865
      %5929 = vmatpush1.bf16.msra.mxu0 %v5864
      %5930 = vmatprep.subr.bf16.mxu0 %v5867
      %5931 = vmatpush1.bf16.msra.mxu0 %v5866
      %5932 = vmatprep.subr.bf16.mxu0 %v5869
      %5933 = vmatpush1.bf16.msra.mxu0 %v5868
      %5934 = vmatprep.subr.bf16.mxu0 %v5871
      %5935 = vmatpush1.bf16.msra.mxu0 %v5870
      %5936 = vmatprep.subr.bf16.mxu0 %v5873
      %5937 = vmatpush1.bf16.msra.mxu0 %v5872
      %5938 = vmatprep.subr.bf16.mxu0 %v5875
      %5939 = vmatpush1.bf16.msra.mxu0 %v5874
      %5940 = vmatprep.subr.bf16.mxu0 %v5877
      %5941 = vmatpush1.bf16.msra.mxu0 %v5876
      %5942 = vmatprep.subr.bf16.mxu0 %v5879
      %5943 = vmatpush1.bf16.msra.mxu0 %v5878
      %5944 = vmatprep.subr.bf16.mxu0 %v5881
      %5945 = vmatpush1.bf16.msra.mxu0 %v5880
      %5946 = vmatprep.subr.bf16.mxu0 %v5883
      %5947 = vmatpush1.bf16.msra.mxu0 %v5882
      %5948 = vmatprep.subr.bf16.mxu0 %v5885
      %5949 = vmatpush1.bf16.msra.mxu0 %v5884
      %5950 = vmatprep.subr.bf16.mxu0 %v5887
      %5951 = vmatpush1.bf16.msra.mxu0 %v5886
      %5952 = vmatprep.subr.bf16.mxu0 %v5889
      %5953 = vmatpush1.bf16.msra.mxu0 %v5888
      %5954 = vmatprep.subr.bf16.mxu0 %v5891
      %5955 = vmatpush1.bf16.msra.mxu0 %v5890
      %5956 = vmatprep.mubr.bf16.mxu0 %v5668
      %5957 = vmatmul.mubr.bf16.gmra.mrb[0].mxu0 %v5667
      %v5958 = vpop.f32.mrb[0].mxu0
      %v5959 = vadd.f32 0.0, %v5958
      %v5960 = vpop.f32.mrb[0].mxu0
      %v5961 = vadd.f32 0.0, %v5960
      %v5962 = vpop.f32.mrb[0].mxu0
      %v5963 = vadd.f32 0.0, %v5962
      %v5964 = vpop.f32.mrb[0].mxu0
      %v5965 = vadd.f32 0.0, %v5964
      %5966 = vmatprep.mubr.bf16.mxu0 %v5670
      %5967 = vmatmul.mubr.bf16.gmra.mrb[0].mxu0 %v5669
      %v5968 = vpop.f32.mrb[0].mxu0
      %v5969 = vadd.f32 0.0, %v5968
      %v5970 = vpop.f32.mrb[0].mxu0
      %v5971 = vadd.f32 0.0, %v5970
      %v5972 = vpop.f32.mrb[0].mxu0
      %v5973 = vadd.f32 0.0, %v5972
      %v5974 = vpop.f32.mrb[0].mxu0
      %v5975 = vadd.f32 0.0, %v5974
      %5976 = vmatprep.mubr.bf16.mxu0 %v5672
      %5977 = vmatmul.mubr.bf16.gmra.mrb[0].mxu0 %v5671
      %v5978 = vpop.f32.mrb[0].mxu0
      %v5979 = vadd.f32 0.0, %v5978
      %v5980 = vpop.f32.mrb[0].mxu0
      %v5981 = vadd.f32 0.0, %v5980
      %v5982 = vpop.f32.mrb[0].mxu0
      %v5983 = vadd.f32 0.0, %v5982
      %v5984 = vpop.f32.mrb[0].mxu0
      %v5985 = vadd.f32 0.0, %v5984
      %5986 = vmatprep.mubr.bf16.mxu0 %v5674
      %5987 = vmatmul.mubr.bf16.gmra.mrb[0].mxu0 %v5673
      %v5988 = vpop.f32.mrb[0].mxu0
      %v5989 = vadd.f32 0.0, %v5988
      %v5990 = vpop.f32.mrb[0].mxu0
      %v5991 = vadd.f32 0.0, %v5990
      %v5992 = vpop.f32.mrb[0].mxu0
      %v5993 = vadd.f32 0.0, %v5992
      %v5994 = vpop.f32.mrb[0].mxu0
      %v5995 = vadd.f32 0.0, %v5994
      %5996 = vmatprep.mubr.bf16.mxu0 %v5676
      %5997 = vmatmul.mubr.bf16.gmra.mrb[0].mxu0 %v5675
      %v5998 = vpop.f32.mrb[0].mxu0
      %v5999 = vadd.f32 0.0, %v5998
      %v6000 = vpop.f32.mrb[0].mxu0
      %v6001 = vadd.f32 0.0, %v6000
      %v6002 = vpop.f32.mrb[0].mxu0
      %v6003 = vadd.f32 0.0, %v6002
      %v6004 = vpop.f32.mrb[0].mxu0
      %v6005 = vadd.f32 0.0, %v6004
      %6006 = vmatprep.mubr.bf16.mxu0 %v5678
      %6007 = vmatmul.mubr.bf16.gmra.mrb[0].mxu0 %v5677
      %v6008 = vpop.f32.mrb[0].mxu0
      %v6009 = vadd.f32 0.0, %v6008
      %v6010 = vpop.f32.mrb[0].mxu0
      %v6011 = vadd.f32 0.0, %v6010
      %v6012 = vpop.f32.mrb[0].mxu0
      %v6013 = vadd.f32 0.0, %v6012
      %v6014 = vpop.f32.mrb[0].mxu0
      %v6015 = vadd.f32 0.0, %v6014
      %6016 = vmatprep.mubr.bf16.mxu0 %v5680
      %6017 = vmatmul.mubr.bf16.gmra.mrb[0].mxu0 %v5679
      %v6018 = vpop.f32.mrb[0].mxu0
      %v6019 = vadd.f32 0.0, %v6018
      %v6020 = vpop.f32.mrb[0].mxu0
      %v6021 = vadd.f32 0.0, %v6020
      %v6022 = vpop.f32.mrb[0].mxu0
      %v6023 = vadd.f32 0.0, %v6022
      %v6024 = vpop.f32.mrb[0].mxu0
      %v6025 = vadd.f32 0.0, %v6024
      %6026 = vmatprep.mubr.bf16.mxu0 %v5682
      %6027 = vmatmul.mubr.bf16.gmra.mrb[0].mxu0 %v5681
      %v6028 = vpop.f32.mrb[0].mxu0
      %v6029 = vadd.f32 0.0, %v6028
      %v6030 = vpop.f32.mrb[0].mxu0
      %v6031 = vadd.f32 0.0, %v6030
      %v6032 = vpop.f32.mrb[0].mxu0
      %v6033 = vadd.f32 0.0, %v6032
      %v6034 = vpop.f32.mrb[0].mxu0
      %v6035 = vadd.f32 0.0, %v6034
      %6036 = vmatprep.mubr.bf16.mxu0 %v5684
      %6037 = vmatmul.mubr.bf16.gmra.mrb[0].mxu0 %v5683
      %v6038 = vpop.f32.mrb[0].mxu0
      %v6039 = vadd.f32 0.0, %v6038
      %v6040 = vpop.f32.mrb[0].mxu0
      %v6041 = vadd.f32 0.0, %v6040
      %v6042 = vpop.f32.mrb[0].mxu0
      %v6043 = vadd.f32 0.0, %v6042
      %v6044 = vpop.f32.mrb[0].mxu0
      %v6045 = vadd.f32 0.0, %v6044
      %6046 = vmatprep.mubr.bf16.mxu0 %v5686
      %6047 = vmatmul.mubr.bf16.gmra.mrb[0].mxu0 %v5685
      %v6048 = vpop.f32.mrb[0].mxu0
      %v6049 = vadd.f32 0.0, %v6048
      %v6050 = vpop.f32.mrb[0].mxu0
      %v6051 = vadd.f32 0.0, %v6050
      %v6052 = vpop.f32.mrb[0].mxu0
      %v6053 = vadd.f32 0.0, %v6052
      %v6054 = vpop.f32.mrb[0].mxu0
      %v6055 = vadd.f32 0.0, %v6054
      %6056 = vmatprep.mubr.bf16.mxu0 %v5688
      %6057 = vmatmul.mubr.bf16.gmra.mrb[0].mxu0 %v5687
      %v6058 = vpop.f32.mrb[0].mxu0
      %v6059 = vadd.f32 0.0, %v6058
      %v6060 = vpop.f32.mrb[0].mxu0
      %v6061 = vadd.f32 0.0, %v6060
      %v6062 = vpop.f32.mrb[0].mxu0
      %v6063 = vadd.f32 0.0, %v6062
      %v6064 = vpop.f32.mrb[0].mxu0
      %v6065 = vadd.f32 0.0, %v6064
      %6066 = vmatprep.mubr.bf16.mxu0 %v5690
      %6067 = vmatmul.mubr.bf16.gmra.mrb[0].mxu0 %v5689
      %v6068 = vpop.f32.mrb[0].mxu0
      %v6069 = vadd.f32 0.0, %v6068
      %v6070 = vpop.f32.mrb[0].mxu0
      %v6071 = vadd.f32 0.0, %v6070
      %v6072 = vpop.f32.mrb[0].mxu0
      %v6073 = vadd.f32 0.0, %v6072
      %v6074 = vpop.f32.mrb[0].mxu0
      %v6075 = vadd.f32 0.0, %v6074
      %6076 = vmatprep.mubr.bf16.mxu0 %v5692
      %6077 = vmatmul.mubr.bf16.gmra.mrb[0].mxu0 %v5691
      %v6078 = vpop.f32.mrb[0].mxu0
      %v6079 = vadd.f32 0.0, %v6078
      %v6080 = vpop.f32.mrb[0].mxu0
      %v6081 = vadd.f32 0.0, %v6080
      %v6082 = vpop.f32.mrb[0].mxu0
      %v6083 = vadd.f32 0.0, %v6082
      %v6084 = vpop.f32.mrb[0].mxu0
      %v6085 = vadd.f32 0.0, %v6084
      %6086 = vmatprep.mubr.bf16.mxu0 %v5694
      %6087 = vmatmul.mubr.bf16.gmra.mrb[0].mxu0 %v5693
      %v6088 = vpop.f32.mrb[0].mxu0
      %v6089 = vadd.f32 0.0, %v6088
      %v6090 = vpop.f32.mrb[0].mxu0
      %v6091 = vadd.f32 0.0, %v6090
      %v6092 = vpop.f32.mrb[0].mxu0
      %v6093 = vadd.f32 0.0, %v6092
      %v6094 = vpop.f32.mrb[0].mxu0
      %v6095 = vadd.f32 0.0, %v6094
      %6096 = vmatprep.mubr.bf16.mxu0 %v5696
      %6097 = vmatmul.mubr.bf16.gmra.mrb[0].mxu0 %v5695
      %v6098 = vpop.f32.mrb[0].mxu0
      %v6099 = vadd.f32 0.0, %v6098
      %v6100 = vpop.f32.mrb[0].mxu0
      %v6101 = vadd.f32 0.0, %v6100
      %v6102 = vpop.f32.mrb[0].mxu0
      %v6103 = vadd.f32 0.0, %v6102
      %v6104 = vpop.f32.mrb[0].mxu0
      %v6105 = vadd.f32 0.0, %v6104
      %6106 = vmatprep.mubr.bf16.mxu0 %v5698
      %6107 = vmatmul.mubr.bf16.gmra.mrb[0].mxu0 %v5697
      %v6108 = vpop.f32.mrb[0].mxu0
      %v6109 = vadd.f32 0.0, %v6108
      %v6110 = vpop.f32.mrb[0].mxu0
      %v6111 = vadd.f32 0.0, %v6110
      %v6112 = vpop.f32.mrb[0].mxu0
      %v6113 = vadd.f32 0.0, %v6112
      %v6114 = vpop.f32.mrb[0].mxu0
      %v6115 = vadd.f32 0.0, %v6114
      %6116 = vmatprep.mubr.bf16.mxu0 %v5700
      %6117 = vmatmul.mubr.bf16.gmra.mrb[0].mxu0 %v5699
      %v6118 = vpop.f32.mrb[0].mxu0
      %v6119 = vadd.f32 0.0, %v6118
      %v6120 = vpop.f32.mrb[0].mxu0
      %v6121 = vadd.f32 0.0, %v6120
      %v6122 = vpop.f32.mrb[0].mxu0
      %v6123 = vadd.f32 0.0, %v6122
      %v6124 = vpop.f32.mrb[0].mxu0
      %v6125 = vadd.f32 0.0, %v6124
      %6126 = vmatprep.mubr.bf16.mxu0 %v5702
      %6127 = vmatmul.mubr.bf16.gmra.mrb[0].mxu0 %v5701
      %v6128 = vpop.f32.mrb[0].mxu0
      %v6129 = vadd.f32 0.0, %v6128
      %v6130 = vpop.f32.mrb[0].mxu0
      %v6131 = vadd.f32 0.0, %v6130
      %v6132 = vpop.f32.mrb[0].mxu0
      %v6133 = vadd.f32 0.0, %v6132
      %v6134 = vpop.f32.mrb[0].mxu0
      %v6135 = vadd.f32 0.0, %v6134
      %6136 = vmatprep.mubr.bf16.mxu0 %v5704
      %6137 = vmatmul.mubr.bf16.gmra.mrb[0].mxu0 %v5703
      %v6138 = vpop.f32.mrb[0].mxu0
      %v6139 = vadd.f32 0.0, %v6138
      %v6140 = vpop.f32.mrb[0].mxu0
      %v6141 = vadd.f32 0.0, %v6140
      %v6142 = vpop.f32.mrb[0].mxu0
      %v6143 = vadd.f32 0.0, %v6142
      %v6144 = vpop.f32.mrb[0].mxu0
      %v6145 = vadd.f32 0.0, %v6144
      %6146 = vmatprep.mubr.bf16.mxu0 %v5706
      %6147 = vmatmul.mubr.bf16.gmra.mrb[0].mxu0 %v5705
      %v6148 = vpop.f32.mrb[0].mxu0
      %v6149 = vadd.f32 0.0, %v6148
      %v6150 = vpop.f32.mrb[0].mxu0
      %v6151 = vadd.f32 0.0, %v6150
      %v6152 = vpop.f32.mrb[0].mxu0
      %v6153 = vadd.f32 0.0, %v6152
      %v6154 = vpop.f32.mrb[0].mxu0
      %v6155 = vadd.f32 0.0, %v6154
      %6156 = vmatprep.mubr.bf16.mxu0 %v5708
      %6157 = vmatmul.mubr.bf16.gmra.mrb[0].mxu0 %v5707
      %v6158 = vpop.f32.mrb[0].mxu0
      %v6159 = vadd.f32 0.0, %v6158
      %v6160 = vpop.f32.mrb[0].mxu0
      %v6161 = vadd.f32 0.0, %v6160
      %v6162 = vpop.f32.mrb[0].mxu0
      %v6163 = vadd.f32 0.0, %v6162
      %v6164 = vpop.f32.mrb[0].mxu0
      %v6165 = vadd.f32 0.0, %v6164
      %6166 = vmatprep.mubr.bf16.mxu0 %v5710
      %6167 = vmatmul.mubr.bf16.gmra.mrb[0].mxu0 %v5709
      %v6168 = vpop.f32.mrb[0].mxu0
      %v6169 = vadd.f32 0.0, %v6168
      %v6170 = vpop.f32.mrb[0].mxu0
      %v6171 = vadd.f32 0.0, %v6170
      %v6172 = vpop.f32.mrb[0].mxu0
      %v6173 = vadd.f32 0.0, %v6172
      %v6174 = vpop.f32.mrb[0].mxu0
      %v6175 = vadd.f32 0.0, %v6174
      %6176 = vmatprep.mubr.bf16.mxu0 %v5712
      %6177 = vmatmul.mubr.bf16.gmra.mrb[0].mxu0 %v5711
      %v6178 = vpop.f32.mrb[0].mxu0
      %v6179 = vadd.f32 0.0, %v6178
      %v6180 = vpop.f32.mrb[0].mxu0
      %v6181 = vadd.f32 0.0, %v6180
      %v6182 = vpop.f32.mrb[0].mxu0
      %v6183 = vadd.f32 0.0, %v6182
      %v6184 = vpop.f32.mrb[0].mxu0
      %v6185 = vadd.f32 0.0, %v6184
      %6186 = vmatprep.mubr.bf16.mxu0 %v5714
      %6187 = vmatmul.mubr.bf16.gmra.mrb[0].mxu0 %v5713
      %v6188 = vpop.f32.mrb[0].mxu0
      %v6189 = vadd.f32 0.0, %v6188
      %v6190 = vpop.f32.mrb[0].mxu0
      %v6191 = vadd.f32 0.0, %v6190
      %v6192 = vpop.f32.mrb[0].mxu0
      %v6193 = vadd.f32 0.0, %v6192
      %v6194 = vpop.f32.mrb[0].mxu0
      %v6195 = vadd.f32 0.0, %v6194
      %6196 = vmatprep.mubr.bf16.mxu0 %v5716
      %6197 = vmatmul.mubr.bf16.gmra.mrb[0].mxu0 %v5715
      %v6198 = vpop.f32.mrb[0].mxu0
      %v6199 = vadd.f32 0.0, %v6198
      %v6200 = vpop.f32.mrb[0].mxu0
      %v6201 = vadd.f32 0.0, %v6200
      %v6202 = vpop.f32.mrb[0].mxu0
      %v6203 = vadd.f32 0.0, %v6202
      %v6204 = vpop.f32.mrb[0].mxu0
      %v6205 = vadd.f32 0.0, %v6204
      %6206 = vmatprep.mubr.bf16.mxu0 %v5718
      %6207 = vmatmul.mubr.bf16.gmra.mrb[0].mxu0 %v5717
      %v6208 = vpop.f32.mrb[0].mxu0
      %v6209 = vadd.f32 0.0, %v6208
      %v6210 = vpop.f32.mrb[0].mxu0
      %v6211 = vadd.f32 0.0, %v6210
      %v6212 = vpop.f32.mrb[0].mxu0
      %v6213 = vadd.f32 0.0, %v6212
      %v6214 = vpop.f32.mrb[0].mxu0
      %v6215 = vadd.f32 0.0, %v6214
      %6216 = vmatprep.mubr.bf16.mxu0 %v5720
      %6217 = vmatmul.mubr.bf16.gmra.mrb[0].mxu0 %v5719
      %v6218 = vpop.f32.mrb[0].mxu0
      %v6219 = vadd.f32 0.0, %v6218
      %v6220 = vpop.f32.mrb[0].mxu0
      %v6221 = vadd.f32 0.0, %v6220
      %v6222 = vpop.f32.mrb[0].mxu0
      %v6223 = vadd.f32 0.0, %v6222
      %v6224 = vpop.f32.mrb[0].mxu0
      %v6225 = vadd.f32 0.0, %v6224
      %6226 = vmatprep.mubr.bf16.mxu0 %v5722
      %6227 = vmatmul.mubr.bf16.gmra.mrb[0].mxu0 %v5721
      %v6228 = vpop.f32.mrb[0].mxu0
      %v6229 = vadd.f32 0.0, %v6228
      %v6230 = vpop.f32.mrb[0].mxu0
      %v6231 = vadd.f32 0.0, %v6230
      %v6232 = vpop.f32.mrb[0].mxu0
      %v6233 = vadd.f32 0.0, %v6232
      %v6234 = vpop.f32.mrb[0].mxu0
      %v6235 = vadd.f32 0.0, %v6234
      %6236 = vmatprep.mubr.bf16.mxu0 %v5724
      %6237 = vmatmul.mubr.bf16.gmra.mrb[0].mxu0 %v5723
      %v6238 = vpop.f32.mrb[0].mxu0
      %v6239 = vadd.f32 0.0, %v6238
      %v6240 = vpop.f32.mrb[0].mxu0
      %v6241 = vadd.f32 0.0, %v6240
      %v6242 = vpop.f32.mrb[0].mxu0
      %v6243 = vadd.f32 0.0, %v6242
      %v6244 = vpop.f32.mrb[0].mxu0
      %v6245 = vadd.f32 0.0, %v6244
      %6246 = vmatprep.mubr.bf16.mxu0 %v5726
      %6247 = vmatmul.mubr.bf16.gmra.mrb[0].mxu0 %v5725
      %v6248 = vpop.f32.mrb[0].mxu0
      %v6249 = vadd.f32 0.0, %v6248
      %v6250 = vpop.f32.mrb[0].mxu0
      %v6251 = vadd.f32 0.0, %v6250
      %v6252 = vpop.f32.mrb[0].mxu0
      %v6253 = vadd.f32 0.0, %v6252
      %v6254 = vpop.f32.mrb[0].mxu0
      %v6255 = vadd.f32 0.0, %v6254
      %6256 = vmatprep.mubr.bf16.mxu0 %v5728
      %6257 = vmatmul.mubr.bf16.gmra.mrb[0].mxu0 %v5727
      %v6258 = vpop.f32.mrb[0].mxu0
      %v6259 = vadd.f32 0.0, %v6258
      %v6260 = vpop.f32.mrb[0].mxu0
      %v6261 = vadd.f32 0.0, %v6260
      %v6262 = vpop.f32.mrb[0].mxu0
      %v6263 = vadd.f32 0.0, %v6262
      %v6264 = vpop.f32.mrb[0].mxu0
      %v6265 = vadd.f32 0.0, %v6264
      %6266 = vmatprep.mubr.bf16.mxu0 %v5730
      %6267 = vmatmul.mubr.bf16.gmra.mrb[0].mxu0 %v5729
      %v6268 = vpop.f32.mrb[0].mxu0
      %v6269 = vadd.f32 0.0, %v6268
      %v6270 = vpop.f32.mrb[0].mxu0
      %v6271 = vadd.f32 0.0, %v6270
      %v6272 = vpop.f32.mrb[0].mxu0
      %v6273 = vadd.f32 0.0, %v6272
      %v6274 = vpop.f32.mrb[0].mxu0
      %v6275 = vadd.f32 0.0, %v6274
      %6276 = vdwg.mxu0
      %v6277 = vadd.f32 %v2246, %v5959
      %v6278 = vadd.f32 %v2247, %v5961
      %v6279 = vadd.f32 %v2250, %v5963
      %v6280 = vadd.f32 %v2251, %v5965
      %v6281 = vadd.f32 %v2254, %v5969
      %v6282 = vadd.f32 %v2255, %v5971
      %v6283 = vadd.f32 %v2258, %v5973
      %v6284 = vadd.f32 %v2259, %v5975
      %v6285 = vadd.f32 %v2262, %v5979
      %v6286 = vadd.f32 %v2263, %v5981
      %v6287 = vadd.f32 %v2266, %v5983
      %v6288 = vadd.f32 %v2267, %v5985
      %v6289 = vadd.f32 %v2270, %v5989
      %v6290 = vadd.f32 %v2271, %v5991
      %v6291 = vadd.f32 %v2274, %v5993
      %v6292 = vadd.f32 %v2275, %v5995
      %v6293 = vadd.f32 %v2278, %v5999
      %v6294 = vadd.f32 %v2279, %v6001
      %v6295 = vadd.f32 %v2282, %v6003
      %v6296 = vadd.f32 %v2283, %v6005
      %v6297 = vadd.f32 %v2286, %v6009
      %v6298 = vadd.f32 %v2287, %v6011
      %v6299 = vadd.f32 %v2290, %v6013
      %v6300 = vadd.f32 %v2291, %v6015
      %v6301 = vadd.f32 %v2294, %v6019
      %v6302 = vadd.f32 %v2295, %v6021
      %v6303 = vadd.f32 %v2298, %v6023
      %v6304 = vadd.f32 %v2299, %v6025
      %v6305 = vadd.f32 %v2302, %v6029
      %v6306 = vadd.f32 %v2303, %v6031
      %v6307 = vadd.f32 %v2306, %v6033
      %v6308 = vadd.f32 %v2307, %v6035
      %v6309 = vadd.f32 %v2310, %v6039
      %v6310 = vadd.f32 %v2311, %v6041
      %v6311 = vadd.f32 %v2314, %v6043
      %v6312 = vadd.f32 %v2315, %v6045
      %v6313 = vadd.f32 %v2318, %v6049
      %v6314 = vadd.f32 %v2319, %v6051
      %v6315 = vadd.f32 %v2322, %v6053
      %v6316 = vadd.f32 %v2323, %v6055
      %v6317 = vadd.f32 %v2326, %v6059
      %v6318 = vadd.f32 %v2327, %v6061
      %v6319 = vadd.f32 %v2330, %v6063
      %v6320 = vadd.f32 %v2331, %v6065
      %v6321 = vadd.f32 %v2334, %v6069
      %v6322 = vadd.f32 %v2335, %v6071
      %v6323 = vadd.f32 %v2338, %v6073
      %v6324 = vadd.f32 %v2339, %v6075
      %v6325 = vadd.f32 %v2342, %v6079
      %v6326 = vadd.f32 %v2343, %v6081
      %v6327 = vadd.f32 %v2346, %v6083
      %v6328 = vadd.f32 %v2347, %v6085
      %v6329 = vadd.f32 %v2350, %v6089
      %v6330 = vadd.f32 %v2351, %v6091
      %v6331 = vadd.f32 %v2354, %v6093
      %v6332 = vadd.f32 %v2355, %v6095
      %v6333 = vadd.f32 %v2358, %v6099
      %v6334 = vadd.f32 %v2359, %v6101
      %v6335 = vadd.f32 %v2362, %v6103
      %v6336 = vadd.f32 %v2363, %v6105
      %v6337 = vadd.f32 %v2366, %v6109
      %v6338 = vadd.f32 %v2367, %v6111
      %v6339 = vadd.f32 %v2370, %v6113
      %v6340 = vadd.f32 %v2371, %v6115
      %v6341 = vadd.f32 %v2374, %v6119
      %v6342 = vadd.f32 %v2375, %v6121
      %v6343 = vadd.f32 %v2378, %v6123
      %v6344 = vadd.f32 %v2379, %v6125
      %v6345 = vadd.f32 %v2382, %v6129
      %v6346 = vadd.f32 %v2383, %v6131
      %v6347 = vadd.f32 %v2386, %v6133
      %v6348 = vadd.f32 %v2387, %v6135
      %v6349 = vadd.f32 %v2390, %v6139
      %v6350 = vadd.f32 %v2391, %v6141
      %v6351 = vadd.f32 %v2394, %v6143
      %v6352 = vadd.f32 %v2395, %v6145
      %v6353 = vadd.f32 %v2398, %v6149
      %v6354 = vadd.f32 %v2399, %v6151
      %v6355 = vadd.f32 %v2402, %v6153
      %v6356 = vadd.f32 %v2403, %v6155
      %v6357 = vadd.f32 %v2406, %v6159
      %v6358 = vadd.f32 %v2407, %v6161
      %v6359 = vadd.f32 %v2410, %v6163
      %v6360 = vadd.f32 %v2411, %v6165
      %v6361 = vadd.f32 %v2414, %v6169
      %v6362 = vadd.f32 %v2415, %v6171
      %v6363 = vadd.f32 %v2418, %v6173
      %v6364 = vadd.f32 %v2419, %v6175
      %v6365 = vadd.f32 %v2422, %v6179
      %v6366 = vadd.f32 %v2423, %v6181
      %v6367 = vadd.f32 %v2426, %v6183
      %v6368 = vadd.f32 %v2427, %v6185
      %v6369 = vadd.f32 %v2430, %v6189
      %v6370 = vadd.f32 %v2431, %v6191
      %v6371 = vadd.f32 %v2434, %v6193
      %v6372 = vadd.f32 %v2435, %v6195
      %v6373 = vadd.f32 %v2438, %v6199
      %v6374 = vadd.f32 %v2439, %v6201
      %v6375 = vadd.f32 %v2442, %v6203
      %v6376 = vadd.f32 %v2443, %v6205
      %v6377 = vadd.f32 %v2446, %v6209
      %v6378 = vadd.f32 %v2447, %v6211
      %v6379 = vadd.f32 %v2450, %v6213
      %v6380 = vadd.f32 %v2451, %v6215
      %v6381 = vadd.f32 %v2454, %v6219
      %v6382 = vadd.f32 %v2455, %v6221
      %v6383 = vadd.f32 %v2458, %v6223
      %v6384 = vadd.f32 %v2459, %v6225
      %v6385 = vadd.f32 %v2462, %v6229
      %v6386 = vadd.f32 %v2463, %v6231
      %v6387 = vadd.f32 %v2466, %v6233
      %v6388 = vadd.f32 %v2467, %v6235
      %v6389 = vadd.f32 %v2470, %v6239
      %v6390 = vadd.f32 %v2471, %v6241
      %v6391 = vadd.f32 %v2474, %v6243
      %v6392 = vadd.f32 %v2475, %v6245
      %v6393 = vadd.f32 %v2478, %v6249
      %v6394 = vadd.f32 %v2479, %v6251
      %v6395 = vadd.f32 %v2482, %v6253
      %v6396 = vadd.f32 %v2483, %v6255
      %v6397 = vadd.f32 %v2486, %v6259
      %v6398 = vadd.f32 %v2487, %v6261
      %v6399 = vadd.f32 %v2490, %v6263
      %v6400 = vadd.f32 %v2491, %v6265
      %v6401 = vadd.f32 %v2494, %v6269
      %v6402 = vadd.f32 %v2495, %v6271
      %v6403 = vadd.f32 %v2498, %v6273
      %v6404 = vadd.f32 %v2499, %v6275
      %v6405 = vpack.c.bf16 %v6279, %v6277
      %v6406 = vpack.c.bf16 %v6280, %v6278
      %v6407 = vpack.c.bf16 %v6283, %v6281
      %v6408 = vpack.c.bf16 %v6284, %v6282
      %v6409 = vpack.c.bf16 %v6287, %v6285
      %v6410 = vpack.c.bf16 %v6288, %v6286
      %v6411 = vpack.c.bf16 %v6291, %v6289
      %v6412 = vpack.c.bf16 %v6292, %v6290
      %v6413 = vpack.c.bf16 %v6295, %v6293
      %v6414 = vpack.c.bf16 %v6296, %v6294
      %v6415 = vpack.c.bf16 %v6299, %v6297
      %v6416 = vpack.c.bf16 %v6300, %v6298
      %v6417 = vpack.c.bf16 %v6303, %v6301
      %v6418 = vpack.c.bf16 %v6304, %v6302
      %v6419 = vpack.c.bf16 %v6307, %v6305
      %v6420 = vpack.c.bf16 %v6308, %v6306
      %v6421 = vpack.c.bf16 %v6311, %v6309
      %v6422 = vpack.c.bf16 %v6312, %v6310
      %v6423 = vpack.c.bf16 %v6315, %v6313
      %v6424 = vpack.c.bf16 %v6316, %v6314
      %v6425 = vpack.c.bf16 %v6319, %v6317
      %v6426 = vpack.c.bf16 %v6320, %v6318
      %v6427 = vpack.c.bf16 %v6323, %v6321
      %v6428 = vpack.c.bf16 %v6324, %v6322
      %v6429 = vpack.c.bf16 %v6327, %v6325
      %v6430 = vpack.c.bf16 %v6328, %v6326
      %v6431 = vpack.c.bf16 %v6331, %v6329
      %v6432 = vpack.c.bf16 %v6332, %v6330
      %v6433 = vpack.c.bf16 %v6335, %v6333
      %v6434 = vpack.c.bf16 %v6336, %v6334
      %v6435 = vpack.c.bf16 %v6339, %v6337
      %v6436 = vpack.c.bf16 %v6340, %v6338
      %v6437 = vpack.c.bf16 %v6343, %v6341
      %v6438 = vpack.c.bf16 %v6344, %v6342
      %v6439 = vpack.c.bf16 %v6347, %v6345
      %v6440 = vpack.c.bf16 %v6348, %v6346
      %v6441 = vpack.c.bf16 %v6351, %v6349
      %v6442 = vpack.c.bf16 %v6352, %v6350
      %v6443 = vpack.c.bf16 %v6355, %v6353
      %v6444 = vpack.c.bf16 %v6356, %v6354
      %v6445 = vpack.c.bf16 %v6359, %v6357
      %v6446 = vpack.c.bf16 %v6360, %v6358
      %v6447 = vpack.c.bf16 %v6363, %v6361
      %v6448 = vpack.c.bf16 %v6364, %v6362
      %v6449 = vpack.c.bf16 %v6367, %v6365
      %v6450 = vpack.c.bf16 %v6368, %v6366
      %v6451 = vpack.c.bf16 %v6371, %v6369
      %v6452 = vpack.c.bf16 %v6372, %v6370
      %v6453 = vpack.c.bf16 %v6375, %v6373
      %v6454 = vpack.c.bf16 %v6376, %v6374
      %v6455 = vpack.c.bf16 %v6379, %v6377
      %v6456 = vpack.c.bf16 %v6380, %v6378
      %v6457 = vpack.c.bf16 %v6383, %v6381
      %v6458 = vpack.c.bf16 %v6384, %v6382
      %v6459 = vpack.c.bf16 %v6387, %v6385
      %v6460 = vpack.c.bf16 %v6388, %v6386
      %v6461 = vpack.c.bf16 %v6391, %v6389
      %v6462 = vpack.c.bf16 %v6392, %v6390
      %v6463 = vpack.c.bf16 %v6395, %v6393
      %v6464 = vpack.c.bf16 %v6396, %v6394
      %v6465 = vpack.c.bf16 %v6399, %v6397
      %v6466 = vpack.c.bf16 %v6400, %v6398
      %v6467 = vpack.c.bf16 %v6403, %v6401
      %v6468 = vpack.c.bf16 %v6404, %v6402
      %v6469 = vshrl.u32 %v5587, 16
      %v6470 = vpack.i.b16 %v6469, %v6469
      %v6472 = vlaneseq
      %v6473 = vshrl.u32 %v6472, 7
      %v6474 = vsub.s32 2, %v6473
      %v6475 = vrot.slane %v6470, %v6474
      %v6476 = vshrl.u32 %v5588, 16
      %v6477 = vpack.i.b16 %v6476, %v6476
      %v6479 = vlaneseq
      %v6480 = vshrl.u32 %v6479, 7
      %v6481 = vsub.s32 2, %v6480
      %v6482 = vrot.slane %v6477, %v6481
      %v6483 = vadd.bf16 %v6405, %v6475
      %v6484 = vadd.bf16 %v6406, %v6482
      %v6485 = vadd.bf16 %v6407, %v6475
      %v6486 = vadd.bf16 %v6408, %v6482
      %v6487 = vadd.bf16 %v6409, %v6475
      %v6488 = vadd.bf16 %v6410, %v6482
      %v6489 = vadd.bf16 %v6411, %v6475
      %v6490 = vadd.bf16 %v6412, %v6482
      %v6491 = vadd.bf16 %v6413, %v6475
      %v6492 = vadd.bf16 %v6414, %v6482
      %v6493 = vadd.bf16 %v6415, %v6475
      %v6494 = vadd.bf16 %v6416, %v6482
      %v6495 = vadd.bf16 %v6417, %v6475
      %v6496 = vadd.bf16 %v6418, %v6482
      %v6497 = vadd.bf16 %v6419, %v6475
      %v6498 = vadd.bf16 %v6420, %v6482
      %v6499 = vadd.bf16 %v6421, %v6475
      %v6500 = vadd.bf16 %v6422, %v6482
      %v6501 = vadd.bf16 %v6423, %v6475
      %v6502 = vadd.bf16 %v6424, %v6482
      %v6503 = vadd.bf16 %v6425, %v6475
      %v6504 = vadd.bf16 %v6426, %v6482
      %v6505 = vadd.bf16 %v6427, %v6475
      %v6506 = vadd.bf16 %v6428, %v6482
      %v6507 = vadd.bf16 %v6429, %v6475
      %v6508 = vadd.bf16 %v6430, %v6482
      %v6509 = vadd.bf16 %v6431, %v6475
      %v6510 = vadd.bf16 %v6432, %v6482
      %v6511 = vadd.bf16 %v6433, %v6475
      %v6512 = vadd.bf16 %v6434, %v6482
      %v6513 = vadd.bf16 %v6435, %v6475
      %v6514 = vadd.bf16 %v6436, %v6482
      %v6515 = vadd.bf16 %v6437, %v6475
      %v6516 = vadd.bf16 %v6438, %v6482
      %v6517 = vadd.bf16 %v6439, %v6475
      %v6518 = vadd.bf16 %v6440, %v6482
      %v6519 = vadd.bf16 %v6441, %v6475
      %v6520 = vadd.bf16 %v6442, %v6482
      %v6521 = vadd.bf16 %v6443, %v6475
      %v6522 = vadd.bf16 %v6444, %v6482
      %v6523 = vadd.bf16 %v6445, %v6475
      %v6524 = vadd.bf16 %v6446, %v6482
      %v6525 = vadd.bf16 %v6447, %v6475
      %v6526 = vadd.bf16 %v6448, %v6482
      %v6527 = vadd.bf16 %v6449, %v6475
      %v6528 = vadd.bf16 %v6450, %v6482
      %v6529 = vadd.bf16 %v6451, %v6475
      %v6530 = vadd.bf16 %v6452, %v6482
      %v6531 = vadd.bf16 %v6453, %v6475
      %v6532 = vadd.bf16 %v6454, %v6482
      %v6533 = vadd.bf16 %v6455, %v6475
      %v6534 = vadd.bf16 %v6456, %v6482
      %v6535 = vadd.bf16 %v6457, %v6475
      %v6536 = vadd.bf16 %v6458, %v6482
      %v6537 = vadd.bf16 %v6459, %v6475
      %v6538 = vadd.bf16 %v6460, %v6482
      %v6539 = vadd.bf16 %v6461, %v6475
      %v6540 = vadd.bf16 %v6462, %v6482
      %v6541 = vadd.bf16 %v6463, %v6475
      %v6542 = vadd.bf16 %v6464, %v6482
      %v6543 = vadd.bf16 %v6465, %v6475
      %v6544 = vadd.bf16 %v6466, %v6482
      %v6545 = vadd.bf16 %v6467, %v6475
      %v6546 = vadd.bf16 %v6468, %v6482
      %v6547 = vmax.bf16 %v6483, 0
      %v6548 = vmax.bf16 %v6484, 0
      %v6549 = vmax.bf16 %v6485, 0
      %v6550 = vmax.bf16 %v6486, 0
      %v6551 = vmax.bf16 %v6487, 0
      %v6552 = vmax.bf16 %v6488, 0
      %v6553 = vmax.bf16 %v6489, 0
      %v6554 = vmax.bf16 %v6490, 0
      %v6555 = vmax.bf16 %v6491, 0
      %v6556 = vmax.bf16 %v6492, 0
      %v6557 = vmax.bf16 %v6493, 0
      %v6558 = vmax.bf16 %v6494, 0
      %v6559 = vmax.bf16 %v6495, 0
      %v6560 = vmax.bf16 %v6496, 0
      %v6561 = vmax.bf16 %v6497, 0
      %v6562 = vmax.bf16 %v6498, 0
      %v6563 = vmax.bf16 %v6499, 0
      %v6564 = vmax.bf16 %v6500, 0
      %v6565 = vmax.bf16 %v6501, 0
      %v6566 = vmax.bf16 %v6502, 0
      %v6567 = vmax.bf16 %v6503, 0
      %v6568 = vmax.bf16 %v6504, 0
      %v6569 = vmax.bf16 %v6505, 0
      %v6570 = vmax.bf16 %v6506, 0
      %v6571 = vmax.bf16 %v6507, 0
      %v6572 = vmax.bf16 %v6508, 0
      %v6573 = vmax.bf16 %v6509, 0
      %v6574 = vmax.bf16 %v6510, 0
      %v6575 = vmax.bf16 %v6511, 0
      %v6576 = vmax.bf16 %v6512, 0
      %v6577 = vmax.bf16 %v6513, 0
      %v6578 = vmax.bf16 %v6514, 0
      %v6579 = vmax.bf16 %v6515, 0
      %v6580 = vmax.bf16 %v6516, 0
      %v6581 = vmax.bf16 %v6517, 0
      %v6582 = vmax.bf16 %v6518, 0
      %v6583 = vmax.bf16 %v6519, 0
      %v6584 = vmax.bf16 %v6520, 0
      %v6585 = vmax.bf16 %v6521, 0
      %v6586 = vmax.bf16 %v6522, 0
      %v6587 = vmax.bf16 %v6523, 0
      %v6588 = vmax.bf16 %v6524, 0
      %v6589 = vmax.bf16 %v6525, 0
      %v6590 = vmax.bf16 %v6526, 0
      %v6591 = vmax.bf16 %v6527, 0
      %v6592 = vmax.bf16 %v6528, 0
      %v6593 = vmax.bf16 %v6529, 0
      %v6594 = vmax.bf16 %v6530, 0
      %v6595 = vmax.bf16 %v6531, 0
      %v6596 = vmax.bf16 %v6532, 0
      %v6597 = vmax.bf16 %v6533, 0
      %v6598 = vmax.bf16 %v6534, 0
      %v6599 = vmax.bf16 %v6535, 0
      %v6600 = vmax.bf16 %v6536, 0
      %v6601 = vmax.bf16 %v6537, 0
      %v6602 = vmax.bf16 %v6538, 0
      %v6603 = vmax.bf16 %v6539, 0
      %v6604 = vmax.bf16 %v6540, 0
      %v6605 = vmax.bf16 %v6541, 0
      %v6606 = vmax.bf16 %v6542, 0
      %v6607 = vmax.bf16 %v6543, 0
      %v6608 = vmax.bf16 %v6544, 0
      %v6609 = vmax.bf16 %v6545, 0
      %v6610 = vmax.bf16 %v6546, 0
      %s6611 = scalar_lea.vmem %s2, 1280
      %v6612 = vld [vmem:[%s6611] sm:$0xff]
      %v6613 = vld [vmem:[%s6611 + $0x8] sm:$0xff]
      %v6614 = vld [vmem:[%s6611 + $0x10] sm:$0xff]
      %v6615 = vld [vmem:[%s6611 + $0x18] sm:$0xff]
      %v6616 = vld [vmem:[%s6611 + $0x20] sm:$0xff]
      %v6617 = vld [vmem:[%s6611 + $0x28] sm:$0xff]
      %v6618 = vld [vmem:[%s6611 + $0x30] sm:$0xff]
      %v6619 = vld [vmem:[%s6611 + $0x38] sm:$0xff]
      %v6620 = vld [vmem:[%s6611 + $0x40] sm:$0xff]
      %v6621 = vld [vmem:[%s6611 + $0x48] sm:$0xff]
      %v6622 = vld [vmem:[%s6611 + $0x50] sm:$0xff]
      %v6623 = vld [vmem:[%s6611 + $0x58] sm:$0xff]
      %v6624 = vld [vmem:[%s6611 + $0x60] sm:$0xff]
      %v6625 = vld [vmem:[%s6611 + $0x68] sm:$0xff]
      %v6626 = vld [vmem:[%s6611 + $0x70] sm:$0xff]
      %v6627 = vld [vmem:[%s6611 + $0x78] sm:$0xff]
      %v6628 = vld [vmem:[%s6611 + $0x80] sm:$0xff]
      %v6629 = vld [vmem:[%s6611 + $0x88] sm:$0xff]
      %v6630 = vld [vmem:[%s6611 + $0x90] sm:$0xff]
      %v6631 = vld [vmem:[%s6611 + $0x98] sm:$0xff]
      %v6632 = vld [vmem:[%s6611 + $0xa0] sm:$0xff]
      %v6633 = vld [vmem:[%s6611 + $0xa8] sm:$0xff]
      %v6634 = vld [vmem:[%s6611 + $0xb0] sm:$0xff]
      %v6635 = vld [vmem:[%s6611 + $0xb8] sm:$0xff]
      %v6636 = vld [vmem:[%s6611 + $0xc0] sm:$0xff]
      %v6637 = vld [vmem:[%s6611 + $0xc8] sm:$0xff]
      %v6638 = vld [vmem:[%s6611 + $0xd0] sm:$0xff]
      %v6639 = vld [vmem:[%s6611 + $0xd8] sm:$0xff]
      %v6640 = vld [vmem:[%s6611 + $0xe0] sm:$0xff]
      %v6641 = vld [vmem:[%s6611 + $0xe8] sm:$0xff]
      %v6642 = vld [vmem:[%s6611 + $0xf0] sm:$0xff]
      %v6643 = vld [vmem:[%s6611 + $0xf8] sm:$0xff]
      %v6676 = vunpack.c.l.b16 %v6612
      %v6677 = vunpack.c.h.b16 %v6612
      %v6678 = vunpack.c.l.b16 %v6613
      %v6679 = vunpack.c.h.b16 %v6613
      %v6680 = vunpack.c.l.b16 %v6614
      %v6681 = vunpack.c.h.b16 %v6614
      %v6682 = vunpack.c.l.b16 %v6615
      %v6683 = vunpack.c.h.b16 %v6615
      %v6684 = vunpack.c.l.b16 %v6616
      %v6685 = vunpack.c.h.b16 %v6616
      %v6686 = vunpack.c.l.b16 %v6617
      %v6687 = vunpack.c.h.b16 %v6617
      %v6688 = vunpack.c.l.b16 %v6618
      %v6689 = vunpack.c.h.b16 %v6618
      %v6690 = vunpack.c.l.b16 %v6619
      %v6691 = vunpack.c.h.b16 %v6619
      %v6692 = vunpack.c.l.b16 %v6620
      %v6693 = vunpack.c.h.b16 %v6620
      %v6694 = vunpack.c.l.b16 %v6621
      %v6695 = vunpack.c.h.b16 %v6621
      %v6696 = vunpack.c.l.b16 %v6622
      %v6697 = vunpack.c.h.b16 %v6622
      %v6698 = vunpack.c.l.b16 %v6623
      %v6699 = vunpack.c.h.b16 %v6623
      %v6700 = vunpack.c.l.b16 %v6624
      %v6701 = vunpack.c.h.b16 %v6624
      %v6702 = vunpack.c.l.b16 %v6625
      %v6703 = vunpack.c.h.b16 %v6625
      %v6704 = vunpack.c.l.b16 %v6626
      %v6705 = vunpack.c.h.b16 %v6626
      %v6706 = vunpack.c.l.b16 %v6627
      %v6707 = vunpack.c.h.b16 %v6627
      %v6708 = vunpack.c.l.b16 %v6628
      %v6709 = vunpack.c.h.b16 %v6628
      %v6710 = vunpack.c.l.b16 %v6629
      %v6711 = vunpack.c.h.b16 %v6629
      %v6712 = vunpack.c.l.b16 %v6630
      %v6713 = vunpack.c.h.b16 %v6630
      %v6714 = vunpack.c.l.b16 %v6631
      %v6715 = vunpack.c.h.b16 %v6631
      %v6716 = vunpack.c.l.b16 %v6632
      %v6717 = vunpack.c.h.b16 %v6632
      %v6718 = vunpack.c.l.b16 %v6633
      %v6719 = vunpack.c.h.b16 %v6633
      %v6720 = vunpack.c.l.b16 %v6634
      %v6721 = vunpack.c.h.b16 %v6634
      %v6722 = vunpack.c.l.b16 %v6635
      %v6723 = vunpack.c.h.b16 %v6635
      %v6724 = vunpack.c.l.b16 %v6636
      %v6725 = vunpack.c.h.b16 %v6636
      %v6726 = vunpack.c.l.b16 %v6637
      %v6727 = vunpack.c.h.b16 %v6637
      %v6728 = vunpack.c.l.b16 %v6638
      %v6729 = vunpack.c.h.b16 %v6638
      %v6730 = vunpack.c.l.b16 %v6639
      %v6731 = vunpack.c.h.b16 %v6639
      %v6732 = vunpack.c.l.b16 %v6640
      %v6733 = vunpack.c.h.b16 %v6640
      %v6734 = vunpack.c.l.b16 %v6641
      %v6735 = vunpack.c.h.b16 %v6641
      %v6736 = vunpack.c.l.b16 %v6642
      %v6737 = vunpack.c.h.b16 %v6642
      %v6738 = vunpack.c.l.b16 %v6643
      %v6739 = vunpack.c.h.b16 %v6643
      %v6740 = vpack.c.b16 %v6678, %v6676
      %v6741 = vpack.c.b16 %v6679, %v6677
      %v6742 = vpack.c.b16 %v6682, %v6680
      %v6743 = vpack.c.b16 %v6683, %v6681
      %v6744 = vpack.c.b16 %v6686, %v6684
      %v6745 = vpack.c.b16 %v6687, %v6685
      %v6746 = vpack.c.b16 %v6690, %v6688
      %v6747 = vpack.c.b16 %v6691, %v6689
      %v6748 = vpack.c.b16 %v6694, %v6692
      %v6749 = vpack.c.b16 %v6695, %v6693
      %v6750 = vpack.c.b16 %v6698, %v6696
      %v6751 = vpack.c.b16 %v6699, %v6697
      %v6752 = vpack.c.b16 %v6702, %v6700
      %v6753 = vpack.c.b16 %v6703, %v6701
      %v6754 = vpack.c.b16 %v6706, %v6704
      %v6755 = vpack.c.b16 %v6707, %v6705
      %v6756 = vpack.c.b16 %v6710, %v6708
      %v6757 = vpack.c.b16 %v6711, %v6709
      %v6758 = vpack.c.b16 %v6714, %v6712
      %v6759 = vpack.c.b16 %v6715, %v6713
      %v6760 = vpack.c.b16 %v6718, %v6716
      %v6761 = vpack.c.b16 %v6719, %v6717
      %v6762 = vpack.c.b16 %v6722, %v6720
      %v6763 = vpack.c.b16 %v6723, %v6721
      %v6764 = vpack.c.b16 %v6726, %v6724
      %v6765 = vpack.c.b16 %v6727, %v6725
      %v6766 = vpack.c.b16 %v6730, %v6728
      %v6767 = vpack.c.b16 %v6731, %v6729
      %v6768 = vpack.c.b16 %v6734, %v6732
      %v6769 = vpack.c.b16 %v6735, %v6733
      %v6770 = vpack.c.b16 %v6738, %v6736
      %v6771 = vpack.c.b16 %v6739, %v6737
      %6804 = vmatprep.subr.bf16.mxu0 %v6741
      %6805 = vmatpush1.bf16.msra.mxu0 %v6740
      %6806 = vmatprep.subr.bf16.mxu0 %v6743
      %6807 = vmatpush1.bf16.msra.mxu0 %v6742
      %6808 = vmatprep.subr.bf16.mxu0 %v6745
      %6809 = vmatpush1.bf16.msra.mxu0 %v6744
      %6810 = vmatprep.subr.bf16.mxu0 %v6747
      %6811 = vmatpush1.bf16.msra.mxu0 %v6746
      %6812 = vmatprep.subr.bf16.mxu0 %v6749
      %6813 = vmatpush1.bf16.msra.mxu0 %v6748
      %6814 = vmatprep.subr.bf16.mxu0 %v6751
      %6815 = vmatpush1.bf16.msra.mxu0 %v6750
      %6816 = vmatprep.subr.bf16.mxu0 %v6753
      %6817 = vmatpush1.bf16.msra.mxu0 %v6752
      %6818 = vmatprep.subr.bf16.mxu0 %v6755
      %6819 = vmatpush1.bf16.msra.mxu0 %v6754
      %6820 = vmatprep.subr.bf16.mxu0 %v6757
      %6821 = vmatpush1.bf16.msra.mxu0 %v6756
      %6822 = vmatprep.subr.bf16.mxu0 %v6759
      %6823 = vmatpush1.bf16.msra.mxu0 %v6758
      %6824 = vmatprep.subr.bf16.mxu0 %v6761
      %6825 = vmatpush1.bf16.msra.mxu0 %v6760
      %6826 = vmatprep.subr.bf16.mxu0 %v6763
      %6827 = vmatpush1.bf16.msra.mxu0 %v6762
      %6828 = vmatprep.subr.bf16.mxu0 %v6765
      %6829 = vmatpush1.bf16.msra.mxu0 %v6764
      %6830 = vmatprep.subr.bf16.mxu0 %v6767
      %6831 = vmatpush1.bf16.msra.mxu0 %v6766
      %6832 = vmatprep.subr.bf16.mxu0 %v6769
      %6833 = vmatpush1.bf16.msra.mxu0 %v6768
      %6834 = vmatprep.subr.bf16.mxu0 %v6771
      %6835 = vmatpush1.bf16.msra.mxu0 %v6770
      %6836 = vmatprep.mubr.bf16.mxu0 %v6548
      %6837 = vmatmul.mubr.bf16.gmra.mrb[0].mxu0 %v6547
      %v6838 = vpop.f32.mrb[0].mxu0
      %v6839 = vadd.f32 0.0, %v6838
      %v6840 = vpop.f32.mrb[0].mxu0
      %v6841 = vadd.f32 0.0, %v6840
      %v6842 = vpop.f32.mrb[0].mxu0
      %v6843 = vadd.f32 0.0, %v6842
      %v6844 = vpop.f32.mrb[0].mxu0
      %v6845 = vadd.f32 0.0, %v6844
      %6846 = vmatprep.mubr.bf16.mxu0 %v6550
      %6847 = vmatmul.mubr.bf16.gmra.mrb[0].mxu0 %v6549
      %v6848 = vpop.f32.mrb[0].mxu0
      %v6849 = vadd.f32 0.0, %v6848
      %v6850 = vpop.f32.mrb[0].mxu0
      %v6851 = vadd.f32 0.0, %v6850
      %v6852 = vpop.f32.mrb[0].mxu0
      %v6853 = vadd.f32 0.0, %v6852
      %v6854 = vpop.f32.mrb[0].mxu0
      %v6855 = vadd.f32 0.0, %v6854
      %6856 = vmatprep.mubr.bf16.mxu0 %v6552
      %6857 = vmatmul.mubr.bf16.gmra.mrb[0].mxu0 %v6551
      %v6858 = vpop.f32.mrb[0].mxu0
      %v6859 = vadd.f32 0.0, %v6858
      %v6860 = vpop.f32.mrb[0].mxu0
      %v6861 = vadd.f32 0.0, %v6860
      %v6862 = vpop.f32.mrb[0].mxu0
      %v6863 = vadd.f32 0.0, %v6862
      %v6864 = vpop.f32.mrb[0].mxu0
      %v6865 = vadd.f32 0.0, %v6864
      %6866 = vmatprep.mubr.bf16.mxu0 %v6554
      %6867 = vmatmul.mubr.bf16.gmra.mrb[0].mxu0 %v6553
      %v6868 = vpop.f32.mrb[0].mxu0
      %v6869 = vadd.f32 0.0, %v6868
      %v6870 = vpop.f32.mrb[0].mxu0
      %v6871 = vadd.f32 0.0, %v6870
      %v6872 = vpop.f32.mrb[0].mxu0
      %v6873 = vadd.f32 0.0, %v6872
      %v6874 = vpop.f32.mrb[0].mxu0
      %v6875 = vadd.f32 0.0, %v6874
      %6876 = vmatprep.mubr.bf16.mxu0 %v6556
      %6877 = vmatmul.mubr.bf16.gmra.mrb[0].mxu0 %v6555
      %v6878 = vpop.f32.mrb[0].mxu0
      %v6879 = vadd.f32 0.0, %v6878
      %v6880 = vpop.f32.mrb[0].mxu0
      %v6881 = vadd.f32 0.0, %v6880
      %v6882 = vpop.f32.mrb[0].mxu0
      %v6883 = vadd.f32 0.0, %v6882
      %v6884 = vpop.f32.mrb[0].mxu0
      %v6885 = vadd.f32 0.0, %v6884
      %6886 = vmatprep.mubr.bf16.mxu0 %v6558
      %6887 = vmatmul.mubr.bf16.gmra.mrb[0].mxu0 %v6557
      %v6888 = vpop.f32.mrb[0].mxu0
      %v6889 = vadd.f32 0.0, %v6888
      %v6890 = vpop.f32.mrb[0].mxu0
      %v6891 = vadd.f32 0.0, %v6890
      %v6892 = vpop.f32.mrb[0].mxu0
      %v6893 = vadd.f32 0.0, %v6892
      %v6894 = vpop.f32.mrb[0].mxu0
      %v6895 = vadd.f32 0.0, %v6894
      %6896 = vmatprep.mubr.bf16.mxu0 %v6560
      %6897 = vmatmul.mubr.bf16.gmra.mrb[0].mxu0 %v6559
      %v6898 = vpop.f32.mrb[0].mxu0
      %v6899 = vadd.f32 0.0, %v6898
      %v6900 = vpop.f32.mrb[0].mxu0
      %v6901 = vadd.f32 0.0, %v6900
      %v6902 = vpop.f32.mrb[0].mxu0
      %v6903 = vadd.f32 0.0, %v6902
      %v6904 = vpop.f32.mrb[0].mxu0
      %v6905 = vadd.f32 0.0, %v6904
      %6906 = vmatprep.mubr.bf16.mxu0 %v6562
      %6907 = vmatmul.mubr.bf16.gmra.mrb[0].mxu0 %v6561
      %v6908 = vpop.f32.mrb[0].mxu0
      %v6909 = vadd.f32 0.0, %v6908
      %v6910 = vpop.f32.mrb[0].mxu0
      %v6911 = vadd.f32 0.0, %v6910
      %v6912 = vpop.f32.mrb[0].mxu0
      %v6913 = vadd.f32 0.0, %v6912
      %v6914 = vpop.f32.mrb[0].mxu0
      %v6915 = vadd.f32 0.0, %v6914
      %6916 = vmatprep.mubr.bf16.mxu0 %v6564
      %6917 = vmatmul.mubr.bf16.gmra.mrb[0].mxu0 %v6563
      %v6918 = vpop.f32.mrb[0].mxu0
      %v6919 = vadd.f32 0.0, %v6918
      %v6920 = vpop.f32.mrb[0].mxu0
      %v6921 = vadd.f32 0.0, %v6920
      %v6922 = vpop.f32.mrb[0].mxu0
      %v6923 = vadd.f32 0.0, %v6922
      %v6924 = vpop.f32.mrb[0].mxu0
      %v6925 = vadd.f32 0.0, %v6924
      %6926 = vmatprep.mubr.bf16.mxu0 %v6566
      %6927 = vmatmul.mubr.bf16.gmra.mrb[0].mxu0 %v6565
      %v6928 = vpop.f32.mrb[0].mxu0
      %v6929 = vadd.f32 0.0, %v6928
      %v6930 = vpop.f32.mrb[0].mxu0
      %v6931 = vadd.f32 0.0, %v6930
      %v6932 = vpop.f32.mrb[0].mxu0
      %v6933 = vadd.f32 0.0, %v6932
      %v6934 = vpop.f32.mrb[0].mxu0
      %v6935 = vadd.f32 0.0, %v6934
      %6936 = vmatprep.mubr.bf16.mxu0 %v6568
      %6937 = vmatmul.mubr.bf16.gmra.mrb[0].mxu0 %v6567
      %v6938 = vpop.f32.mrb[0].mxu0
      %v6939 = vadd.f32 0.0, %v6938
      %v6940 = vpop.f32.mrb[0].mxu0
      %v6941 = vadd.f32 0.0, %v6940
      %v6942 = vpop.f32.mrb[0].mxu0
      %v6943 = vadd.f32 0.0, %v6942
      %v6944 = vpop.f32.mrb[0].mxu0
      %v6945 = vadd.f32 0.0, %v6944
      %6946 = vmatprep.mubr.bf16.mxu0 %v6570
      %6947 = vmatmul.mubr.bf16.gmra.mrb[0].mxu0 %v6569
      %v6948 = vpop.f32.mrb[0].mxu0
      %v6949 = vadd.f32 0.0, %v6948
      %v6950 = vpop.f32.mrb[0].mxu0
      %v6951 = vadd.f32 0.0, %v6950
      %v6952 = vpop.f32.mrb[0].mxu0
      %v6953 = vadd.f32 0.0, %v6952
      %v6954 = vpop.f32.mrb[0].mxu0
      %v6955 = vadd.f32 0.0, %v6954
      %6956 = vmatprep.mubr.bf16.mxu0 %v6572
      %6957 = vmatmul.mubr.bf16.gmra.mrb[0].mxu0 %v6571
      %v6958 = vpop.f32.mrb[0].mxu0
      %v6959 = vadd.f32 0.0, %v6958
      %v6960 = vpop.f32.mrb[0].mxu0
      %v6961 = vadd.f32 0.0, %v6960
      %v6962 = vpop.f32.mrb[0].mxu0
      %v6963 = vadd.f32 0.0, %v6962
      %v6964 = vpop.f32.mrb[0].mxu0
      %v6965 = vadd.f32 0.0, %v6964
      %6966 = vmatprep.mubr.bf16.mxu0 %v6574
      %6967 = vmatmul.mubr.bf16.gmra.mrb[0].mxu0 %v6573
      %v6968 = vpop.f32.mrb[0].mxu0
      %v6969 = vadd.f32 0.0, %v6968
      %v6970 = vpop.f32.mrb[0].mxu0
      %v6971 = vadd.f32 0.0, %v6970
      %v6972 = vpop.f32.mrb[0].mxu0
      %v6973 = vadd.f32 0.0, %v6972
      %v6974 = vpop.f32.mrb[0].mxu0
      %v6975 = vadd.f32 0.0, %v6974
      %6976 = vmatprep.mubr.bf16.mxu0 %v6576
      %6977 = vmatmul.mubr.bf16.gmra.mrb[0].mxu0 %v6575
      %v6978 = vpop.f32.mrb[0].mxu0
      %v6979 = vadd.f32 0.0, %v6978
      %v6980 = vpop.f32.mrb[0].mxu0
      %v6981 = vadd.f32 0.0, %v6980
      %v6982 = vpop.f32.mrb[0].mxu0
      %v6983 = vadd.f32 0.0, %v6982
      %v6984 = vpop.f32.mrb[0].mxu0
      %v6985 = vadd.f32 0.0, %v6984
      %6986 = vmatprep.mubr.bf16.mxu0 %v6578
      %6987 = vmatmul.mubr.bf16.gmra.mrb[0].mxu0 %v6577
      %v6988 = vpop.f32.mrb[0].mxu0
      %v6989 = vadd.f32 0.0, %v6988
      %v6990 = vpop.f32.mrb[0].mxu0
      %v6991 = vadd.f32 0.0, %v6990
      %v6992 = vpop.f32.mrb[0].mxu0
      %v6993 = vadd.f32 0.0, %v6992
      %v6994 = vpop.f32.mrb[0].mxu0
      %v6995 = vadd.f32 0.0, %v6994
      %6996 = vmatprep.mubr.bf16.mxu0 %v6580
      %6997 = vmatmul.mubr.bf16.gmra.mrb[0].mxu0 %v6579
      %v6998 = vpop.f32.mrb[0].mxu0
      %v6999 = vadd.f32 0.0, %v6998
      %v7000 = vpop.f32.mrb[0].mxu0
      %v7001 = vadd.f32 0.0, %v7000
      %v7002 = vpop.f32.mrb[0].mxu0
      %v7003 = vadd.f32 0.0, %v7002
      %v7004 = vpop.f32.mrb[0].mxu0
      %v7005 = vadd.f32 0.0, %v7004
      %7006 = vmatprep.mubr.bf16.mxu0 %v6582
      %7007 = vmatmul.mubr.bf16.gmra.mrb[0].mxu0 %v6581
      %v7008 = vpop.f32.mrb[0].mxu0
      %v7009 = vadd.f32 0.0, %v7008
      %v7010 = vpop.f32.mrb[0].mxu0
      %v7011 = vadd.f32 0.0, %v7010
      %v7012 = vpop.f32.mrb[0].mxu0
      %v7013 = vadd.f32 0.0, %v7012
      %v7014 = vpop.f32.mrb[0].mxu0
      %v7015 = vadd.f32 0.0, %v7014
      %7016 = vmatprep.mubr.bf16.mxu0 %v6584
      %7017 = vmatmul.mubr.bf16.gmra.mrb[0].mxu0 %v6583
      %v7018 = vpop.f32.mrb[0].mxu0
      %v7019 = vadd.f32 0.0, %v7018
      %v7020 = vpop.f32.mrb[0].mxu0
      %v7021 = vadd.f32 0.0, %v7020
      %v7022 = vpop.f32.mrb[0].mxu0
      %v7023 = vadd.f32 0.0, %v7022
      %v7024 = vpop.f32.mrb[0].mxu0
      %v7025 = vadd.f32 0.0, %v7024
      %7026 = vmatprep.mubr.bf16.mxu0 %v6586
      %7027 = vmatmul.mubr.bf16.gmra.mrb[0].mxu0 %v6585
      %v7028 = vpop.f32.mrb[0].mxu0
      %v7029 = vadd.f32 0.0, %v7028
      %v7030 = vpop.f32.mrb[0].mxu0
      %v7031 = vadd.f32 0.0, %v7030
      %v7032 = vpop.f32.mrb[0].mxu0
      %v7033 = vadd.f32 0.0, %v7032
      %v7034 = vpop.f32.mrb[0].mxu0
      %v7035 = vadd.f32 0.0, %v7034
      %7036 = vmatprep.mubr.bf16.mxu0 %v6588
      %7037 = vmatmul.mubr.bf16.gmra.mrb[0].mxu0 %v6587
      %v7038 = vpop.f32.mrb[0].mxu0
      %v7039 = vadd.f32 0.0, %v7038
      %v7040 = vpop.f32.mrb[0].mxu0
      %v7041 = vadd.f32 0.0, %v7040
      %v7042 = vpop.f32.mrb[0].mxu0
      %v7043 = vadd.f32 0.0, %v7042
      %v7044 = vpop.f32.mrb[0].mxu0
      %v7045 = vadd.f32 0.0, %v7044
      %7046 = vmatprep.mubr.bf16.mxu0 %v6590
      %7047 = vmatmul.mubr.bf16.gmra.mrb[0].mxu0 %v6589
      %v7048 = vpop.f32.mrb[0].mxu0
      %v7049 = vadd.f32 0.0, %v7048
      %v7050 = vpop.f32.mrb[0].mxu0
      %v7051 = vadd.f32 0.0, %v7050
      %v7052 = vpop.f32.mrb[0].mxu0
      %v7053 = vadd.f32 0.0, %v7052
      %v7054 = vpop.f32.mrb[0].mxu0
      %v7055 = vadd.f32 0.0, %v7054
      %7056 = vmatprep.mubr.bf16.mxu0 %v6592
      %7057 = vmatmul.mubr.bf16.gmra.mrb[0].mxu0 %v6591
      %v7058 = vpop.f32.mrb[0].mxu0
      %v7059 = vadd.f32 0.0, %v7058
      %v7060 = vpop.f32.mrb[0].mxu0
      %v7061 = vadd.f32 0.0, %v7060
      %v7062 = vpop.f32.mrb[0].mxu0
      %v7063 = vadd.f32 0.0, %v7062
      %v7064 = vpop.f32.mrb[0].mxu0
      %v7065 = vadd.f32 0.0, %v7064
      %7066 = vmatprep.mubr.bf16.mxu0 %v6594
      %7067 = vmatmul.mubr.bf16.gmra.mrb[0].mxu0 %v6593
      %v7068 = vpop.f32.mrb[0].mxu0
      %v7069 = vadd.f32 0.0, %v7068
      %v7070 = vpop.f32.mrb[0].mxu0
      %v7071 = vadd.f32 0.0, %v7070
      %v7072 = vpop.f32.mrb[0].mxu0
      %v7073 = vadd.f32 0.0, %v7072
      %v7074 = vpop.f32.mrb[0].mxu0
      %v7075 = vadd.f32 0.0, %v7074
      %7076 = vmatprep.mubr.bf16.mxu0 %v6596
      %7077 = vmatmul.mubr.bf16.gmra.mrb[0].mxu0 %v6595
      %v7078 = vpop.f32.mrb[0].mxu0
      %v7079 = vadd.f32 0.0, %v7078
      %v7080 = vpop.f32.mrb[0].mxu0
      %v7081 = vadd.f32 0.0, %v7080
      %v7082 = vpop.f32.mrb[0].mxu0
      %v7083 = vadd.f32 0.0, %v7082
      %v7084 = vpop.f32.mrb[0].mxu0
      %v7085 = vadd.f32 0.0, %v7084
      %7086 = vmatprep.mubr.bf16.mxu0 %v6598
      %7087 = vmatmul.mubr.bf16.gmra.mrb[0].mxu0 %v6597
      %v7088 = vpop.f32.mrb[0].mxu0
      %v7089 = vadd.f32 0.0, %v7088
      %v7090 = vpop.f32.mrb[0].mxu0
      %v7091 = vadd.f32 0.0, %v7090
      %v7092 = vpop.f32.mrb[0].mxu0
      %v7093 = vadd.f32 0.0, %v7092
      %v7094 = vpop.f32.mrb[0].mxu0
      %v7095 = vadd.f32 0.0, %v7094
      %7096 = vmatprep.mubr.bf16.mxu0 %v6600
      %7097 = vmatmul.mubr.bf16.gmra.mrb[0].mxu0 %v6599
      %v7098 = vpop.f32.mrb[0].mxu0
      %v7099 = vadd.f32 0.0, %v7098
      %v7100 = vpop.f32.mrb[0].mxu0
      %v7101 = vadd.f32 0.0, %v7100
      %v7102 = vpop.f32.mrb[0].mxu0
      %v7103 = vadd.f32 0.0, %v7102
      %v7104 = vpop.f32.mrb[0].mxu0
      %v7105 = vadd.f32 0.0, %v7104
      %7106 = vmatprep.mubr.bf16.mxu0 %v6602
      %7107 = vmatmul.mubr.bf16.gmra.mrb[0].mxu0 %v6601
      %v7108 = vpop.f32.mrb[0].mxu0
      %v7109 = vadd.f32 0.0, %v7108
      %v7110 = vpop.f32.mrb[0].mxu0
      %v7111 = vadd.f32 0.0, %v7110
      %v7112 = vpop.f32.mrb[0].mxu0
      %v7113 = vadd.f32 0.0, %v7112
      %v7114 = vpop.f32.mrb[0].mxu0
      %v7115 = vadd.f32 0.0, %v7114
      %7116 = vmatprep.mubr.bf16.mxu0 %v6604
      %7117 = vmatmul.mubr.bf16.gmra.mrb[0].mxu0 %v6603
      %v7118 = vpop.f32.mrb[0].mxu0
      %v7119 = vadd.f32 0.0, %v7118
      %v7120 = vpop.f32.mrb[0].mxu0
      %v7121 = vadd.f32 0.0, %v7120
      %v7122 = vpop.f32.mrb[0].mxu0
      %v7123 = vadd.f32 0.0, %v7122
      %v7124 = vpop.f32.mrb[0].mxu0
      %v7125 = vadd.f32 0.0, %v7124
      %7126 = vmatprep.mubr.bf16.mxu0 %v6606
      %7127 = vmatmul.mubr.bf16.gmra.mrb[0].mxu0 %v6605
      %v7128 = vpop.f32.mrb[0].mxu0
      %v7129 = vadd.f32 0.0, %v7128
      %v7130 = vpop.f32.mrb[0].mxu0
      %v7131 = vadd.f32 0.0, %v7130
      %v7132 = vpop.f32.mrb[0].mxu0
      %v7133 = vadd.f32 0.0, %v7132
      %v7134 = vpop.f32.mrb[0].mxu0
      %v7135 = vadd.f32 0.0, %v7134
      %7136 = vmatprep.mubr.bf16.mxu0 %v6608
      %7137 = vmatmul.mubr.bf16.gmra.mrb[0].mxu0 %v6607
      %v7138 = vpop.f32.mrb[0].mxu0
      %v7139 = vadd.f32 0.0, %v7138
      %v7140 = vpop.f32.mrb[0].mxu0
      %v7141 = vadd.f32 0.0, %v7140
      %v7142 = vpop.f32.mrb[0].mxu0
      %v7143 = vadd.f32 0.0, %v7142
      %v7144 = vpop.f32.mrb[0].mxu0
      %v7145 = vadd.f32 0.0, %v7144
      %7146 = vmatprep.mubr.bf16.mxu0 %v6610
      %7147 = vmatmul.mubr.bf16.gmra.mrb[0].mxu0 %v6609
      %v7148 = vpop.f32.mrb[0].mxu0
      %v7149 = vadd.f32 0.0, %v7148
      %v7150 = vpop.f32.mrb[0].mxu0
      %v7151 = vadd.f32 0.0, %v7150
      %v7152 = vpop.f32.mrb[0].mxu0
      %v7153 = vadd.f32 0.0, %v7152
      %v7154 = vpop.f32.mrb[0].mxu0
      %v7155 = vadd.f32 0.0, %v7154
      %7156 = vdwg.mxu0
      %v7157 = vpack.c.bf16 %v6843, %v6839
      %v7158 = vpack.c.bf16 %v6845, %v6841
      %v7159 = vpack.c.bf16 %v6853, %v6849
      %v7160 = vpack.c.bf16 %v6855, %v6851
      %v7161 = vpack.c.bf16 %v6863, %v6859
      %v7162 = vpack.c.bf16 %v6865, %v6861
      %v7163 = vpack.c.bf16 %v6873, %v6869
      %v7164 = vpack.c.bf16 %v6875, %v6871
      %v7165 = vpack.c.bf16 %v6883, %v6879
      %v7166 = vpack.c.bf16 %v6885, %v6881
      %v7167 = vpack.c.bf16 %v6893, %v6889
      %v7168 = vpack.c.bf16 %v6895, %v6891
      %v7169 = vpack.c.bf16 %v6903, %v6899
      %v7170 = vpack.c.bf16 %v6905, %v6901
      %v7171 = vpack.c.bf16 %v6913, %v6909
      %v7172 = vpack.c.bf16 %v6915, %v6911
      %v7173 = vpack.c.bf16 %v6923, %v6919
      %v7174 = vpack.c.bf16 %v6925, %v6921
      %v7175 = vpack.c.bf16 %v6933, %v6929
      %v7176 = vpack.c.bf16 %v6935, %v6931
      %v7177 = vpack.c.bf16 %v6943, %v6939
      %v7178 = vpack.c.bf16 %v6945, %v6941
      %v7179 = vpack.c.bf16 %v6953, %v6949
      %v7180 = vpack.c.bf16 %v6955, %v6951
      %v7181 = vpack.c.bf16 %v6963, %v6959
      %v7182 = vpack.c.bf16 %v6965, %v6961
      %v7183 = vpack.c.bf16 %v6973, %v6969
      %v7184 = vpack.c.bf16 %v6975, %v6971
      %v7185 = vpack.c.bf16 %v6983, %v6979
      %v7186 = vpack.c.bf16 %v6985, %v6981
      %v7187 = vpack.c.bf16 %v6993, %v6989
      %v7188 = vpack.c.bf16 %v6995, %v6991
      %v7189 = vpack.c.bf16 %v7003, %v6999
      %v7190 = vpack.c.bf16 %v7005, %v7001
      %v7191 = vpack.c.bf16 %v7013, %v7009
      %v7192 = vpack.c.bf16 %v7015, %v7011
      %v7193 = vpack.c.bf16 %v7023, %v7019
      %v7194 = vpack.c.bf16 %v7025, %v7021
      %v7195 = vpack.c.bf16 %v7033, %v7029
      %v7196 = vpack.c.bf16 %v7035, %v7031
      %v7197 = vpack.c.bf16 %v7043, %v7039
      %v7198 = vpack.c.bf16 %v7045, %v7041
      %v7199 = vpack.c.bf16 %v7053, %v7049
      %v7200 = vpack.c.bf16 %v7055, %v7051
      %v7201 = vpack.c.bf16 %v7063, %v7059
      %v7202 = vpack.c.bf16 %v7065, %v7061
      %v7203 = vpack.c.bf16 %v7073, %v7069
      %v7204 = vpack.c.bf16 %v7075, %v7071
      %v7205 = vpack.c.bf16 %v7083, %v7079
      %v7206 = vpack.c.bf16 %v7085, %v7081
      %v7207 = vpack.c.bf16 %v7093, %v7089
      %v7208 = vpack.c.bf16 %v7095, %v7091
      %v7209 = vpack.c.bf16 %v7103, %v7099
      %v7210 = vpack.c.bf16 %v7105, %v7101
      %v7211 = vpack.c.bf16 %v7113, %v7109
      %v7212 = vpack.c.bf16 %v7115, %v7111
      %v7213 = vpack.c.bf16 %v7123, %v7119
      %v7214 = vpack.c.bf16 %v7125, %v7121
      %v7215 = vpack.c.bf16 %v7133, %v7129
      %v7216 = vpack.c.bf16 %v7135, %v7131
      %v7217 = vpack.c.bf16 %v7143, %v7139
      %v7218 = vpack.c.bf16 %v7145, %v7141
      %v7219 = vpack.c.bf16 %v7153, %v7149
      %v7220 = vpack.c.bf16 %v7155, %v7151
      %v7221 = vld [vmem:[%s3] sm:$0x88]
      %v7223 = vunpack.c.l.b16 %v7221
      %v7224 = vunpack.c.h.b16 %v7221
      %v7225 = vpack.c.b16 %v7223, %v7223
      %v7226 = vpack.c.b16 %v7224, %v7224
      %v7228 = vpack.i.b16 %v7225, %v7225
      %v7230 = vlaneseq
      %v7231 = vshrl.u32 %v7230, 7
      %v7232 = vsub.s32 3, %v7231
      %v7233 = vrot.slane %v7228, %v7232
      %v7235 = vpack.i.b16 %v7226, %v7226
      %v7237 = vlaneseq
      %v7238 = vshrl.u32 %v7237, 7
      %v7239 = vsub.s32 3, %v7238
      %v7240 = vrot.slane %v7235, %v7239
      %v7241 = vadd.bf16 %v7157, %v7233
      %v7242 = vadd.bf16 %v7158, %v7240
      %v7243 = vadd.bf16 %v7159, %v7233
      %v7244 = vadd.bf16 %v7160, %v7240
      %v7245 = vadd.bf16 %v7161, %v7233
      %v7246 = vadd.bf16 %v7162, %v7240
      %v7247 = vadd.bf16 %v7163, %v7233
      %v7248 = vadd.bf16 %v7164, %v7240
      %v7249 = vadd.bf16 %v7165, %v7233
      %v7250 = vadd.bf16 %v7166, %v7240
      %v7251 = vadd.bf16 %v7167, %v7233
      %v7252 = vadd.bf16 %v7168, %v7240
      %v7253 = vadd.bf16 %v7169, %v7233
      %v7254 = vadd.bf16 %v7170, %v7240
      %v7255 = vadd.bf16 %v7171, %v7233
      %v7256 = vadd.bf16 %v7172, %v7240
      %v7257 = vadd.bf16 %v7173, %v7233
      %v7258 = vadd.bf16 %v7174, %v7240
      %v7259 = vadd.bf16 %v7175, %v7233
      %v7260 = vadd.bf16 %v7176, %v7240
      %v7261 = vadd.bf16 %v7177, %v7233
      %v7262 = vadd.bf16 %v7178, %v7240
      %v7263 = vadd.bf16 %v7179, %v7233
      %v7264 = vadd.bf16 %v7180, %v7240
      %v7265 = vadd.bf16 %v7181, %v7233
      %v7266 = vadd.bf16 %v7182, %v7240
      %v7267 = vadd.bf16 %v7183, %v7233
      %v7268 = vadd.bf16 %v7184, %v7240
      %v7269 = vadd.bf16 %v7185, %v7233
      %v7270 = vadd.bf16 %v7186, %v7240
      %v7271 = vadd.bf16 %v7187, %v7233
      %v7272 = vadd.bf16 %v7188, %v7240
      %v7273 = vadd.bf16 %v7189, %v7233
      %v7274 = vadd.bf16 %v7190, %v7240
      %v7275 = vadd.bf16 %v7191, %v7233
      %v7276 = vadd.bf16 %v7192, %v7240
      %v7277 = vadd.bf16 %v7193, %v7233
      %v7278 = vadd.bf16 %v7194, %v7240
      %v7279 = vadd.bf16 %v7195, %v7233
      %v7280 = vadd.bf16 %v7196, %v7240
      %v7281 = vadd.bf16 %v7197, %v7233
      %v7282 = vadd.bf16 %v7198, %v7240
      %v7283 = vadd.bf16 %v7199, %v7233
      %v7284 = vadd.bf16 %v7200, %v7240
      %v7285 = vadd.bf16 %v7201, %v7233
      %v7286 = vadd.bf16 %v7202, %v7240
      %v7287 = vadd.bf16 %v7203, %v7233
      %v7288 = vadd.bf16 %v7204, %v7240
      %v7289 = vadd.bf16 %v7205, %v7233
      %v7290 = vadd.bf16 %v7206, %v7240
      %v7291 = vadd.bf16 %v7207, %v7233
      %v7292 = vadd.bf16 %v7208, %v7240
      %v7293 = vadd.bf16 %v7209, %v7233
      %v7294 = vadd.bf16 %v7210, %v7240
      %v7295 = vadd.bf16 %v7211, %v7233
      %v7296 = vadd.bf16 %v7212, %v7240
      %v7297 = vadd.bf16 %v7213, %v7233
      %v7298 = vadd.bf16 %v7214, %v7240
      %v7299 = vadd.bf16 %v7215, %v7233
      %v7300 = vadd.bf16 %v7216, %v7240
      %v7301 = vadd.bf16 %v7217, %v7233
      %v7302 = vadd.bf16 %v7218, %v7240
      %v7303 = vadd.bf16 %v7219, %v7233
      %v7304 = vadd.bf16 %v7220, %v7240
      %v7305 = vmax.bf16 %v7241, 0
      %v7306 = vmax.bf16 %v7242, 0
      %v7307 = vmax.bf16 %v7243, 0
      %v7308 = vmax.bf16 %v7244, 0
      %v7309 = vmax.bf16 %v7245, 0
      %v7310 = vmax.bf16 %v7246, 0
      %v7311 = vmax.bf16 %v7247, 0
      %v7312 = vmax.bf16 %v7248, 0
      %v7313 = vmax.bf16 %v7249, 0
      %v7314 = vmax.bf16 %v7250, 0
      %v7315 = vmax.bf16 %v7251, 0
      %v7316 = vmax.bf16 %v7252, 0
      %v7317 = vmax.bf16 %v7253, 0
      %v7318 = vmax.bf16 %v7254, 0
      %v7319 = vmax.bf16 %v7255, 0
      %v7320 = vmax.bf16 %v7256, 0
      %v7321 = vmax.bf16 %v7257, 0
      %v7322 = vmax.bf16 %v7258, 0
      %v7323 = vmax.bf16 %v7259, 0
      %v7324 = vmax.bf16 %v7260, 0
      %v7325 = vmax.bf16 %v7261, 0
      %v7326 = vmax.bf16 %v7262, 0
      %v7327 = vmax.bf16 %v7263, 0
      %v7328 = vmax.bf16 %v7264, 0
      %v7329 = vmax.bf16 %v7265, 0
      %v7330 = vmax.bf16 %v7266, 0
      %v7331 = vmax.bf16 %v7267, 0
      %v7332 = vmax.bf16 %v7268, 0
      %v7333 = vmax.bf16 %v7269, 0
      %v7334 = vmax.bf16 %v7270, 0
      %v7335 = vmax.bf16 %v7271, 0
      %v7336 = vmax.bf16 %v7272, 0
      %v7337 = vmax.bf16 %v7273, 0
      %v7338 = vmax.bf16 %v7274, 0
      %v7339 = vmax.bf16 %v7275, 0
      %v7340 = vmax.bf16 %v7276, 0
      %v7341 = vmax.bf16 %v7277, 0
      %v7342 = vmax.bf16 %v7278, 0
      %v7343 = vmax.bf16 %v7279, 0
      %v7344 = vmax.bf16 %v7280, 0
      %v7345 = vmax.bf16 %v7281, 0
      %v7346 = vmax.bf16 %v7282, 0
      %v7347 = vmax.bf16 %v7283, 0
      %v7348 = vmax.bf16 %v7284, 0
      %v7349 = vmax.bf16 %v7285, 0
      %v7350 = vmax.bf16 %v7286, 0
      %v7351 = vmax.bf16 %v7287, 0
      %v7352 = vmax.bf16 %v7288, 0
      %v7353 = vmax.bf16 %v7289, 0
      %v7354 = vmax.bf16 %v7290, 0
      %v7355 = vmax.bf16 %v7291, 0
      %v7356 = vmax.bf16 %v7292, 0
      %v7357 = vmax.bf16 %v7293, 0
      %v7358 = vmax.bf16 %v7294, 0
      %v7359 = vmax.bf16 %v7295, 0
      %v7360 = vmax.bf16 %v7296, 0
      %v7361 = vmax.bf16 %v7297, 0
      %v7362 = vmax.bf16 %v7298, 0
      %v7363 = vmax.bf16 %v7299, 0
      %v7364 = vmax.bf16 %v7300, 0
      %v7365 = vmax.bf16 %v7301, 0
      %v7366 = vmax.bf16 %v7302, 0
      %v7367 = vmax.bf16 %v7303, 0
      %v7368 = vmax.bf16 %v7304, 0
      %s7369 = scalar_lea.vmem %s2, 1536
      %v7370 = vld [vmem:[%s7369] sm:$0xff]
      %v7371 = vld [vmem:[%s7369 + $0x8] sm:$0xff]
      %v7372 = vld [vmem:[%s7369 + $0x10] sm:$0xff]
      %v7373 = vld [vmem:[%s7369 + $0x18] sm:$0xff]
      %v7374 = vld [vmem:[%s7369 + $0x20] sm:$0xff]
      %v7375 = vld [vmem:[%s7369 + $0x28] sm:$0xff]
      %v7376 = vld [vmem:[%s7369 + $0x30] sm:$0xff]
      %v7377 = vld [vmem:[%s7369 + $0x38] sm:$0xff]
      %v7378 = vld [vmem:[%s7369 + $0x40] sm:$0xff]
      %v7379 = vld [vmem:[%s7369 + $0x48] sm:$0xff]
      %v7380 = vld [vmem:[%s7369 + $0x50] sm:$0xff]
      %v7381 = vld [vmem:[%s7369 + $0x58] sm:$0xff]
      %v7382 = vld [vmem:[%s7369 + $0x60] sm:$0xff]
      %v7383 = vld [vmem:[%s7369 + $0x68] sm:$0xff]
      %v7384 = vld [vmem:[%s7369 + $0x70] sm:$0xff]
      %v7385 = vld [vmem:[%s7369 + $0x78] sm:$0xff]
      %v7386 = vld [vmem:[%s7369 + $0x80] sm:$0xff]
      %v7387 = vld [vmem:[%s7369 + $0x88] sm:$0xff]
      %v7388 = vld [vmem:[%s7369 + $0x90] sm:$0xff]
      %v7389 = vld [vmem:[%s7369 + $0x98] sm:$0xff]
      %v7390 = vld [vmem:[%s7369 + $0xa0] sm:$0xff]
      %v7391 = vld [vmem:[%s7369 + $0xa8] sm:$0xff]
      %v7392 = vld [vmem:[%s7369 + $0xb0] sm:$0xff]
      %v7393 = vld [vmem:[%s7369 + $0xb8] sm:$0xff]
      %v7394 = vld [vmem:[%s7369 + $0xc0] sm:$0xff]
      %v7395 = vld [vmem:[%s7369 + $0xc8] sm:$0xff]
      %v7396 = vld [vmem:[%s7369 + $0xd0] sm:$0xff]
      %v7397 = vld [vmem:[%s7369 + $0xd8] sm:$0xff]
      %v7398 = vld [vmem:[%s7369 + $0xe0] sm:$0xff]
      %v7399 = vld [vmem:[%s7369 + $0xe8] sm:$0xff]
      %v7400 = vld [vmem:[%s7369 + $0xf0] sm:$0xff]
      %v7401 = vld [vmem:[%s7369 + $0xf8] sm:$0xff]
      %v7434 = vunpack.c.l.b16 %v7370
      %v7435 = vunpack.c.h.b16 %v7370
      %v7436 = vunpack.c.l.b16 %v7371
      %v7437 = vunpack.c.h.b16 %v7371
      %v7438 = vunpack.c.l.b16 %v7372
      %v7439 = vunpack.c.h.b16 %v7372
      %v7440 = vunpack.c.l.b16 %v7373
      %v7441 = vunpack.c.h.b16 %v7373
      %v7442 = vunpack.c.l.b16 %v7374
      %v7443 = vunpack.c.h.b16 %v7374
      %v7444 = vunpack.c.l.b16 %v7375
      %v7445 = vunpack.c.h.b16 %v7375
      %v7446 = vunpack.c.l.b16 %v7376
      %v7447 = vunpack.c.h.b16 %v7376
      %v7448 = vunpack.c.l.b16 %v7377
      %v7449 = vunpack.c.h.b16 %v7377
      %v7450 = vunpack.c.l.b16 %v7378
      %v7451 = vunpack.c.h.b16 %v7378
      %v7452 = vunpack.c.l.b16 %v7379
      %v7453 = vunpack.c.h.b16 %v7379
      %v7454 = vunpack.c.l.b16 %v7380
      %v7455 = vunpack.c.h.b16 %v7380
      %v7456 = vunpack.c.l.b16 %v7381
      %v7457 = vunpack.c.h.b16 %v7381
      %v7458 = vunpack.c.l.b16 %v7382
      %v7459 = vunpack.c.h.b16 %v7382
      %v7460 = vunpack.c.l.b16 %v7383
      %v7461 = vunpack.c.h.b16 %v7383
      %v7462 = vunpack.c.l.b16 %v7384
      %v7463 = vunpack.c.h.b16 %v7384
      %v7464 = vunpack.c.l.b16 %v7385
      %v7465 = vunpack.c.h.b16 %v7385
      %v7466 = vunpack.c.l.b16 %v7386
      %v7467 = vunpack.c.h.b16 %v7386
      %v7468 = vunpack.c.l.b16 %v7387
      %v7469 = vunpack.c.h.b16 %v7387
      %v7470 = vunpack.c.l.b16 %v7388
      %v7471 = vunpack.c.h.b16 %v7388
      %v7472 = vunpack.c.l.b16 %v7389
      %v7473 = vunpack.c.h.b16 %v7389
      %v7474 = vunpack.c.l.b16 %v7390
      %v7475 = vunpack.c.h.b16 %v7390
      %v7476 = vunpack.c.l.b16 %v7391
      %v7477 = vunpack.c.h.b16 %v7391
      %v7478 = vunpack.c.l.b16 %v7392
      %v7479 = vunpack.c.h.b16 %v7392
      %v7480 = vunpack.c.l.b16 %v7393
      %v7481 = vunpack.c.h.b16 %v7393
      %v7482 = vunpack.c.l.b16 %v7394
      %v7483 = vunpack.c.h.b16 %v7394
      %v7484 = vunpack.c.l.b16 %v7395
      %v7485 = vunpack.c.h.b16 %v7395
      %v7486 = vunpack.c.l.b16 %v7396
      %v7487 = vunpack.c.h.b16 %v7396
      %v7488 = vunpack.c.l.b16 %v7397
      %v7489 = vunpack.c.h.b16 %v7397
      %v7490 = vunpack.c.l.b16 %v7398
      %v7491 = vunpack.c.h.b16 %v7398
      %v7492 = vunpack.c.l.b16 %v7399
      %v7493 = vunpack.c.h.b16 %v7399
      %v7494 = vunpack.c.l.b16 %v7400
      %v7495 = vunpack.c.h.b16 %v7400
      %v7496 = vunpack.c.l.b16 %v7401
      %v7497 = vunpack.c.h.b16 %v7401
      %v7498 = vpack.c.b16 %v7436, %v7434
      %v7499 = vpack.c.b16 %v7437, %v7435
      %v7500 = vpack.c.b16 %v7440, %v7438
      %v7501 = vpack.c.b16 %v7441, %v7439
      %v7502 = vpack.c.b16 %v7444, %v7442
      %v7503 = vpack.c.b16 %v7445, %v7443
      %v7504 = vpack.c.b16 %v7448, %v7446
      %v7505 = vpack.c.b16 %v7449, %v7447
      %v7506 = vpack.c.b16 %v7452, %v7450
      %v7507 = vpack.c.b16 %v7453, %v7451
      %v7508 = vpack.c.b16 %v7456, %v7454
      %v7509 = vpack.c.b16 %v7457, %v7455
      %v7510 = vpack.c.b16 %v7460, %v7458
      %v7511 = vpack.c.b16 %v7461, %v7459
      %v7512 = vpack.c.b16 %v7464, %v7462
      %v7513 = vpack.c.b16 %v7465, %v7463
      %v7514 = vpack.c.b16 %v7468, %v7466
      %v7515 = vpack.c.b16 %v7469, %v7467
      %v7516 = vpack.c.b16 %v7472, %v7470
      %v7517 = vpack.c.b16 %v7473, %v7471
      %v7518 = vpack.c.b16 %v7476, %v7474
      %v7519 = vpack.c.b16 %v7477, %v7475
      %v7520 = vpack.c.b16 %v7480, %v7478
      %v7521 = vpack.c.b16 %v7481, %v7479
      %v7522 = vpack.c.b16 %v7484, %v7482
      %v7523 = vpack.c.b16 %v7485, %v7483
      %v7524 = vpack.c.b16 %v7488, %v7486
      %v7525 = vpack.c.b16 %v7489, %v7487
      %v7526 = vpack.c.b16 %v7492, %v7490
      %v7527 = vpack.c.b16 %v7493, %v7491
      %v7528 = vpack.c.b16 %v7496, %v7494
      %v7529 = vpack.c.b16 %v7497, %v7495
      %7562 = vmatprep.subr.bf16.mxu0 %v7499
      %7563 = vmatpush1.bf16.msra.mxu0 %v7498
      %7564 = vmatprep.subr.bf16.mxu0 %v7501
      %7565 = vmatpush1.bf16.msra.mxu0 %v7500
      %7566 = vmatprep.subr.bf16.mxu0 %v7503
      %7567 = vmatpush1.bf16.msra.mxu0 %v7502
      %7568 = vmatprep.subr.bf16.mxu0 %v7505
      %7569 = vmatpush1.bf16.msra.mxu0 %v7504
      %7570 = vmatprep.subr.bf16.mxu0 %v7507
      %7571 = vmatpush1.bf16.msra.mxu0 %v7506
      %7572 = vmatprep.subr.bf16.mxu0 %v7509
      %7573 = vmatpush1.bf16.msra.mxu0 %v7508
      %7574 = vmatprep.subr.bf16.mxu0 %v7511
      %7575 = vmatpush1.bf16.msra.mxu0 %v7510
      %7576 = vmatprep.subr.bf16.mxu0 %v7513
      %7577 = vmatpush1.bf16.msra.mxu0 %v7512
      %7578 = vmatprep.subr.bf16.mxu0 %v7515
      %7579 = vmatpush1.bf16.msra.mxu0 %v7514
      %7580 = vmatprep.subr.bf16.mxu0 %v7517
      %7581 = vmatpush1.bf16.msra.mxu0 %v7516
      %7582 = vmatprep.subr.bf16.mxu0 %v7519
      %7583 = vmatpush1.bf16.msra.mxu0 %v7518
      %7584 = vmatprep.subr.bf16.mxu0 %v7521
      %7585 = vmatpush1.bf16.msra.mxu0 %v7520
      %7586 = vmatprep.subr.bf16.mxu0 %v7523
      %7587 = vmatpush1.bf16.msra.mxu0 %v7522
      %7588 = vmatprep.subr.bf16.mxu0 %v7525
      %7589 = vmatpush1.bf16.msra.mxu0 %v7524
      %7590 = vmatprep.subr.bf16.mxu0 %v7527
      %7591 = vmatpush1.bf16.msra.mxu0 %v7526
      %7592 = vmatprep.subr.bf16.mxu0 %v7529
      %7593 = vmatpush1.bf16.msra.mxu0 %v7528
      %7594 = vmatprep.mubr.bf16.mxu0 %v7306
      %7595 = vmatmul.mubr.bf16.gmra.mrb[0].mxu0 %v7305
      %v7596 = vpop.f32.mrb[0].mxu0
      %v7597 = vadd.f32 0.0, %v7596
      %v7598 = vpop.f32.mrb[0].mxu0
      %v7599 = vadd.f32 0.0, %v7598
      %v7600 = vpop.f32.mrb[0].mxu0
      %v7601 = vadd.f32 0.0, %v7600
      %v7602 = vpop.f32.mrb[0].mxu0
      %v7603 = vadd.f32 0.0, %v7602
      %7604 = vmatprep.mubr.bf16.mxu0 %v7308
      %7605 = vmatmul.mubr.bf16.gmra.mrb[0].mxu0 %v7307
      %v7606 = vpop.f32.mrb[0].mxu0
      %v7607 = vadd.f32 0.0, %v7606
      %v7608 = vpop.f32.mrb[0].mxu0
      %v7609 = vadd.f32 0.0, %v7608
      %v7610 = vpop.f32.mrb[0].mxu0
      %v7611 = vadd.f32 0.0, %v7610
      %v7612 = vpop.f32.mrb[0].mxu0
      %v7613 = vadd.f32 0.0, %v7612
      %7614 = vmatprep.mubr.bf16.mxu0 %v7310
      %7615 = vmatmul.mubr.bf16.gmra.mrb[0].mxu0 %v7309
      %v7616 = vpop.f32.mrb[0].mxu0
      %v7617 = vadd.f32 0.0, %v7616
      %v7618 = vpop.f32.mrb[0].mxu0
      %v7619 = vadd.f32 0.0, %v7618
      %v7620 = vpop.f32.mrb[0].mxu0
      %v7621 = vadd.f32 0.0, %v7620
      %v7622 = vpop.f32.mrb[0].mxu0
      %v7623 = vadd.f32 0.0, %v7622
      %7624 = vmatprep.mubr.bf16.mxu0 %v7312
      %7625 = vmatmul.mubr.bf16.gmra.mrb[0].mxu0 %v7311
      %v7626 = vpop.f32.mrb[0].mxu0
      %v7627 = vadd.f32 0.0, %v7626
      %v7628 = vpop.f32.mrb[0].mxu0
      %v7629 = vadd.f32 0.0, %v7628
      %v7630 = vpop.f32.mrb[0].mxu0
      %v7631 = vadd.f32 0.0, %v7630
      %v7632 = vpop.f32.mrb[0].mxu0
      %v7633 = vadd.f32 0.0, %v7632
      %7634 = vmatprep.mubr.bf16.mxu0 %v7314
      %7635 = vmatmul.mubr.bf16.gmra.mrb[0].mxu0 %v7313
      %v7636 = vpop.f32.mrb[0].mxu0
      %v7637 = vadd.f32 0.0, %v7636
      %v7638 = vpop.f32.mrb[0].mxu0
      %v7639 = vadd.f32 0.0, %v7638
      %v7640 = vpop.f32.mrb[0].mxu0
      %v7641 = vadd.f32 0.0, %v7640
      %v7642 = vpop.f32.mrb[0].mxu0
      %v7643 = vadd.f32 0.0, %v7642
      %7644 = vmatprep.mubr.bf16.mxu0 %v7316
      %7645 = vmatmul.mubr.bf16.gmra.mrb[0].mxu0 %v7315
      %v7646 = vpop.f32.mrb[0].mxu0
      %v7647 = vadd.f32 0.0, %v7646
      %v7648 = vpop.f32.mrb[0].mxu0
      %v7649 = vadd.f32 0.0, %v7648
      %v7650 = vpop.f32.mrb[0].mxu0
      %v7651 = vadd.f32 0.0, %v7650
      %v7652 = vpop.f32.mrb[0].mxu0
      %v7653 = vadd.f32 0.0, %v7652
      %7654 = vmatprep.mubr.bf16.mxu0 %v7318
      %7655 = vmatmul.mubr.bf16.gmra.mrb[0].mxu0 %v7317
      %v7656 = vpop.f32.mrb[0].mxu0
      %v7657 = vadd.f32 0.0, %v7656
      %v7658 = vpop.f32.mrb[0].mxu0
      %v7659 = vadd.f32 0.0, %v7658
      %v7660 = vpop.f32.mrb[0].mxu0
      %v7661 = vadd.f32 0.0, %v7660
      %v7662 = vpop.f32.mrb[0].mxu0
      %v7663 = vadd.f32 0.0, %v7662
      %7664 = vmatprep.mubr.bf16.mxu0 %v7320
      %7665 = vmatmul.mubr.bf16.gmra.mrb[0].mxu0 %v7319
      %v7666 = vpop.f32.mrb[0].mxu0
      %v7667 = vadd.f32 0.0, %v7666
      %v7668 = vpop.f32.mrb[0].mxu0
      %v7669 = vadd.f32 0.0, %v7668
      %v7670 = vpop.f32.mrb[0].mxu0
      %v7671 = vadd.f32 0.0, %v7670
      %v7672 = vpop.f32.mrb[0].mxu0
      %v7673 = vadd.f32 0.0, %v7672
      %7674 = vmatprep.mubr.bf16.mxu0 %v7322
      %7675 = vmatmul.mubr.bf16.gmra.mrb[0].mxu0 %v7321
      %v7676 = vpop.f32.mrb[0].mxu0
      %v7677 = vadd.f32 0.0, %v7676
      %v7678 = vpop.f32.mrb[0].mxu0
      %v7679 = vadd.f32 0.0, %v7678
      %v7680 = vpop.f32.mrb[0].mxu0
      %v7681 = vadd.f32 0.0, %v7680
      %v7682 = vpop.f32.mrb[0].mxu0
      %v7683 = vadd.f32 0.0, %v7682
      %7684 = vmatprep.mubr.bf16.mxu0 %v7324
      %7685 = vmatmul.mubr.bf16.gmra.mrb[0].mxu0 %v7323
      %v7686 = vpop.f32.mrb[0].mxu0
      %v7687 = vadd.f32 0.0, %v7686
      %v7688 = vpop.f32.mrb[0].mxu0
      %v7689 = vadd.f32 0.0, %v7688
      %v7690 = vpop.f32.mrb[0].mxu0
      %v7691 = vadd.f32 0.0, %v7690
      %v7692 = vpop.f32.mrb[0].mxu0
      %v7693 = vadd.f32 0.0, %v7692
      %7694 = vmatprep.mubr.bf16.mxu0 %v7326
      %7695 = vmatmul.mubr.bf16.gmra.mrb[0].mxu0 %v7325
      %v7696 = vpop.f32.mrb[0].mxu0
      %v7697 = vadd.f32 0.0, %v7696
      %v7698 = vpop.f32.mrb[0].mxu0
      %v7699 = vadd.f32 0.0, %v7698
      %v7700 = vpop.f32.mrb[0].mxu0
      %v7701 = vadd.f32 0.0, %v7700
      %v7702 = vpop.f32.mrb[0].mxu0
      %v7703 = vadd.f32 0.0, %v7702
      %7704 = vmatprep.mubr.bf16.mxu0 %v7328
      %7705 = vmatmul.mubr.bf16.gmra.mrb[0].mxu0 %v7327
      %v7706 = vpop.f32.mrb[0].mxu0
      %v7707 = vadd.f32 0.0, %v7706
      %v7708 = vpop.f32.mrb[0].mxu0
      %v7709 = vadd.f32 0.0, %v7708
      %v7710 = vpop.f32.mrb[0].mxu0
      %v7711 = vadd.f32 0.0, %v7710
      %v7712 = vpop.f32.mrb[0].mxu0
      %v7713 = vadd.f32 0.0, %v7712
      %7714 = vmatprep.mubr.bf16.mxu0 %v7330
      %7715 = vmatmul.mubr.bf16.gmra.mrb[0].mxu0 %v7329
      %v7716 = vpop.f32.mrb[0].mxu0
      %v7717 = vadd.f32 0.0, %v7716
      %v7718 = vpop.f32.mrb[0].mxu0
      %v7719 = vadd.f32 0.0, %v7718
      %v7720 = vpop.f32.mrb[0].mxu0
      %v7721 = vadd.f32 0.0, %v7720
      %v7722 = vpop.f32.mrb[0].mxu0
      %v7723 = vadd.f32 0.0, %v7722
      %7724 = vmatprep.mubr.bf16.mxu0 %v7332
      %7725 = vmatmul.mubr.bf16.gmra.mrb[0].mxu0 %v7331
      %v7726 = vpop.f32.mrb[0].mxu0
      %v7727 = vadd.f32 0.0, %v7726
      %v7728 = vpop.f32.mrb[0].mxu0
      %v7729 = vadd.f32 0.0, %v7728
      %v7730 = vpop.f32.mrb[0].mxu0
      %v7731 = vadd.f32 0.0, %v7730
      %v7732 = vpop.f32.mrb[0].mxu0
      %v7733 = vadd.f32 0.0, %v7732
      %7734 = vmatprep.mubr.bf16.mxu0 %v7334
      %7735 = vmatmul.mubr.bf16.gmra.mrb[0].mxu0 %v7333
      %v7736 = vpop.f32.mrb[0].mxu0
      %v7737 = vadd.f32 0.0, %v7736
      %v7738 = vpop.f32.mrb[0].mxu0
      %v7739 = vadd.f32 0.0, %v7738
      %v7740 = vpop.f32.mrb[0].mxu0
      %v7741 = vadd.f32 0.0, %v7740
      %v7742 = vpop.f32.mrb[0].mxu0
      %v7743 = vadd.f32 0.0, %v7742
      %7744 = vmatprep.mubr.bf16.mxu0 %v7336
      %7745 = vmatmul.mubr.bf16.gmra.mrb[0].mxu0 %v7335
      %v7746 = vpop.f32.mrb[0].mxu0
      %v7747 = vadd.f32 0.0, %v7746
      %v7748 = vpop.f32.mrb[0].mxu0
      %v7749 = vadd.f32 0.0, %v7748
      %v7750 = vpop.f32.mrb[0].mxu0
      %v7751 = vadd.f32 0.0, %v7750
      %v7752 = vpop.f32.mrb[0].mxu0
      %v7753 = vadd.f32 0.0, %v7752
      %7754 = vmatprep.mubr.bf16.mxu0 %v7338
      %7755 = vmatmul.mubr.bf16.gmra.mrb[0].mxu0 %v7337
      %v7756 = vpop.f32.mrb[0].mxu0
      %v7757 = vadd.f32 0.0, %v7756
      %v7758 = vpop.f32.mrb[0].mxu0
      %v7759 = vadd.f32 0.0, %v7758
      %v7760 = vpop.f32.mrb[0].mxu0
      %v7761 = vadd.f32 0.0, %v7760
      %v7762 = vpop.f32.mrb[0].mxu0
      %v7763 = vadd.f32 0.0, %v7762
      %7764 = vmatprep.mubr.bf16.mxu0 %v7340
      %7765 = vmatmul.mubr.bf16.gmra.mrb[0].mxu0 %v7339
      %v7766 = vpop.f32.mrb[0].mxu0
      %v7767 = vadd.f32 0.0, %v7766
      %v7768 = vpop.f32.mrb[0].mxu0
      %v7769 = vadd.f32 0.0, %v7768
      %v7770 = vpop.f32.mrb[0].mxu0
      %v7771 = vadd.f32 0.0, %v7770
      %v7772 = vpop.f32.mrb[0].mxu0
      %v7773 = vadd.f32 0.0, %v7772
      %7774 = vmatprep.mubr.bf16.mxu0 %v7342
      %7775 = vmatmul.mubr.bf16.gmra.mrb[0].mxu0 %v7341
      %v7776 = vpop.f32.mrb[0].mxu0
      %v7777 = vadd.f32 0.0, %v7776
      %v7778 = vpop.f32.mrb[0].mxu0
      %v7779 = vadd.f32 0.0, %v7778
      %v7780 = vpop.f32.mrb[0].mxu0
      %v7781 = vadd.f32 0.0, %v7780
      %v7782 = vpop.f32.mrb[0].mxu0
      %v7783 = vadd.f32 0.0, %v7782
      %7784 = vmatprep.mubr.bf16.mxu0 %v7344
      %7785 = vmatmul.mubr.bf16.gmra.mrb[0].mxu0 %v7343
      %v7786 = vpop.f32.mrb[0].mxu0
      %v7787 = vadd.f32 0.0, %v7786
      %v7788 = vpop.f32.mrb[0].mxu0
      %v7789 = vadd.f32 0.0, %v7788
      %v7790 = vpop.f32.mrb[0].mxu0
      %v7791 = vadd.f32 0.0, %v7790
      %v7792 = vpop.f32.mrb[0].mxu0
      %v7793 = vadd.f32 0.0, %v7792
      %7794 = vmatprep.mubr.bf16.mxu0 %v7346
      %7795 = vmatmul.mubr.bf16.gmra.mrb[0].mxu0 %v7345
      %v7796 = vpop.f32.mrb[0].mxu0
      %v7797 = vadd.f32 0.0, %v7796
      %v7798 = vpop.f32.mrb[0].mxu0
      %v7799 = vadd.f32 0.0, %v7798
      %v7800 = vpop.f32.mrb[0].mxu0
      %v7801 = vadd.f32 0.0, %v7800
      %v7802 = vpop.f32.mrb[0].mxu0
      %v7803 = vadd.f32 0.0, %v7802
      %7804 = vmatprep.mubr.bf16.mxu0 %v7348
      %7805 = vmatmul.mubr.bf16.gmra.mrb[0].mxu0 %v7347
      %v7806 = vpop.f32.mrb[0].mxu0
      %v7807 = vadd.f32 0.0, %v7806
      %v7808 = vpop.f32.mrb[0].mxu0
      %v7809 = vadd.f32 0.0, %v7808
      %v7810 = vpop.f32.mrb[0].mxu0
      %v7811 = vadd.f32 0.0, %v7810
      %v7812 = vpop.f32.mrb[0].mxu0
      %v7813 = vadd.f32 0.0, %v7812
      %7814 = vmatprep.mubr.bf16.mxu0 %v7350
      %7815 = vmatmul.mubr.bf16.gmra.mrb[0].mxu0 %v7349
      %v7816 = vpop.f32.mrb[0].mxu0
      %v7817 = vadd.f32 0.0, %v7816
      %v7818 = vpop.f32.mrb[0].mxu0
      %v7819 = vadd.f32 0.0, %v7818
      %v7820 = vpop.f32.mrb[0].mxu0
      %v7821 = vadd.f32 0.0, %v7820
      %v7822 = vpop.f32.mrb[0].mxu0
      %v7823 = vadd.f32 0.0, %v7822
      %7824 = vmatprep.mubr.bf16.mxu0 %v7352
      %7825 = vmatmul.mubr.bf16.gmra.mrb[0].mxu0 %v7351
      %v7826 = vpop.f32.mrb[0].mxu0
      %v7827 = vadd.f32 0.0, %v7826
      %v7828 = vpop.f32.mrb[0].mxu0
      %v7829 = vadd.f32 0.0, %v7828
      %v7830 = vpop.f32.mrb[0].mxu0
      %v7831 = vadd.f32 0.0, %v7830
      %v7832 = vpop.f32.mrb[0].mxu0
      %v7833 = vadd.f32 0.0, %v7832
      %7834 = vmatprep.mubr.bf16.mxu0 %v7354
      %7835 = vmatmul.mubr.bf16.gmra.mrb[0].mxu0 %v7353
      %v7836 = vpop.f32.mrb[0].mxu0
      %v7837 = vadd.f32 0.0, %v7836
      %v7838 = vpop.f32.mrb[0].mxu0
      %v7839 = vadd.f32 0.0, %v7838
      %v7840 = vpop.f32.mrb[0].mxu0
      %v7841 = vadd.f32 0.0, %v7840
      %v7842 = vpop.f32.mrb[0].mxu0
      %v7843 = vadd.f32 0.0, %v7842
      %7844 = vmatprep.mubr.bf16.mxu0 %v7356
      %7845 = vmatmul.mubr.bf16.gmra.mrb[0].mxu0 %v7355
      %v7846 = vpop.f32.mrb[0].mxu0
      %v7847 = vadd.f32 0.0, %v7846
      %v7848 = vpop.f32.mrb[0].mxu0
      %v7849 = vadd.f32 0.0, %v7848
      %v7850 = vpop.f32.mrb[0].mxu0
      %v7851 = vadd.f32 0.0, %v7850
      %v7852 = vpop.f32.mrb[0].mxu0
      %v7853 = vadd.f32 0.0, %v7852
      %7854 = vmatprep.mubr.bf16.mxu0 %v7358
      %7855 = vmatmul.mubr.bf16.gmra.mrb[0].mxu0 %v7357
      %v7856 = vpop.f32.mrb[0].mxu0
      %v7857 = vadd.f32 0.0, %v7856
      %v7858 = vpop.f32.mrb[0].mxu0
      %v7859 = vadd.f32 0.0, %v7858
      %v7860 = vpop.f32.mrb[0].mxu0
      %v7861 = vadd.f32 0.0, %v7860
      %v7862 = vpop.f32.mrb[0].mxu0
      %v7863 = vadd.f32 0.0, %v7862
      %7864 = vmatprep.mubr.bf16.mxu0 %v7360
      %7865 = vmatmul.mubr.bf16.gmra.mrb[0].mxu0 %v7359
      %v7866 = vpop.f32.mrb[0].mxu0
      %v7867 = vadd.f32 0.0, %v7866
      %v7868 = vpop.f32.mrb[0].mxu0
      %v7869 = vadd.f32 0.0, %v7868
      %v7870 = vpop.f32.mrb[0].mxu0
      %v7871 = vadd.f32 0.0, %v7870
      %v7872 = vpop.f32.mrb[0].mxu0
      %v7873 = vadd.f32 0.0, %v7872
      %7874 = vmatprep.mubr.bf16.mxu0 %v7362
      %7875 = vmatmul.mubr.bf16.gmra.mrb[0].mxu0 %v7361
      %v7876 = vpop.f32.mrb[0].mxu0
      %v7877 = vadd.f32 0.0, %v7876
      %v7878 = vpop.f32.mrb[0].mxu0
      %v7879 = vadd.f32 0.0, %v7878
      %v7880 = vpop.f32.mrb[0].mxu0
      %v7881 = vadd.f32 0.0, %v7880
      %v7882 = vpop.f32.mrb[0].mxu0
      %v7883 = vadd.f32 0.0, %v7882
      %7884 = vmatprep.mubr.bf16.mxu0 %v7364
      %7885 = vmatmul.mubr.bf16.gmra.mrb[0].mxu0 %v7363
      %v7886 = vpop.f32.mrb[0].mxu0
      %v7887 = vadd.f32 0.0, %v7886
      %v7888 = vpop.f32.mrb[0].mxu0
      %v7889 = vadd.f32 0.0, %v7888
      %v7890 = vpop.f32.mrb[0].mxu0
      %v7891 = vadd.f32 0.0, %v7890
      %v7892 = vpop.f32.mrb[0].mxu0
      %v7893 = vadd.f32 0.0, %v7892
      %7894 = vmatprep.mubr.bf16.mxu0 %v7366
      %7895 = vmatmul.mubr.bf16.gmra.mrb[0].mxu0 %v7365
      %v7896 = vpop.f32.mrb[0].mxu0
      %v7897 = vadd.f32 0.0, %v7896
      %v7898 = vpop.f32.mrb[0].mxu0
      %v7899 = vadd.f32 0.0, %v7898
      %v7900 = vpop.f32.mrb[0].mxu0
      %v7901 = vadd.f32 0.0, %v7900
      %v7902 = vpop.f32.mrb[0].mxu0
      %v7903 = vadd.f32 0.0, %v7902
      %7904 = vmatprep.mubr.bf16.mxu0 %v7368
      %7905 = vmatmul.mubr.bf16.gmra.mrb[0].mxu0 %v7367
      %v7906 = vpop.f32.mrb[0].mxu0
      %v7907 = vadd.f32 0.0, %v7906
      %v7908 = vpop.f32.mrb[0].mxu0
      %v7909 = vadd.f32 0.0, %v7908
      %v7910 = vpop.f32.mrb[0].mxu0
      %v7911 = vadd.f32 0.0, %v7910
      %v7912 = vpop.f32.mrb[0].mxu0
      %v7913 = vadd.f32 0.0, %v7912
      %7914 = vdwg.mxu0
      %v7915 = vpack.c.bf16 %v7601, %v7597
      %v7916 = vpack.c.bf16 %v7603, %v7599
      %v7917 = vpack.c.bf16 %v7611, %v7607
      %v7918 = vpack.c.bf16 %v7613, %v7609
      %v7919 = vpack.c.bf16 %v7621, %v7617
      %v7920 = vpack.c.bf16 %v7623, %v7619
      %v7921 = vpack.c.bf16 %v7631, %v7627
      %v7922 = vpack.c.bf16 %v7633, %v7629
      %v7923 = vpack.c.bf16 %v7641, %v7637
      %v7924 = vpack.c.bf16 %v7643, %v7639
      %v7925 = vpack.c.bf16 %v7651, %v7647
      %v7926 = vpack.c.bf16 %v7653, %v7649
      %v7927 = vpack.c.bf16 %v7661, %v7657
      %v7928 = vpack.c.bf16 %v7663, %v7659
      %v7929 = vpack.c.bf16 %v7671, %v7667
      %v7930 = vpack.c.bf16 %v7673, %v7669
      %v7931 = vpack.c.bf16 %v7681, %v7677
      %v7932 = vpack.c.bf16 %v7683, %v7679
      %v7933 = vpack.c.bf16 %v7691, %v7687
      %v7934 = vpack.c.bf16 %v7693, %v7689
      %v7935 = vpack.c.bf16 %v7701, %v7697
      %v7936 = vpack.c.bf16 %v7703, %v7699
      %v7937 = vpack.c.bf16 %v7711, %v7707
      %v7938 = vpack.c.bf16 %v7713, %v7709
      %v7939 = vpack.c.bf16 %v7721, %v7717
      %v7940 = vpack.c.bf16 %v7723, %v7719
      %v7941 = vpack.c.bf16 %v7731, %v7727
      %v7942 = vpack.c.bf16 %v7733, %v7729
      %v7943 = vpack.c.bf16 %v7741, %v7737
      %v7944 = vpack.c.bf16 %v7743, %v7739
      %v7945 = vpack.c.bf16 %v7751, %v7747
      %v7946 = vpack.c.bf16 %v7753, %v7749
      %v7947 = vpack.c.bf16 %v7761, %v7757
      %v7948 = vpack.c.bf16 %v7763, %v7759
      %v7949 = vpack.c.bf16 %v7771, %v7767
      %v7950 = vpack.c.bf16 %v7773, %v7769
      %v7951 = vpack.c.bf16 %v7781, %v7777
      %v7952 = vpack.c.bf16 %v7783, %v7779
      %v7953 = vpack.c.bf16 %v7791, %v7787
      %v7954 = vpack.c.bf16 %v7793, %v7789
      %v7955 = vpack.c.bf16 %v7801, %v7797
      %v7956 = vpack.c.bf16 %v7803, %v7799
      %v7957 = vpack.c.bf16 %v7811, %v7807
      %v7958 = vpack.c.bf16 %v7813, %v7809
      %v7959 = vpack.c.bf16 %v7821, %v7817
      %v7960 = vpack.c.bf16 %v7823, %v7819
      %v7961 = vpack.c.bf16 %v7831, %v7827
      %v7962 = vpack.c.bf16 %v7833, %v7829
      %v7963 = vpack.c.bf16 %v7841, %v7837
      %v7964 = vpack.c.bf16 %v7843, %v7839
      %v7965 = vpack.c.bf16 %v7851, %v7847
      %v7966 = vpack.c.bf16 %v7853, %v7849
      %v7967 = vpack.c.bf16 %v7861, %v7857
      %v7968 = vpack.c.bf16 %v7863, %v7859
      %v7969 = vpack.c.bf16 %v7871, %v7867
      %v7970 = vpack.c.bf16 %v7873, %v7869
      %v7971 = vpack.c.bf16 %v7881, %v7877
      %v7972 = vpack.c.bf16 %v7883, %v7879
      %v7973 = vpack.c.bf16 %v7891, %v7887
      %v7974 = vpack.c.bf16 %v7893, %v7889
      %v7975 = vpack.c.bf16 %v7901, %v7897
      %v7976 = vpack.c.bf16 %v7903, %v7899
      %v7977 = vpack.c.bf16 %v7911, %v7907
      %v7978 = vpack.c.bf16 %v7913, %v7909
      %v7979 = vshrl.u32 %v7225, 16
      %v7980 = vpack.i.b16 %v7979, %v7979
      %v7982 = vlaneseq
      %v7983 = vshrl.u32 %v7982, 7
      %v7984 = vsub.s32 3, %v7983
      %v7985 = vrot.slane %v7980, %v7984
      %v7986 = vshrl.u32 %v7226, 16
      %v7987 = vpack.i.b16 %v7986, %v7986
      %v7989 = vlaneseq
      %v7990 = vshrl.u32 %v7989, 7
      %v7991 = vsub.s32 3, %v7990
      %v7992 = vrot.slane %v7987, %v7991
      %v7993 = vadd.bf16 %v7915, %v7985
      %v7994 = vadd.bf16 %v7916, %v7992
      %v7995 = vadd.bf16 %v7917, %v7985
      %v7996 = vadd.bf16 %v7918, %v7992
      %v7997 = vadd.bf16 %v7919, %v7985
      %v7998 = vadd.bf16 %v7920, %v7992
      %v7999 = vadd.bf16 %v7921, %v7985
      %v8000 = vadd.bf16 %v7922, %v7992
      %v8001 = vadd.bf16 %v7923, %v7985
      %v8002 = vadd.bf16 %v7924, %v7992
      %v8003 = vadd.bf16 %v7925, %v7985
      %v8004 = vadd.bf16 %v7926, %v7992
      %v8005 = vadd.bf16 %v7927, %v7985
      %v8006 = vadd.bf16 %v7928, %v7992
      %v8007 = vadd.bf16 %v7929, %v7985
      %v8008 = vadd.bf16 %v7930, %v7992
      %v8009 = vadd.bf16 %v7931, %v7985
      %v8010 = vadd.bf16 %v7932, %v7992
      %v8011 = vadd.bf16 %v7933, %v7985
      %v8012 = vadd.bf16 %v7934, %v7992
      %v8013 = vadd.bf16 %v7935, %v7985
      %v8014 = vadd.bf16 %v7936, %v7992
      %v8015 = vadd.bf16 %v7937, %v7985
      %v8016 = vadd.bf16 %v7938, %v7992
      %v8017 = vadd.bf16 %v7939, %v7985
      %v8018 = vadd.bf16 %v7940, %v7992
      %v8019 = vadd.bf16 %v7941, %v7985
      %v8020 = vadd.bf16 %v7942, %v7992
      %v8021 = vadd.bf16 %v7943, %v7985
      %v8022 = vadd.bf16 %v7944, %v7992
      %v8023 = vadd.bf16 %v7945, %v7985
      %v8024 = vadd.bf16 %v7946, %v7992
      %v8025 = vadd.bf16 %v7947, %v7985
      %v8026 = vadd.bf16 %v7948, %v7992
      %v8027 = vadd.bf16 %v7949, %v7985
      %v8028 = vadd.bf16 %v7950, %v7992
      %v8029 = vadd.bf16 %v7951, %v7985
      %v8030 = vadd.bf16 %v7952, %v7992
      %v8031 = vadd.bf16 %v7953, %v7985
      %v8032 = vadd.bf16 %v7954, %v7992
      %v8033 = vadd.bf16 %v7955, %v7985
      %v8034 = vadd.bf16 %v7956, %v7992
      %v8035 = vadd.bf16 %v7957, %v7985
      %v8036 = vadd.bf16 %v7958, %v7992
      %v8037 = vadd.bf16 %v7959, %v7985
      %v8038 = vadd.bf16 %v7960, %v7992
      %v8039 = vadd.bf16 %v7961, %v7985
      %v8040 = vadd.bf16 %v7962, %v7992
      %v8041 = vadd.bf16 %v7963, %v7985
      %v8042 = vadd.bf16 %v7964, %v7992
      %v8043 = vadd.bf16 %v7965, %v7985
      %v8044 = vadd.bf16 %v7966, %v7992
      %v8045 = vadd.bf16 %v7967, %v7985
      %v8046 = vadd.bf16 %v7968, %v7992
      %v8047 = vadd.bf16 %v7969, %v7985
      %v8048 = vadd.bf16 %v7970, %v7992
      %v8049 = vadd.bf16 %v7971, %v7985
      %v8050 = vadd.bf16 %v7972, %v7992
      %v8051 = vadd.bf16 %v7973, %v7985
      %v8052 = vadd.bf16 %v7974, %v7992
      %v8053 = vadd.bf16 %v7975, %v7985
      %v8054 = vadd.bf16 %v7976, %v7992
      %v8055 = vadd.bf16 %v7977, %v7985
      %v8056 = vadd.bf16 %v7978, %v7992
      %v8057 = vmax.bf16 %v7993, 0
      %v8058 = vmax.bf16 %v7994, 0
      %v8059 = vmax.bf16 %v7995, 0
      %v8060 = vmax.bf16 %v7996, 0
      %v8061 = vmax.bf16 %v7997, 0
      %v8062 = vmax.bf16 %v7998, 0
      %v8063 = vmax.bf16 %v7999, 0
      %v8064 = vmax.bf16 %v8000, 0
      %v8065 = vmax.bf16 %v8001, 0
      %v8066 = vmax.bf16 %v8002, 0
      %v8067 = vmax.bf16 %v8003, 0
      %v8068 = vmax.bf16 %v8004, 0
      %v8069 = vmax.bf16 %v8005, 0
      %v8070 = vmax.bf16 %v8006, 0
      %v8071 = vmax.bf16 %v8007, 0
      %v8072 = vmax.bf16 %v8008, 0
      %v8073 = vmax.bf16 %v8009, 0
      %v8074 = vmax.bf16 %v8010, 0
      %v8075 = vmax.bf16 %v8011, 0
      %v8076 = vmax.bf16 %v8012, 0
      %v8077 = vmax.bf16 %v8013, 0
      %v8078 = vmax.bf16 %v8014, 0
      %v8079 = vmax.bf16 %v8015, 0
      %v8080 = vmax.bf16 %v8016, 0
      %v8081 = vmax.bf16 %v8017, 0
      %v8082 = vmax.bf16 %v8018, 0
      %v8083 = vmax.bf16 %v8019, 0
      %v8084 = vmax.bf16 %v8020, 0
      %v8085 = vmax.bf16 %v8021, 0
      %v8086 = vmax.bf16 %v8022, 0
      %v8087 = vmax.bf16 %v8023, 0
      %v8088 = vmax.bf16 %v8024, 0
      %v8089 = vmax.bf16 %v8025, 0
      %v8090 = vmax.bf16 %v8026, 0
      %v8091 = vmax.bf16 %v8027, 0
      %v8092 = vmax.bf16 %v8028, 0
      %v8093 = vmax.bf16 %v8029, 0
      %v8094 = vmax.bf16 %v8030, 0
      %v8095 = vmax.bf16 %v8031, 0
      %v8096 = vmax.bf16 %v8032, 0
      %v8097 = vmax.bf16 %v8033, 0
      %v8098 = vmax.bf16 %v8034, 0
      %v8099 = vmax.bf16 %v8035, 0
      %v8100 = vmax.bf16 %v8036, 0
      %v8101 = vmax.bf16 %v8037, 0
      %v8102 = vmax.bf16 %v8038, 0
      %v8103 = vmax.bf16 %v8039, 0
      %v8104 = vmax.bf16 %v8040, 0
      %v8105 = vmax.bf16 %v8041, 0
      %v8106 = vmax.bf16 %v8042, 0
      %v8107 = vmax.bf16 %v8043, 0
      %v8108 = vmax.bf16 %v8044, 0
      %v8109 = vmax.bf16 %v8045, 0
      %v8110 = vmax.bf16 %v8046, 0
      %v8111 = vmax.bf16 %v8047, 0
      %v8112 = vmax.bf16 %v8048, 0
      %v8113 = vmax.bf16 %v8049, 0
      %v8114 = vmax.bf16 %v8050, 0
      %v8115 = vmax.bf16 %v8051, 0
      %v8116 = vmax.bf16 %v8052, 0
      %v8117 = vmax.bf16 %v8053, 0
      %v8118 = vmax.bf16 %v8054, 0
      %v8119 = vmax.bf16 %v8055, 0
      %v8120 = vmax.bf16 %v8056, 0
      %v8121 = vld [vmem:[%s4] sm:$0xf]
      %v8122 = vld [vmem:[%s4 + $0x4] sm:$0xf]
      %v8123 = vld [vmem:[%s4 + $0x8] sm:$0xf]
      %v8124 = vld [vmem:[%s4 + $0xc] sm:$0xf]
      %v8125 = vld [vmem:[%s4 + $0x10] sm:$0xf]
      %v8126 = vld [vmem:[%s4 + $0x14] sm:$0xf]
      %v8127 = vld [vmem:[%s4 + $0x18] sm:$0xf]
      %v8128 = vld [vmem:[%s4 + $0x1c] sm:$0xf]
      %v8129 = vld [vmem:[%s4 + $0x20] sm:$0xf]
      %v8130 = vld [vmem:[%s4 + $0x24] sm:$0xf]
      %v8131 = vld [vmem:[%s4 + $0x28] sm:$0xf]
      %v8132 = vld [vmem:[%s4 + $0x2c] sm:$0xf]
      %v8133 = vld [vmem:[%s4 + $0x30] sm:$0xf]
      %v8134 = vld [vmem:[%s4 + $0x34] sm:$0xf]
      %v8135 = vld [vmem:[%s4 + $0x38] sm:$0xf]
      %v8136 = vld [vmem:[%s4 + $0x3c] sm:$0xf]
      %v8137 = vld [vmem:[%s4 + $0x40] sm:$0xf]
      %v8138 = vld [vmem:[%s4 + $0x44] sm:$0xf]
      %v8139 = vld [vmem:[%s4 + $0x48] sm:$0xf]
      %v8140 = vld [vmem:[%s4 + $0x4c] sm:$0xf]
      %v8141 = vld [vmem:[%s4 + $0x50] sm:$0xf]
      %v8142 = vld [vmem:[%s4 + $0x54] sm:$0xf]
      %v8143 = vld [vmem:[%s4 + $0x58] sm:$0xf]
      %v8144 = vld [vmem:[%s4 + $0x5c] sm:$0xf]
      %v8145 = vld [vmem:[%s4 + $0x60] sm:$0xf]
      %v8146 = vld [vmem:[%s4 + $0x64] sm:$0xf]
      %v8147 = vld [vmem:[%s4 + $0x68] sm:$0xf]
      %v8148 = vld [vmem:[%s4 + $0x6c] sm:$0xf]
      %v8149 = vld [vmem:[%s4 + $0x70] sm:$0xf]
      %v8150 = vld [vmem:[%s4 + $0x74] sm:$0xf]
      %v8151 = vld [vmem:[%s4 + $0x78] sm:$0xf]
      %v8152 = vld [vmem:[%s4 + $0x7c] sm:$0xf]
      %v8153 = vld [vmem:[%s5] sm:$0x1]
      %v8155 = vlaneseq
      %v8156 = vshrl.u32 %v8155, 7
      %v8157 = vsub.s32 0, %v8156
      %v8158 = vrot.slane %v8153, %v8157
      %v8192 = vunpack.c.l.b16 %v8121
      %v8193 = vunpack.c.l.b16 %v8122
      %v8194 = vunpack.c.l.b16 %v8123
      %v8195 = vunpack.c.l.b16 %v8124
      %v8196 = vunpack.c.l.b16 %v8125
      %v8197 = vunpack.c.l.b16 %v8126
      %v8198 = vunpack.c.l.b16 %v8127
      %v8199 = vunpack.c.l.b16 %v8128
      %v8200 = vunpack.c.l.b16 %v8129
      %v8201 = vunpack.c.l.b16 %v8130
      %v8202 = vunpack.c.l.b16 %v8131
      %v8203 = vunpack.c.l.b16 %v8132
      %v8204 = vunpack.c.l.b16 %v8133
      %v8205 = vunpack.c.l.b16 %v8134
      %v8206 = vunpack.c.l.b16 %v8135
      %v8207 = vunpack.c.l.b16 %v8136
      %v8208 = vunpack.c.l.b16 %v8137
      %v8209 = vunpack.c.l.b16 %v8138
      %v8210 = vunpack.c.l.b16 %v8139
      %v8211 = vunpack.c.l.b16 %v8140
      %v8212 = vunpack.c.l.b16 %v8141
      %v8213 = vunpack.c.l.b16 %v8142
      %v8214 = vunpack.c.l.b16 %v8143
      %v8215 = vunpack.c.l.b16 %v8144
      %v8216 = vunpack.c.l.b16 %v8145
      %v8217 = vunpack.c.l.b16 %v8146
      %v8218 = vunpack.c.l.b16 %v8147
      %v8219 = vunpack.c.l.b16 %v8148
      %v8220 = vunpack.c.l.b16 %v8149
      %v8221 = vunpack.c.l.b16 %v8150
      %v8222 = vunpack.c.l.b16 %v8151
      %v8223 = vunpack.c.l.b16 %v8152
      %v8224 = vpack.c.b16 %v8193, %v8192
      %v8225 = vpack.c.b16 %v8195, %v8194
      %v8226 = vpack.c.b16 %v8197, %v8196
      %v8227 = vpack.c.b16 %v8199, %v8198
      %v8228 = vpack.c.b16 %v8201, %v8200
      %v8229 = vpack.c.b16 %v8203, %v8202
      %v8230 = vpack.c.b16 %v8205, %v8204
      %v8231 = vpack.c.b16 %v8207, %v8206
      %v8232 = vpack.c.b16 %v8209, %v8208
      %v8233 = vpack.c.b16 %v8211, %v8210
      %v8234 = vpack.c.b16 %v8213, %v8212
      %v8235 = vpack.c.b16 %v8215, %v8214
      %v8236 = vpack.c.b16 %v8217, %v8216
      %v8237 = vpack.c.b16 %v8219, %v8218
      %v8238 = vpack.c.b16 %v8221, %v8220
      %v8239 = vpack.c.b16 %v8223, %v8222
      %8256 = vmatprep.subr.bf16.mxu0 0
      %8257 = vmatpush1.bf16.msra.mxu0 %v8224
      %8258 = vmatprep.subr.bf16.mxu0 0
      %8259 = vmatpush1.bf16.msra.mxu0 %v8225
      %8260 = vmatprep.subr.bf16.mxu0 0
      %8261 = vmatpush1.bf16.msra.mxu0 %v8226
      %8262 = vmatprep.subr.bf16.mxu0 0
      %8263 = vmatpush1.bf16.msra.mxu0 %v8227
      %8264 = vmatprep.subr.bf16.mxu0 0
      %8265 = vmatpush1.bf16.msra.mxu0 %v8228
      %8266 = vmatprep.subr.bf16.mxu0 0
      %8267 = vmatpush1.bf16.msra.mxu0 %v8229
      %8268 = vmatprep.subr.bf16.mxu0 0
      %8269 = vmatpush1.bf16.msra.mxu0 %v8230
      %8270 = vmatprep.subr.bf16.mxu0 0
      %8271 = vmatpush1.bf16.msra.mxu0 %v8231
      %8272 = vmatprep.subr.bf16.mxu0 0
      %8273 = vmatpush1.bf16.msra.mxu0 %v8232
      %8274 = vmatprep.subr.bf16.mxu0 0
      %8275 = vmatpush1.bf16.msra.mxu0 %v8233
      %8276 = vmatprep.subr.bf16.mxu0 0
      %8277 = vmatpush1.bf16.msra.mxu0 %v8234
      %8278 = vmatprep.subr.bf16.mxu0 0
      %8279 = vmatpush1.bf16.msra.mxu0 %v8235
      %8280 = vmatprep.subr.bf16.mxu0 0
      %8281 = vmatpush1.bf16.msra.mxu0 %v8236
      %8282 = vmatprep.subr.bf16.mxu0 0
      %8283 = vmatpush1.bf16.msra.mxu0 %v8237
      %8284 = vmatprep.subr.bf16.mxu0 0
      %8285 = vmatpush1.bf16.msra.mxu0 %v8238
      %8286 = vmatprep.subr.bf16.mxu0 0
      %8287 = vmatpush1.bf16.msra.mxu0 %v8239
      %8288 = vmatprep.mubr.bf16.mxu0 %v8058
      %8289 = vmatmul.mubr.bf16.gmra.mrb[0].mxu0 %v8057
      %v8290 = vpop.f32.mrb[0].mxu0
      %v8291 = vadd.f32 %v8158, %v8290
      %v8292 = vpop.f32.mrb[0].mxu0
      %v8293 = vpop.f32.mrb[0].mxu0
      %v8294 = vadd.f32 %v8158, %v8293
      %v8295 = vpop.f32.mrb[0].mxu0
      %8296 = vmatprep.mubr.bf16.mxu0 %v8060
      %8297 = vmatmul.mubr.bf16.gmra.mrb[0].mxu0 %v8059
      %v8298 = vpop.f32.mrb[0].mxu0
      %v8299 = vadd.f32 %v8158, %v8298
      %v8300 = vpop.f32.mrb[0].mxu0
      %v8301 = vpop.f32.mrb[0].mxu0
      %v8302 = vadd.f32 %v8158, %v8301
      %v8303 = vpop.f32.mrb[0].mxu0
      %8304 = vmatprep.mubr.bf16.mxu0 %v8062
      %8305 = vmatmul.mubr.bf16.gmra.mrb[0].mxu0 %v8061
      %v8306 = vpop.f32.mrb[0].mxu0
      %v8307 = vadd.f32 %v8158, %v8306
      %v8308 = vpop.f32.mrb[0].mxu0
      %v8309 = vpop.f32.mrb[0].mxu0
      %v8310 = vadd.f32 %v8158, %v8309
      %v8311 = vpop.f32.mrb[0].mxu0
      %8312 = vmatprep.mubr.bf16.mxu0 %v8064
      %8313 = vmatmul.mubr.bf16.gmra.mrb[0].mxu0 %v8063
      %v8314 = vpop.f32.mrb[0].mxu0
      %v8315 = vadd.f32 %v8158, %v8314
      %v8316 = vpop.f32.mrb[0].mxu0
      %v8317 = vpop.f32.mrb[0].mxu0
      %v8318 = vadd.f32 %v8158, %v8317
      %v8319 = vpop.f32.mrb[0].mxu0
      %8320 = vmatprep.mubr.bf16.mxu0 %v8066
      %8321 = vmatmul.mubr.bf16.gmra.mrb[0].mxu0 %v8065
      %v8322 = vpop.f32.mrb[0].mxu0
      %v8323 = vadd.f32 %v8158, %v8322
      %v8324 = vpop.f32.mrb[0].mxu0
      %v8325 = vpop.f32.mrb[0].mxu0
      %v8326 = vadd.f32 %v8158, %v8325
      %v8327 = vpop.f32.mrb[0].mxu0
      %8328 = vmatprep.mubr.bf16.mxu0 %v8068
      %8329 = vmatmul.mubr.bf16.gmra.mrb[0].mxu0 %v8067
      %v8330 = vpop.f32.mrb[0].mxu0
      %v8331 = vadd.f32 %v8158, %v8330
      %v8332 = vpop.f32.mrb[0].mxu0
      %v8333 = vpop.f32.mrb[0].mxu0
      %v8334 = vadd.f32 %v8158, %v8333
      %v8335 = vpop.f32.mrb[0].mxu0
      %8336 = vmatprep.mubr.bf16.mxu0 %v8070
      %8337 = vmatmul.mubr.bf16.gmra.mrb[0].mxu0 %v8069
      %v8338 = vpop.f32.mrb[0].mxu0
      %v8339 = vadd.f32 %v8158, %v8338
      %v8340 = vpop.f32.mrb[0].mxu0
      %v8341 = vpop.f32.mrb[0].mxu0
      %v8342 = vadd.f32 %v8158, %v8341
      %v8343 = vpop.f32.mrb[0].mxu0
      %8344 = vmatprep.mubr.bf16.mxu0 %v8072
      %8345 = vmatmul.mubr.bf16.gmra.mrb[0].mxu0 %v8071
      %v8346 = vpop.f32.mrb[0].mxu0
      %v8347 = vadd.f32 %v8158, %v8346
      %v8348 = vpop.f32.mrb[0].mxu0
      %v8349 = vpop.f32.mrb[0].mxu0
      %v8350 = vadd.f32 %v8158, %v8349
      %v8351 = vpop.f32.mrb[0].mxu0
      %8352 = vmatprep.mubr.bf16.mxu0 %v8074
      %8353 = vmatmul.mubr.bf16.gmra.mrb[0].mxu0 %v8073
      %v8354 = vpop.f32.mrb[0].mxu0
      %v8355 = vadd.f32 %v8158, %v8354
      %v8356 = vpop.f32.mrb[0].mxu0
      %v8357 = vpop.f32.mrb[0].mxu0
      %v8358 = vadd.f32 %v8158, %v8357
      %v8359 = vpop.f32.mrb[0].mxu0
      %8360 = vmatprep.mubr.bf16.mxu0 %v8076
      %8361 = vmatmul.mubr.bf16.gmra.mrb[0].mxu0 %v8075
      %v8362 = vpop.f32.mrb[0].mxu0
      %v8363 = vadd.f32 %v8158, %v8362
      %v8364 = vpop.f32.mrb[0].mxu0
      %v8365 = vpop.f32.mrb[0].mxu0
      %v8366 = vadd.f32 %v8158, %v8365
      %v8367 = vpop.f32.mrb[0].mxu0
      %8368 = vmatprep.mubr.bf16.mxu0 %v8078
      %8369 = vmatmul.mubr.bf16.gmra.mrb[0].mxu0 %v8077
      %v8370 = vpop.f32.mrb[0].mxu0
      %v8371 = vadd.f32 %v8158, %v8370
      %v8372 = vpop.f32.mrb[0].mxu0
      %v8373 = vpop.f32.mrb[0].mxu0
      %v8374 = vadd.f32 %v8158, %v8373
      %v8375 = vpop.f32.mrb[0].mxu0
      %8376 = vmatprep.mubr.bf16.mxu0 %v8080
      %8377 = vmatmul.mubr.bf16.gmra.mrb[0].mxu0 %v8079
      %v8378 = vpop.f32.mrb[0].mxu0
      %v8379 = vadd.f32 %v8158, %v8378
      %v8380 = vpop.f32.mrb[0].mxu0
      %v8381 = vpop.f32.mrb[0].mxu0
      %v8382 = vadd.f32 %v8158, %v8381
      %v8383 = vpop.f32.mrb[0].mxu0
      %8384 = vmatprep.mubr.bf16.mxu0 %v8082
      %8385 = vmatmul.mubr.bf16.gmra.mrb[0].mxu0 %v8081
      %v8386 = vpop.f32.mrb[0].mxu0
      %v8387 = vadd.f32 %v8158, %v8386
      %v8388 = vpop.f32.mrb[0].mxu0
      %v8389 = vpop.f32.mrb[0].mxu0
      %v8390 = vadd.f32 %v8158, %v8389
      %v8391 = vpop.f32.mrb[0].mxu0
      %8392 = vmatprep.mubr.bf16.mxu0 %v8084
      %8393 = vmatmul.mubr.bf16.gmra.mrb[0].mxu0 %v8083
      %v8394 = vpop.f32.mrb[0].mxu0
      %v8395 = vadd.f32 %v8158, %v8394
      %v8396 = vpop.f32.mrb[0].mxu0
      %v8397 = vpop.f32.mrb[0].mxu0
      %v8398 = vadd.f32 %v8158, %v8397
      %v8399 = vpop.f32.mrb[0].mxu0
      %8400 = vmatprep.mubr.bf16.mxu0 %v8086
      %8401 = vmatmul.mubr.bf16.gmra.mrb[0].mxu0 %v8085
      %v8402 = vpop.f32.mrb[0].mxu0
      %v8403 = vadd.f32 %v8158, %v8402
      %v8404 = vpop.f32.mrb[0].mxu0
      %v8405 = vpop.f32.mrb[0].mxu0
      %v8406 = vadd.f32 %v8158, %v8405
      %v8407 = vpop.f32.mrb[0].mxu0
      %8408 = vmatprep.mubr.bf16.mxu0 %v8088
      %8409 = vmatmul.mubr.bf16.gmra.mrb[0].mxu0 %v8087
      %v8410 = vpop.f32.mrb[0].mxu0
      %v8411 = vadd.f32 %v8158, %v8410
      %v8412 = vpop.f32.mrb[0].mxu0
      %v8413 = vpop.f32.mrb[0].mxu0
      %v8414 = vadd.f32 %v8158, %v8413
      %v8415 = vpop.f32.mrb[0].mxu0
      %8416 = vmatprep.mubr.bf16.mxu0 %v8090
      %8417 = vmatmul.mubr.bf16.gmra.mrb[0].mxu0 %v8089
      %v8418 = vpop.f32.mrb[0].mxu0
      %v8419 = vadd.f32 %v8158, %v8418
      %v8420 = vpop.f32.mrb[0].mxu0
      %v8421 = vpop.f32.mrb[0].mxu0
      %v8422 = vadd.f32 %v8158, %v8421
      %v8423 = vpop.f32.mrb[0].mxu0
      %8424 = vmatprep.mubr.bf16.mxu0 %v8092
      %8425 = vmatmul.mubr.bf16.gmra.mrb[0].mxu0 %v8091
      %v8426 = vpop.f32.mrb[0].mxu0
      %v8427 = vadd.f32 %v8158, %v8426
      %v8428 = vpop.f32.mrb[0].mxu0
      %v8429 = vpop.f32.mrb[0].mxu0
      %v8430 = vadd.f32 %v8158, %v8429
      %v8431 = vpop.f32.mrb[0].mxu0
      %8432 = vmatprep.mubr.bf16.mxu0 %v8094
      %8433 = vmatmul.mubr.bf16.gmra.mrb[0].mxu0 %v8093
      %v8434 = vpop.f32.mrb[0].mxu0
      %v8435 = vadd.f32 %v8158, %v8434
      %v8436 = vpop.f32.mrb[0].mxu0
      %v8437 = vpop.f32.mrb[0].mxu0
      %v8438 = vadd.f32 %v8158, %v8437
      %v8439 = vpop.f32.mrb[0].mxu0
      %8440 = vmatprep.mubr.bf16.mxu0 %v8096
      %8441 = vmatmul.mubr.bf16.gmra.mrb[0].mxu0 %v8095
      %v8442 = vpop.f32.mrb[0].mxu0
      %v8443 = vadd.f32 %v8158, %v8442
      %v8444 = vpop.f32.mrb[0].mxu0
      %v8445 = vpop.f32.mrb[0].mxu0
      %v8446 = vadd.f32 %v8158, %v8445
      %v8447 = vpop.f32.mrb[0].mxu0
      %8448 = vmatprep.mubr.bf16.mxu0 %v8098
      %8449 = vmatmul.mubr.bf16.gmra.mrb[0].mxu0 %v8097
      %v8450 = vpop.f32.mrb[0].mxu0
      %v8451 = vadd.f32 %v8158, %v8450
      %v8452 = vpop.f32.mrb[0].mxu0
      %v8453 = vpop.f32.mrb[0].mxu0
      %v8454 = vadd.f32 %v8158, %v8453
      %v8455 = vpop.f32.mrb[0].mxu0
      %8456 = vmatprep.mubr.bf16.mxu0 %v8100
      %8457 = vmatmul.mubr.bf16.gmra.mrb[0].mxu0 %v8099
      %v8458 = vpop.f32.mrb[0].mxu0
      %v8459 = vadd.f32 %v8158, %v8458
      %v8460 = vpop.f32.mrb[0].mxu0
      %v8461 = vpop.f32.mrb[0].mxu0
      %v8462 = vadd.f32 %v8158, %v8461
      %v8463 = vpop.f32.mrb[0].mxu0
      %8464 = vmatprep.mubr.bf16.mxu0 %v8102
      %8465 = vmatmul.mubr.bf16.gmra.mrb[0].mxu0 %v8101
      %v8466 = vpop.f32.mrb[0].mxu0
      %v8467 = vadd.f32 %v8158, %v8466
      %v8468 = vpop.f32.mrb[0].mxu0
      %v8469 = vpop.f32.mrb[0].mxu0
      %v8470 = vadd.f32 %v8158, %v8469
      %v8471 = vpop.f32.mrb[0].mxu0
      %8472 = vmatprep.mubr.bf16.mxu0 %v8104
      %8473 = vmatmul.mubr.bf16.gmra.mrb[0].mxu0 %v8103
      %v8474 = vpop.f32.mrb[0].mxu0
      %v8475 = vadd.f32 %v8158, %v8474
      %v8476 = vpop.f32.mrb[0].mxu0
      %v8477 = vpop.f32.mrb[0].mxu0
      %v8478 = vadd.f32 %v8158, %v8477
      %v8479 = vpop.f32.mrb[0].mxu0
      %8480 = vmatprep.mubr.bf16.mxu0 %v8106
      %8481 = vmatmul.mubr.bf16.gmra.mrb[0].mxu0 %v8105
      %v8482 = vpop.f32.mrb[0].mxu0
      %v8483 = vadd.f32 %v8158, %v8482
      %v8484 = vpop.f32.mrb[0].mxu0
      %v8485 = vpop.f32.mrb[0].mxu0
      %v8486 = vadd.f32 %v8158, %v8485
      %v8487 = vpop.f32.mrb[0].mxu0
      %8488 = vmatprep.mubr.bf16.mxu0 %v8108
      %8489 = vmatmul.mubr.bf16.gmra.mrb[0].mxu0 %v8107
      %v8490 = vpop.f32.mrb[0].mxu0
      %v8491 = vadd.f32 %v8158, %v8490
      %v8492 = vpop.f32.mrb[0].mxu0
      %v8493 = vpop.f32.mrb[0].mxu0
      %v8494 = vadd.f32 %v8158, %v8493
      %v8495 = vpop.f32.mrb[0].mxu0
      %8496 = vmatprep.mubr.bf16.mxu0 %v8110
      %8497 = vmatmul.mubr.bf16.gmra.mrb[0].mxu0 %v8109
      %v8498 = vpop.f32.mrb[0].mxu0
      %v8499 = vadd.f32 %v8158, %v8498
      %v8500 = vpop.f32.mrb[0].mxu0
      %v8501 = vpop.f32.mrb[0].mxu0
      %v8502 = vadd.f32 %v8158, %v8501
      %v8503 = vpop.f32.mrb[0].mxu0
      %8504 = vmatprep.mubr.bf16.mxu0 %v8112
      %8505 = vmatmul.mubr.bf16.gmra.mrb[0].mxu0 %v8111
      %v8506 = vpop.f32.mrb[0].mxu0
      %v8507 = vadd.f32 %v8158, %v8506
      %v8508 = vpop.f32.mrb[0].mxu0
      %v8509 = vpop.f32.mrb[0].mxu0
      %v8510 = vadd.f32 %v8158, %v8509
      %v8511 = vpop.f32.mrb[0].mxu0
      %8512 = vmatprep.mubr.bf16.mxu0 %v8114
      %8513 = vmatmul.mubr.bf16.gmra.mrb[0].mxu0 %v8113
      %v8514 = vpop.f32.mrb[0].mxu0
      %v8515 = vadd.f32 %v8158, %v8514
      %v8516 = vpop.f32.mrb[0].mxu0
      %v8517 = vpop.f32.mrb[0].mxu0
      %v8518 = vadd.f32 %v8158, %v8517
      %v8519 = vpop.f32.mrb[0].mxu0
      %8520 = vmatprep.mubr.bf16.mxu0 %v8116
      %8521 = vmatmul.mubr.bf16.gmra.mrb[0].mxu0 %v8115
      %v8522 = vpop.f32.mrb[0].mxu0
      %v8523 = vadd.f32 %v8158, %v8522
      %v8524 = vpop.f32.mrb[0].mxu0
      %v8525 = vpop.f32.mrb[0].mxu0
      %v8526 = vadd.f32 %v8158, %v8525
      %v8527 = vpop.f32.mrb[0].mxu0
      %8528 = vmatprep.mubr.bf16.mxu0 %v8118
      %8529 = vmatmul.mubr.bf16.gmra.mrb[0].mxu0 %v8117
      %v8530 = vpop.f32.mrb[0].mxu0
      %v8531 = vadd.f32 %v8158, %v8530
      %v8532 = vpop.f32.mrb[0].mxu0
      %v8533 = vpop.f32.mrb[0].mxu0
      %v8534 = vadd.f32 %v8158, %v8533
      %v8535 = vpop.f32.mrb[0].mxu0
      %8536 = vmatprep.mubr.bf16.mxu0 %v8120
      %8537 = vmatmul.mubr.bf16.gmra.mrb[0].mxu0 %v8119
      %v8538 = vpop.f32.mrb[0].mxu0
      %v8539 = vadd.f32 %v8158, %v8538
      %v8540 = vpop.f32.mrb[0].mxu0
      %v8541 = vpop.f32.mrb[0].mxu0
      %v8542 = vadd.f32 %v8158, %v8541
      %v8543 = vpop.f32.mrb[0].mxu0
      %8544 = vdwg.mxu0
      %vm8545 = vcmask 31744
      %8546 = vst.msk [vmem:[%s253] sm:$0xff] %vm8545, %v8291
      %8547 = vst.msk [vmem:[%s253 + $0x8] sm:$0xff] %vm8545, %v8294
      %8548 = vst.msk [vmem:[%s253 + $0x10] sm:$0xff] %vm8545, %v8299
      %8549 = vst.msk [vmem:[%s253 + $0x18] sm:$0xff] %vm8545, %v8302
      %8550 = vst.msk [vmem:[%s253 + $0x20] sm:$0xff] %vm8545, %v8307
      %8551 = vst.msk [vmem:[%s253 + $0x28] sm:$0xff] %vm8545, %v8310
      %8552 = vst.msk [vmem:[%s253 + $0x30] sm:$0xff] %vm8545, %v8315
      %8553 = vst.msk [vmem:[%s253 + $0x38] sm:$0xff] %vm8545, %v8318
      %8554 = vst.msk [vmem:[%s253 + $0x40] sm:$0xff] %vm8545, %v8323
      %8555 = vst.msk [vmem:[%s253 + $0x48] sm:$0xff] %vm8545, %v8326
      %8556 = vst.msk [vmem:[%s253 + $0x50] sm:$0xff] %vm8545, %v8331
      %8557 = vst.msk [vmem:[%s253 + $0x58] sm:$0xff] %vm8545, %v8334
      %8558 = vst.msk [vmem:[%s253 + $0x60] sm:$0xff] %vm8545, %v8339
      %8559 = vst.msk [vmem:[%s253 + $0x68] sm:$0xff] %vm8545, %v8342
      %8560 = vst.msk [vmem:[%s253 + $0x70] sm:$0xff] %vm8545, %v8347
      %8561 = vst.msk [vmem:[%s253 + $0x78] sm:$0xff] %vm8545, %v8350
      %8562 = vst.msk [vmem:[%s253 + $0x80] sm:$0xff] %vm8545, %v8355
      %8563 = vst.msk [vmem:[%s253 + $0x88] sm:$0xff] %vm8545, %v8358
      %8564 = vst.msk [vmem:[%s253 + $0x90] sm:$0xff] %vm8545, %v8363
      %8565 = vst.msk [vmem:[%s253 + $0x98] sm:$0xff] %vm8545, %v8366
      %8566 = vst.msk [vmem:[%s253 + $0xa0] sm:$0xff] %vm8545, %v8371
      %8567 = vst.msk [vmem:[%s253 + $0xa8] sm:$0xff] %vm8545, %v8374
      %8568 = vst.msk [vmem:[%s253 + $0xb0] sm:$0xff] %vm8545, %v8379
      %8569 = vst.msk [vmem:[%s253 + $0xb8] sm:$0xff] %vm8545, %v8382
      %8570 = vst.msk [vmem:[%s253 + $0xc0] sm:$0xff] %vm8545, %v8387
      %8571 = vst.msk [vmem:[%s253 + $0xc8] sm:$0xff] %vm8545, %v8390
      %8572 = vst.msk [vmem:[%s253 + $0xd0] sm:$0xff] %vm8545, %v8395
      %8573 = vst.msk [vmem:[%s253 + $0xd8] sm:$0xff] %vm8545, %v8398
      %8574 = vst.msk [vmem:[%s253 + $0xe0] sm:$0xff] %vm8545, %v8403
      %8575 = vst.msk [vmem:[%s253 + $0xe8] sm:$0xff] %vm8545, %v8406
      %8576 = vst.msk [vmem:[%s253 + $0xf0] sm:$0xff] %vm8545, %v8411
      %8577 = vst.msk [vmem:[%s253 + $0xf8] sm:$0xff] %vm8545, %v8414
      %8578 = vst.msk [vmem:[%s253 + $0x100] sm:$0xff] %vm8545, %v8419
      %8579 = vst.msk [vmem:[%s253 + $0x108] sm:$0xff] %vm8545, %v8422
      %8580 = vst.msk [vmem:[%s253 + $0x110] sm:$0xff] %vm8545, %v8427
      %8581 = vst.msk [vmem:[%s253 + $0x118] sm:$0xff] %vm8545, %v8430
      %8582 = vst.msk [vmem:[%s253 + $0x120] sm:$0xff] %vm8545, %v8435
      %8583 = vst.msk [vmem:[%s253 + $0x128] sm:$0xff] %vm8545, %v8438
      %8584 = vst.msk [vmem:[%s253 + $0x130] sm:$0xff] %vm8545, %v8443
      %8585 = vst.msk [vmem:[%s253 + $0x138] sm:$0xff] %vm8545, %v8446
      %8586 = vst.msk [vmem:[%s253 + $0x140] sm:$0xff] %vm8545, %v8451
      %8587 = vst.msk [vmem:[%s253 + $0x148] sm:$0xff] %vm8545, %v8454
      %8588 = vst.msk [vmem:[%s253 + $0x150] sm:$0xff] %vm8545, %v8459
      %8589 = vst.msk [vmem:[%s253 + $0x158] sm:$0xff] %vm8545, %v8462
      %8590 = vst.msk [vmem:[%s253 + $0x160] sm:$0xff] %vm8545, %v8467
      %8591 = vst.msk [vmem:[%s253 + $0x168] sm:$0xff] %vm8545, %v8470
      %8592 = vst.msk [vmem:[%s253 + $0x170] sm:$0xff] %vm8545, %v8475
      %8593 = vst.msk [vmem:[%s253 + $0x178] sm:$0xff] %vm8545, %v8478
      %8594 = vst.msk [vmem:[%s253 + $0x180] sm:$0xff] %vm8545, %v8483
      %8595 = vst.msk [vmem:[%s253 + $0x188] sm:$0xff] %vm8545, %v8486
      %8596 = vst.msk [vmem:[%s253 + $0x190] sm:$0xff] %vm8545, %v8491
      %8597 = vst.msk [vmem:[%s253 + $0x198] sm:$0xff] %vm8545, %v8494
      %8598 = vst.msk [vmem:[%s253 + $0x1a0] sm:$0xff] %vm8545, %v8499
      %8599 = vst.msk [vmem:[%s253 + $0x1a8] sm:$0xff] %vm8545, %v8502
      %8600 = vst.msk [vmem:[%s253 + $0x1b0] sm:$0xff] %vm8545, %v8507
      %8601 = vst.msk [vmem:[%s253 + $0x1b8] sm:$0xff] %vm8545, %v8510
      %8602 = vst.msk [vmem:[%s253 + $0x1c0] sm:$0xff] %vm8545, %v8515
      %8603 = vst.msk [vmem:[%s253 + $0x1c8] sm:$0xff] %vm8545, %v8518
      %8604 = vst.msk [vmem:[%s253 + $0x1d0] sm:$0xff] %vm8545, %v8523
      %8605 = vst.msk [vmem:[%s253 + $0x1d8] sm:$0xff] %vm8545, %v8526
      %8606 = vst.msk [vmem:[%s253 + $0x1e0] sm:$0xff] %vm8545, %v8531
      %8607 = vst.msk [vmem:[%s253 + $0x1e8] sm:$0xff] %vm8545, %v8534
      %8608 = vst.msk [vmem:[%s253 + $0x1f0] sm:$0xff] %vm8545, %v8539
      %8609 = vst.msk [vmem:[%s253 + $0x1f8] sm:$0xff] %vm8545, %v8542
      %s8610 = smul.u32 64, %s17
      %p8611 = scmp.lt.s32.totalorder %s8610, 127
      %s8612 = scalar_select %p8611, %s8610, 127
      %s8613 = smul.addr %s8612, 8
      %s8614 = scalar_lea.vmem %s6, %s8613
      // Predicated region
      $region45: #{nerf_forward.1} parent=43 // pred_check
        %p8615 = pneg %p166
      $region46: #{nerf_forward.1} parent=43 // pred_check_branch
        %8617 = sbr.rel (%p8615) target = $region48
      $region47: #{nerf_forward.1} parent=43 // pred_region
        %s8618 = smul.u32 64, %s17
      $region48: #{nerf_forward.1} parent=43 // pred_fallthru
        _
    $region44: #{nerf_forward.1} parent=5 // pred_fallthru
      _
    %p8619 = scmp.le.s32.totalorder 2, %s12
    // Predicated region
    $region49: #{nerf_forward.1} parent=5 // pred_check
      %p8620 = pneg %p8619
    $region50: #{nerf_forward.1} parent=5 // pred_check_branch
      %8622 = sbr.rel (%p8620) target = $region52
    $region51: #{nerf_forward.1} parent=5 // pred_region
      %s8623 = ssub.s32 %s12, 2
      // Predicated region
      $region53: #{nerf_forward.1} parent=51 // pred_check
        %p8624 = pneg %p172
      $region54: #{nerf_forward.1} parent=51 // pred_check_branch
        %8626 = sbr.rel (%p8624) target = $region56
      $region55: #{nerf_forward.1} parent=51 // pred_region
        %s8627 = smul.u32 64, %s18
        %p8628 = scmp.lt.s32.totalorder %s8627, 127
        %s8629 = scalar_select %p8628, %s8627, 127
        %s8630 = smul.addr %s8629, 8
        %s8631 = scalar_lea.vmem %s6, %s8630
      $region56: #{nerf_forward.1} parent=51 // pred_fallthru
        _
    $region52: #{nerf_forward.1} parent=5 // pred_fallthru
      _
  $region6: #{nerf_forward.1} parent=0 // loop_footer
    %s16 = sadd.s32 1, %s12
  $region7: #{nerf_forward.1} parent=0 // loop_footer_branch
    %11 = sbr.rel target = $region3
  $region8: #{nerf_forward.1} parent=0 // loop_exit
    _

</llo_original>
